<compile_context>
chip_gen: v5e
topology: v5e:2x2
jax: 0.10.0
libtpu: 0.0.40
codegen_flags: <defaults>
</compile_context>

<pallas_src>
import functools

import numpy as np
import jax
import jax.numpy as jnp
from jax import lax
from jax.experimental import pallas as pl
from jax.experimental.pallas import tpu as pltpu

EPS = 1e-5

# Budgets sized against v7x (64 MiB VMEM per TensorCore) with headroom;
# v5e / v6e (128 MiB) are automatically comfortable.
_FUSED_VMEM_BUDGET = 40 * 1024 * 1024
_TILED_VMEM_BUDGET = 40 * 1024 * 1024


# ---------------------------------------------------------------------------
# Path 1: fully fused single-call forward (small problems)
# ---------------------------------------------------------------------------

def _fused_kernel(x_ref, w1_ref, b1_ref, g1_ref, be1_ref,
                  w2_ref, b2_ref, g2_ref, be2_ref,
                  w3_ref, b3_ref, out_ref):
    """Whole Projector forward with everything resident in VMEM."""
    inv_n = 1.0 / x_ref.shape[0]

    def linear(a_bf16, w_ref, b_ref):
        return jnp.dot(a_bf16, w_ref[...],
                       preferred_element_type=jnp.float32) + b_ref[...]

    def bn_relu(h, g_ref, be_ref):
        # Exact full-batch BatchNorm: centered (two-pass) variance, all in f32.
        mean = jnp.sum(h, axis=0, keepdims=True) * inv_n
        c = h - mean
        var = jnp.sum(c * c, axis=0, keepdims=True) * inv_n
        a = c * (g_ref[...] * lax.rsqrt(var + EPS)) + be_ref[...]
        return jnp.maximum(a, 0.0).astype(jnp.bfloat16)  # bf16 feeds the MXU

    h1 = linear(x_ref[...].astype(jnp.bfloat16), w1_ref, b1_ref)
    a1 = bn_relu(h1, g1_ref, be1_ref)
    h2 = linear(a1, w2_ref, b2_ref)
    a2 = bn_relu(h2, g2_ref, be2_ref)
    out_ref[...] = linear(a2, w3_ref, b3_ref).astype(out_ref.dtype)


def _fused_footprint_bytes(n, d, p):
    act = n * p
    return int(n * d * 4                    # x (f32)
               + act * 4                    # out (f32)
               + (d * p + 2 * p * p) * 2    # weights (bf16)
               + 8 * p * 4                  # bias / gamma / beta vectors
               + 2 * act * 4                # h1, h2 f32 temporaries
               + 2 * act * 2)               # a1, a2 bf16 temporaries


def _fused_forward(x, p):
    n, d = x.shape
    pdim = p["w1"].shape[1]
    fp = _fused_footprint_bytes(n, d, pdim)
    vmem_limit = int(min(60 * 2**20, max(32 * 2**20, 2 * fp)))
    flops = 2 * n * (d * pdim + 2 * pdim * pdim) + 10 * n * pdim
    bytes_accessed = (n * d * 4 + n * pdim * 4
                      + (d * pdim + 2 * pdim * pdim) * 2 + 8 * pdim * 4)
    # Note: this single-step call runs on one TensorCore (v7x has two); BN's
    # full-batch coupling makes a 2-TC split not worthwhile at fused sizes.
    return pl.pallas_call(
        _fused_kernel,
        out_shape=jax.ShapeDtypeStruct((n, pdim), jnp.float32),
        compiler_params=pltpu.CompilerParams(vmem_limit_bytes=vmem_limit),
        cost_estimate=pl.CostEstimate(flops=int(flops),
                                      transcendentals=int(2 * pdim),
                                      bytes_accessed=int(bytes_accessed)),
    )(x, p["w1"], p["b1"], p["g1"], p["be1"],
      p["w2"], p["b2"], p["g2"], p["be2"],
      p["w3"], p["b3"])


# ---------------------------------------------------------------------------
# Path 2: tiled, pipelined per-layer fallback (large problems)
# ---------------------------------------------------------------------------

def _layer_kernel(*refs, fuse_bn_relu, with_stats, single_k):
    """One grid step of a tiled [BN->ReLU]? -> Linear(+bias) layer."""
    idx = 0
    x_ref = refs[idx]; idx += 1
    if fuse_bn_relu:
        scale_ref, shift_ref = refs[idx], refs[idx + 1]; idx += 2
    w_ref, b_ref = refs[idx], refs[idx + 1]; idx += 2
    out_ref = refs[idx]; idx += 1
    stats_ref = None
    if with_stats:
        stats_ref = refs[idx]; idx += 1
    acc_ref = None if single_k else refs[idx]

    if fuse_bn_relu:
        # Previous layer's BatchNorm (folded scale/shift) + ReLU in f32,
        # then feed the MXU in bf16.
        a = x_ref[...].astype(jnp.float32) * scale_ref[...] + shift_ref[...]
        a = jnp.maximum(a, 0.0).astype(jnp.bfloat16)
    else:
        a = x_ref[...].astype(jnp.bfloat16)

    partial = jnp.dot(a, w_ref[...], preferred_element_type=jnp.float32)

    def finalize(acc):
        h = acc + b_ref[...]                          # f32 (TM, TN)
        out_ref[...] = h.astype(out_ref.dtype)
        if with_stats:
            # Per-feature sum / sum-of-squares over this batch tile via a
            # ones-vector matmul (axis-0 reduction rides the MXU), written
            # with direct sub-view stores (no concatenate/reshape relayout).
            ones = jnp.ones((1, h.shape[0]), jnp.float32)
            stats_ref[:, 0, :] = jnp.dot(ones, h,
                                         preferred_element_type=jnp.float32)
            stats_ref[:, 1, :] = jnp.dot(ones, h * h,
                                         preferred_element_type=jnp.float32)

    if single_k:
        # No accumulator round-trip at all when the contraction fits one tile.
        finalize(partial)
    else:
        k = pl.program_id(2)

        @pl.when(k == 0)
        def _init():
            acc_ref[...] = partial                    # no zero-fill + add

        @pl.when(k > 0)
        def _accum():
            acc_ref[...] += partial

        @pl.when(k == pl.num_programs(2) - 1)
        def _final():
            finalize(acc_ref[...])


def _pick_tile(dim, candidates):
    for c in candidates:
        if c <= dim and dim % c == 0:
            return c
    return dim


def _layer_call(x, w, b, scale=None, shift=None, *, out_dtype, with_stats):
    m, kdim = x.shape
    nout = w.shape[1]
    fuse = scale is not None
    x_bytes = x.dtype.itemsize
    out_bytes = np.dtype(out_dtype).itemsize

    # TM: several batch tiles -> both v7x TensorCores get work, pipeline depth.
    tm = _pick_tile(m, (512, 256, 128, 64, 32, 16, 8))

    def step_bytes(tk, tn):
        # 2-deep buffering on pipelined operands + the f32 accumulator.
        return (2 * (tm * tk * x_bytes + tk * tn * 2 + tm * tn * out_bytes
                     + 2 * tn * 4 + (2 * tk * 4 if fuse else 0))
                + tm * tn * 4)

    # Prefer TN == nout / TK == kdim (weight panel DMA'd once, x activated
    # once) whenever the per-step footprint fits the VMEM budget.
    tn_cands = [c for c in (nout, 2048, 1024, 512, 256, 128)
                if c <= nout and nout % c == 0]
    tk_cands = [c for c in (kdim, 2048, 1024, 512, 256, 128)
                if c <= kdim and kdim % c == 0]
    tn = tk = None
    for cn in tn_cands:
        for ck in tk_cands:
            if step_bytes(ck, cn) < _TILED_VMEM_BUDGET:
                tn, tk = cn, ck
                break
        if tn is not None:
            break
    if tn is None:
        tn, tk = tn_cands[-1], tk_cands[-1]
    if step_bytes(tk, tn) >= 60 * 2**20:
        raise ValueError("Projector tile plan exceeds VMEM; shapes too awkward.")

    n_m, n_n, n_k = m // tm, nout // tn, kdim // tk
    single_k = n_k == 1
    vmem_limit = int(min(60 * 2**20, max(32 * 2**20, 2 * step_bytes(tk, tn))))

    in_specs = [pl.BlockSpec((tm, tk), lambda i, j, k: (i, k))]
    args = [x]
    if fuse:
        vec_spec = pl.BlockSpec((1, tk), lambda i, j, k: (0, k))
        in_specs += [vec_spec, vec_spec]
        args += [scale, shift]
    in_specs += [pl.BlockSpec((tk, tn), lambda i, j, k: (k, j)),
                 pl.BlockSpec((1, tn), lambda i, j, k: (0, j))]
    args += [w, b]

    if with_stats:
        out_shape = (jax.ShapeDtypeStruct((m, nout), out_dtype),
                     jax.ShapeDtypeStruct((n_m, 2, nout), jnp.float32))
        out_specs = (pl.BlockSpec((tm, tn), lambda i, j, k: (i, j)),
                     pl.BlockSpec((1, 2, tn), lambda i, j, k: (i, 0, j)))
    else:
        out_shape = jax.ShapeDtypeStruct((m, nout), out_dtype)
        out_specs = pl.BlockSpec((tm, tn), lambda i, j, k: (i, j))

    flops = 2 * m * kdim * nout + (4 * m * nout if with_stats else 0)
    bytes_accessed = (m * kdim * x_bytes + kdim * nout * w.dtype.itemsize
                      + nout * 4 + m * nout * out_bytes
                      + (n_m * 2 * nout * 4 if with_stats else 0)
                      + (2 * kdim * 4 if fuse else 0))

    return pl.pallas_call(
        functools.partial(_layer_kernel, fuse_bn_relu=fuse,
                          with_stats=with_stats, single_k=single_k),
        out_shape=out_shape,
        grid_spec=pltpu.PrefetchScalarGridSpec(
            num_scalar_prefetch=0,
            grid=(n_m, n_n, n_k),
            in_specs=in_specs,
            out_specs=out_specs,
            scratch_shapes=([] if single_k
                            else [pltpu.VMEM((tm, tn), jnp.float32)])),
        compiler_params=pltpu.CompilerParams(
            dimension_semantics=("parallel", "parallel", "arbitrary"),
            vmem_limit_bytes=vmem_limit),
        cost_estimate=pl.CostEstimate(flops=int(flops), transcendentals=0,
                                      bytes_accessed=int(bytes_accessed)),
    )(*args)


def _finish_bn(stats, n_rows, gamma, beta):
    """Reduce per-batch-tile [sum, sumsq] to folded BN scale/shift ((1,P) f32)."""
    s = jnp.sum(stats, axis=0)                               # (2, P)
    mean = s[0:1] / n_rows
    var = jnp.maximum(s[1:2] / n_rows - mean * mean, 0.0)    # biased batch var
    scale = gamma * lax.rsqrt(var + EPS)
    shift = beta - mean * scale
    return scale, shift


def _tiled_forward(x, p):
    n = x.shape[0]
    # The O(P) reductions between calls are tiny XLA ops; their dispatch is
    # amortized at the large problem sizes for which this path is selected.
    h1, st1 = _layer_call(x, p["w1"], p["b1"],
                          out_dtype=jnp.float32, with_stats=True)
    sc1, sh1 = _finish_bn(st1, n, p["g1"], p["be1"])
    h2, st2 = _layer_call(h1, p["w2"], p["b2"], sc1, sh1,
                          out_dtype=jnp.float32, with_stats=True)
    sc2, sh2 = _finish_bn(st2, n, p["g2"], p["be2"])
    return _layer_call(h2, p["w3"], p["b3"], sc2, sh2,
                       out_dtype=jnp.float32, with_stats=False)


# ---------------------------------------------------------------------------
# Public forward + params
# ---------------------------------------------------------------------------

@functools.partial(jax.jit, static_argnames=("force_tiled",))
def projector_forward(x, params, force_tiled=False):
    n, d = x.shape
    pdim = params["w1"].shape[1]
    if (not force_tiled
            and _fused_footprint_bytes(n, d, pdim) < _FUSED_VMEM_BUDGET):
        return _fused_forward(x, params)
    return _tiled_forward(x, params)


def init_params(key, D, P):
    """PyTorch-default-style init (uniform +-1/sqrt(fan_in)); weights in bf16."""
    ks = jax.random.split(key, 6)

    def lin(kw, kb, fan_in, fan_out):
        bound = 1.0 / np.sqrt(fan_in)
        # stored as (in, out): transpose of PyTorch's (out, in) layout
        w = jax.random.uniform(kw, (fan_in, fan_out), jnp.float32, -bound, bound)
        b = jax.random.uniform(kb, (1, fan_out), jnp.float32, -bound, bound)
        return w.astype(jnp.bfloat16), b

    w1, b1 = lin(ks[0], ks[1], D, P)
    w2, b2 = lin(ks[2], ks[3], P, P)
    w3, b3 = lin(ks[4], ks[5], P, P)
    ones = jnp.ones((1, P), jnp.float32)
    zeros = jnp.zeros((1, P), jnp.float32)
    return dict(w1=w1, b1=b1, g1=ones, be1=zeros,
                w2=w2, b2=b2, g2=ones, be2=zeros,
                w3=w3, b3=b3)


def projector_ref(x, p):
    """Pure-JAX reference: training-mode BatchNorm (batch mean, biased var),
    matmuls in bf16 with f32 accumulation (mirrors the kernel's precision)."""

    def linear(a, w, b):
        return jnp.dot(a.astype(jnp.bfloat16), w,
                       preferred_element_type=jnp.float32) + b

    def bn_relu(h, g, be):
        mean = jnp.mean(h, axis=0, keepdims=True)
        var = jnp.mean((h - mean) ** 2, axis=0, keepdims=True)
        a = (h - mean) * (g * lax.rsqrt(var + EPS)) + be
        return jnp.maximum(a, 0.0)

    h1 = linear(x, p["w1"], p["b1"])
    a1 = bn_relu(h1, p["g1"], p["be1"])
    h2 = linear(a1, p["w2"], p["b2"])
    a2 = bn_relu(h2, p["g2"], p["be2"])
    return linear(a2, p["w3"], p["b3"])


if __name__ == "__main__":
    # Module defaults: D=128, proj_dim=512.  Batch 256 keeps it small while
    # still exercising the full BN-over-batch semantics.
    N, D, P = 256, 128, 512

    key = jax.random.PRNGKey(0)
    kx, kp = jax.random.split(key)
    x = jax.random.normal(kx, (N, D), jnp.float32)
    params = init_params(kp, D, P)

    out_fused = jax.block_until_ready(projector_forward(x, params))
    out_tiled = jax.block_until_ready(
        projector_forward(x, params, force_tiled=True))
    ref = jax.block_until_ready(projector_ref(x, params))

    np.testing.assert_allclose(np.asarray(out_fused), np.asarray(ref),
                               rtol=2e-2, atol=2e-2)
    np.testing.assert_allclose(np.asarray(out_tiled), np.asarray(ref),
                               rtol=2e-2, atol=2e-2)

    print("KERNEL_OK")
</pallas_src>

<mosaic_0001>
module attributes {stable_mosaic.version = 11 : i64} {
  func.func @_fused_kernel(%arg0: memref<256x128xf32, #tpu.memory_space<vmem>>, %arg1: memref<128x512xbf16, #tpu.memory_space<vmem>>, %arg2: memref<1x512xf32, #tpu.memory_space<vmem>>, %arg3: memref<1x512xf32, #tpu.memory_space<vmem>>, %arg4: memref<1x512xf32, #tpu.memory_space<vmem>>, %arg5: memref<512x512xbf16, #tpu.memory_space<vmem>>, %arg6: memref<1x512xf32, #tpu.memory_space<vmem>>, %arg7: memref<1x512xf32, #tpu.memory_space<vmem>>, %arg8: memref<1x512xf32, #tpu.memory_space<vmem>>, %arg9: memref<512x512xbf16, #tpu.memory_space<vmem>>, %arg10: memref<1x512xf32, #tpu.memory_space<vmem>>, %arg11: memref<256x512xf32, #tpu.memory_space<vmem>>) attributes {dimension_semantics = [], scalar_prefetch = 0 : i64, scratch_operands = 0 : i64, tpu.core_type = #tpu.core_type<tc>} {
    %c0 = arith.constant 0 : index
    %c0_0 = arith.constant 0 : index
    %0 = vector.load %arg0[%c0, %c0_0] : memref<256x128xf32, #tpu.memory_space<vmem>>, vector<256x128xf32>
    %1 = arith.truncf %0 : vector<256x128xf32> to vector<256x128xbf16>
    %c0_1 = arith.constant 0 : index
    %c0_2 = arith.constant 0 : index
    %2 = vector.load %arg1[%c0_1, %c0_2] : memref<128x512xbf16, #tpu.memory_space<vmem>>, vector<128x512xbf16>
    %cst = arith.constant dense<0.000000e+00> : vector<256x512xf32>
    %3 = tpu.matmul %1, %2, %cst {dimension_numbers = #tpu.dot_dimension_numbers<[1], [0], [0], [1], [0, 0, 1, 1], [], []>} : vector<256x128xbf16>, vector<128x512xbf16>, vector<256x512xf32> -> vector<256x512xf32>
    %c0_3 = arith.constant 0 : index
    %c0_4 = arith.constant 0 : index
    %4 = vector.load %arg2[%c0_3, %c0_4] : memref<1x512xf32, #tpu.memory_space<vmem>>, vector<1x512xf32>
    %5 = vector.broadcast %4 : vector<1x512xf32> to vector<256x512xf32>
    %6 = arith.addf %3, %5 : vector<256x512xf32>
    %cst_5 = arith.constant dense<0.000000e+00> : vector<512xf32>
    %7 = vector.multi_reduction <add>, %6, %cst_5 [0] : vector<256x512xf32> to vector<512xf32>
    %8 = vector.shape_cast %7 : vector<512xf32> to vector<1x512xf32>
    %cst_6 = arith.constant 3.906250e-03 : f32
    %9 = vector.broadcast %cst_6 : f32 to vector<1x512xf32>
    %10 = arith.mulf %8, %9 : vector<1x512xf32>
    %11 = vector.broadcast %10 : vector<1x512xf32> to vector<256x512xf32>
    %12 = arith.subf %6, %11 : vector<256x512xf32>
    %13 = arith.mulf %12, %12 : vector<256x512xf32>
    %cst_7 = arith.constant dense<0.000000e+00> : vector<512xf32>
    %14 = vector.multi_reduction <add>, %13, %cst_7 [0] : vector<256x512xf32> to vector<512xf32>
    %15 = vector.shape_cast %14 : vector<512xf32> to vector<1x512xf32>
    %cst_8 = arith.constant 3.906250e-03 : f32
    %16 = vector.broadcast %cst_8 : f32 to vector<1x512xf32>
    %17 = arith.mulf %15, %16 : vector<1x512xf32>
    %c0_9 = arith.constant 0 : index
    %c0_10 = arith.constant 0 : index
    %18 = vector.load %arg3[%c0_9, %c0_10] : memref<1x512xf32, #tpu.memory_space<vmem>>, vector<1x512xf32>
    %cst_11 = arith.constant 9.99999974E-6 : f32
    %19 = vector.broadcast %cst_11 : f32 to vector<1x512xf32>
    %20 = arith.addf %17, %19 : vector<1x512xf32>
    %21 = math.rsqrt %20 : vector<1x512xf32>
    %22 = arith.mulf %18, %21 : vector<1x512xf32>
    %23 = vector.broadcast %22 : vector<1x512xf32> to vector<256x512xf32>
    %24 = arith.mulf %12, %23 : vector<256x512xf32>
    %c0_12 = arith.constant 0 : index
    %c0_13 = arith.constant 0 : index
    %25 = vector.load %arg4[%c0_12, %c0_13] : memref<1x512xf32, #tpu.memory_space<vmem>>, vector<1x512xf32>
    %26 = vector.broadcast %25 : vector<1x512xf32> to vector<256x512xf32>
    %27 = arith.addf %24, %26 : vector<256x512xf32>
    %cst_14 = arith.constant 0.000000e+00 : f32
    %28 = vector.broadcast %cst_14 : f32 to vector<256x512xf32>
    %29 = arith.maximumf %27, %28 : vector<256x512xf32>
    %30 = arith.truncf %29 : vector<256x512xf32> to vector<256x512xbf16>
    %c0_15 = arith.constant 0 : index
    %c0_16 = arith.constant 0 : index
    %31 = vector.load %arg5[%c0_15, %c0_16] : memref<512x512xbf16, #tpu.memory_space<vmem>>, vector<512x512xbf16>
    %cst_17 = arith.constant dense<0.000000e+00> : vector<256x512xf32>
    %32 = tpu.matmul %30, %31, %cst_17 {dimension_numbers = #tpu.dot_dimension_numbers<[1], [0], [0], [1], [0, 0, 1, 1], [], []>} : vector<256x512xbf16>, vector<512x512xbf16>, vector<256x512xf32> -> vector<256x512xf32>
    %c0_18 = arith.constant 0 : index
    %c0_19 = arith.constant 0 : index
    %33 = vector.load %arg6[%c0_18, %c0_19] : memref<1x512xf32, #tpu.memory_space<vmem>>, vector<1x512xf32>
    %34 = vector.broadcast %33 : vector<1x512xf32> to vector<256x512xf32>
    %35 = arith.addf %32, %34 : vector<256x512xf32>
    %cst_20 = arith.constant dense<0.000000e+00> : vector<512xf32>
    %36 = vector.multi_reduction <add>, %35, %cst_20 [0] : vector<256x512xf32> to vector<512xf32>
    %37 = vector.shape_cast %36 : vector<512xf32> to vector<1x512xf32>
    %cst_21 = arith.constant 3.906250e-03 : f32
    %38 = vector.broadcast %cst_21 : f32 to vector<1x512xf32>
    %39 = arith.mulf %37, %38 : vector<1x512xf32>
    %40 = vector.broadcast %39 : vector<1x512xf32> to vector<256x512xf32>
    %41 = arith.subf %35, %40 : vector<256x512xf32>
    %42 = arith.mulf %41, %41 : vector<256x512xf32>
    %cst_22 = arith.constant dense<0.000000e+00> : vector<512xf32>
    %43 = vector.multi_reduction <add>, %42, %cst_22 [0] : vector<256x512xf32> to vector<512xf32>
    %44 = vector.shape_cast %43 : vector<512xf32> to vector<1x512xf32>
    %cst_23 = arith.constant 3.906250e-03 : f32
    %45 = vector.broadcast %cst_23 : f32 to vector<1x512xf32>
    %46 = arith.mulf %44, %45 : vector<1x512xf32>
    %c0_24 = arith.constant 0 : index
    %c0_25 = arith.constant 0 : index
    %47 = vector.load %arg7[%c0_24, %c0_25] : memref<1x512xf32, #tpu.memory_space<vmem>>, vector<1x512xf32>
    %cst_26 = arith.constant 9.99999974E-6 : f32
    %48 = vector.broadcast %cst_26 : f32 to vector<1x512xf32>
    %49 = arith.addf %46, %48 : vector<1x512xf32>
    %50 = math.rsqrt %49 : vector<1x512xf32>
    %51 = arith.mulf %47, %50 : vector<1x512xf32>
    %52 = vector.broadcast %51 : vector<1x512xf32> to vector<256x512xf32>
    %53 = arith.mulf %41, %52 : vector<256x512xf32>
    %c0_27 = arith.constant 0 : index
    %c0_28 = arith.constant 0 : index
    %54 = vector.load %arg8[%c0_27, %c0_28] : memref<1x512xf32, #tpu.memory_space<vmem>>, vector<1x512xf32>
    %55 = vector.broadcast %54 : vector<1x512xf32> to vector<256x512xf32>
    %56 = arith.addf %53, %55 : vector<256x512xf32>
    %cst_29 = arith.constant 0.000000e+00 : f32
    %57 = vector.broadcast %cst_29 : f32 to vector<256x512xf32>
    %58 = arith.maximumf %56, %57 : vector<256x512xf32>
    %59 = arith.truncf %58 : vector<256x512xf32> to vector<256x512xbf16>
    %c0_30 = arith.constant 0 : index
    %c0_31 = arith.constant 0 : index
    %60 = vector.load %arg9[%c0_30, %c0_31] : memref<512x512xbf16, #tpu.memory_space<vmem>>, vector<512x512xbf16>
    %cst_32 = arith.constant dense<0.000000e+00> : vector<256x512xf32>
    %61 = tpu.matmul %59, %60, %cst_32 {dimension_numbers = #tpu.dot_dimension_numbers<[1], [0], [0], [1], [0, 0, 1, 1], [], []>} : vector<256x512xbf16>, vector<512x512xbf16>, vector<256x512xf32> -> vector<256x512xf32>
    %c0_33 = arith.constant 0 : index
    %c0_34 = arith.constant 0 : index
    %62 = vector.load %arg10[%c0_33, %c0_34] : memref<1x512xf32, #tpu.memory_space<vmem>>, vector<1x512xf32>
    %63 = vector.broadcast %62 : vector<1x512xf32> to vector<256x512xf32>
    %64 = arith.addf %61, %63 : vector<256x512xf32>
    %c0_35 = arith.constant 0 : index
    %c0_36 = arith.constant 0 : index
    %65 = vector.load %arg11[%c0_35, %c0_36] : memref<256x512xf32, #tpu.memory_space<vmem>>, vector<256x512xf32>
    tpu.vector_store %arg11[%c0_35, %c0_36], %64 {strides = array<i32>} : memref<256x512xf32, #tpu.memory_space<vmem>>, vector<256x512xf32>,
    return
  }
}

</mosaic_0001>

<llo_original>
// kernel: projector_forward.1
$region0: #{projector_forward.1}
  #allocation0 [shape = 'u32[]', space=smem, size = 0x4, offset = 0x4, fixed_abs, tag = 'smem constant byte address 0x4 - core index']
  #allocation1 [shape = 'u32[72,128]{1,0:T(1,128)}', space=vmem, size = 0x9000, scoped, tag = 'internal scratch']
  %s0 = inlined_call_operand.hbm [shape: f32[256,128], index: 0, kind: input, shape index: {}]
  %s1 = inlined_call_operand.hbm [shape: bf16[128,512], index: 1, kind: input, shape index: {}]
  %s2 = inlined_call_operand.hbm [shape: f32[1,512], index: 2, kind: input, shape index: {}]
  %s3 = inlined_call_operand.vmem [shape: f32[1,512], index: 3, kind: input, shape index: {}]
  %s4 = inlined_call_operand.hbm [shape: f32[1,512], index: 4, kind: input, shape index: {}]
  %s5 = inlined_call_operand.hbm [shape: bf16[512,512], index: 5, kind: input, shape index: {}]
  %s6 = inlined_call_operand.hbm [shape: f32[1,512], index: 6, kind: input, shape index: {}]
  %s7 = inlined_call_operand.hbm [shape: f32[1,512], index: 7, kind: input, shape index: {}]
  %s8 = inlined_call_operand.hbm [shape: f32[1,512], index: 8, kind: input, shape index: {}]
  %s9 = inlined_call_operand.hbm [shape: bf16[512,512], index: 9, kind: input, shape index: {}]
  %s10 = inlined_call_operand.hbm [shape: f32[1,512], index: 10, kind: input, shape index: {}]
  %s11 = inlined_call_operand.hbm [shape: f32[256,512], index: 11, kind: output, shape index: {}]
  %s12 = sld [smem:[#allocation0]]
  $region94: #{projector_forward.1} parent=0
    _
  %s14 = ssub.s32 1, %s12
  %s15 = scalar_select 0, %s14, %s12
  $region1: #{projector_forward.1} parent=0
    #allocation2 [shape = 'u8[131072]{0}', space=vmem, size = 0x20000, scoped, tag = 'input window, operand 0, single buffered']
    #allocation3 [shape = 's32[1]{0}', space=sflag, size = 0x4, scoped, tag = 'scoped memory for projector_forward.1']
    #allocation4 [shape = 's32[1]{0}', space=sflag, size = 0x4, scoped, tag = 'scoped memory for projector_forward.1']
    #allocation5 [shape = 'u8[131072]{0}', space=vmem, size = 0x20000, scoped, tag = 'input window, operand 1, single buffered']
    #allocation6 [shape = 's32[1]{0}', space=sflag, size = 0x4, scoped, tag = 'scoped memory for projector_forward.1']
    #allocation7 [shape = 'u8[2048]{0}', space=vmem, size = 0x800, scoped, tag = 'input window, operand 2, single buffered']
    #allocation8 [shape = 'u8[2048]{0}', space=vmem, size = 0x800, scoped, tag = 'input window, operand 4, single buffered']
    #allocation9 [shape = 's32[1]{0}', space=sflag, size = 0x4, scoped, tag = 'scoped memory for projector_forward.1']
    #allocation10 [shape = 'u8[524288]{0}', space=vmem, size = 0x80000, scoped, tag = 'input window, operand 5, single buffered']
    #allocation11 [shape = 'u8[2048]{0}', space=vmem, size = 0x800, scoped, tag = 'input window, operand 6, single buffered']
    #allocation12 [shape = 's32[1]{0}', space=sflag, size = 0x4, scoped, tag = 'scoped memory for projector_forward.1']
    #allocation13 [shape = 'u8[2048]{0}', space=vmem, size = 0x800, scoped, tag = 'input window, operand 7, single buffered']
    #allocation14 [shape = 'u8[2048]{0}', space=vmem, size = 0x800, scoped, tag = 'input window, operand 8, single buffered']
    #allocation15 [shape = 's32[1]{0}', space=sflag, size = 0x4, scoped, tag = 'scoped memory for projector_forward.1']
    #allocation16 [shape = 'u8[524288]{0}', space=vmem, size = 0x80000, scoped, tag = 'input window, operand 9, single buffered']
    #allocation17 [shape = 'u8[2048]{0}', space=vmem, size = 0x800, scoped, tag = 'input window, operand 10, single buffered']
    #allocation18 [shape = 's32[1]{0}', space=sflag, size = 0x4, scoped, tag = 'scoped memory for projector_forward.1']
    #allocation19 [shape = 'u8[524288]{0}', space=vmem, size = 0x80000, scoped, tag = 'output window, operand 0, single buffered']
    %16 = vsyncpa [#allocation3], 0
    %17 = vsyncpa [#allocation6], 0
    %18 = vsyncpa [#allocation9], 0
    %19 = vsyncpa [#allocation12], 0
    %20 = vsyncpa [#allocation15], 0
    %21 = vsyncpa [#allocation18], 0
    %22 = vsyncpa [#allocation4], 0
    // Predicated region
    $region2: #{projector_forward.1} parent=1 // pred_check
      _
    $region3: #{projector_forward.1} parent=1 // pred_check_branch
      %24 = sbr.rel (0) target = $region5
    $region4: #{projector_forward.1} parent=1 // pred_region
      %26 = vsyncadd [#allocation3], 0
      %s27 = sshll.u32 %s0, 4
      %s28 = int_to_ptr.hbm [resolvable:$true] %s27
      %s29 = sshll.u32 [#allocation2], 4
      %s30 = int_to_ptr.vmem [resolvable:$true] %s29
      %35 = dma.hbm_to_vmem [thread:$0]  %s28, 4096, %s30, [#allocation3], 128, 128, 8
    $region5: #{projector_forward.1} parent=1 // pred_fallthru
      _
    // Predicated region
    $region6: #{projector_forward.1} parent=1 // pred_check
      _
    $region7: #{projector_forward.1} parent=1 // pred_check_branch
      %37 = sbr.rel (0) target = $region9
    $region8: #{projector_forward.1} parent=1 // pred_region
      %39 = vsyncadd [#allocation6], 0
      %s40 = sshll.u32 %s1, 4
      %s41 = int_to_ptr.hbm [resolvable:$true] %s40
      %s42 = sshll.u32 [#allocation5], 4
      %s43 = int_to_ptr.vmem [resolvable:$true] %s42
      %48 = dma.hbm_to_vmem [thread:$0]  %s41, 4096, %s43, [#allocation6], 256, 256, 16
    $region9: #{projector_forward.1} parent=1 // pred_fallthru
      _
    // Predicated region
    $region10: #{projector_forward.1} parent=1 // pred_check
      _
    $region11: #{projector_forward.1} parent=1 // pred_check_branch
      %50 = sbr.rel (0) target = $region13
    $region12: #{projector_forward.1} parent=1 // pred_region
      %52 = vsyncadd [#allocation6], 0
      %s54 = sshll.u32 %s2, 4
      %s55 = int_to_ptr.hbm [resolvable:$true] %s54
      %s56 = sshll.u32 [#allocation7], 4
      %s57 = int_to_ptr.vmem [resolvable:$true] %s56
      %59 = dma.hbm_to_vmem [thread:$0]  %s55, 64, %s57, [#allocation6]
    $region13: #{projector_forward.1} parent=1 // pred_fallthru
      _
    // Predicated region
    $region14: #{projector_forward.1} parent=1 // pred_check
      _
    $region15: #{projector_forward.1} parent=1 // pred_check_branch
      %61 = sbr.rel (0) target = $region17
    $region16: #{projector_forward.1} parent=1 // pred_region
      _
    $region17: #{projector_forward.1} parent=1 // pred_fallthru
      _
    // Predicated region
    $region18: #{projector_forward.1} parent=1 // pred_check
      _
    $region19: #{projector_forward.1} parent=1 // pred_check_branch
      %63 = sbr.rel (0) target = $region21
    $region20: #{projector_forward.1} parent=1 // pred_region
      %65 = vsyncadd [#allocation9], 0
      %s67 = sshll.u32 %s4, 4
      %s68 = int_to_ptr.hbm [resolvable:$true] %s67
      %s69 = sshll.u32 [#allocation8], 4
      %s70 = int_to_ptr.vmem [resolvable:$true] %s69
      %72 = dma.hbm_to_vmem [thread:$0]  %s68, 64, %s70, [#allocation9]
    $region21: #{projector_forward.1} parent=1 // pred_fallthru
      _
    // Predicated region
    $region22: #{projector_forward.1} parent=1 // pred_check
      _
    $region23: #{projector_forward.1} parent=1 // pred_check_branch
      %74 = sbr.rel (0) target = $region25
    $region24: #{projector_forward.1} parent=1 // pred_region
      %76 = vsyncadd [#allocation9], 0
      %s77 = sshll.u32 %s5, 4
      %s78 = int_to_ptr.hbm [resolvable:$true] %s77
      %s79 = sshll.u32 [#allocation10], 4
      %s80 = int_to_ptr.vmem [resolvable:$true] %s79
      %85 = dma.hbm_to_vmem [thread:$0]  %s78, 16384, %s80, [#allocation9], 256, 256, 16
    $region25: #{projector_forward.1} parent=1 // pred_fallthru
      _
    // Predicated region
    $region26: #{projector_forward.1} parent=1 // pred_check
      _
    $region27: #{projector_forward.1} parent=1 // pred_check_branch
      %87 = sbr.rel (0) target = $region29
    $region28: #{projector_forward.1} parent=1 // pred_region
      %89 = vsyncadd [#allocation12], 0
      %s91 = sshll.u32 %s6, 4
      %s92 = int_to_ptr.hbm [resolvable:$true] %s91
      %s93 = sshll.u32 [#allocation11], 4
      %s94 = int_to_ptr.vmem [resolvable:$true] %s93
      %96 = dma.hbm_to_vmem [thread:$0]  %s92, 64, %s94, [#allocation12]
    $region29: #{projector_forward.1} parent=1 // pred_fallthru
      _
    // Predicated region
    $region30: #{projector_forward.1} parent=1 // pred_check
      _
    $region31: #{projector_forward.1} parent=1 // pred_check_branch
      %98 = sbr.rel (0) target = $region33
    $region32: #{projector_forward.1} parent=1 // pred_region
      %100 = vsyncadd [#allocation12], 0
      %s102 = sshll.u32 %s7, 4
      %s103 = int_to_ptr.hbm [resolvable:$true] %s102
      %s104 = sshll.u32 [#allocation13], 4
      %s105 = int_to_ptr.vmem [resolvable:$true] %s104
      %107 = dma.hbm_to_vmem [thread:$0]  %s103, 64, %s105, [#allocation12]
    $region33: #{projector_forward.1} parent=1 // pred_fallthru
      _
    // Predicated region
    $region34: #{projector_forward.1} parent=1 // pred_check
      _
    $region35: #{projector_forward.1} parent=1 // pred_check_branch
      %109 = sbr.rel (0) target = $region37
    $region36: #{projector_forward.1} parent=1 // pred_region
      %111 = vsyncadd [#allocation15], 0
      %s113 = sshll.u32 %s8, 4
      %s114 = int_to_ptr.hbm [resolvable:$true] %s113
      %s115 = sshll.u32 [#allocation14], 4
      %s116 = int_to_ptr.vmem [resolvable:$true] %s115
      %118 = dma.hbm_to_vmem [thread:$0]  %s114, 64, %s116, [#allocation15]
    $region37: #{projector_forward.1} parent=1 // pred_fallthru
      _
    // Predicated region
    $region38: #{projector_forward.1} parent=1 // pred_check
      _
    $region39: #{projector_forward.1} parent=1 // pred_check_branch
      %120 = sbr.rel (0) target = $region41
    $region40: #{projector_forward.1} parent=1 // pred_region
      %122 = vsyncadd [#allocation15], 0
      %s123 = sshll.u32 %s9, 4
      %s124 = int_to_ptr.hbm [resolvable:$true] %s123
      %s125 = sshll.u32 [#allocation16], 4
      %s126 = int_to_ptr.vmem [resolvable:$true] %s125
      %131 = dma.hbm_to_vmem [thread:$0]  %s124, 16384, %s126, [#allocation15], 256, 256, 16
    $region41: #{projector_forward.1} parent=1 // pred_fallthru
      _
    // Predicated region
    $region42: #{projector_forward.1} parent=1 // pred_check
      _
    $region43: #{projector_forward.1} parent=1 // pred_check_branch
      %133 = sbr.rel (0) target = $region45
    $region44: #{projector_forward.1} parent=1 // pred_region
      %135 = vsyncadd [#allocation18], 0
      %s137 = sshll.u32 %s10, 4
      %s138 = int_to_ptr.hbm [resolvable:$true] %s137
      %s139 = sshll.u32 [#allocation17], 4
      %s140 = int_to_ptr.vmem [resolvable:$true] %s139
      %142 = dma.hbm_to_vmem [thread:$0]  %s138, 64, %s140, [#allocation18]
    $region45: #{projector_forward.1} parent=1 // pred_fallthru
      _
    // Predicated region
    $region46: #{projector_forward.1} parent=1 // pred_check
      _
    $region47: #{projector_forward.1} parent=1 // pred_check_branch
      %144 = sbr.rel (0) target = $region49
    $region48: #{projector_forward.1} parent=1 // pred_region
      %146 = dma.done [#allocation3], 4096
    $region49: #{projector_forward.1} parent=1 // pred_fallthru
      _
    // Predicated region
    $region50: #{projector_forward.1} parent=1 // pred_check
      _
    $region51: #{projector_forward.1} parent=1 // pred_check_branch
      %148 = sbr.rel (0) target = $region53
    $region52: #{projector_forward.1} parent=1 // pred_region
      %150 = dma.done [#allocation6], 4096
    $region53: #{projector_forward.1} parent=1 // pred_fallthru
      _
    // Predicated region
    $region54: #{projector_forward.1} parent=1 // pred_check
      _
    $region55: #{projector_forward.1} parent=1 // pred_check_branch
      %152 = sbr.rel (0) target = $region57
    $region56: #{projector_forward.1} parent=1 // pred_region
      %154 = dma.done [#allocation6], 64
    $region57: #{projector_forward.1} parent=1 // pred_fallthru
      _
    // Predicated region
    $region58: #{projector_forward.1} parent=1 // pred_check
      _
    $region59: #{projector_forward.1} parent=1 // pred_check_branch
      %156 = sbr.rel (0) target = $region61
    $region60: #{projector_forward.1} parent=1 // pred_region
      %158 = dma.done [#allocation9], 64
    $region61: #{projector_forward.1} parent=1 // pred_fallthru
      _
    // Predicated region
    $region62: #{projector_forward.1} parent=1 // pred_check
      _
    $region63: #{projector_forward.1} parent=1 // pred_check_branch
      %160 = sbr.rel (0) target = $region65
    $region64: #{projector_forward.1} parent=1 // pred_region
      %162 = dma.done [#allocation9], 16384
    $region65: #{projector_forward.1} parent=1 // pred_fallthru
      _
    // Predicated region
    $region66: #{projector_forward.1} parent=1 // pred_check
      _
    $region67: #{projector_forward.1} parent=1 // pred_check_branch
      %164 = sbr.rel (0) target = $region69
    $region68: #{projector_forward.1} parent=1 // pred_region
      %166 = dma.done [#allocation12], 64
    $region69: #{projector_forward.1} parent=1 // pred_fallthru
      _
    // Predicated region
    $region70: #{projector_forward.1} parent=1 // pred_check
      _
    $region71: #{projector_forward.1} parent=1 // pred_check_branch
      %168 = sbr.rel (0) target = $region73
    $region72: #{projector_forward.1} parent=1 // pred_region
      %170 = dma.done [#allocation12], 64
    $region73: #{projector_forward.1} parent=1 // pred_fallthru
      _
    // Predicated region
    $region74: #{projector_forward.1} parent=1 // pred_check
      _
    $region75: #{projector_forward.1} parent=1 // pred_check_branch
      %172 = sbr.rel (0) target = $region77
    $region76: #{projector_forward.1} parent=1 // pred_region
      %174 = dma.done [#allocation15], 64
    $region77: #{projector_forward.1} parent=1 // pred_fallthru
      _
    // Predicated region
    $region78: #{projector_forward.1} parent=1 // pred_check
      _
    $region79: #{projector_forward.1} parent=1 // pred_check_branch
      %176 = sbr.rel (0) target = $region81
    $region80: #{projector_forward.1} parent=1 // pred_region
      %178 = dma.done [#allocation15], 16384
    $region81: #{projector_forward.1} parent=1 // pred_fallthru
      _
    // Predicated region
    $region82: #{projector_forward.1} parent=1 // pred_check
      _
    $region83: #{projector_forward.1} parent=1 // pred_check_branch
      %180 = sbr.rel (0) target = $region85
    $region84: #{projector_forward.1} parent=1 // pred_region
      %182 = dma.done [#allocation18], 64
    $region85: #{projector_forward.1} parent=1 // pred_fallthru
      _
    %v183 = vld [vmem:[#allocation2] sm:$0xff]
    %v184 = vld [vmem:[#allocation2 + $0x8] sm:$0xff]
    %v185 = vld [vmem:[#allocation2 + $0x10] sm:$0xff]
    %v186 = vld [vmem:[#allocation2 + $0x18] sm:$0xff]
    %v187 = vld [vmem:[#allocation2 + $0x20] sm:$0xff]
    %v188 = vld [vmem:[#allocation2 + $0x28] sm:$0xff]
    %v189 = vld [vmem:[#allocation2 + $0x30] sm:$0xff]
    %v190 = vld [vmem:[#allocation2 + $0x38] sm:$0xff]
    %v191 = vld [vmem:[#allocation2 + $0x40] sm:$0xff]
    %v192 = vld [vmem:[#allocation2 + $0x48] sm:$0xff]
    %v193 = vld [vmem:[#allocation2 + $0x50] sm:$0xff]
    %v194 = vld [vmem:[#allocation2 + $0x58] sm:$0xff]
    %v195 = vld [vmem:[#allocation2 + $0x60] sm:$0xff]
    %v196 = vld [vmem:[#allocation2 + $0x68] sm:$0xff]
    %v197 = vld [vmem:[#allocation2 + $0x70] sm:$0xff]
    %v198 = vld [vmem:[#allocation2 + $0x78] sm:$0xff]
    %v199 = vld [vmem:[#allocation2 + $0x80] sm:$0xff]
    %v200 = vld [vmem:[#allocation2 + $0x88] sm:$0xff]
    %v201 = vld [vmem:[#allocation2 + $0x90] sm:$0xff]
    %v202 = vld [vmem:[#allocation2 + $0x98] sm:$0xff]
    %v203 = vld [vmem:[#allocation2 + $0xa0] sm:$0xff]
    %v204 = vld [vmem:[#allocation2 + $0xa8] sm:$0xff]
    %v205 = vld [vmem:[#allocation2 + $0xb0] sm:$0xff]
    %v206 = vld [vmem:[#allocation2 + $0xb8] sm:$0xff]
    %v207 = vld [vmem:[#allocation2 + $0xc0] sm:$0xff]
    %v208 = vld [vmem:[#allocation2 + $0xc8] sm:$0xff]
    %v209 = vld [vmem:[#allocation2 + $0xd0] sm:$0xff]
    %v210 = vld [vmem:[#allocation2 + $0xd8] sm:$0xff]
    %v211 = vld [vmem:[#allocation2 + $0xe0] sm:$0xff]
    %v212 = vld [vmem:[#allocation2 + $0xe8] sm:$0xff]
    %v213 = vld [vmem:[#allocation2 + $0xf0] sm:$0xff]
    %v214 = vld [vmem:[#allocation2 + $0xf8] sm:$0xff]
    %v215 = vpack.c.bf16 %v184, %v183
    %v216 = vpack.c.bf16 %v186, %v185
    %v217 = vpack.c.bf16 %v188, %v187
    %v218 = vpack.c.bf16 %v190, %v189
    %v219 = vpack.c.bf16 %v192, %v191
    %v220 = vpack.c.bf16 %v194, %v193
    %v221 = vpack.c.bf16 %v196, %v195
    %v222 = vpack.c.bf16 %v198, %v197
    %v223 = vpack.c.bf16 %v200, %v199
    %v224 = vpack.c.bf16 %v202, %v201
    %v225 = vpack.c.bf16 %v204, %v203
    %v226 = vpack.c.bf16 %v206, %v205
    %v227 = vpack.c.bf16 %v208, %v207
    %v228 = vpack.c.bf16 %v210, %v209
    %v229 = vpack.c.bf16 %v212, %v211
    %v230 = vpack.c.bf16 %v214, %v213
    %v231 = vld [vmem:[#allocation5] sm:$0xff]
    %v232 = vld [vmem:[#allocation5 + $0x8] sm:$0xff]
    %v233 = vld [vmem:[#allocation5 + $0x10] sm:$0xff]
    %v234 = vld [vmem:[#allocation5 + $0x18] sm:$0xff]
    %v235 = vld [vmem:[#allocation5 + $0x20] sm:$0xff]
    %v236 = vld [vmem:[#allocation5 + $0x28] sm:$0xff]
    %v237 = vld [vmem:[#allocation5 + $0x30] sm:$0xff]
    %v238 = vld [vmem:[#allocation5 + $0x38] sm:$0xff]
    %v239 = vld [vmem:[#allocation5 + $0x40] sm:$0xff]
    %v240 = vld [vmem:[#allocation5 + $0x48] sm:$0xff]
    %v241 = vld [vmem:[#allocation5 + $0x50] sm:$0xff]
    %v242 = vld [vmem:[#allocation5 + $0x58] sm:$0xff]
    %v243 = vld [vmem:[#allocation5 + $0x60] sm:$0xff]
    %v244 = vld [vmem:[#allocation5 + $0x68] sm:$0xff]
    %v245 = vld [vmem:[#allocation5 + $0x70] sm:$0xff]
    %v246 = vld [vmem:[#allocation5 + $0x78] sm:$0xff]
    %v247 = vld [vmem:[#allocation5 + $0x80] sm:$0xff]
    %v248 = vld [vmem:[#allocation5 + $0x88] sm:$0xff]
    %v249 = vld [vmem:[#allocation5 + $0x90] sm:$0xff]
    %v250 = vld [vmem:[#allocation5 + $0x98] sm:$0xff]
    %v251 = vld [vmem:[#allocation5 + $0xa0] sm:$0xff]
    %v252 = vld [vmem:[#allocation5 + $0xa8] sm:$0xff]
    %v253 = vld [vmem:[#allocation5 + $0xb0] sm:$0xff]
    %v254 = vld [vmem:[#allocation5 + $0xb8] sm:$0xff]
    %v255 = vld [vmem:[#allocation5 + $0xc0] sm:$0xff]
    %v256 = vld [vmem:[#allocation5 + $0xc8] sm:$0xff]
    %v257 = vld [vmem:[#allocation5 + $0xd0] sm:$0xff]
    %v258 = vld [vmem:[#allocation5 + $0xd8] sm:$0xff]
    %v259 = vld [vmem:[#allocation5 + $0xe0] sm:$0xff]
    %v260 = vld [vmem:[#allocation5 + $0xe8] sm:$0xff]
    %v261 = vld [vmem:[#allocation5 + $0xf0] sm:$0xff]
    %v262 = vld [vmem:[#allocation5 + $0xf8] sm:$0xff]
    %v263 = vld [vmem:[#allocation7] sm:$0xf]
    %v265 = vperm.slane %v263, 0
    %v266 = vperm.slane %v263, 1
    %v267 = vperm.slane %v263, 2
    %v268 = vperm.slane %v263, 3
    %v305 = vunpack.c.l.b16 %v231
    %v306 = vunpack.c.h.b16 %v231
    %v307 = vunpack.c.l.b16 %v232
    %v308 = vunpack.c.h.b16 %v232
    %v309 = vunpack.c.l.b16 %v233
    %v310 = vunpack.c.h.b16 %v233
    %v311 = vunpack.c.l.b16 %v234
    %v312 = vunpack.c.h.b16 %v234
    %v313 = vunpack.c.l.b16 %v235
    %v314 = vunpack.c.h.b16 %v235
    %v315 = vunpack.c.l.b16 %v236
    %v316 = vunpack.c.h.b16 %v236
    %v317 = vunpack.c.l.b16 %v237
    %v318 = vunpack.c.h.b16 %v237
    %v319 = vunpack.c.l.b16 %v238
    %v320 = vunpack.c.h.b16 %v238
    %v321 = vunpack.c.l.b16 %v239
    %v322 = vunpack.c.h.b16 %v239
    %v323 = vunpack.c.l.b16 %v240
    %v324 = vunpack.c.h.b16 %v240
    %v325 = vunpack.c.l.b16 %v241
    %v326 = vunpack.c.h.b16 %v241
    %v327 = vunpack.c.l.b16 %v242
    %v328 = vunpack.c.h.b16 %v242
    %v329 = vunpack.c.l.b16 %v243
    %v330 = vunpack.c.h.b16 %v243
    %v331 = vunpack.c.l.b16 %v244
    %v332 = vunpack.c.h.b16 %v244
    %v333 = vunpack.c.l.b16 %v245
    %v334 = vunpack.c.h.b16 %v245
    %v335 = vunpack.c.l.b16 %v246
    %v336 = vunpack.c.h.b16 %v246
    %v337 = vunpack.c.l.b16 %v247
    %v338 = vunpack.c.h.b16 %v247
    %v339 = vunpack.c.l.b16 %v248
    %v340 = vunpack.c.h.b16 %v248
    %v341 = vunpack.c.l.b16 %v249
    %v342 = vunpack.c.h.b16 %v249
    %v343 = vunpack.c.l.b16 %v250
    %v344 = vunpack.c.h.b16 %v250
    %v345 = vunpack.c.l.b16 %v251
    %v346 = vunpack.c.h.b16 %v251
    %v347 = vunpack.c.l.b16 %v252
    %v348 = vunpack.c.h.b16 %v252
    %v349 = vunpack.c.l.b16 %v253
    %v350 = vunpack.c.h.b16 %v253
    %v351 = vunpack.c.l.b16 %v254
    %v352 = vunpack.c.h.b16 %v254
    %v353 = vunpack.c.l.b16 %v255
    %v354 = vunpack.c.h.b16 %v255
    %v355 = vunpack.c.l.b16 %v256
    %v356 = vunpack.c.h.b16 %v256
    %v357 = vunpack.c.l.b16 %v257
    %v358 = vunpack.c.h.b16 %v257
    %v359 = vunpack.c.l.b16 %v258
    %v360 = vunpack.c.h.b16 %v258
    %v361 = vunpack.c.l.b16 %v259
    %v362 = vunpack.c.h.b16 %v259
    %v363 = vunpack.c.l.b16 %v260
    %v364 = vunpack.c.h.b16 %v260
    %v365 = vunpack.c.l.b16 %v261
    %v366 = vunpack.c.h.b16 %v261
    %v367 = vunpack.c.l.b16 %v262
    %v368 = vunpack.c.h.b16 %v262
    %v369 = vpack.c.b16 %v309, %v305
    %v370 = vpack.c.b16 %v310, %v306
    %v371 = vpack.c.b16 %v311, %v307
    %v372 = vpack.c.b16 %v312, %v308
    %v373 = vpack.c.b16 %v317, %v313
    %v374 = vpack.c.b16 %v318, %v314
    %v375 = vpack.c.b16 %v319, %v315
    %v376 = vpack.c.b16 %v320, %v316
    %v377 = vpack.c.b16 %v325, %v321
    %v378 = vpack.c.b16 %v326, %v322
    %v379 = vpack.c.b16 %v327, %v323
    %v380 = vpack.c.b16 %v328, %v324
    %v381 = vpack.c.b16 %v333, %v329
    %v382 = vpack.c.b16 %v334, %v330
    %v383 = vpack.c.b16 %v335, %v331
    %v384 = vpack.c.b16 %v336, %v332
    %v385 = vpack.c.b16 %v341, %v337
    %v386 = vpack.c.b16 %v342, %v338
    %v387 = vpack.c.b16 %v343, %v339
    %v388 = vpack.c.b16 %v344, %v340
    %v389 = vpack.c.b16 %v349, %v345
    %v390 = vpack.c.b16 %v350, %v346
    %v391 = vpack.c.b16 %v351, %v347
    %v392 = vpack.c.b16 %v352, %v348
    %v393 = vpack.c.b16 %v357, %v353
    %v394 = vpack.c.b16 %v358, %v354
    %v395 = vpack.c.b16 %v359, %v355
    %v396 = vpack.c.b16 %v360, %v356
    %v397 = vpack.c.b16 %v365, %v361
    %v398 = vpack.c.b16 %v366, %v362
    %v399 = vpack.c.b16 %v367, %v363
    %v400 = vpack.c.b16 %v368, %v364
    %433 = vmatpush.bf16.msra.mxu0 %v397
    %434 = vmatpush.bf16.msra.mxu0 %v393
    %435 = vmatpush.bf16.msra.mxu0 %v389
    %436 = vmatpush.bf16.msra.mxu0 %v385
    %437 = vmatpush.bf16.msra.mxu0 %v381
    %438 = vmatpush.bf16.msra.mxu0 %v377
    %439 = vmatpush.bf16.msra.mxu0 %v373
    %440 = vmatpush.bf16.msra.mxu0 %v369
    %441 = vmatmul.bf16.gmra.mxu0 %v215
    %v442 = vpop.f32.mrf.mxu0
    %v443 = vadd.f32 %v265, %v442
    %v444 = vpop.f32.mrf.mxu0
    %v445 = vadd.f32 %v265, %v444
    %446 = vmatmul.bf16.gmra.mxu0 %v216
    %v447 = vpop.f32.mrf.mxu0
    %v448 = vadd.f32 %v265, %v447
    %v449 = vpop.f32.mrf.mxu0
    %v450 = vadd.f32 %v265, %v449
    %451 = vmatmul.bf16.gmra.mxu0 %v217
    %v452 = vpop.f32.mrf.mxu0
    %v453 = vadd.f32 %v265, %v452
    %v454 = vpop.f32.mrf.mxu0
    %v455 = vadd.f32 %v265, %v454
    %456 = vmatmul.bf16.gmra.mxu0 %v218
    %v457 = vpop.f32.mrf.mxu0
    %v458 = vadd.f32 %v265, %v457
    %v459 = vpop.f32.mrf.mxu0
    %v460 = vadd.f32 %v265, %v459
    %461 = vmatmul.bf16.gmra.mxu0 %v219
    %v462 = vpop.f32.mrf.mxu0
    %v463 = vadd.f32 %v265, %v462
    %v464 = vpop.f32.mrf.mxu0
    %v465 = vadd.f32 %v265, %v464
    %466 = vmatmul.bf16.gmra.mxu0 %v220
    %v467 = vpop.f32.mrf.mxu0
    %v468 = vadd.f32 %v265, %v467
    %v469 = vpop.f32.mrf.mxu0
    %v470 = vadd.f32 %v265, %v469
    %471 = vmatmul.bf16.gmra.mxu0 %v221
    %v472 = vpop.f32.mrf.mxu0
    %v473 = vadd.f32 %v265, %v472
    %v474 = vpop.f32.mrf.mxu0
    %v475 = vadd.f32 %v265, %v474
    %476 = vmatmul.bf16.gmra.mxu0 %v222
    %v477 = vpop.f32.mrf.mxu0
    %v478 = vadd.f32 %v265, %v477
    %v479 = vpop.f32.mrf.mxu0
    %v480 = vadd.f32 %v265, %v479
    %481 = vmatmul.bf16.gmra.mxu0 %v223
    %v482 = vpop.f32.mrf.mxu0
    %v483 = vadd.f32 %v265, %v482
    %v484 = vpop.f32.mrf.mxu0
    %v485 = vadd.f32 %v265, %v484
    %486 = vmatmul.bf16.gmra.mxu0 %v224
    %v487 = vpop.f32.mrf.mxu0
    %v488 = vadd.f32 %v265, %v487
    %v489 = vpop.f32.mrf.mxu0
    %v490 = vadd.f32 %v265, %v489
    %491 = vmatmul.bf16.gmra.mxu0 %v225
    %v492 = vpop.f32.mrf.mxu0
    %v493 = vadd.f32 %v265, %v492
    %v494 = vpop.f32.mrf.mxu0
    %v495 = vadd.f32 %v265, %v494
    %496 = vmatmul.bf16.gmra.mxu0 %v226
    %v497 = vpop.f32.mrf.mxu0
    %v498 = vadd.f32 %v265, %v497
    %v499 = vpop.f32.mrf.mxu0
    %v500 = vadd.f32 %v265, %v499
    %501 = vmatmul.bf16.gmra.mxu0 %v227
    %v502 = vpop.f32.mrf.mxu0
    %v503 = vadd.f32 %v265, %v502
    %v504 = vpop.f32.mrf.mxu0
    %v505 = vadd.f32 %v265, %v504
    %506 = vmatmul.bf16.gmra.mxu0 %v228
    %v507 = vpop.f32.mrf.mxu0
    %v508 = vadd.f32 %v265, %v507
    %v509 = vpop.f32.mrf.mxu0
    %v510 = vadd.f32 %v265, %v509
    %511 = vmatmul.bf16.gmra.mxu0 %v229
    %v512 = vpop.f32.mrf.mxu0
    %v513 = vadd.f32 %v265, %v512
    %v514 = vpop.f32.mrf.mxu0
    %v515 = vadd.f32 %v265, %v514
    %516 = vmatmul.bf16.gmra.mxu0 %v230
    %v517 = vpop.f32.mrf.mxu0
    %v518 = vadd.f32 %v265, %v517
    %v519 = vpop.f32.mrf.mxu0
    %v520 = vadd.f32 %v265, %v519
    %521 = vdwg.mxu0
    %522 = vmatpush.bf16.msra.mxu0 %v398
    %523 = vmatpush.bf16.msra.mxu0 %v394
    %524 = vmatpush.bf16.msra.mxu0 %v390
    %525 = vmatpush.bf16.msra.mxu0 %v386
    %526 = vmatpush.bf16.msra.mxu0 %v382
    %527 = vmatpush.bf16.msra.mxu0 %v378
    %528 = vmatpush.bf16.msra.mxu0 %v374
    %529 = vmatpush.bf16.msra.mxu0 %v370
    %530 = vmatmul.bf16.gmra.mxu0 %v215
    %v531 = vpop.f32.mrf.mxu0
    %v532 = vadd.f32 %v266, %v531
    %v533 = vpop.f32.mrf.mxu0
    %v534 = vadd.f32 %v266, %v533
    %535 = vmatmul.bf16.gmra.mxu0 %v216
    %v536 = vpop.f32.mrf.mxu0
    %v537 = vadd.f32 %v266, %v536
    %v538 = vpop.f32.mrf.mxu0
    %v539 = vadd.f32 %v266, %v538
    %540 = vmatmul.bf16.gmra.mxu0 %v217
    %v541 = vpop.f32.mrf.mxu0
    %v542 = vadd.f32 %v266, %v541
    %v543 = vpop.f32.mrf.mxu0
    %v544 = vadd.f32 %v266, %v543
    %545 = vmatmul.bf16.gmra.mxu0 %v218
    %v546 = vpop.f32.mrf.mxu0
    %v547 = vadd.f32 %v266, %v546
    %v548 = vpop.f32.mrf.mxu0
    %v549 = vadd.f32 %v266, %v548
    %550 = vmatmul.bf16.gmra.mxu0 %v219
    %v551 = vpop.f32.mrf.mxu0
    %v552 = vadd.f32 %v266, %v551
    %v553 = vpop.f32.mrf.mxu0
    %v554 = vadd.f32 %v266, %v553
    %555 = vmatmul.bf16.gmra.mxu0 %v220
    %v556 = vpop.f32.mrf.mxu0
    %v557 = vadd.f32 %v266, %v556
    %v558 = vpop.f32.mrf.mxu0
    %v559 = vadd.f32 %v266, %v558
    %560 = vmatmul.bf16.gmra.mxu0 %v221
    %v561 = vpop.f32.mrf.mxu0
    %v562 = vadd.f32 %v266, %v561
    %v563 = vpop.f32.mrf.mxu0
    %v564 = vadd.f32 %v266, %v563
    %565 = vmatmul.bf16.gmra.mxu0 %v222
    %v566 = vpop.f32.mrf.mxu0
    %v567 = vadd.f32 %v266, %v566
    %v568 = vpop.f32.mrf.mxu0
    %v569 = vadd.f32 %v266, %v568
    %570 = vmatmul.bf16.gmra.mxu0 %v223
    %v571 = vpop.f32.mrf.mxu0
    %v572 = vadd.f32 %v266, %v571
    %v573 = vpop.f32.mrf.mxu0
    %v574 = vadd.f32 %v266, %v573
    %575 = vmatmul.bf16.gmra.mxu0 %v224
    %v576 = vpop.f32.mrf.mxu0
    %v577 = vadd.f32 %v266, %v576
    %v578 = vpop.f32.mrf.mxu0
    %v579 = vadd.f32 %v266, %v578
    %580 = vmatmul.bf16.gmra.mxu0 %v225
    %v581 = vpop.f32.mrf.mxu0
    %v582 = vadd.f32 %v266, %v581
    %v583 = vpop.f32.mrf.mxu0
    %v584 = vadd.f32 %v266, %v583
    %585 = vmatmul.bf16.gmra.mxu0 %v226
    %v586 = vpop.f32.mrf.mxu0
    %v587 = vadd.f32 %v266, %v586
    %v588 = vpop.f32.mrf.mxu0
    %v589 = vadd.f32 %v266, %v588
    %590 = vmatmul.bf16.gmra.mxu0 %v227
    %v591 = vpop.f32.mrf.mxu0
    %v592 = vadd.f32 %v266, %v591
    %v593 = vpop.f32.mrf.mxu0
    %v594 = vadd.f32 %v266, %v593
    %595 = vmatmul.bf16.gmra.mxu0 %v228
    %v596 = vpop.f32.mrf.mxu0
    %v597 = vadd.f32 %v266, %v596
    %v598 = vpop.f32.mrf.mxu0
    %v599 = vadd.f32 %v266, %v598
    %600 = vmatmul.bf16.gmra.mxu0 %v229
    %v601 = vpop.f32.mrf.mxu0
    %v602 = vadd.f32 %v266, %v601
    %v603 = vpop.f32.mrf.mxu0
    %v604 = vadd.f32 %v266, %v603
    %605 = vmatmul.bf16.gmra.mxu0 %v230
    %v606 = vpop.f32.mrf.mxu0
    %v607 = vadd.f32 %v266, %v606
    %v608 = vpop.f32.mrf.mxu0
    %v609 = vadd.f32 %v266, %v608
    %610 = vdwg.mxu0
    %611 = vmatpush.bf16.msra.mxu0 %v399
    %612 = vmatpush.bf16.msra.mxu0 %v395
    %613 = vmatpush.bf16.msra.mxu0 %v391
    %614 = vmatpush.bf16.msra.mxu0 %v387
    %615 = vmatpush.bf16.msra.mxu0 %v383
    %616 = vmatpush.bf16.msra.mxu0 %v379
    %617 = vmatpush.bf16.msra.mxu0 %v375
    %618 = vmatpush.bf16.msra.mxu0 %v371
    %619 = vmatmul.bf16.gmra.mxu0 %v215
    %v620 = vpop.f32.mrf.mxu0
    %v621 = vadd.f32 %v267, %v620
    %v622 = vpop.f32.mrf.mxu0
    %v623 = vadd.f32 %v267, %v622
    %624 = vmatmul.bf16.gmra.mxu0 %v216
    %v625 = vpop.f32.mrf.mxu0
    %v626 = vadd.f32 %v267, %v625
    %v627 = vpop.f32.mrf.mxu0
    %v628 = vadd.f32 %v267, %v627
    %629 = vmatmul.bf16.gmra.mxu0 %v217
    %v630 = vpop.f32.mrf.mxu0
    %v631 = vadd.f32 %v267, %v630
    %v632 = vpop.f32.mrf.mxu0
    %v633 = vadd.f32 %v267, %v632
    %634 = vmatmul.bf16.gmra.mxu0 %v218
    %v635 = vpop.f32.mrf.mxu0
    %v636 = vadd.f32 %v267, %v635
    %v637 = vpop.f32.mrf.mxu0
    %v638 = vadd.f32 %v267, %v637
    %639 = vmatmul.bf16.gmra.mxu0 %v219
    %v640 = vpop.f32.mrf.mxu0
    %v641 = vadd.f32 %v267, %v640
    %v642 = vpop.f32.mrf.mxu0
    %v643 = vadd.f32 %v267, %v642
    %644 = vmatmul.bf16.gmra.mxu0 %v220
    %v645 = vpop.f32.mrf.mxu0
    %v646 = vadd.f32 %v267, %v645
    %v647 = vpop.f32.mrf.mxu0
    %v648 = vadd.f32 %v267, %v647
    %649 = vmatmul.bf16.gmra.mxu0 %v221
    %v650 = vpop.f32.mrf.mxu0
    %v651 = vadd.f32 %v267, %v650
    %v652 = vpop.f32.mrf.mxu0
    %v653 = vadd.f32 %v267, %v652
    %654 = vmatmul.bf16.gmra.mxu0 %v222
    %v655 = vpop.f32.mrf.mxu0
    %v656 = vadd.f32 %v267, %v655
    %v657 = vpop.f32.mrf.mxu0
    %v658 = vadd.f32 %v267, %v657
    %659 = vmatmul.bf16.gmra.mxu0 %v223
    %v660 = vpop.f32.mrf.mxu0
    %v661 = vadd.f32 %v267, %v660
    %v662 = vpop.f32.mrf.mxu0
    %v663 = vadd.f32 %v267, %v662
    %664 = vmatmul.bf16.gmra.mxu0 %v224
    %v665 = vpop.f32.mrf.mxu0
    %v666 = vadd.f32 %v267, %v665
    %v667 = vpop.f32.mrf.mxu0
    %v668 = vadd.f32 %v267, %v667
    %669 = vmatmul.bf16.gmra.mxu0 %v225
    %v670 = vpop.f32.mrf.mxu0
    %v671 = vadd.f32 %v267, %v670
    %v672 = vpop.f32.mrf.mxu0
    %v673 = vadd.f32 %v267, %v672
    %674 = vmatmul.bf16.gmra.mxu0 %v226
    %v675 = vpop.f32.mrf.mxu0
    %v676 = vadd.f32 %v267, %v675
    %v677 = vpop.f32.mrf.mxu0
    %v678 = vadd.f32 %v267, %v677
    %679 = vmatmul.bf16.gmra.mxu0 %v227
    %v680 = vpop.f32.mrf.mxu0
    %v681 = vadd.f32 %v267, %v680
    %v682 = vpop.f32.mrf.mxu0
    %v683 = vadd.f32 %v267, %v682
    %684 = vmatmul.bf16.gmra.mxu0 %v228
    %v685 = vpop.f32.mrf.mxu0
    %v686 = vadd.f32 %v267, %v685
    %v687 = vpop.f32.mrf.mxu0
    %v688 = vadd.f32 %v267, %v687
    %689 = vmatmul.bf16.gmra.mxu0 %v229
    %v690 = vpop.f32.mrf.mxu0
    %v691 = vadd.f32 %v267, %v690
    %v692 = vpop.f32.mrf.mxu0
    %v693 = vadd.f32 %v267, %v692
    %694 = vmatmul.bf16.gmra.mxu0 %v230
    %v695 = vpop.f32.mrf.mxu0
    %v696 = vadd.f32 %v267, %v695
    %v697 = vpop.f32.mrf.mxu0
    %v698 = vadd.f32 %v267, %v697
    %699 = vdwg.mxu0
    %700 = vmatpush.bf16.msra.mxu0 %v400
    %701 = vmatpush.bf16.msra.mxu0 %v396
    %702 = vmatpush.bf16.msra.mxu0 %v392
    %703 = vmatpush.bf16.msra.mxu0 %v388
    %704 = vmatpush.bf16.msra.mxu0 %v384
    %705 = vmatpush.bf16.msra.mxu0 %v380
    %706 = vmatpush.bf16.msra.mxu0 %v376
    %707 = vmatpush.bf16.msra.mxu0 %v372
    %708 = vmatmul.bf16.gmra.mxu0 %v215
    %v709 = vpop.f32.mrf.mxu0
    %v710 = vadd.f32 %v268, %v709
    %v711 = vpop.f32.mrf.mxu0
    %v712 = vadd.f32 %v268, %v711
    %713 = vmatmul.bf16.gmra.mxu0 %v216
    %v714 = vpop.f32.mrf.mxu0
    %v715 = vadd.f32 %v268, %v714
    %v716 = vpop.f32.mrf.mxu0
    %v717 = vadd.f32 %v268, %v716
    %718 = vmatmul.bf16.gmra.mxu0 %v217
    %v719 = vpop.f32.mrf.mxu0
    %v720 = vadd.f32 %v268, %v719
    %v721 = vpop.f32.mrf.mxu0
    %v722 = vadd.f32 %v268, %v721
    %723 = vmatmul.bf16.gmra.mxu0 %v218
    %v724 = vpop.f32.mrf.mxu0
    %v725 = vadd.f32 %v268, %v724
    %v726 = vpop.f32.mrf.mxu0
    %v727 = vadd.f32 %v268, %v726
    %728 = vmatmul.bf16.gmra.mxu0 %v219
    %v729 = vpop.f32.mrf.mxu0
    %v730 = vadd.f32 %v268, %v729
    %v731 = vpop.f32.mrf.mxu0
    %v732 = vadd.f32 %v268, %v731
    %733 = vmatmul.bf16.gmra.mxu0 %v220
    %v734 = vpop.f32.mrf.mxu0
    %v735 = vadd.f32 %v268, %v734
    %v736 = vpop.f32.mrf.mxu0
    %v737 = vadd.f32 %v268, %v736
    %738 = vmatmul.bf16.gmra.mxu0 %v221
    %v739 = vpop.f32.mrf.mxu0
    %v740 = vadd.f32 %v268, %v739
    %v741 = vpop.f32.mrf.mxu0
    %v742 = vadd.f32 %v268, %v741
    %743 = vmatmul.bf16.gmra.mxu0 %v222
    %v744 = vpop.f32.mrf.mxu0
    %v745 = vadd.f32 %v268, %v744
    %v746 = vpop.f32.mrf.mxu0
    %v747 = vadd.f32 %v268, %v746
    %748 = vmatmul.bf16.gmra.mxu0 %v223
    %v749 = vpop.f32.mrf.mxu0
    %v750 = vadd.f32 %v268, %v749
    %v751 = vpop.f32.mrf.mxu0
    %v752 = vadd.f32 %v268, %v751
    %753 = vmatmul.bf16.gmra.mxu0 %v224
    %v754 = vpop.f32.mrf.mxu0
    %v755 = vadd.f32 %v268, %v754
    %v756 = vpop.f32.mrf.mxu0
    %v757 = vadd.f32 %v268, %v756
    %758 = vmatmul.bf16.gmra.mxu0 %v225
    %v759 = vpop.f32.mrf.mxu0
    %v760 = vadd.f32 %v268, %v759
    %v761 = vpop.f32.mrf.mxu0
    %v762 = vadd.f32 %v268, %v761
    %763 = vmatmul.bf16.gmra.mxu0 %v226
    %v764 = vpop.f32.mrf.mxu0
    %v765 = vadd.f32 %v268, %v764
    %v766 = vpop.f32.mrf.mxu0
    %v767 = vadd.f32 %v268, %v766
    %768 = vmatmul.bf16.gmra.mxu0 %v227
    %v769 = vpop.f32.mrf.mxu0
    %v770 = vadd.f32 %v268, %v769
    %v771 = vpop.f32.mrf.mxu0
    %v772 = vadd.f32 %v268, %v771
    %773 = vmatmul.bf16.gmra.mxu0 %v228
    %v774 = vpop.f32.mrf.mxu0
    %v775 = vadd.f32 %v268, %v774
    %v776 = vpop.f32.mrf.mxu0
    %v777 = vadd.f32 %v268, %v776
    %778 = vmatmul.bf16.gmra.mxu0 %v229
    %v779 = vpop.f32.mrf.mxu0
    %v780 = vadd.f32 %v268, %v779
    %v781 = vpop.f32.mrf.mxu0
    %v782 = vadd.f32 %v268, %v781
    %783 = vmatmul.bf16.gmra.mxu0 %v230
    %v784 = vpop.f32.mrf.mxu0
    %v785 = vadd.f32 %v268, %v784
    %v786 = vpop.f32.mrf.mxu0
    %v787 = vadd.f32 %v268, %v786
    %788 = vdwg.mxu0
    %v789 = vadd.f32 %v443, %v445
    %v790 = vadd.f32 %v789, %v448
    %v791 = vadd.f32 %v790, %v450
    %v792 = vadd.f32 %v791, %v453
    %v793 = vadd.f32 %v792, %v455
    %v794 = vadd.f32 %v793, %v458
    %v795 = vadd.f32 %v794, %v460
    %v796 = vadd.f32 %v795, %v463
    %v797 = vadd.f32 %v796, %v465
    %v798 = vadd.f32 %v797, %v468
    %v799 = vadd.f32 %v798, %v470
    %v800 = vadd.f32 %v799, %v473
    %v801 = vadd.f32 %v800, %v475
    %v802 = vadd.f32 %v801, %v478
    %v803 = vadd.f32 %v802, %v480
    %v804 = vadd.f32 %v803, %v483
    %v805 = vadd.f32 %v804, %v485
    %v806 = vadd.f32 %v805, %v488
    %v807 = vadd.f32 %v806, %v490
    %v808 = vadd.f32 %v807, %v493
    %v809 = vadd.f32 %v808, %v495
    %v810 = vadd.f32 %v809, %v498
    %v811 = vadd.f32 %v810, %v500
    %v812 = vadd.f32 %v811, %v503
    %v813 = vadd.f32 %v812, %v505
    %v814 = vadd.f32 %v813, %v508
    %v815 = vadd.f32 %v814, %v510
    %v816 = vadd.f32 %v815, %v513
    %v817 = vadd.f32 %v816, %v515
    %v818 = vadd.f32 %v817, %v518
    %v819 = vadd.f32 %v818, %v520
    %v820 = vrot.slane %v819, 4
    %v821 = vadd.f32 %v819, %v820
    %v822 = vrot.slane %v821, 2
    %v823 = vadd.f32 %v821, %v822
    %v824 = vrot.slane %v823, 1
    %v825 = vadd.f32 %v823, %v824
    %v826 = vadd.f32 %v532, %v534
    %v827 = vadd.f32 %v826, %v537
    %v828 = vadd.f32 %v827, %v539
    %v829 = vadd.f32 %v828, %v542
    %v830 = vadd.f32 %v829, %v544
    %v831 = vadd.f32 %v830, %v547
    %v832 = vadd.f32 %v831, %v549
    %v833 = vadd.f32 %v832, %v552
    %v834 = vadd.f32 %v833, %v554
    %v835 = vadd.f32 %v834, %v557
    %v836 = vadd.f32 %v835, %v559
    %v837 = vadd.f32 %v836, %v562
    %v838 = vadd.f32 %v837, %v564
    %v839 = vadd.f32 %v838, %v567
    %v840 = vadd.f32 %v839, %v569
    %v841 = vadd.f32 %v840, %v572
    %v842 = vadd.f32 %v841, %v574
    %v843 = vadd.f32 %v842, %v577
    %v844 = vadd.f32 %v843, %v579
    %v845 = vadd.f32 %v844, %v582
    %v846 = vadd.f32 %v845, %v584
    %v847 = vadd.f32 %v846, %v587
    %v848 = vadd.f32 %v847, %v589
    %v849 = vadd.f32 %v848, %v592
    %v850 = vadd.f32 %v849, %v594
    %v851 = vadd.f32 %v850, %v597
    %v852 = vadd.f32 %v851, %v599
    %v853 = vadd.f32 %v852, %v602
    %v854 = vadd.f32 %v853, %v604
    %v855 = vadd.f32 %v854, %v607
    %v856 = vadd.f32 %v855, %v609
    %v857 = vrot.slane %v856, 4
    %v858 = vadd.f32 %v856, %v857
    %v859 = vrot.slane %v858, 2
    %v860 = vadd.f32 %v858, %v859
    %v861 = vrot.slane %v860, 1
    %v862 = vadd.f32 %v860, %v861
    %v863 = vadd.f32 %v621, %v623
    %v864 = vadd.f32 %v863, %v626
    %v865 = vadd.f32 %v864, %v628
    %v866 = vadd.f32 %v865, %v631
    %v867 = vadd.f32 %v866, %v633
    %v868 = vadd.f32 %v867, %v636
    %v869 = vadd.f32 %v868, %v638
    %v870 = vadd.f32 %v869, %v641
    %v871 = vadd.f32 %v870, %v643
    %v872 = vadd.f32 %v871, %v646
    %v873 = vadd.f32 %v872, %v648
    %v874 = vadd.f32 %v873, %v651
    %v875 = vadd.f32 %v874, %v653
    %v876 = vadd.f32 %v875, %v656
    %v877 = vadd.f32 %v876, %v658
    %v878 = vadd.f32 %v877, %v661
    %v879 = vadd.f32 %v878, %v663
    %v880 = vadd.f32 %v879, %v666
    %v881 = vadd.f32 %v880, %v668
    %v882 = vadd.f32 %v881, %v671
    %v883 = vadd.f32 %v882, %v673
    %v884 = vadd.f32 %v883, %v676
    %v885 = vadd.f32 %v884, %v678
    %v886 = vadd.f32 %v885, %v681
    %v887 = vadd.f32 %v886, %v683
    %v888 = vadd.f32 %v887, %v686
    %v889 = vadd.f32 %v888, %v688
    %v890 = vadd.f32 %v889, %v691
    %v891 = vadd.f32 %v890, %v693
    %v892 = vadd.f32 %v891, %v696
    %v893 = vadd.f32 %v892, %v698
    %v894 = vrot.slane %v893, 4
    %v895 = vadd.f32 %v893, %v894
    %v896 = vrot.slane %v895, 2
    %v897 = vadd.f32 %v895, %v896
    %v898 = vrot.slane %v897, 1
    %v899 = vadd.f32 %v897, %v898
    %v900 = vadd.f32 %v710, %v712
    %v901 = vadd.f32 %v900, %v715
    %v902 = vadd.f32 %v901, %v717
    %v903 = vadd.f32 %v902, %v720
    %v904 = vadd.f32 %v903, %v722
    %v905 = vadd.f32 %v904, %v725
    %v906 = vadd.f32 %v905, %v727
    %v907 = vadd.f32 %v906, %v730
    %v908 = vadd.f32 %v907, %v732
    %v909 = vadd.f32 %v908, %v735
    %v910 = vadd.f32 %v909, %v737
    %v911 = vadd.f32 %v910, %v740
    %v912 = vadd.f32 %v911, %v742
    %v913 = vadd.f32 %v912, %v745
    %v914 = vadd.f32 %v913, %v747
    %v915 = vadd.f32 %v914, %v750
    %v916 = vadd.f32 %v915, %v752
    %v917 = vadd.f32 %v916, %v755
    %v918 = vadd.f32 %v917, %v757
    %v919 = vadd.f32 %v918, %v760
    %v920 = vadd.f32 %v919, %v762
    %v921 = vadd.f32 %v920, %v765
    %v922 = vadd.f32 %v921, %v767
    %v923 = vadd.f32 %v922, %v770
    %v924 = vadd.f32 %v923, %v772
    %v925 = vadd.f32 %v924, %v775
    %v926 = vadd.f32 %v925, %v777
    %v927 = vadd.f32 %v926, %v780
    %v928 = vadd.f32 %v927, %v782
    %v929 = vadd.f32 %v928, %v785
    %v930 = vadd.f32 %v929, %v787
    %v931 = vrot.slane %v930, 4
    %v932 = vadd.f32 %v930, %v931
    %v933 = vrot.slane %v932, 2
    %v934 = vadd.f32 %v932, %v933
    %v935 = vrot.slane %v934, 1
    %v936 = vadd.f32 %v934, %v935
    %v937 = vmul.f32 %v825, 0.00390625
    %v938 = vmul.f32 %v862, 0.00390625
    %v939 = vmul.f32 %v899, 0.00390625
    %v940 = vmul.f32 %v936, 0.00390625
    %v941 = vsub.f32 %v443, %v937
    %v942 = vsub.f32 %v532, %v938
    %v943 = vsub.f32 %v621, %v939
    %v944 = vsub.f32 %v710, %v940
    %v945 = vsub.f32 %v445, %v937
    %v946 = vsub.f32 %v534, %v938
    %v947 = vsub.f32 %v623, %v939
    %v948 = vsub.f32 %v712, %v940
    %v949 = vsub.f32 %v448, %v937
    %v950 = vsub.f32 %v537, %v938
    %v951 = vsub.f32 %v626, %v939
    %v952 = vsub.f32 %v715, %v940
    %v953 = vsub.f32 %v450, %v937
    %v954 = vsub.f32 %v539, %v938
    %v955 = vsub.f32 %v628, %v939
    %v956 = vsub.f32 %v717, %v940
    %v957 = vsub.f32 %v453, %v937
    %v958 = vsub.f32 %v542, %v938
    %v959 = vsub.f32 %v631, %v939
    %v960 = vsub.f32 %v720, %v940
    %v961 = vsub.f32 %v455, %v937
    %v962 = vsub.f32 %v544, %v938
    %v963 = vsub.f32 %v633, %v939
    %v964 = vsub.f32 %v722, %v940
    %v965 = vsub.f32 %v458, %v937
    %v966 = vsub.f32 %v547, %v938
    %v967 = vsub.f32 %v636, %v939
    %v968 = vsub.f32 %v725, %v940
    %v969 = vsub.f32 %v460, %v937
    %v970 = vsub.f32 %v549, %v938
    %v971 = vsub.f32 %v638, %v939
    %v972 = vsub.f32 %v727, %v940
    %v973 = vsub.f32 %v463, %v937
    %v974 = vsub.f32 %v552, %v938
    %v975 = vsub.f32 %v641, %v939
    %v976 = vsub.f32 %v730, %v940
    %v977 = vsub.f32 %v465, %v937
    %v978 = vsub.f32 %v554, %v938
    %v979 = vsub.f32 %v643, %v939
    %v980 = vsub.f32 %v732, %v940
    %v981 = vsub.f32 %v468, %v937
    %v982 = vsub.f32 %v557, %v938
    %v983 = vsub.f32 %v646, %v939
    %v984 = vsub.f32 %v735, %v940
    %v985 = vsub.f32 %v470, %v937
    %v986 = vsub.f32 %v559, %v938
    %v987 = vsub.f32 %v648, %v939
    %v988 = vsub.f32 %v737, %v940
    %v989 = vsub.f32 %v473, %v937
    %v990 = vsub.f32 %v562, %v938
    %v991 = vsub.f32 %v651, %v939
    %v992 = vsub.f32 %v740, %v940
    %v993 = vsub.f32 %v475, %v937
    %v994 = vsub.f32 %v564, %v938
    %v995 = vsub.f32 %v653, %v939
    %v996 = vsub.f32 %v742, %v940
    %v997 = vsub.f32 %v478, %v937
    %v998 = vsub.f32 %v567, %v938
    %v999 = vsub.f32 %v656, %v939
    %v1000 = vsub.f32 %v745, %v940
    %v1001 = vsub.f32 %v480, %v937
    %v1002 = vsub.f32 %v569, %v938
    %v1003 = vsub.f32 %v658, %v939
    %v1004 = vsub.f32 %v747, %v940
    %v1005 = vsub.f32 %v483, %v937
    %v1006 = vsub.f32 %v572, %v938
    %v1007 = vsub.f32 %v661, %v939
    %v1008 = vsub.f32 %v750, %v940
    %v1009 = vsub.f32 %v485, %v937
    %v1010 = vsub.f32 %v574, %v938
    %v1011 = vsub.f32 %v663, %v939
    %v1012 = vsub.f32 %v752, %v940
    %v1013 = vsub.f32 %v488, %v937
    %v1014 = vsub.f32 %v577, %v938
    %v1015 = vsub.f32 %v666, %v939
    %v1016 = vsub.f32 %v755, %v940
    %v1017 = vsub.f32 %v490, %v937
    %v1018 = vsub.f32 %v579, %v938
    %v1019 = vsub.f32 %v668, %v939
    %v1020 = vsub.f32 %v757, %v940
    %v1021 = vsub.f32 %v493, %v937
    %v1022 = vsub.f32 %v582, %v938
    %v1023 = vsub.f32 %v671, %v939
    %v1024 = vsub.f32 %v760, %v940
    %v1025 = vsub.f32 %v495, %v937
    %v1026 = vsub.f32 %v584, %v938
    %v1027 = vsub.f32 %v673, %v939
    %v1028 = vsub.f32 %v762, %v940
    %v1029 = vsub.f32 %v498, %v937
    %v1030 = vsub.f32 %v587, %v938
    %v1031 = vsub.f32 %v676, %v939
    %v1032 = vsub.f32 %v765, %v940
    %v1033 = vsub.f32 %v500, %v937
    %v1034 = vsub.f32 %v589, %v938
    %v1035 = vsub.f32 %v678, %v939
    %v1036 = vsub.f32 %v767, %v940
    %v1037 = vsub.f32 %v503, %v937
    %v1038 = vsub.f32 %v592, %v938
    %v1039 = vsub.f32 %v681, %v939
    %v1040 = vsub.f32 %v770, %v940
    %v1041 = vsub.f32 %v505, %v937
    %v1042 = vsub.f32 %v594, %v938
    %v1043 = vsub.f32 %v683, %v939
    %v1044 = vsub.f32 %v772, %v940
    %v1045 = vsub.f32 %v508, %v937
    %v1046 = vsub.f32 %v597, %v938
    %v1047 = vsub.f32 %v686, %v939
    %v1048 = vsub.f32 %v775, %v940
    %v1049 = vsub.f32 %v510, %v937
    %v1050 = vsub.f32 %v599, %v938
    %v1051 = vsub.f32 %v688, %v939
    %v1052 = vsub.f32 %v777, %v940
    %v1053 = vsub.f32 %v513, %v937
    %v1054 = vsub.f32 %v602, %v938
    %v1055 = vsub.f32 %v691, %v939
    %v1056 = vsub.f32 %v780, %v940
    %v1057 = vsub.f32 %v515, %v937
    %v1058 = vsub.f32 %v604, %v938
    %v1059 = vsub.f32 %v693, %v939
    %v1060 = vsub.f32 %v782, %v940
    %v1061 = vsub.f32 %v518, %v937
    %v1062 = vsub.f32 %v607, %v938
    %v1063 = vsub.f32 %v696, %v939
    %v1064 = vsub.f32 %v785, %v940
    %v1065 = vsub.f32 %v520, %v937
    %v1066 = vsub.f32 %v609, %v938
    %v1067 = vsub.f32 %v698, %v939
    %v1068 = vsub.f32 %v787, %v940
    %v1069 = vmul.f32 %v941, %v941
    %v1070 = vmul.f32 %v942, %v942
    %v1071 = vmul.f32 %v943, %v943
    %v1072 = vmul.f32 %v944, %v944
    %v1073 = vmul.f32 %v945, %v945
    %v1074 = vmul.f32 %v946, %v946
    %v1075 = vmul.f32 %v947, %v947
    %v1076 = vmul.f32 %v948, %v948
    %v1077 = vmul.f32 %v949, %v949
    %v1078 = vmul.f32 %v950, %v950
    %v1079 = vmul.f32 %v951, %v951
    %v1080 = vmul.f32 %v952, %v952
    %v1081 = vmul.f32 %v953, %v953
    %v1082 = vmul.f32 %v954, %v954
    %v1083 = vmul.f32 %v955, %v955
    %v1084 = vmul.f32 %v956, %v956
    %v1085 = vmul.f32 %v957, %v957
    %v1086 = vmul.f32 %v958, %v958
    %v1087 = vmul.f32 %v959, %v959
    %v1088 = vmul.f32 %v960, %v960
    %v1089 = vmul.f32 %v961, %v961
    %v1090 = vmul.f32 %v962, %v962
    %v1091 = vmul.f32 %v963, %v963
    %v1092 = vmul.f32 %v964, %v964
    %v1093 = vmul.f32 %v965, %v965
    %v1094 = vmul.f32 %v966, %v966
    %v1095 = vmul.f32 %v967, %v967
    %v1096 = vmul.f32 %v968, %v968
    %v1097 = vmul.f32 %v969, %v969
    %v1098 = vmul.f32 %v970, %v970
    %v1099 = vmul.f32 %v971, %v971
    %v1100 = vmul.f32 %v972, %v972
    %v1101 = vmul.f32 %v973, %v973
    %v1102 = vmul.f32 %v974, %v974
    %v1103 = vmul.f32 %v975, %v975
    %v1104 = vmul.f32 %v976, %v976
    %v1105 = vmul.f32 %v977, %v977
    %v1106 = vmul.f32 %v978, %v978
    %v1107 = vmul.f32 %v979, %v979
    %v1108 = vmul.f32 %v980, %v980
    %v1109 = vmul.f32 %v981, %v981
    %v1110 = vmul.f32 %v982, %v982
    %v1111 = vmul.f32 %v983, %v983
    %v1112 = vmul.f32 %v984, %v984
    %v1113 = vmul.f32 %v985, %v985
    %v1114 = vmul.f32 %v986, %v986
    %v1115 = vmul.f32 %v987, %v987
    %v1116 = vmul.f32 %v988, %v988
    %v1117 = vmul.f32 %v989, %v989
    %v1118 = vmul.f32 %v990, %v990
    %v1119 = vmul.f32 %v991, %v991
    %v1120 = vmul.f32 %v992, %v992
    %v1121 = vmul.f32 %v993, %v993
    %v1122 = vmul.f32 %v994, %v994
    %v1123 = vmul.f32 %v995, %v995
    %v1124 = vmul.f32 %v996, %v996
    %v1125 = vmul.f32 %v997, %v997
    %v1126 = vmul.f32 %v998, %v998
    %v1127 = vmul.f32 %v999, %v999
    %v1128 = vmul.f32 %v1000, %v1000
    %v1129 = vmul.f32 %v1001, %v1001
    %v1130 = vmul.f32 %v1002, %v1002
    %v1131 = vmul.f32 %v1003, %v1003
    %v1132 = vmul.f32 %v1004, %v1004
    %v1133 = vmul.f32 %v1005, %v1005
    %v1134 = vmul.f32 %v1006, %v1006
    %v1135 = vmul.f32 %v1007, %v1007
    %v1136 = vmul.f32 %v1008, %v1008
    %v1137 = vmul.f32 %v1009, %v1009
    %v1138 = vmul.f32 %v1010, %v1010
    %v1139 = vmul.f32 %v1011, %v1011
    %v1140 = vmul.f32 %v1012, %v1012
    %v1141 = vmul.f32 %v1013, %v1013
    %v1142 = vmul.f32 %v1014, %v1014
    %v1143 = vmul.f32 %v1015, %v1015
    %v1144 = vmul.f32 %v1016, %v1016
    %v1145 = vmul.f32 %v1017, %v1017
    %v1146 = vmul.f32 %v1018, %v1018
    %v1147 = vmul.f32 %v1019, %v1019
    %v1148 = vmul.f32 %v1020, %v1020
    %v1149 = vmul.f32 %v1021, %v1021
    %v1150 = vmul.f32 %v1022, %v1022
    %v1151 = vmul.f32 %v1023, %v1023
    %v1152 = vmul.f32 %v1024, %v1024
    %v1153 = vmul.f32 %v1025, %v1025
    %v1154 = vmul.f32 %v1026, %v1026
    %v1155 = vmul.f32 %v1027, %v1027
    %v1156 = vmul.f32 %v1028, %v1028
    %v1157 = vmul.f32 %v1029, %v1029
    %v1158 = vmul.f32 %v1030, %v1030
    %v1159 = vmul.f32 %v1031, %v1031
    %v1160 = vmul.f32 %v1032, %v1032
    %v1161 = vmul.f32 %v1033, %v1033
    %v1162 = vmul.f32 %v1034, %v1034
    %v1163 = vmul.f32 %v1035, %v1035
    %v1164 = vmul.f32 %v1036, %v1036
    %v1165 = vmul.f32 %v1037, %v1037
    %v1166 = vmul.f32 %v1038, %v1038
    %v1167 = vmul.f32 %v1039, %v1039
    %v1168 = vmul.f32 %v1040, %v1040
    %v1169 = vmul.f32 %v1041, %v1041
    %v1170 = vmul.f32 %v1042, %v1042
    %v1171 = vmul.f32 %v1043, %v1043
    %v1172 = vmul.f32 %v1044, %v1044
    %v1173 = vmul.f32 %v1045, %v1045
    %v1174 = vmul.f32 %v1046, %v1046
    %v1175 = vmul.f32 %v1047, %v1047
    %v1176 = vmul.f32 %v1048, %v1048
    %v1177 = vmul.f32 %v1049, %v1049
    %v1178 = vmul.f32 %v1050, %v1050
    %v1179 = vmul.f32 %v1051, %v1051
    %v1180 = vmul.f32 %v1052, %v1052
    %v1181 = vmul.f32 %v1053, %v1053
    %v1182 = vmul.f32 %v1054, %v1054
    %v1183 = vmul.f32 %v1055, %v1055
    %v1184 = vmul.f32 %v1056, %v1056
    %v1185 = vmul.f32 %v1057, %v1057
    %v1186 = vmul.f32 %v1058, %v1058
    %v1187 = vmul.f32 %v1059, %v1059
    %v1188 = vmul.f32 %v1060, %v1060
    %v1189 = vmul.f32 %v1061, %v1061
    %v1190 = vmul.f32 %v1062, %v1062
    %v1191 = vmul.f32 %v1063, %v1063
    %v1192 = vmul.f32 %v1064, %v1064
    %v1193 = vmul.f32 %v1065, %v1065
    %v1194 = vmul.f32 %v1066, %v1066
    %v1195 = vmul.f32 %v1067, %v1067
    %v1196 = vmul.f32 %v1068, %v1068
    %v1197 = vadd.f32 %v1069, %v1073
    %v1198 = vadd.f32 %v1197, %v1077
    %v1199 = vadd.f32 %v1198, %v1081
    %v1200 = vadd.f32 %v1199, %v1085
    %v1201 = vadd.f32 %v1200, %v1089
    %v1202 = vadd.f32 %v1201, %v1093
    %v1203 = vadd.f32 %v1202, %v1097
    %v1204 = vadd.f32 %v1203, %v1101
    %v1205 = vadd.f32 %v1204, %v1105
    %v1206 = vadd.f32 %v1205, %v1109
    %v1207 = vadd.f32 %v1206, %v1113
    %v1208 = vadd.f32 %v1207, %v1117
    %v1209 = vadd.f32 %v1208, %v1121
    %v1210 = vadd.f32 %v1209, %v1125
    %v1211 = vadd.f32 %v1210, %v1129
    %v1212 = vadd.f32 %v1211, %v1133
    %v1213 = vadd.f32 %v1212, %v1137
    %v1214 = vadd.f32 %v1213, %v1141
    %v1215 = vadd.f32 %v1214, %v1145
    %v1216 = vadd.f32 %v1215, %v1149
    %v1217 = vadd.f32 %v1216, %v1153
    %v1218 = vadd.f32 %v1217, %v1157
    %v1219 = vadd.f32 %v1218, %v1161
    %v1220 = vadd.f32 %v1219, %v1165
    %v1221 = vadd.f32 %v1220, %v1169
    %v1222 = vadd.f32 %v1221, %v1173
    %v1223 = vadd.f32 %v1222, %v1177
    %v1224 = vadd.f32 %v1223, %v1181
    %v1225 = vadd.f32 %v1224, %v1185
    %v1226 = vadd.f32 %v1225, %v1189
    %v1227 = vadd.f32 %v1226, %v1193
    %v1228 = vrot.slane %v1227, 4
    %v1229 = vadd.f32 %v1227, %v1228
    %v1230 = vrot.slane %v1229, 2
    %v1231 = vadd.f32 %v1229, %v1230
    %v1232 = vrot.slane %v1231, 1
    %v1233 = vadd.f32 %v1231, %v1232
    %v1234 = vadd.f32 %v1070, %v1074
    %v1235 = vadd.f32 %v1234, %v1078
    %v1236 = vadd.f32 %v1235, %v1082
    %v1237 = vadd.f32 %v1236, %v1086
    %v1238 = vadd.f32 %v1237, %v1090
    %v1239 = vadd.f32 %v1238, %v1094
    %v1240 = vadd.f32 %v1239, %v1098
    %v1241 = vadd.f32 %v1240, %v1102
    %v1242 = vadd.f32 %v1241, %v1106
    %v1243 = vadd.f32 %v1242, %v1110
    %v1244 = vadd.f32 %v1243, %v1114
    %v1245 = vadd.f32 %v1244, %v1118
    %v1246 = vadd.f32 %v1245, %v1122
    %v1247 = vadd.f32 %v1246, %v1126
    %v1248 = vadd.f32 %v1247, %v1130
    %v1249 = vadd.f32 %v1248, %v1134
    %v1250 = vadd.f32 %v1249, %v1138
    %v1251 = vadd.f32 %v1250, %v1142
    %v1252 = vadd.f32 %v1251, %v1146
    %v1253 = vadd.f32 %v1252, %v1150
    %v1254 = vadd.f32 %v1253, %v1154
    %v1255 = vadd.f32 %v1254, %v1158
    %v1256 = vadd.f32 %v1255, %v1162
    %v1257 = vadd.f32 %v1256, %v1166
    %v1258 = vadd.f32 %v1257, %v1170
    %v1259 = vadd.f32 %v1258, %v1174
    %v1260 = vadd.f32 %v1259, %v1178
    %v1261 = vadd.f32 %v1260, %v1182
    %v1262 = vadd.f32 %v1261, %v1186
    %v1263 = vadd.f32 %v1262, %v1190
    %v1264 = vadd.f32 %v1263, %v1194
    %v1265 = vrot.slane %v1264, 4
    %v1266 = vadd.f32 %v1264, %v1265
    %v1267 = vrot.slane %v1266, 2
    %v1268 = vadd.f32 %v1266, %v1267
    %v1269 = vrot.slane %v1268, 1
    %v1270 = vadd.f32 %v1268, %v1269
    %v1271 = vadd.f32 %v1071, %v1075
    %v1272 = vadd.f32 %v1271, %v1079
    %v1273 = vadd.f32 %v1272, %v1083
    %v1274 = vadd.f32 %v1273, %v1087
    %v1275 = vadd.f32 %v1274, %v1091
    %v1276 = vadd.f32 %v1275, %v1095
    %v1277 = vadd.f32 %v1276, %v1099
    %v1278 = vadd.f32 %v1277, %v1103
    %v1279 = vadd.f32 %v1278, %v1107
    %v1280 = vadd.f32 %v1279, %v1111
    %v1281 = vadd.f32 %v1280, %v1115
    %v1282 = vadd.f32 %v1281, %v1119
    %v1283 = vadd.f32 %v1282, %v1123
    %v1284 = vadd.f32 %v1283, %v1127
    %v1285 = vadd.f32 %v1284, %v1131
    %v1286 = vadd.f32 %v1285, %v1135
    %v1287 = vadd.f32 %v1286, %v1139
    %v1288 = vadd.f32 %v1287, %v1143
    %v1289 = vadd.f32 %v1288, %v1147
    %v1290 = vadd.f32 %v1289, %v1151
    %v1291 = vadd.f32 %v1290, %v1155
    %v1292 = vadd.f32 %v1291, %v1159
    %v1293 = vadd.f32 %v1292, %v1163
    %v1294 = vadd.f32 %v1293, %v1167
    %v1295 = vadd.f32 %v1294, %v1171
    %v1296 = vadd.f32 %v1295, %v1175
    %v1297 = vadd.f32 %v1296, %v1179
    %v1298 = vadd.f32 %v1297, %v1183
    %v1299 = vadd.f32 %v1298, %v1187
    %v1300 = vadd.f32 %v1299, %v1191
    %v1301 = vadd.f32 %v1300, %v1195
    %v1302 = vrot.slane %v1301, 4
    %v1303 = vadd.f32 %v1301, %v1302
    %v1304 = vrot.slane %v1303, 2
    %v1305 = vadd.f32 %v1303, %v1304
    %v1306 = vrot.slane %v1305, 1
    %v1307 = vadd.f32 %v1305, %v1306
    %v1308 = vadd.f32 %v1072, %v1076
    %v1309 = vadd.f32 %v1308, %v1080
    %v1310 = vadd.f32 %v1309, %v1084
    %v1311 = vadd.f32 %v1310, %v1088
    %v1312 = vadd.f32 %v1311, %v1092
    %v1313 = vadd.f32 %v1312, %v1096
    %v1314 = vadd.f32 %v1313, %v1100
    %v1315 = vadd.f32 %v1314, %v1104
    %v1316 = vadd.f32 %v1315, %v1108
    %v1317 = vadd.f32 %v1316, %v1112
    %v1318 = vadd.f32 %v1317, %v1116
    %v1319 = vadd.f32 %v1318, %v1120
    %v1320 = vadd.f32 %v1319, %v1124
    %v1321 = vadd.f32 %v1320, %v1128
    %v1322 = vadd.f32 %v1321, %v1132
    %v1323 = vadd.f32 %v1322, %v1136
    %v1324 = vadd.f32 %v1323, %v1140
    %v1325 = vadd.f32 %v1324, %v1144
    %v1326 = vadd.f32 %v1325, %v1148
    %v1327 = vadd.f32 %v1326, %v1152
    %v1328 = vadd.f32 %v1327, %v1156
    %v1329 = vadd.f32 %v1328, %v1160
    %v1330 = vadd.f32 %v1329, %v1164
    %v1331 = vadd.f32 %v1330, %v1168
    %v1332 = vadd.f32 %v1331, %v1172
    %v1333 = vadd.f32 %v1332, %v1176
    %v1334 = vadd.f32 %v1333, %v1180
    %v1335 = vadd.f32 %v1334, %v1184
    %v1336 = vadd.f32 %v1335, %v1188
    %v1337 = vadd.f32 %v1336, %v1192
    %v1338 = vadd.f32 %v1337, %v1196
    %v1339 = vrot.slane %v1338, 4
    %v1340 = vadd.f32 %v1338, %v1339
    %v1341 = vrot.slane %v1340, 2
    %v1342 = vadd.f32 %v1340, %v1341
    %v1343 = vrot.slane %v1342, 1
    %v1344 = vadd.f32 %v1342, %v1343
    %v1345 = vmul.f32 %v1233, 0.00390625
    %v1346 = vmul.f32 %v1270, 0.00390625
    %v1347 = vmul.f32 %v1307, 0.00390625
    %v1348 = vmul.f32 %v1344, 0.00390625
    %v1349 = vld [vmem:[%s3] sm:$0xf]
    %v1350 = vadd.f32 %v1345, 1e-05
    %v1351 = vadd.f32 %v1346, 1e-05
    %v1352 = vadd.f32 %v1347, 1e-05
    %v1353 = vadd.f32 %v1348, 1e-05
    %v1354 = vrsqrt.pop %v1350
    %v1355 = vmul.f32 %v1354, %v1350
    %v1356 = vmul.f32 %v1355, %v1354
    %v1357 = vmul.f32 0.5, %v1356
    %v1358 = vsub.f32 1.5, %v1357
    %v1359 = vmul.f32 %v1354, %v1358
    %vm1360 = vweird.f32 %v1350
    %vm1361 = vweird.f32 %v1354
    %vm1362 = vmor %vm1360, %vm1361
    %v1363 = vsel %vm1362, %v1354, %v1359
    %v1364 = vrsqrt.pop %v1351
    %v1365 = vmul.f32 %v1364, %v1351
    %v1366 = vmul.f32 %v1365, %v1364
    %v1367 = vmul.f32 0.5, %v1366
    %v1368 = vsub.f32 1.5, %v1367
    %v1369 = vmul.f32 %v1364, %v1368
    %vm1370 = vweird.f32 %v1351
    %vm1371 = vweird.f32 %v1364
    %vm1372 = vmor %vm1370, %vm1371
    %v1373 = vsel %vm1372, %v1364, %v1369
    %v1374 = vrsqrt.pop %v1352
    %v1375 = vmul.f32 %v1374, %v1352
    %v1376 = vmul.f32 %v1375, %v1374
    %v1377 = vmul.f32 0.5, %v1376
    %v1378 = vsub.f32 1.5, %v1377
    %v1379 = vmul.f32 %v1374, %v1378
    %vm1380 = vweird.f32 %v1352
    %vm1381 = vweird.f32 %v1374
    %vm1382 = vmor %vm1380, %vm1381
    %v1383 = vsel %vm1382, %v1374, %v1379
    %v1384 = vrsqrt.pop %v1353
    %v1385 = vmul.f32 %v1384, %v1353
    %v1386 = vmul.f32 %v1385, %v1384
    %v1387 = vmul.f32 0.5, %v1386
    %v1388 = vsub.f32 1.5, %v1387
    %v1389 = vmul.f32 %v1384, %v1388
    %vm1390 = vweird.f32 %v1353
    %vm1391 = vweird.f32 %v1384
    %vm1392 = vmor %vm1390, %vm1391
    %v1393 = vsel %vm1392, %v1384, %v1389
    %v1398 = vrot.slane %v1373, 7
    %v1399 = vrot.slane %v1383, 6
    %v1400 = vrot.slane %v1393, 5
    %vm1401 = vcmask 1040384
    %v1402 = vsel %vm1401, %v1363, %v1398
    %vm1403 = vcmask 1042434
    %v1404 = vsel %vm1403, %v1399, %v1400
    %vm1405 = vcmask 1041408
    %v1406 = vsel %vm1405, %v1402, %v1404
    %v1408 = vmul.f32 %v1349, %v1406
    %v1410 = vperm.slane %v1408, 0
    %v1411 = vperm.slane %v1408, 1
    %v1412 = vperm.slane %v1408, 2
    %v1413 = vperm.slane %v1408, 3
    %v1418 = vmul.f32 %v941, %v1410
    %v1419 = vmul.f32 %v942, %v1411
    %v1420 = vmul.f32 %v943, %v1412
    %v1421 = vmul.f32 %v944, %v1413
    %v1422 = vmul.f32 %v945, %v1410
    %v1423 = vmul.f32 %v946, %v1411
    %v1424 = vmul.f32 %v947, %v1412
    %v1425 = vmul.f32 %v948, %v1413
    %v1426 = vmul.f32 %v949, %v1410
    %v1427 = vmul.f32 %v950, %v1411
    %v1428 = vmul.f32 %v951, %v1412
    %v1429 = vmul.f32 %v952, %v1413
    %v1430 = vmul.f32 %v953, %v1410
    %v1431 = vmul.f32 %v954, %v1411
    %v1432 = vmul.f32 %v955, %v1412
    %v1433 = vmul.f32 %v956, %v1413
    %v1434 = vmul.f32 %v957, %v1410
    %v1435 = vmul.f32 %v958, %v1411
    %v1436 = vmul.f32 %v959, %v1412
    %v1437 = vmul.f32 %v960, %v1413
    %v1438 = vmul.f32 %v961, %v1410
    %v1439 = vmul.f32 %v962, %v1411
    %v1440 = vmul.f32 %v963, %v1412
    %v1441 = vmul.f32 %v964, %v1413
    %v1442 = vmul.f32 %v965, %v1410
    %v1443 = vmul.f32 %v966, %v1411
    %v1444 = vmul.f32 %v967, %v1412
    %v1445 = vmul.f32 %v968, %v1413
    %v1446 = vmul.f32 %v969, %v1410
    %v1447 = vmul.f32 %v970, %v1411
    %v1448 = vmul.f32 %v971, %v1412
    %v1449 = vmul.f32 %v972, %v1413
    %v1450 = vmul.f32 %v973, %v1410
    %v1451 = vmul.f32 %v974, %v1411
    %v1452 = vmul.f32 %v975, %v1412
    %v1453 = vmul.f32 %v976, %v1413
    %v1454 = vmul.f32 %v977, %v1410
    %v1455 = vmul.f32 %v978, %v1411
    %v1456 = vmul.f32 %v979, %v1412
    %v1457 = vmul.f32 %v980, %v1413
    %v1458 = vmul.f32 %v981, %v1410
    %v1459 = vmul.f32 %v982, %v1411
    %v1460 = vmul.f32 %v983, %v1412
    %v1461 = vmul.f32 %v984, %v1413
    %v1462 = vmul.f32 %v985, %v1410
    %v1463 = vmul.f32 %v986, %v1411
    %v1464 = vmul.f32 %v987, %v1412
    %v1465 = vmul.f32 %v988, %v1413
    %v1466 = vmul.f32 %v989, %v1410
    %v1467 = vmul.f32 %v990, %v1411
    %v1468 = vmul.f32 %v991, %v1412
    %v1469 = vmul.f32 %v992, %v1413
    %v1470 = vmul.f32 %v993, %v1410
    %v1471 = vmul.f32 %v994, %v1411
    %v1472 = vmul.f32 %v995, %v1412
    %v1473 = vmul.f32 %v996, %v1413
    %v1474 = vmul.f32 %v997, %v1410
    %v1475 = vmul.f32 %v998, %v1411
    %v1476 = vmul.f32 %v999, %v1412
    %v1477 = vmul.f32 %v1000, %v1413
    %v1478 = vmul.f32 %v1001, %v1410
    %v1479 = vmul.f32 %v1002, %v1411
    %v1480 = vmul.f32 %v1003, %v1412
    %v1481 = vmul.f32 %v1004, %v1413
    %v1482 = vmul.f32 %v1005, %v1410
    %v1483 = vmul.f32 %v1006, %v1411
    %v1484 = vmul.f32 %v1007, %v1412
    %v1485 = vmul.f32 %v1008, %v1413
    %v1486 = vmul.f32 %v1009, %v1410
    %v1487 = vmul.f32 %v1010, %v1411
    %v1488 = vmul.f32 %v1011, %v1412
    %v1489 = vmul.f32 %v1012, %v1413
    %v1490 = vmul.f32 %v1013, %v1410
    %v1491 = vmul.f32 %v1014, %v1411
    %v1492 = vmul.f32 %v1015, %v1412
    %v1493 = vmul.f32 %v1016, %v1413
    %v1494 = vmul.f32 %v1017, %v1410
    %v1495 = vmul.f32 %v1018, %v1411
    %v1496 = vmul.f32 %v1019, %v1412
    %v1497 = vmul.f32 %v1020, %v1413
    %v1498 = vmul.f32 %v1021, %v1410
    %v1499 = vmul.f32 %v1022, %v1411
    %v1500 = vmul.f32 %v1023, %v1412
    %v1501 = vmul.f32 %v1024, %v1413
    %v1502 = vmul.f32 %v1025, %v1410
    %v1503 = vmul.f32 %v1026, %v1411
    %v1504 = vmul.f32 %v1027, %v1412
    %v1505 = vmul.f32 %v1028, %v1413
    %v1506 = vmul.f32 %v1029, %v1410
    %v1507 = vmul.f32 %v1030, %v1411
    %v1508 = vmul.f32 %v1031, %v1412
    %v1509 = vmul.f32 %v1032, %v1413
    %v1510 = vmul.f32 %v1033, %v1410
    %v1511 = vmul.f32 %v1034, %v1411
    %v1512 = vmul.f32 %v1035, %v1412
    %v1513 = vmul.f32 %v1036, %v1413
    %v1514 = vmul.f32 %v1037, %v1410
    %v1515 = vmul.f32 %v1038, %v1411
    %v1516 = vmul.f32 %v1039, %v1412
    %v1517 = vmul.f32 %v1040, %v1413
    %v1518 = vmul.f32 %v1041, %v1410
    %v1519 = vmul.f32 %v1042, %v1411
    %v1520 = vmul.f32 %v1043, %v1412
    %v1521 = vmul.f32 %v1044, %v1413
    %v1522 = vmul.f32 %v1045, %v1410
    %v1523 = vmul.f32 %v1046, %v1411
    %v1524 = vmul.f32 %v1047, %v1412
    %v1525 = vmul.f32 %v1048, %v1413
    %v1526 = vmul.f32 %v1049, %v1410
    %v1527 = vmul.f32 %v1050, %v1411
    %v1528 = vmul.f32 %v1051, %v1412
    %v1529 = vmul.f32 %v1052, %v1413
    %v1530 = vmul.f32 %v1053, %v1410
    %v1531 = vmul.f32 %v1054, %v1411
    %v1532 = vmul.f32 %v1055, %v1412
    %v1533 = vmul.f32 %v1056, %v1413
    %v1534 = vmul.f32 %v1057, %v1410
    %v1535 = vmul.f32 %v1058, %v1411
    %v1536 = vmul.f32 %v1059, %v1412
    %v1537 = vmul.f32 %v1060, %v1413
    %v1538 = vmul.f32 %v1061, %v1410
    %v1539 = vmul.f32 %v1062, %v1411
    %v1540 = vmul.f32 %v1063, %v1412
    %v1541 = vmul.f32 %v1064, %v1413
    %v1542 = vmul.f32 %v1065, %v1410
    %v1543 = vmul.f32 %v1066, %v1411
    %v1544 = vmul.f32 %v1067, %v1412
    %v1545 = vmul.f32 %v1068, %v1413
    %v1546 = vld [vmem:[#allocation8] sm:$0xf]
    %v1548 = vperm.slane %v1546, 0
    %v1549 = vperm.slane %v1546, 1
    %v1550 = vperm.slane %v1546, 2
    %v1551 = vperm.slane %v1546, 3
    %v1556 = vadd.f32 %v1418, %v1548
    %v1557 = vadd.f32 %v1419, %v1549
    %v1558 = vadd.f32 %v1420, %v1550
    %v1559 = vadd.f32 %v1421, %v1551
    %v1560 = vadd.f32 %v1422, %v1548
    %v1561 = vadd.f32 %v1423, %v1549
    %v1562 = vadd.f32 %v1424, %v1550
    %v1563 = vadd.f32 %v1425, %v1551
    %v1564 = vadd.f32 %v1426, %v1548
    %v1565 = vadd.f32 %v1427, %v1549
    %v1566 = vadd.f32 %v1428, %v1550
    %v1567 = vadd.f32 %v1429, %v1551
    %v1568 = vadd.f32 %v1430, %v1548
    %v1569 = vadd.f32 %v1431, %v1549
    %v1570 = vadd.f32 %v1432, %v1550
    %v1571 = vadd.f32 %v1433, %v1551
    %v1572 = vadd.f32 %v1434, %v1548
    %v1573 = vadd.f32 %v1435, %v1549
    %v1574 = vadd.f32 %v1436, %v1550
    %v1575 = vadd.f32 %v1437, %v1551
    %v1576 = vadd.f32 %v1438, %v1548
    %v1577 = vadd.f32 %v1439, %v1549
    %v1578 = vadd.f32 %v1440, %v1550
    %v1579 = vadd.f32 %v1441, %v1551
    %v1580 = vadd.f32 %v1442, %v1548
    %v1581 = vadd.f32 %v1443, %v1549
    %v1582 = vadd.f32 %v1444, %v1550
    %v1583 = vadd.f32 %v1445, %v1551
    %v1584 = vadd.f32 %v1446, %v1548
    %v1585 = vadd.f32 %v1447, %v1549
    %v1586 = vadd.f32 %v1448, %v1550
    %v1587 = vadd.f32 %v1449, %v1551
    %v1588 = vadd.f32 %v1450, %v1548
    %v1589 = vadd.f32 %v1451, %v1549
    %v1590 = vadd.f32 %v1452, %v1550
    %v1591 = vadd.f32 %v1453, %v1551
    %v1592 = vadd.f32 %v1454, %v1548
    %v1593 = vadd.f32 %v1455, %v1549
    %v1594 = vadd.f32 %v1456, %v1550
    %v1595 = vadd.f32 %v1457, %v1551
    %v1596 = vadd.f32 %v1458, %v1548
    %v1597 = vadd.f32 %v1459, %v1549
    %v1598 = vadd.f32 %v1460, %v1550
    %v1599 = vadd.f32 %v1461, %v1551
    %v1600 = vadd.f32 %v1462, %v1548
    %v1601 = vadd.f32 %v1463, %v1549
    %v1602 = vadd.f32 %v1464, %v1550
    %v1603 = vadd.f32 %v1465, %v1551
    %v1604 = vadd.f32 %v1466, %v1548
    %v1605 = vadd.f32 %v1467, %v1549
    %v1606 = vadd.f32 %v1468, %v1550
    %v1607 = vadd.f32 %v1469, %v1551
    %v1608 = vadd.f32 %v1470, %v1548
    %v1609 = vadd.f32 %v1471, %v1549
    %v1610 = vadd.f32 %v1472, %v1550
    %v1611 = vadd.f32 %v1473, %v1551
    %v1612 = vadd.f32 %v1474, %v1548
    %v1613 = vadd.f32 %v1475, %v1549
    %v1614 = vadd.f32 %v1476, %v1550
    %v1615 = vadd.f32 %v1477, %v1551
    %v1616 = vadd.f32 %v1478, %v1548
    %v1617 = vadd.f32 %v1479, %v1549
    %v1618 = vadd.f32 %v1480, %v1550
    %v1619 = vadd.f32 %v1481, %v1551
    %v1620 = vadd.f32 %v1482, %v1548
    %v1621 = vadd.f32 %v1483, %v1549
    %v1622 = vadd.f32 %v1484, %v1550
    %v1623 = vadd.f32 %v1485, %v1551
    %v1624 = vadd.f32 %v1486, %v1548
    %v1625 = vadd.f32 %v1487, %v1549
    %v1626 = vadd.f32 %v1488, %v1550
    %v1627 = vadd.f32 %v1489, %v1551
    %v1628 = vadd.f32 %v1490, %v1548
    %v1629 = vadd.f32 %v1491, %v1549
    %v1630 = vadd.f32 %v1492, %v1550
    %v1631 = vadd.f32 %v1493, %v1551
    %v1632 = vadd.f32 %v1494, %v1548
    %v1633 = vadd.f32 %v1495, %v1549
    %v1634 = vadd.f32 %v1496, %v1550
    %v1635 = vadd.f32 %v1497, %v1551
    %v1636 = vadd.f32 %v1498, %v1548
    %v1637 = vadd.f32 %v1499, %v1549
    %v1638 = vadd.f32 %v1500, %v1550
    %v1639 = vadd.f32 %v1501, %v1551
    %v1640 = vadd.f32 %v1502, %v1548
    %v1641 = vadd.f32 %v1503, %v1549
    %v1642 = vadd.f32 %v1504, %v1550
    %v1643 = vadd.f32 %v1505, %v1551
    %v1644 = vadd.f32 %v1506, %v1548
    %v1645 = vadd.f32 %v1507, %v1549
    %v1646 = vadd.f32 %v1508, %v1550
    %v1647 = vadd.f32 %v1509, %v1551
    %v1648 = vadd.f32 %v1510, %v1548
    %v1649 = vadd.f32 %v1511, %v1549
    %v1650 = vadd.f32 %v1512, %v1550
    %v1651 = vadd.f32 %v1513, %v1551
    %v1652 = vadd.f32 %v1514, %v1548
    %v1653 = vadd.f32 %v1515, %v1549
    %v1654 = vadd.f32 %v1516, %v1550
    %v1655 = vadd.f32 %v1517, %v1551
    %v1656 = vadd.f32 %v1518, %v1548
    %v1657 = vadd.f32 %v1519, %v1549
    %v1658 = vadd.f32 %v1520, %v1550
    %v1659 = vadd.f32 %v1521, %v1551
    %v1660 = vadd.f32 %v1522, %v1548
    %v1661 = vadd.f32 %v1523, %v1549
    %v1662 = vadd.f32 %v1524, %v1550
    %v1663 = vadd.f32 %v1525, %v1551
    %v1664 = vadd.f32 %v1526, %v1548
    %v1665 = vadd.f32 %v1527, %v1549
    %v1666 = vadd.f32 %v1528, %v1550
    %v1667 = vadd.f32 %v1529, %v1551
    %v1668 = vadd.f32 %v1530, %v1548
    %v1669 = vadd.f32 %v1531, %v1549
    %v1670 = vadd.f32 %v1532, %v1550
    %v1671 = vadd.f32 %v1533, %v1551
    %v1672 = vadd.f32 %v1534, %v1548
    %v1673 = vadd.f32 %v1535, %v1549
    %v1674 = vadd.f32 %v1536, %v1550
    %v1675 = vadd.f32 %v1537, %v1551
    %v1676 = vadd.f32 %v1538, %v1548
    %v1677 = vadd.f32 %v1539, %v1549
    %v1678 = vadd.f32 %v1540, %v1550
    %v1679 = vadd.f32 %v1541, %v1551
    %v1680 = vadd.f32 %v1542, %v1548
    %v1681 = vadd.f32 %v1543, %v1549
    %v1682 = vadd.f32 %v1544, %v1550
    %v1683 = vadd.f32 %v1545, %v1551
    %v1684 = vmax.f32 %v1556, 0.0
    %v1685 = vmax.f32 %v1557, 0.0
    %v1686 = vmax.f32 %v1558, 0.0
    %v1687 = vmax.f32 %v1559, 0.0
    %v1688 = vmax.f32 %v1560, 0.0
    %v1689 = vmax.f32 %v1561, 0.0
    %v1690 = vmax.f32 %v1562, 0.0
    %v1691 = vmax.f32 %v1563, 0.0
    %v1692 = vmax.f32 %v1564, 0.0
    %v1693 = vmax.f32 %v1565, 0.0
    %v1694 = vmax.f32 %v1566, 0.0
    %v1695 = vmax.f32 %v1567, 0.0
    %v1696 = vmax.f32 %v1568, 0.0
    %v1697 = vmax.f32 %v1569, 0.0
    %v1698 = vmax.f32 %v1570, 0.0
    %v1699 = vmax.f32 %v1571, 0.0
    %v1700 = vmax.f32 %v1572, 0.0
    %v1701 = vmax.f32 %v1573, 0.0
    %v1702 = vmax.f32 %v1574, 0.0
    %v1703 = vmax.f32 %v1575, 0.0
    %v1704 = vmax.f32 %v1576, 0.0
    %v1705 = vmax.f32 %v1577, 0.0
    %v1706 = vmax.f32 %v1578, 0.0
    %v1707 = vmax.f32 %v1579, 0.0
    %v1708 = vmax.f32 %v1580, 0.0
    %v1709 = vmax.f32 %v1581, 0.0
    %v1710 = vmax.f32 %v1582, 0.0
    %v1711 = vmax.f32 %v1583, 0.0
    %v1712 = vmax.f32 %v1584, 0.0
    %v1713 = vmax.f32 %v1585, 0.0
    %v1714 = vmax.f32 %v1586, 0.0
    %v1715 = vmax.f32 %v1587, 0.0
    %v1716 = vmax.f32 %v1588, 0.0
    %v1717 = vmax.f32 %v1589, 0.0
    %v1718 = vmax.f32 %v1590, 0.0
    %v1719 = vmax.f32 %v1591, 0.0
    %v1720 = vmax.f32 %v1592, 0.0
    %v1721 = vmax.f32 %v1593, 0.0
    %v1722 = vmax.f32 %v1594, 0.0
    %v1723 = vmax.f32 %v1595, 0.0
    %v1724 = vmax.f32 %v1596, 0.0
    %v1725 = vmax.f32 %v1597, 0.0
    %v1726 = vmax.f32 %v1598, 0.0
    %v1727 = vmax.f32 %v1599, 0.0
    %v1728 = vmax.f32 %v1600, 0.0
    %v1729 = vmax.f32 %v1601, 0.0
    %v1730 = vmax.f32 %v1602, 0.0
    %v1731 = vmax.f32 %v1603, 0.0
    %v1732 = vmax.f32 %v1604, 0.0
    %v1733 = vmax.f32 %v1605, 0.0
    %v1734 = vmax.f32 %v1606, 0.0
    %v1735 = vmax.f32 %v1607, 0.0
    %v1736 = vmax.f32 %v1608, 0.0
    %v1737 = vmax.f32 %v1609, 0.0
    %v1738 = vmax.f32 %v1610, 0.0
    %v1739 = vmax.f32 %v1611, 0.0
    %v1740 = vmax.f32 %v1612, 0.0
    %v1741 = vmax.f32 %v1613, 0.0
    %v1742 = vmax.f32 %v1614, 0.0
    %v1743 = vmax.f32 %v1615, 0.0
    %v1744 = vmax.f32 %v1616, 0.0
    %v1745 = vmax.f32 %v1617, 0.0
    %v1746 = vmax.f32 %v1618, 0.0
    %v1747 = vmax.f32 %v1619, 0.0
    %v1748 = vmax.f32 %v1620, 0.0
    %v1749 = vmax.f32 %v1621, 0.0
    %v1750 = vmax.f32 %v1622, 0.0
    %v1751 = vmax.f32 %v1623, 0.0
    %v1752 = vmax.f32 %v1624, 0.0
    %v1753 = vmax.f32 %v1625, 0.0
    %v1754 = vmax.f32 %v1626, 0.0
    %v1755 = vmax.f32 %v1627, 0.0
    %v1756 = vmax.f32 %v1628, 0.0
    %v1757 = vmax.f32 %v1629, 0.0
    %v1758 = vmax.f32 %v1630, 0.0
    %v1759 = vmax.f32 %v1631, 0.0
    %v1760 = vmax.f32 %v1632, 0.0
    %v1761 = vmax.f32 %v1633, 0.0
    %v1762 = vmax.f32 %v1634, 0.0
    %v1763 = vmax.f32 %v1635, 0.0
    %v1764 = vmax.f32 %v1636, 0.0
    %v1765 = vmax.f32 %v1637, 0.0
    %v1766 = vmax.f32 %v1638, 0.0
    %v1767 = vmax.f32 %v1639, 0.0
    %v1768 = vmax.f32 %v1640, 0.0
    %v1769 = vmax.f32 %v1641, 0.0
    %v1770 = vmax.f32 %v1642, 0.0
    %v1771 = vmax.f32 %v1643, 0.0
    %v1772 = vmax.f32 %v1644, 0.0
    %v1773 = vmax.f32 %v1645, 0.0
    %v1774 = vmax.f32 %v1646, 0.0
    %v1775 = vmax.f32 %v1647, 0.0
    %v1776 = vmax.f32 %v1648, 0.0
    %v1777 = vmax.f32 %v1649, 0.0
    %v1778 = vmax.f32 %v1650, 0.0
    %v1779 = vmax.f32 %v1651, 0.0
    %v1780 = vmax.f32 %v1652, 0.0
    %v1781 = vmax.f32 %v1653, 0.0
    %v1782 = vmax.f32 %v1654, 0.0
    %v1783 = vmax.f32 %v1655, 0.0
    %v1784 = vmax.f32 %v1656, 0.0
    %v1785 = vmax.f32 %v1657, 0.0
    %v1786 = vmax.f32 %v1658, 0.0
    %v1787 = vmax.f32 %v1659, 0.0
    %v1788 = vmax.f32 %v1660, 0.0
    %v1789 = vmax.f32 %v1661, 0.0
    %v1790 = vmax.f32 %v1662, 0.0
    %v1791 = vmax.f32 %v1663, 0.0
    %v1792 = vmax.f32 %v1664, 0.0
    %v1793 = vmax.f32 %v1665, 0.0
    %v1794 = vmax.f32 %v1666, 0.0
    %v1795 = vmax.f32 %v1667, 0.0
    %v1796 = vmax.f32 %v1668, 0.0
    %v1797 = vmax.f32 %v1669, 0.0
    %v1798 = vmax.f32 %v1670, 0.0
    %v1799 = vmax.f32 %v1671, 0.0
    %v1800 = vmax.f32 %v1672, 0.0
    %v1801 = vmax.f32 %v1673, 0.0
    %v1802 = vmax.f32 %v1674, 0.0
    %v1803 = vmax.f32 %v1675, 0.0
    %v1804 = vmax.f32 %v1676, 0.0
    %v1805 = vmax.f32 %v1677, 0.0
    %v1806 = vmax.f32 %v1678, 0.0
    %v1807 = vmax.f32 %v1679, 0.0
    %v1808 = vmax.f32 %v1680, 0.0
    %v1809 = vmax.f32 %v1681, 0.0
    %v1810 = vmax.f32 %v1682, 0.0
    %v1811 = vmax.f32 %v1683, 0.0
    %v1812 = vpack.c.bf16 %v1688, %v1684
    %v1813 = vpack.c.bf16 %v1689, %v1685
    %v1814 = vpack.c.bf16 %v1690, %v1686
    %v1815 = vpack.c.bf16 %v1691, %v1687
    %v1816 = vpack.c.bf16 %v1696, %v1692
    %v1817 = vpack.c.bf16 %v1697, %v1693
    %v1818 = vpack.c.bf16 %v1698, %v1694
    %v1819 = vpack.c.bf16 %v1699, %v1695
    %v1820 = vpack.c.bf16 %v1704, %v1700
    %v1821 = vpack.c.bf16 %v1705, %v1701
    %v1822 = vpack.c.bf16 %v1706, %v1702
    %v1823 = vpack.c.bf16 %v1707, %v1703
    %v1824 = vpack.c.bf16 %v1712, %v1708
    %v1825 = vpack.c.bf16 %v1713, %v1709
    %v1826 = vpack.c.bf16 %v1714, %v1710
    %v1827 = vpack.c.bf16 %v1715, %v1711
    %v1828 = vpack.c.bf16 %v1720, %v1716
    %v1829 = vpack.c.bf16 %v1721, %v1717
    %v1830 = vpack.c.bf16 %v1722, %v1718
    %v1831 = vpack.c.bf16 %v1723, %v1719
    %v1832 = vpack.c.bf16 %v1728, %v1724
    %v1833 = vpack.c.bf16 %v1729, %v1725
    %v1834 = vpack.c.bf16 %v1730, %v1726
    %v1835 = vpack.c.bf16 %v1731, %v1727
    %v1836 = vpack.c.bf16 %v1736, %v1732
    %v1837 = vpack.c.bf16 %v1737, %v1733
    %v1838 = vpack.c.bf16 %v1738, %v1734
    %v1839 = vpack.c.bf16 %v1739, %v1735
    %v1840 = vpack.c.bf16 %v1744, %v1740
    %v1841 = vpack.c.bf16 %v1745, %v1741
    %v1842 = vpack.c.bf16 %v1746, %v1742
    %v1843 = vpack.c.bf16 %v1747, %v1743
    %v1844 = vpack.c.bf16 %v1752, %v1748
    %v1845 = vpack.c.bf16 %v1753, %v1749
    %v1846 = vpack.c.bf16 %v1754, %v1750
    %v1847 = vpack.c.bf16 %v1755, %v1751
    %v1848 = vpack.c.bf16 %v1760, %v1756
    %v1849 = vpack.c.bf16 %v1761, %v1757
    %v1850 = vpack.c.bf16 %v1762, %v1758
    %v1851 = vpack.c.bf16 %v1763, %v1759
    %v1852 = vpack.c.bf16 %v1768, %v1764
    %v1853 = vpack.c.bf16 %v1769, %v1765
    %v1854 = vpack.c.bf16 %v1770, %v1766
    %v1855 = vpack.c.bf16 %v1771, %v1767
    %v1856 = vpack.c.bf16 %v1776, %v1772
    %v1857 = vpack.c.bf16 %v1777, %v1773
    %v1858 = vpack.c.bf16 %v1778, %v1774
    %v1859 = vpack.c.bf16 %v1779, %v1775
    %v1860 = vpack.c.bf16 %v1784, %v1780
    %v1861 = vpack.c.bf16 %v1785, %v1781
    %v1862 = vpack.c.bf16 %v1786, %v1782
    %v1863 = vpack.c.bf16 %v1787, %v1783
    %v1864 = vpack.c.bf16 %v1792, %v1788
    %v1865 = vpack.c.bf16 %v1793, %v1789
    %v1866 = vpack.c.bf16 %v1794, %v1790
    %v1867 = vpack.c.bf16 %v1795, %v1791
    %v1868 = vpack.c.bf16 %v1800, %v1796
    %v1869 = vpack.c.bf16 %v1801, %v1797
    %v1870 = vpack.c.bf16 %v1802, %v1798
    %v1871 = vpack.c.bf16 %v1803, %v1799
    %v1872 = vpack.c.bf16 %v1808, %v1804
    %v1873 = vpack.c.bf16 %v1809, %v1805
    %v1874 = vpack.c.bf16 %v1810, %v1806
    %v1875 = vpack.c.bf16 %v1811, %v1807
    %v1876 = vld [vmem:[#allocation10] sm:$0xff]
    %v1877 = vld [vmem:[#allocation10 + $0x8] sm:$0xff]
    %v1878 = vld [vmem:[#allocation10 + $0x10] sm:$0xff]
    %v1879 = vld [vmem:[#allocation10 + $0x18] sm:$0xff]
    %v1880 = vld [vmem:[#allocation10 + $0x20] sm:$0xff]
    %v1881 = vld [vmem:[#allocation10 + $0x28] sm:$0xff]
    %v1882 = vld [vmem:[#allocation10 + $0x30] sm:$0xff]
    %v1883 = vld [vmem:[#allocation10 + $0x38] sm:$0xff]
    %v1884 = vld [vmem:[#allocation10 + $0x40] sm:$0xff]
    %v1885 = vld [vmem:[#allocation10 + $0x48] sm:$0xff]
    %v1886 = vld [vmem:[#allocation10 + $0x50] sm:$0xff]
    %v1887 = vld [vmem:[#allocation10 + $0x58] sm:$0xff]
    %v1888 = vld [vmem:[#allocation10 + $0x60] sm:$0xff]
    %v1889 = vld [vmem:[#allocation10 + $0x68] sm:$0xff]
    %v1890 = vld [vmem:[#allocation10 + $0x70] sm:$0xff]
    %v1891 = vld [vmem:[#allocation10 + $0x78] sm:$0xff]
    %v1892 = vld [vmem:[#allocation10 + $0x80] sm:$0xff]
    %v1893 = vld [vmem:[#allocation10 + $0x88] sm:$0xff]
    %v1894 = vld [vmem:[#allocation10 + $0x90] sm:$0xff]
    %v1895 = vld [vmem:[#allocation10 + $0x98] sm:$0xff]
    %v1896 = vld [vmem:[#allocation10 + $0xa0] sm:$0xff]
    %v1897 = vld [vmem:[#allocation10 + $0xa8] sm:$0xff]
    %v1898 = vld [vmem:[#allocation10 + $0xb0] sm:$0xff]
    %v1899 = vld [vmem:[#allocation10 + $0xb8] sm:$0xff]
    %v1900 = vld [vmem:[#allocation10 + $0xc0] sm:$0xff]
    %v1901 = vld [vmem:[#allocation10 + $0xc8] sm:$0xff]
    %v1902 = vld [vmem:[#allocation10 + $0xd0] sm:$0xff]
    %v1903 = vld [vmem:[#allocation10 + $0xd8] sm:$0xff]
    %v1904 = vld [vmem:[#allocation10 + $0xe0] sm:$0xff]
    %v1905 = vld [vmem:[#allocation10 + $0xe8] sm:$0xff]
    %v1906 = vld [vmem:[#allocation10 + $0xf0] sm:$0xff]
    %v1907 = vld [vmem:[#allocation10 + $0xf8] sm:$0xff]
    %v1908 = vld [vmem:[#allocation10 + $0x100] sm:$0xff]
    %v1909 = vld [vmem:[#allocation10 + $0x108] sm:$0xff]
    %v1910 = vld [vmem:[#allocation10 + $0x110] sm:$0xff]
    %v1911 = vld [vmem:[#allocation10 + $0x118] sm:$0xff]
    %v1912 = vld [vmem:[#allocation10 + $0x120] sm:$0xff]
    %v1913 = vld [vmem:[#allocation10 + $0x128] sm:$0xff]
    %v1914 = vld [vmem:[#allocation10 + $0x130] sm:$0xff]
    %v1915 = vld [vmem:[#allocation10 + $0x138] sm:$0xff]
    %v1916 = vld [vmem:[#allocation10 + $0x140] sm:$0xff]
    %v1917 = vld [vmem:[#allocation10 + $0x148] sm:$0xff]
    %v1918 = vld [vmem:[#allocation10 + $0x150] sm:$0xff]
    %v1919 = vld [vmem:[#allocation10 + $0x158] sm:$0xff]
    %v1920 = vld [vmem:[#allocation10 + $0x160] sm:$0xff]
    %v1921 = vld [vmem:[#allocation10 + $0x168] sm:$0xff]
    %v1922 = vld [vmem:[#allocation10 + $0x170] sm:$0xff]
    %v1923 = vld [vmem:[#allocation10 + $0x178] sm:$0xff]
    %v1924 = vld [vmem:[#allocation10 + $0x180] sm:$0xff]
    %v1925 = vld [vmem:[#allocation10 + $0x188] sm:$0xff]
    %v1926 = vld [vmem:[#allocation10 + $0x190] sm:$0xff]
    %v1927 = vld [vmem:[#allocation10 + $0x198] sm:$0xff]
    %v1928 = vld [vmem:[#allocation10 + $0x1a0] sm:$0xff]
    %v1929 = vld [vmem:[#allocation10 + $0x1a8] sm:$0xff]
    %v1930 = vld [vmem:[#allocation10 + $0x1b0] sm:$0xff]
    %v1931 = vld [vmem:[#allocation10 + $0x1b8] sm:$0xff]
    %v1932 = vld [vmem:[#allocation10 + $0x1c0] sm:$0xff]
    %v1933 = vld [vmem:[#allocation10 + $0x1c8] sm:$0xff]
    %v1934 = vld [vmem:[#allocation10 + $0x1d0] sm:$0xff]
    %v1935 = vld [vmem:[#allocation10 + $0x1d8] sm:$0xff]
    %v1936 = vld [vmem:[#allocation10 + $0x1e0] sm:$0xff]
    %v1937 = vld [vmem:[#allocation10 + $0x1e8] sm:$0xff]
    %v1938 = vld [vmem:[#allocation10 + $0x1f0] sm:$0xff]
    %v1939 = vld [vmem:[#allocation10 + $0x1f8] sm:$0xff]
    %v1940 = vld [vmem:[#allocation10 + $0x200] sm:$0xff]
    %v1941 = vld [vmem:[#allocation10 + $0x208] sm:$0xff]
    %v1942 = vld [vmem:[#allocation10 + $0x210] sm:$0xff]
    %v1943 = vld [vmem:[#allocation10 + $0x218] sm:$0xff]
    %v1944 = vld [vmem:[#allocation10 + $0x220] sm:$0xff]
    %v1945 = vld [vmem:[#allocation10 + $0x228] sm:$0xff]
    %v1946 = vld [vmem:[#allocation10 + $0x230] sm:$0xff]
    %v1947 = vld [vmem:[#allocation10 + $0x238] sm:$0xff]
    %v1948 = vld [vmem:[#allocation10 + $0x240] sm:$0xff]
    %v1949 = vld [vmem:[#allocation10 + $0x248] sm:$0xff]
    %v1950 = vld [vmem:[#allocation10 + $0x250] sm:$0xff]
    %v1951 = vld [vmem:[#allocation10 + $0x258] sm:$0xff]
    %v1952 = vld [vmem:[#allocation10 + $0x260] sm:$0xff]
    %v1953 = vld [vmem:[#allocation10 + $0x268] sm:$0xff]
    %v1954 = vld [vmem:[#allocation10 + $0x270] sm:$0xff]
    %v1955 = vld [vmem:[#allocation10 + $0x278] sm:$0xff]
    %v1956 = vld [vmem:[#allocation10 + $0x280] sm:$0xff]
    %v1957 = vld [vmem:[#allocation10 + $0x288] sm:$0xff]
    %v1958 = vld [vmem:[#allocation10 + $0x290] sm:$0xff]
    %v1959 = vld [vmem:[#allocation10 + $0x298] sm:$0xff]
    %v1960 = vld [vmem:[#allocation10 + $0x2a0] sm:$0xff]
    %v1961 = vld [vmem:[#allocation10 + $0x2a8] sm:$0xff]
    %v1962 = vld [vmem:[#allocation10 + $0x2b0] sm:$0xff]
    %v1963 = vld [vmem:[#allocation10 + $0x2b8] sm:$0xff]
    %v1964 = vld [vmem:[#allocation10 + $0x2c0] sm:$0xff]
    %v1965 = vld [vmem:[#allocation10 + $0x2c8] sm:$0xff]
    %v1966 = vld [vmem:[#allocation10 + $0x2d0] sm:$0xff]
    %v1967 = vld [vmem:[#allocation10 + $0x2d8] sm:$0xff]
    %v1968 = vld [vmem:[#allocation10 + $0x2e0] sm:$0xff]
    %v1969 = vld [vmem:[#allocation10 + $0x2e8] sm:$0xff]
    %v1970 = vld [vmem:[#allocation10 + $0x2f0] sm:$0xff]
    %v1971 = vld [vmem:[#allocation10 + $0x2f8] sm:$0xff]
    %v1972 = vld [vmem:[#allocation10 + $0x300] sm:$0xff]
    %v1973 = vld [vmem:[#allocation10 + $0x308] sm:$0xff]
    %v1974 = vld [vmem:[#allocation10 + $0x310] sm:$0xff]
    %v1975 = vld [vmem:[#allocation10 + $0x318] sm:$0xff]
    %v1976 = vld [vmem:[#allocation10 + $0x320] sm:$0xff]
    %v1977 = vld [vmem:[#allocation10 + $0x328] sm:$0xff]
    %v1978 = vld [vmem:[#allocation10 + $0x330] sm:$0xff]
    %v1979 = vld [vmem:[#allocation10 + $0x338] sm:$0xff]
    %v1980 = vld [vmem:[#allocation10 + $0x340] sm:$0xff]
    %v1981 = vld [vmem:[#allocation10 + $0x348] sm:$0xff]
    %v1982 = vld [vmem:[#allocation10 + $0x350] sm:$0xff]
    %v1983 = vld [vmem:[#allocation10 + $0x358] sm:$0xff]
    %v1984 = vld [vmem:[#allocation10 + $0x360] sm:$0xff]
    %v1985 = vld [vmem:[#allocation10 + $0x368] sm:$0xff]
    %v1986 = vld [vmem:[#allocation10 + $0x370] sm:$0xff]
    %v1987 = vld [vmem:[#allocation10 + $0x378] sm:$0xff]
    %v1988 = vld [vmem:[#allocation10 + $0x380] sm:$0xff]
    %v1989 = vld [vmem:[#allocation10 + $0x388] sm:$0xff]
    %v1990 = vld [vmem:[#allocation10 + $0x390] sm:$0xff]
    %v1991 = vld [vmem:[#allocation10 + $0x398] sm:$0xff]
    %v1992 = vld [vmem:[#allocation10 + $0x3a0] sm:$0xff]
    %v1993 = vld [vmem:[#allocation10 + $0x3a8] sm:$0xff]
    %v1994 = vld [vmem:[#allocation10 + $0x3b0] sm:$0xff]
    %v1995 = vld [vmem:[#allocation10 + $0x3b8] sm:$0xff]
    %v1996 = vld [vmem:[#allocation10 + $0x3c0] sm:$0xff]
    %v1997 = vld [vmem:[#allocation10 + $0x3c8] sm:$0xff]
    %v1998 = vld [vmem:[#allocation10 + $0x3d0] sm:$0xff]
    %v1999 = vld [vmem:[#allocation10 + $0x3d8] sm:$0xff]
    %v2000 = vld [vmem:[#allocation10 + $0x3e0] sm:$0xff]
    %v2001 = vld [vmem:[#allocation10 + $0x3e8] sm:$0xff]
    %v2002 = vld [vmem:[#allocation10 + $0x3f0] sm:$0xff]
    %v2003 = vld [vmem:[#allocation10 + $0x3f8] sm:$0xff]
    %v2004 = vld [vmem:[#allocation11] sm:$0xf]
    %v2006 = vperm.slane %v2004, 0
    %v2007 = vperm.slane %v2004, 1
    %v2008 = vperm.slane %v2004, 2
    %v2009 = vperm.slane %v2004, 3
    %v2142 = vunpack.c.l.b16 %v1876
    %v2143 = vunpack.c.h.b16 %v1876
    %v2144 = vunpack.c.l.b16 %v1877
    %v2145 = vunpack.c.h.b16 %v1877
    %v2146 = vunpack.c.l.b16 %v1878
    %v2147 = vunpack.c.h.b16 %v1878
    %v2148 = vunpack.c.l.b16 %v1879
    %v2149 = vunpack.c.h.b16 %v1879
    %v2150 = vunpack.c.l.b16 %v1880
    %v2151 = vunpack.c.h.b16 %v1880
    %v2152 = vunpack.c.l.b16 %v1881
    %v2153 = vunpack.c.h.b16 %v1881
    %v2154 = vunpack.c.l.b16 %v1882
    %v2155 = vunpack.c.h.b16 %v1882
    %v2156 = vunpack.c.l.b16 %v1883
    %v2157 = vunpack.c.h.b16 %v1883
    %v2158 = vunpack.c.l.b16 %v1884
    %v2159 = vunpack.c.h.b16 %v1884
    %v2160 = vunpack.c.l.b16 %v1885
    %v2161 = vunpack.c.h.b16 %v1885
    %v2162 = vunpack.c.l.b16 %v1886
    %v2163 = vunpack.c.h.b16 %v1886
    %v2164 = vunpack.c.l.b16 %v1887
    %v2165 = vunpack.c.h.b16 %v1887
    %v2166 = vunpack.c.l.b16 %v1888
    %v2167 = vunpack.c.h.b16 %v1888
    %v2168 = vunpack.c.l.b16 %v1889
    %v2169 = vunpack.c.h.b16 %v1889
    %v2170 = vunpack.c.l.b16 %v1890
    %v2171 = vunpack.c.h.b16 %v1890
    %v2172 = vunpack.c.l.b16 %v1891
    %v2173 = vunpack.c.h.b16 %v1891
    %v2174 = vunpack.c.l.b16 %v1892
    %v2175 = vunpack.c.h.b16 %v1892
    %v2176 = vunpack.c.l.b16 %v1893
    %v2177 = vunpack.c.h.b16 %v1893
    %v2178 = vunpack.c.l.b16 %v1894
    %v2179 = vunpack.c.h.b16 %v1894
    %v2180 = vunpack.c.l.b16 %v1895
    %v2181 = vunpack.c.h.b16 %v1895
    %v2182 = vunpack.c.l.b16 %v1896
    %v2183 = vunpack.c.h.b16 %v1896
    %v2184 = vunpack.c.l.b16 %v1897
    %v2185 = vunpack.c.h.b16 %v1897
    %v2186 = vunpack.c.l.b16 %v1898
    %v2187 = vunpack.c.h.b16 %v1898
    %v2188 = vunpack.c.l.b16 %v1899
    %v2189 = vunpack.c.h.b16 %v1899
    %v2190 = vunpack.c.l.b16 %v1900
    %v2191 = vunpack.c.h.b16 %v1900
    %v2192 = vunpack.c.l.b16 %v1901
    %v2193 = vunpack.c.h.b16 %v1901
    %v2194 = vunpack.c.l.b16 %v1902
    %v2195 = vunpack.c.h.b16 %v1902
    %v2196 = vunpack.c.l.b16 %v1903
    %v2197 = vunpack.c.h.b16 %v1903
    %v2198 = vunpack.c.l.b16 %v1904
    %v2199 = vunpack.c.h.b16 %v1904
    %v2200 = vunpack.c.l.b16 %v1905
    %v2201 = vunpack.c.h.b16 %v1905
    %v2202 = vunpack.c.l.b16 %v1906
    %v2203 = vunpack.c.h.b16 %v1906
    %v2204 = vunpack.c.l.b16 %v1907
    %v2205 = vunpack.c.h.b16 %v1907
    %v2206 = vunpack.c.l.b16 %v1908
    %v2207 = vunpack.c.h.b16 %v1908
    %v2208 = vunpack.c.l.b16 %v1909
    %v2209 = vunpack.c.h.b16 %v1909
    %v2210 = vunpack.c.l.b16 %v1910
    %v2211 = vunpack.c.h.b16 %v1910
    %v2212 = vunpack.c.l.b16 %v1911
    %v2213 = vunpack.c.h.b16 %v1911
    %v2214 = vunpack.c.l.b16 %v1912
    %v2215 = vunpack.c.h.b16 %v1912
    %v2216 = vunpack.c.l.b16 %v1913
    %v2217 = vunpack.c.h.b16 %v1913
    %v2218 = vunpack.c.l.b16 %v1914
    %v2219 = vunpack.c.h.b16 %v1914
    %v2220 = vunpack.c.l.b16 %v1915
    %v2221 = vunpack.c.h.b16 %v1915
    %v2222 = vunpack.c.l.b16 %v1916
    %v2223 = vunpack.c.h.b16 %v1916
    %v2224 = vunpack.c.l.b16 %v1917
    %v2225 = vunpack.c.h.b16 %v1917
    %v2226 = vunpack.c.l.b16 %v1918
    %v2227 = vunpack.c.h.b16 %v1918
    %v2228 = vunpack.c.l.b16 %v1919
    %v2229 = vunpack.c.h.b16 %v1919
    %v2230 = vunpack.c.l.b16 %v1920
    %v2231 = vunpack.c.h.b16 %v1920
    %v2232 = vunpack.c.l.b16 %v1921
    %v2233 = vunpack.c.h.b16 %v1921
    %v2234 = vunpack.c.l.b16 %v1922
    %v2235 = vunpack.c.h.b16 %v1922
    %v2236 = vunpack.c.l.b16 %v1923
    %v2237 = vunpack.c.h.b16 %v1923
    %v2238 = vunpack.c.l.b16 %v1924
    %v2239 = vunpack.c.h.b16 %v1924
    %v2240 = vunpack.c.l.b16 %v1925
    %v2241 = vunpack.c.h.b16 %v1925
    %v2242 = vunpack.c.l.b16 %v1926
    %v2243 = vunpack.c.h.b16 %v1926
    %v2244 = vunpack.c.l.b16 %v1927
    %v2245 = vunpack.c.h.b16 %v1927
    %v2246 = vunpack.c.l.b16 %v1928
    %v2247 = vunpack.c.h.b16 %v1928
    %v2248 = vunpack.c.l.b16 %v1929
    %v2249 = vunpack.c.h.b16 %v1929
    %v2250 = vunpack.c.l.b16 %v1930
    %v2251 = vunpack.c.h.b16 %v1930
    %v2252 = vunpack.c.l.b16 %v1931
    %v2253 = vunpack.c.h.b16 %v1931
    %v2254 = vunpack.c.l.b16 %v1932
    %v2255 = vunpack.c.h.b16 %v1932
    %v2256 = vunpack.c.l.b16 %v1933
    %v2257 = vunpack.c.h.b16 %v1933
    %v2258 = vunpack.c.l.b16 %v1934
    %v2259 = vunpack.c.h.b16 %v1934
    %v2260 = vunpack.c.l.b16 %v1935
    %v2261 = vunpack.c.h.b16 %v1935
    %v2262 = vunpack.c.l.b16 %v1936
    %v2263 = vunpack.c.h.b16 %v1936
    %v2264 = vunpack.c.l.b16 %v1937
    %v2265 = vunpack.c.h.b16 %v1937
    %v2266 = vunpack.c.l.b16 %v1938
    %v2267 = vunpack.c.h.b16 %v1938
    %v2268 = vunpack.c.l.b16 %v1939
    %v2269 = vunpack.c.h.b16 %v1939
    %v2270 = vunpack.c.l.b16 %v1940
    %v2271 = vunpack.c.h.b16 %v1940
    %v2272 = vunpack.c.l.b16 %v1941
    %v2273 = vunpack.c.h.b16 %v1941
    %v2274 = vunpack.c.l.b16 %v1942
    %v2275 = vunpack.c.h.b16 %v1942
    %v2276 = vunpack.c.l.b16 %v1943
    %v2277 = vunpack.c.h.b16 %v1943
    %v2278 = vunpack.c.l.b16 %v1944
    %v2279 = vunpack.c.h.b16 %v1944
    %v2280 = vunpack.c.l.b16 %v1945
    %v2281 = vunpack.c.h.b16 %v1945
    %v2282 = vunpack.c.l.b16 %v1946
    %v2283 = vunpack.c.h.b16 %v1946
    %v2284 = vunpack.c.l.b16 %v1947
    %v2285 = vunpack.c.h.b16 %v1947
    %v2286 = vunpack.c.l.b16 %v1948
    %v2287 = vunpack.c.h.b16 %v1948
    %v2288 = vunpack.c.l.b16 %v1949
    %v2289 = vunpack.c.h.b16 %v1949
    %v2290 = vunpack.c.l.b16 %v1950
    %v2291 = vunpack.c.h.b16 %v1950
    %v2292 = vunpack.c.l.b16 %v1951
    %v2293 = vunpack.c.h.b16 %v1951
    %v2294 = vunpack.c.l.b16 %v1952
    %v2295 = vunpack.c.h.b16 %v1952
    %v2296 = vunpack.c.l.b16 %v1953
    %v2297 = vunpack.c.h.b16 %v1953
    %v2298 = vunpack.c.l.b16 %v1954
    %v2299 = vunpack.c.h.b16 %v1954
    %v2300 = vunpack.c.l.b16 %v1955
    %v2301 = vunpack.c.h.b16 %v1955
    %v2302 = vunpack.c.l.b16 %v1956
    %v2303 = vunpack.c.h.b16 %v1956
    %v2304 = vunpack.c.l.b16 %v1957
    %v2305 = vunpack.c.h.b16 %v1957
    %v2306 = vunpack.c.l.b16 %v1958
    %v2307 = vunpack.c.h.b16 %v1958
    %v2308 = vunpack.c.l.b16 %v1959
    %v2309 = vunpack.c.h.b16 %v1959
    %v2310 = vunpack.c.l.b16 %v1960
    %v2311 = vunpack.c.h.b16 %v1960
    %v2312 = vunpack.c.l.b16 %v1961
    %v2313 = vunpack.c.h.b16 %v1961
    %v2314 = vunpack.c.l.b16 %v1962
    %v2315 = vunpack.c.h.b16 %v1962
    %v2316 = vunpack.c.l.b16 %v1963
    %v2317 = vunpack.c.h.b16 %v1963
    %v2318 = vunpack.c.l.b16 %v1964
    %v2319 = vunpack.c.h.b16 %v1964
    %v2320 = vunpack.c.l.b16 %v1965
    %v2321 = vunpack.c.h.b16 %v1965
    %v2322 = vunpack.c.l.b16 %v1966
    %v2323 = vunpack.c.h.b16 %v1966
    %v2324 = vunpack.c.l.b16 %v1967
    %v2325 = vunpack.c.h.b16 %v1967
    %v2326 = vunpack.c.l.b16 %v1968
    %v2327 = vunpack.c.h.b16 %v1968
    %v2328 = vunpack.c.l.b16 %v1969
    %v2329 = vunpack.c.h.b16 %v1969
    %v2330 = vunpack.c.l.b16 %v1970
    %v2331 = vunpack.c.h.b16 %v1970
    %v2332 = vunpack.c.l.b16 %v1971
    %v2333 = vunpack.c.h.b16 %v1971
    %v2334 = vunpack.c.l.b16 %v1972
    %v2335 = vunpack.c.h.b16 %v1972
    %v2336 = vunpack.c.l.b16 %v1973
    %v2337 = vunpack.c.h.b16 %v1973
    %v2338 = vunpack.c.l.b16 %v1974
    %v2339 = vunpack.c.h.b16 %v1974
    %v2340 = vunpack.c.l.b16 %v1975
    %v2341 = vunpack.c.h.b16 %v1975
    %v2342 = vunpack.c.l.b16 %v1976
    %v2343 = vunpack.c.h.b16 %v1976
    %v2344 = vunpack.c.l.b16 %v1977
    %v2345 = vunpack.c.h.b16 %v1977
    %v2346 = vunpack.c.l.b16 %v1978
    %v2347 = vunpack.c.h.b16 %v1978
    %v2348 = vunpack.c.l.b16 %v1979
    %v2349 = vunpack.c.h.b16 %v1979
    %v2350 = vunpack.c.l.b16 %v1980
    %v2351 = vunpack.c.h.b16 %v1980
    %v2352 = vunpack.c.l.b16 %v1981
    %v2353 = vunpack.c.h.b16 %v1981
    %v2354 = vunpack.c.l.b16 %v1982
    %v2355 = vunpack.c.h.b16 %v1982
    %v2356 = vunpack.c.l.b16 %v1983
    %v2357 = vunpack.c.h.b16 %v1983
    %v2358 = vunpack.c.l.b16 %v1984
    %v2359 = vunpack.c.h.b16 %v1984
    %v2360 = vunpack.c.l.b16 %v1985
    %v2361 = vunpack.c.h.b16 %v1985
    %v2362 = vunpack.c.l.b16 %v1986
    %v2363 = vunpack.c.h.b16 %v1986
    %v2364 = vunpack.c.l.b16 %v1987
    %v2365 = vunpack.c.h.b16 %v1987
    %v2366 = vunpack.c.l.b16 %v1988
    %v2367 = vunpack.c.h.b16 %v1988
    %v2368 = vunpack.c.l.b16 %v1989
    %v2369 = vunpack.c.h.b16 %v1989
    %v2370 = vunpack.c.l.b16 %v1990
    %v2371 = vunpack.c.h.b16 %v1990
    %v2372 = vunpack.c.l.b16 %v1991
    %v2373 = vunpack.c.h.b16 %v1991
    %v2374 = vunpack.c.l.b16 %v1992
    %v2375 = vunpack.c.h.b16 %v1992
    %v2376 = vunpack.c.l.b16 %v1993
    %v2377 = vunpack.c.h.b16 %v1993
    %v2378 = vunpack.c.l.b16 %v1994
    %v2379 = vunpack.c.h.b16 %v1994
    %v2380 = vunpack.c.l.b16 %v1995
    %v2381 = vunpack.c.h.b16 %v1995
    %v2382 = vunpack.c.l.b16 %v1996
    %v2383 = vunpack.c.h.b16 %v1996
    %v2384 = vunpack.c.l.b16 %v1997
    %v2385 = vunpack.c.h.b16 %v1997
    %v2386 = vunpack.c.l.b16 %v1998
    %v2387 = vunpack.c.h.b16 %v1998
    %v2388 = vunpack.c.l.b16 %v1999
    %v2389 = vunpack.c.h.b16 %v1999
    %v2390 = vunpack.c.l.b16 %v2000
    %v2391 = vunpack.c.h.b16 %v2000
    %v2392 = vunpack.c.l.b16 %v2001
    %v2393 = vunpack.c.h.b16 %v2001
    %v2394 = vunpack.c.l.b16 %v2002
    %v2395 = vunpack.c.h.b16 %v2002
    %v2396 = vunpack.c.l.b16 %v2003
    %v2397 = vunpack.c.h.b16 %v2003
    %v2398 = vpack.c.b16 %v2146, %v2142
    %v2399 = vpack.c.b16 %v2147, %v2143
    %v2400 = vpack.c.b16 %v2148, %v2144
    %v2401 = vpack.c.b16 %v2149, %v2145
    %v2402 = vpack.c.b16 %v2154, %v2150
    %v2403 = vpack.c.b16 %v2155, %v2151
    %v2404 = vpack.c.b16 %v2156, %v2152
    %v2405 = vpack.c.b16 %v2157, %v2153
    %v2406 = vpack.c.b16 %v2162, %v2158
    %v2407 = vpack.c.b16 %v2163, %v2159
    %v2408 = vpack.c.b16 %v2164, %v2160
    %v2409 = vpack.c.b16 %v2165, %v2161
    %v2410 = vpack.c.b16 %v2170, %v2166
    %v2411 = vpack.c.b16 %v2171, %v2167
    %v2412 = vpack.c.b16 %v2172, %v2168
    %v2413 = vpack.c.b16 %v2173, %v2169
    %v2414 = vpack.c.b16 %v2178, %v2174
    %v2415 = vpack.c.b16 %v2179, %v2175
    %v2416 = vpack.c.b16 %v2180, %v2176
    %v2417 = vpack.c.b16 %v2181, %v2177
    %v2418 = vpack.c.b16 %v2186, %v2182
    %v2419 = vpack.c.b16 %v2187, %v2183
    %v2420 = vpack.c.b16 %v2188, %v2184
    %v2421 = vpack.c.b16 %v2189, %v2185
    %v2422 = vpack.c.b16 %v2194, %v2190
    %v2423 = vpack.c.b16 %v2195, %v2191
    %v2424 = vpack.c.b16 %v2196, %v2192
    %v2425 = vpack.c.b16 %v2197, %v2193
    %v2426 = vpack.c.b16 %v2202, %v2198
    %v2427 = vpack.c.b16 %v2203, %v2199
    %v2428 = vpack.c.b16 %v2204, %v2200
    %v2429 = vpack.c.b16 %v2205, %v2201
    %v2430 = vpack.c.b16 %v2210, %v2206
    %v2431 = vpack.c.b16 %v2211, %v2207
    %v2432 = vpack.c.b16 %v2212, %v2208
    %v2433 = vpack.c.b16 %v2213, %v2209
    %v2434 = vpack.c.b16 %v2218, %v2214
    %v2435 = vpack.c.b16 %v2219, %v2215
    %v2436 = vpack.c.b16 %v2220, %v2216
    %v2437 = vpack.c.b16 %v2221, %v2217
    %v2438 = vpack.c.b16 %v2226, %v2222
    %v2439 = vpack.c.b16 %v2227, %v2223
    %v2440 = vpack.c.b16 %v2228, %v2224
    %v2441 = vpack.c.b16 %v2229, %v2225
    %v2442 = vpack.c.b16 %v2234, %v2230
    %v2443 = vpack.c.b16 %v2235, %v2231
    %v2444 = vpack.c.b16 %v2236, %v2232
    %v2445 = vpack.c.b16 %v2237, %v2233
    %v2446 = vpack.c.b16 %v2242, %v2238
    %v2447 = vpack.c.b16 %v2243, %v2239
    %v2448 = vpack.c.b16 %v2244, %v2240
    %v2449 = vpack.c.b16 %v2245, %v2241
    %v2450 = vpack.c.b16 %v2250, %v2246
    %v2451 = vpack.c.b16 %v2251, %v2247
    %v2452 = vpack.c.b16 %v2252, %v2248
    %v2453 = vpack.c.b16 %v2253, %v2249
    %v2454 = vpack.c.b16 %v2258, %v2254
    %v2455 = vpack.c.b16 %v2259, %v2255
    %v2456 = vpack.c.b16 %v2260, %v2256
    %v2457 = vpack.c.b16 %v2261, %v2257
    %v2458 = vpack.c.b16 %v2266, %v2262
    %v2459 = vpack.c.b16 %v2267, %v2263
    %v2460 = vpack.c.b16 %v2268, %v2264
    %v2461 = vpack.c.b16 %v2269, %v2265
    %v2462 = vpack.c.b16 %v2274, %v2270
    %v2463 = vpack.c.b16 %v2275, %v2271
    %v2464 = vpack.c.b16 %v2276, %v2272
    %v2465 = vpack.c.b16 %v2277, %v2273
    %v2466 = vpack.c.b16 %v2282, %v2278
    %v2467 = vpack.c.b16 %v2283, %v2279
    %v2468 = vpack.c.b16 %v2284, %v2280
    %v2469 = vpack.c.b16 %v2285, %v2281
    %v2470 = vpack.c.b16 %v2290, %v2286
    %v2471 = vpack.c.b16 %v2291, %v2287
    %v2472 = vpack.c.b16 %v2292, %v2288
    %v2473 = vpack.c.b16 %v2293, %v2289
    %v2474 = vpack.c.b16 %v2298, %v2294
    %v2475 = vpack.c.b16 %v2299, %v2295
    %v2476 = vpack.c.b16 %v2300, %v2296
    %v2477 = vpack.c.b16 %v2301, %v2297
    %v2478 = vpack.c.b16 %v2306, %v2302
    %v2479 = vpack.c.b16 %v2307, %v2303
    %v2480 = vpack.c.b16 %v2308, %v2304
    %v2481 = vpack.c.b16 %v2309, %v2305
    %v2482 = vpack.c.b16 %v2314, %v2310
    %v2483 = vpack.c.b16 %v2315, %v2311
    %v2484 = vpack.c.b16 %v2316, %v2312
    %v2485 = vpack.c.b16 %v2317, %v2313
    %v2486 = vpack.c.b16 %v2322, %v2318
    %v2487 = vpack.c.b16 %v2323, %v2319
    %v2488 = vpack.c.b16 %v2324, %v2320
    %v2489 = vpack.c.b16 %v2325, %v2321
    %v2490 = vpack.c.b16 %v2330, %v2326
    %v2491 = vpack.c.b16 %v2331, %v2327
    %v2492 = vpack.c.b16 %v2332, %v2328
    %v2493 = vpack.c.b16 %v2333, %v2329
    %v2494 = vpack.c.b16 %v2338, %v2334
    %v2495 = vpack.c.b16 %v2339, %v2335
    %v2496 = vpack.c.b16 %v2340, %v2336
    %v2497 = vpack.c.b16 %v2341, %v2337
    %v2498 = vpack.c.b16 %v2346, %v2342
    %v2499 = vpack.c.b16 %v2347, %v2343
    %v2500 = vpack.c.b16 %v2348, %v2344
    %v2501 = vpack.c.b16 %v2349, %v2345
    %v2502 = vpack.c.b16 %v2354, %v2350
    %v2503 = vpack.c.b16 %v2355, %v2351
    %v2504 = vpack.c.b16 %v2356, %v2352
    %v2505 = vpack.c.b16 %v2357, %v2353
    %v2506 = vpack.c.b16 %v2362, %v2358
    %v2507 = vpack.c.b16 %v2363, %v2359
    %v2508 = vpack.c.b16 %v2364, %v2360
    %v2509 = vpack.c.b16 %v2365, %v2361
    %v2510 = vpack.c.b16 %v2370, %v2366
    %v2511 = vpack.c.b16 %v2371, %v2367
    %v2512 = vpack.c.b16 %v2372, %v2368
    %v2513 = vpack.c.b16 %v2373, %v2369
    %v2514 = vpack.c.b16 %v2378, %v2374
    %v2515 = vpack.c.b16 %v2379, %v2375
    %v2516 = vpack.c.b16 %v2380, %v2376
    %v2517 = vpack.c.b16 %v2381, %v2377
    %v2518 = vpack.c.b16 %v2386, %v2382
    %v2519 = vpack.c.b16 %v2387, %v2383
    %v2520 = vpack.c.b16 %v2388, %v2384
    %v2521 = vpack.c.b16 %v2389, %v2385
    %v2522 = vpack.c.b16 %v2394, %v2390
    %v2523 = vpack.c.b16 %v2395, %v2391
    %v2524 = vpack.c.b16 %v2396, %v2392
    %v2525 = vpack.c.b16 %v2397, %v2393
    %2654 = vmatpush.bf16.msra.mxu0 %v2426
    %2655 = vmatpush.bf16.msra.mxu0 %v2422
    %2656 = vmatpush.bf16.msra.mxu0 %v2418
    %2657 = vmatpush.bf16.msra.mxu0 %v2414
    %2658 = vmatpush.bf16.msra.mxu0 %v2410
    %2659 = vmatpush.bf16.msra.mxu0 %v2406
    %2660 = vmatpush.bf16.msra.mxu0 %v2402
    %2661 = vmatpush.bf16.msra.mxu0 %v2398
    %2662 = vmatmul.bf16.gmra.mxu0 %v1812
    %v2663 = vpop.f32.mrf.mxu0
    %v2664 = vadd.f32 %v2006, %v2663
    %v2665 = vpop.f32.mrf.mxu0
    %v2666 = vadd.f32 %v2006, %v2665
    %2667 = vmatmul.bf16.gmra.mxu0 %v1816
    %v2668 = vpop.f32.mrf.mxu0
    %v2669 = vadd.f32 %v2006, %v2668
    %v2670 = vpop.f32.mrf.mxu0
    %v2671 = vadd.f32 %v2006, %v2670
    %2672 = vmatmul.bf16.gmra.mxu0 %v1820
    %v2673 = vpop.f32.mrf.mxu0
    %v2674 = vadd.f32 %v2006, %v2673
    %v2675 = vpop.f32.mrf.mxu0
    %v2676 = vadd.f32 %v2006, %v2675
    %2677 = vmatmul.bf16.gmra.mxu0 %v1824
    %v2678 = vpop.f32.mrf.mxu0
    %v2679 = vadd.f32 %v2006, %v2678
    %v2680 = vpop.f32.mrf.mxu0
    %v2681 = vadd.f32 %v2006, %v2680
    %2682 = vmatmul.bf16.gmra.mxu0 %v1828
    %v2683 = vpop.f32.mrf.mxu0
    %v2684 = vadd.f32 %v2006, %v2683
    %v2685 = vpop.f32.mrf.mxu0
    %v2686 = vadd.f32 %v2006, %v2685
    %2687 = vmatmul.bf16.gmra.mxu0 %v1832
    %v2688 = vpop.f32.mrf.mxu0
    %v2689 = vadd.f32 %v2006, %v2688
    %v2690 = vpop.f32.mrf.mxu0
    %v2691 = vadd.f32 %v2006, %v2690
    %2692 = vmatmul.bf16.gmra.mxu0 %v1836
    %v2693 = vpop.f32.mrf.mxu0
    %v2694 = vadd.f32 %v2006, %v2693
    %v2695 = vpop.f32.mrf.mxu0
    %v2696 = vadd.f32 %v2006, %v2695
    %2697 = vmatmul.bf16.gmra.mxu0 %v1840
    %v2698 = vpop.f32.mrf.mxu0
    %v2699 = vadd.f32 %v2006, %v2698
    %v2700 = vpop.f32.mrf.mxu0
    %v2701 = vadd.f32 %v2006, %v2700
    %2702 = vmatmul.bf16.gmra.mxu0 %v1844
    %v2703 = vpop.f32.mrf.mxu0
    %v2704 = vadd.f32 %v2006, %v2703
    %v2705 = vpop.f32.mrf.mxu0
    %v2706 = vadd.f32 %v2006, %v2705
    %2707 = vmatmul.bf16.gmra.mxu0 %v1848
    %v2708 = vpop.f32.mrf.mxu0
    %v2709 = vadd.f32 %v2006, %v2708
    %v2710 = vpop.f32.mrf.mxu0
    %v2711 = vadd.f32 %v2006, %v2710
    %2712 = vmatmul.bf16.gmra.mxu0 %v1852
    %v2713 = vpop.f32.mrf.mxu0
    %v2714 = vadd.f32 %v2006, %v2713
    %v2715 = vpop.f32.mrf.mxu0
    %v2716 = vadd.f32 %v2006, %v2715
    %2717 = vmatmul.bf16.gmra.mxu0 %v1856
    %v2718 = vpop.f32.mrf.mxu0
    %v2719 = vadd.f32 %v2006, %v2718
    %v2720 = vpop.f32.mrf.mxu0
    %v2721 = vadd.f32 %v2006, %v2720
    %2722 = vmatmul.bf16.gmra.mxu0 %v1860
    %v2723 = vpop.f32.mrf.mxu0
    %v2724 = vadd.f32 %v2006, %v2723
    %v2725 = vpop.f32.mrf.mxu0
    %v2726 = vadd.f32 %v2006, %v2725
    %2727 = vmatmul.bf16.gmra.mxu0 %v1864
    %v2728 = vpop.f32.mrf.mxu0
    %v2729 = vadd.f32 %v2006, %v2728
    %v2730 = vpop.f32.mrf.mxu0
    %v2731 = vadd.f32 %v2006, %v2730
    %2732 = vmatmul.bf16.gmra.mxu0 %v1868
    %v2733 = vpop.f32.mrf.mxu0
    %v2734 = vadd.f32 %v2006, %v2733
    %v2735 = vpop.f32.mrf.mxu0
    %v2736 = vadd.f32 %v2006, %v2735
    %2737 = vmatmul.bf16.gmra.mxu0 %v1872
    %v2738 = vpop.f32.mrf.mxu0
    %v2739 = vadd.f32 %v2006, %v2738
    %v2740 = vpop.f32.mrf.mxu0
    %v2741 = vadd.f32 %v2006, %v2740
    %2742 = vdwg.mxu0
    %2743 = vmatpush.bf16.msra.mxu0 %v2458
    %2744 = vmatpush.bf16.msra.mxu0 %v2454
    %2745 = vmatpush.bf16.msra.mxu0 %v2450
    %2746 = vmatpush.bf16.msra.mxu0 %v2446
    %2747 = vmatpush.bf16.msra.mxu0 %v2442
    %2748 = vmatpush.bf16.msra.mxu0 %v2438
    %2749 = vmatpush.bf16.msra.mxu0 %v2434
    %2750 = vmatpush.bf16.msra.mxu0 %v2430
    %2751 = vmatmul.bf16.gmra.mxu0 %v1813
    %v2752 = vpop.f32.mrf.mxu0
    %v2753 = vadd.f32 %v2664, %v2752
    %v2754 = vpop.f32.mrf.mxu0
    %v2755 = vadd.f32 %v2666, %v2754
    %2756 = vmatmul.bf16.gmra.mxu0 %v1817
    %v2757 = vpop.f32.mrf.mxu0
    %v2758 = vadd.f32 %v2669, %v2757
    %v2759 = vpop.f32.mrf.mxu0
    %v2760 = vadd.f32 %v2671, %v2759
    %2761 = vmatmul.bf16.gmra.mxu0 %v1821
    %v2762 = vpop.f32.mrf.mxu0
    %v2763 = vadd.f32 %v2674, %v2762
    %v2764 = vpop.f32.mrf.mxu0
    %v2765 = vadd.f32 %v2676, %v2764
    %2766 = vmatmul.bf16.gmra.mxu0 %v1825
    %v2767 = vpop.f32.mrf.mxu0
    %v2768 = vadd.f32 %v2679, %v2767
    %v2769 = vpop.f32.mrf.mxu0
    %v2770 = vadd.f32 %v2681, %v2769
    %2771 = vmatmul.bf16.gmra.mxu0 %v1829
    %v2772 = vpop.f32.mrf.mxu0
    %v2773 = vadd.f32 %v2684, %v2772
    %v2774 = vpop.f32.mrf.mxu0
    %v2775 = vadd.f32 %v2686, %v2774
    %2776 = vmatmul.bf16.gmra.mxu0 %v1833
    %v2777 = vpop.f32.mrf.mxu0
    %v2778 = vadd.f32 %v2689, %v2777
    %v2779 = vpop.f32.mrf.mxu0
    %v2780 = vadd.f32 %v2691, %v2779
    %2781 = vmatmul.bf16.gmra.mxu0 %v1837
    %v2782 = vpop.f32.mrf.mxu0
    %v2783 = vadd.f32 %v2694, %v2782
    %v2784 = vpop.f32.mrf.mxu0
    %v2785 = vadd.f32 %v2696, %v2784
    %2786 = vmatmul.bf16.gmra.mxu0 %v1841
    %v2787 = vpop.f32.mrf.mxu0
    %v2788 = vadd.f32 %v2699, %v2787
    %v2789 = vpop.f32.mrf.mxu0
    %v2790 = vadd.f32 %v2701, %v2789
    %2791 = vmatmul.bf16.gmra.mxu0 %v1845
    %v2792 = vpop.f32.mrf.mxu0
    %v2793 = vadd.f32 %v2704, %v2792
    %v2794 = vpop.f32.mrf.mxu0
    %v2795 = vadd.f32 %v2706, %v2794
    %2796 = vmatmul.bf16.gmra.mxu0 %v1849
    %v2797 = vpop.f32.mrf.mxu0
    %v2798 = vadd.f32 %v2709, %v2797
    %v2799 = vpop.f32.mrf.mxu0
    %v2800 = vadd.f32 %v2711, %v2799
    %2801 = vmatmul.bf16.gmra.mxu0 %v1853
    %v2802 = vpop.f32.mrf.mxu0
    %v2803 = vadd.f32 %v2714, %v2802
    %v2804 = vpop.f32.mrf.mxu0
    %v2805 = vadd.f32 %v2716, %v2804
    %2806 = vmatmul.bf16.gmra.mxu0 %v1857
    %v2807 = vpop.f32.mrf.mxu0
    %v2808 = vadd.f32 %v2719, %v2807
    %v2809 = vpop.f32.mrf.mxu0
    %v2810 = vadd.f32 %v2721, %v2809
    %2811 = vmatmul.bf16.gmra.mxu0 %v1861
    %v2812 = vpop.f32.mrf.mxu0
    %v2813 = vadd.f32 %v2724, %v2812
    %v2814 = vpop.f32.mrf.mxu0
    %v2815 = vadd.f32 %v2726, %v2814
    %2816 = vmatmul.bf16.gmra.mxu0 %v1865
    %v2817 = vpop.f32.mrf.mxu0
    %v2818 = vadd.f32 %v2729, %v2817
    %v2819 = vpop.f32.mrf.mxu0
    %v2820 = vadd.f32 %v2731, %v2819
    %2821 = vmatmul.bf16.gmra.mxu0 %v1869
    %v2822 = vpop.f32.mrf.mxu0
    %v2823 = vadd.f32 %v2734, %v2822
    %v2824 = vpop.f32.mrf.mxu0
    %v2825 = vadd.f32 %v2736, %v2824
    %2826 = vmatmul.bf16.gmra.mxu0 %v1873
    %v2827 = vpop.f32.mrf.mxu0
    %v2828 = vadd.f32 %v2739, %v2827
    %v2829 = vpop.f32.mrf.mxu0
    %v2830 = vadd.f32 %v2741, %v2829
    %2831 = vdwg.mxu0
    %2832 = vmatpush.bf16.msra.mxu0 %v2490
    %2833 = vmatpush.bf16.msra.mxu0 %v2486
    %2834 = vmatpush.bf16.msra.mxu0 %v2482
    %2835 = vmatpush.bf16.msra.mxu0 %v2478
    %2836 = vmatpush.bf16.msra.mxu0 %v2474
    %2837 = vmatpush.bf16.msra.mxu0 %v2470
    %2838 = vmatpush.bf16.msra.mxu0 %v2466
    %2839 = vmatpush.bf16.msra.mxu0 %v2462
    %2840 = vmatmul.bf16.gmra.mxu0 %v1814
    %v2841 = vpop.f32.mrf.mxu0
    %v2842 = vadd.f32 %v2753, %v2841
    %v2843 = vpop.f32.mrf.mxu0
    %v2844 = vadd.f32 %v2755, %v2843
    %2845 = vmatmul.bf16.gmra.mxu0 %v1818
    %v2846 = vpop.f32.mrf.mxu0
    %v2847 = vadd.f32 %v2758, %v2846
    %v2848 = vpop.f32.mrf.mxu0
    %v2849 = vadd.f32 %v2760, %v2848
    %2850 = vmatmul.bf16.gmra.mxu0 %v1822
    %v2851 = vpop.f32.mrf.mxu0
    %v2852 = vadd.f32 %v2763, %v2851
    %v2853 = vpop.f32.mrf.mxu0
    %v2854 = vadd.f32 %v2765, %v2853
    %2855 = vmatmul.bf16.gmra.mxu0 %v1826
    %v2856 = vpop.f32.mrf.mxu0
    %v2857 = vadd.f32 %v2768, %v2856
    %v2858 = vpop.f32.mrf.mxu0
    %v2859 = vadd.f32 %v2770, %v2858
    %2860 = vmatmul.bf16.gmra.mxu0 %v1830
    %v2861 = vpop.f32.mrf.mxu0
    %v2862 = vadd.f32 %v2773, %v2861
    %v2863 = vpop.f32.mrf.mxu0
    %v2864 = vadd.f32 %v2775, %v2863
    %2865 = vmatmul.bf16.gmra.mxu0 %v1834
    %v2866 = vpop.f32.mrf.mxu0
    %v2867 = vadd.f32 %v2778, %v2866
    %v2868 = vpop.f32.mrf.mxu0
    %v2869 = vadd.f32 %v2780, %v2868
    %2870 = vmatmul.bf16.gmra.mxu0 %v1838
    %v2871 = vpop.f32.mrf.mxu0
    %v2872 = vadd.f32 %v2783, %v2871
    %v2873 = vpop.f32.mrf.mxu0
    %v2874 = vadd.f32 %v2785, %v2873
    %2875 = vmatmul.bf16.gmra.mxu0 %v1842
    %v2876 = vpop.f32.mrf.mxu0
    %v2877 = vadd.f32 %v2788, %v2876
    %v2878 = vpop.f32.mrf.mxu0
    %v2879 = vadd.f32 %v2790, %v2878
    %2880 = vmatmul.bf16.gmra.mxu0 %v1846
    %v2881 = vpop.f32.mrf.mxu0
    %v2882 = vadd.f32 %v2793, %v2881
    %v2883 = vpop.f32.mrf.mxu0
    %v2884 = vadd.f32 %v2795, %v2883
    %2885 = vmatmul.bf16.gmra.mxu0 %v1850
    %v2886 = vpop.f32.mrf.mxu0
    %v2887 = vadd.f32 %v2798, %v2886
    %v2888 = vpop.f32.mrf.mxu0
    %v2889 = vadd.f32 %v2800, %v2888
    %2890 = vmatmul.bf16.gmra.mxu0 %v1854
    %v2891 = vpop.f32.mrf.mxu0
    %v2892 = vadd.f32 %v2803, %v2891
    %v2893 = vpop.f32.mrf.mxu0
    %v2894 = vadd.f32 %v2805, %v2893
    %2895 = vmatmul.bf16.gmra.mxu0 %v1858
    %v2896 = vpop.f32.mrf.mxu0
    %v2897 = vadd.f32 %v2808, %v2896
    %v2898 = vpop.f32.mrf.mxu0
    %v2899 = vadd.f32 %v2810, %v2898
    %2900 = vmatmul.bf16.gmra.mxu0 %v1862
    %v2901 = vpop.f32.mrf.mxu0
    %v2902 = vadd.f32 %v2813, %v2901
    %v2903 = vpop.f32.mrf.mxu0
    %v2904 = vadd.f32 %v2815, %v2903
    %2905 = vmatmul.bf16.gmra.mxu0 %v1866
    %v2906 = vpop.f32.mrf.mxu0
    %v2907 = vadd.f32 %v2818, %v2906
    %v2908 = vpop.f32.mrf.mxu0
    %v2909 = vadd.f32 %v2820, %v2908
    %2910 = vmatmul.bf16.gmra.mxu0 %v1870
    %v2911 = vpop.f32.mrf.mxu0
    %v2912 = vadd.f32 %v2823, %v2911
    %v2913 = vpop.f32.mrf.mxu0
    %v2914 = vadd.f32 %v2825, %v2913
    %2915 = vmatmul.bf16.gmra.mxu0 %v1874
    %v2916 = vpop.f32.mrf.mxu0
    %v2917 = vadd.f32 %v2828, %v2916
    %v2918 = vpop.f32.mrf.mxu0
    %v2919 = vadd.f32 %v2830, %v2918
    %2920 = vdwg.mxu0
    %2921 = vmatpush.bf16.msra.mxu0 %v2522
    %2922 = vmatpush.bf16.msra.mxu0 %v2518
    %2923 = vmatpush.bf16.msra.mxu0 %v2514
    %2924 = vmatpush.bf16.msra.mxu0 %v2510
    %2925 = vmatpush.bf16.msra.mxu0 %v2506
    %2926 = vmatpush.bf16.msra.mxu0 %v2502
    %2927 = vmatpush.bf16.msra.mxu0 %v2498
    %2928 = vmatpush.bf16.msra.mxu0 %v2494
    %2929 = vmatmul.bf16.gmra.mxu0 %v1815
    %v2930 = vpop.f32.mrf.mxu0
    %v2931 = vadd.f32 %v2842, %v2930
    %v2932 = vpop.f32.mrf.mxu0
    %v2933 = vadd.f32 %v2844, %v2932
    %2934 = vmatmul.bf16.gmra.mxu0 %v1819
    %v2935 = vpop.f32.mrf.mxu0
    %v2936 = vadd.f32 %v2847, %v2935
    %v2937 = vpop.f32.mrf.mxu0
    %v2938 = vadd.f32 %v2849, %v2937
    %2939 = vmatmul.bf16.gmra.mxu0 %v1823
    %v2940 = vpop.f32.mrf.mxu0
    %v2941 = vadd.f32 %v2852, %v2940
    %v2942 = vpop.f32.mrf.mxu0
    %v2943 = vadd.f32 %v2854, %v2942
    %2944 = vmatmul.bf16.gmra.mxu0 %v1827
    %v2945 = vpop.f32.mrf.mxu0
    %v2946 = vadd.f32 %v2857, %v2945
    %v2947 = vpop.f32.mrf.mxu0
    %v2948 = vadd.f32 %v2859, %v2947
    %2949 = vmatmul.bf16.gmra.mxu0 %v1831
    %v2950 = vpop.f32.mrf.mxu0
    %v2951 = vadd.f32 %v2862, %v2950
    %v2952 = vpop.f32.mrf.mxu0
    %v2953 = vadd.f32 %v2864, %v2952
    %2954 = vmatmul.bf16.gmra.mxu0 %v1835
    %v2955 = vpop.f32.mrf.mxu0
    %v2956 = vadd.f32 %v2867, %v2955
    %v2957 = vpop.f32.mrf.mxu0
    %v2958 = vadd.f32 %v2869, %v2957
    %2959 = vmatmul.bf16.gmra.mxu0 %v1839
    %v2960 = vpop.f32.mrf.mxu0
    %v2961 = vadd.f32 %v2872, %v2960
    %v2962 = vpop.f32.mrf.mxu0
    %v2963 = vadd.f32 %v2874, %v2962
    %2964 = vmatmul.bf16.gmra.mxu0 %v1843
    %v2965 = vpop.f32.mrf.mxu0
    %v2966 = vadd.f32 %v2877, %v2965
    %v2967 = vpop.f32.mrf.mxu0
    %v2968 = vadd.f32 %v2879, %v2967
    %2969 = vmatmul.bf16.gmra.mxu0 %v1847
    %v2970 = vpop.f32.mrf.mxu0
    %v2971 = vadd.f32 %v2882, %v2970
    %v2972 = vpop.f32.mrf.mxu0
    %v2973 = vadd.f32 %v2884, %v2972
    %2974 = vmatmul.bf16.gmra.mxu0 %v1851
    %v2975 = vpop.f32.mrf.mxu0
    %v2976 = vadd.f32 %v2887, %v2975
    %v2977 = vpop.f32.mrf.mxu0
    %v2978 = vadd.f32 %v2889, %v2977
    %2979 = vmatmul.bf16.gmra.mxu0 %v1855
    %v2980 = vpop.f32.mrf.mxu0
    %v2981 = vadd.f32 %v2892, %v2980
    %v2982 = vpop.f32.mrf.mxu0
    %v2983 = vadd.f32 %v2894, %v2982
    %2984 = vmatmul.bf16.gmra.mxu0 %v1859
    %v2985 = vpop.f32.mrf.mxu0
    %v2986 = vadd.f32 %v2897, %v2985
    %v2987 = vpop.f32.mrf.mxu0
    %v2988 = vadd.f32 %v2899, %v2987
    %2989 = vmatmul.bf16.gmra.mxu0 %v1863
    %v2990 = vpop.f32.mrf.mxu0
    %v2991 = vadd.f32 %v2902, %v2990
    %v2992 = vpop.f32.mrf.mxu0
    %v2993 = vadd.f32 %v2904, %v2992
    %2994 = vmatmul.bf16.gmra.mxu0 %v1867
    %v2995 = vpop.f32.mrf.mxu0
    %v2996 = vadd.f32 %v2907, %v2995
    %v2997 = vpop.f32.mrf.mxu0
    %v2998 = vadd.f32 %v2909, %v2997
    %2999 = vmatmul.bf16.gmra.mxu0 %v1871
    %v3000 = vpop.f32.mrf.mxu0
    %v3001 = vadd.f32 %v2912, %v3000
    %v3002 = vpop.f32.mrf.mxu0
    %v3003 = vadd.f32 %v2914, %v3002
    %3004 = vmatmul.bf16.gmra.mxu0 %v1875
    %v3005 = vpop.f32.mrf.mxu0
    %v3006 = vadd.f32 %v2917, %v3005
    %v3007 = vpop.f32.mrf.mxu0
    %v3008 = vadd.f32 %v2919, %v3007
    %3009 = vdwg.mxu0
    %3010 = vmatpush.bf16.msra.mxu0 %v2427
    %3011 = vmatpush.bf16.msra.mxu0 %v2423
    %3012 = vmatpush.bf16.msra.mxu0 %v2419
    %3013 = vmatpush.bf16.msra.mxu0 %v2415
    %3014 = vmatpush.bf16.msra.mxu0 %v2411
    %3015 = vmatpush.bf16.msra.mxu0 %v2407
    %3016 = vmatpush.bf16.msra.mxu0 %v2403
    %3017 = vmatpush.bf16.msra.mxu0 %v2399
    %3018 = vmatmul.bf16.gmra.mxu0 %v1812
    %v3019 = vpop.f32.mrf.mxu0
    %v3020 = vadd.f32 %v2007, %v3019
    %v3021 = vpop.f32.mrf.mxu0
    %v3022 = vadd.f32 %v2007, %v3021
    %3023 = vmatmul.bf16.gmra.mxu0 %v1816
    %v3024 = vpop.f32.mrf.mxu0
    %v3025 = vadd.f32 %v2007, %v3024
    %v3026 = vpop.f32.mrf.mxu0
    %v3027 = vadd.f32 %v2007, %v3026
    %3028 = vmatmul.bf16.gmra.mxu0 %v1820
    %v3029 = vpop.f32.mrf.mxu0
    %v3030 = vadd.f32 %v2007, %v3029
    %v3031 = vpop.f32.mrf.mxu0
    %v3032 = vadd.f32 %v2007, %v3031
    %3033 = vmatmul.bf16.gmra.mxu0 %v1824
    %v3034 = vpop.f32.mrf.mxu0
    %v3035 = vadd.f32 %v2007, %v3034
    %v3036 = vpop.f32.mrf.mxu0
    %v3037 = vadd.f32 %v2007, %v3036
    %3038 = vmatmul.bf16.gmra.mxu0 %v1828
    %v3039 = vpop.f32.mrf.mxu0
    %v3040 = vadd.f32 %v2007, %v3039
    %v3041 = vpop.f32.mrf.mxu0
    %v3042 = vadd.f32 %v2007, %v3041
    %3043 = vmatmul.bf16.gmra.mxu0 %v1832
    %v3044 = vpop.f32.mrf.mxu0
    %v3045 = vadd.f32 %v2007, %v3044
    %v3046 = vpop.f32.mrf.mxu0
    %v3047 = vadd.f32 %v2007, %v3046
    %3048 = vmatmul.bf16.gmra.mxu0 %v1836
    %v3049 = vpop.f32.mrf.mxu0
    %v3050 = vadd.f32 %v2007, %v3049
    %v3051 = vpop.f32.mrf.mxu0
    %v3052 = vadd.f32 %v2007, %v3051
    %3053 = vmatmul.bf16.gmra.mxu0 %v1840
    %v3054 = vpop.f32.mrf.mxu0
    %v3055 = vadd.f32 %v2007, %v3054
    %v3056 = vpop.f32.mrf.mxu0
    %v3057 = vadd.f32 %v2007, %v3056
    %3058 = vmatmul.bf16.gmra.mxu0 %v1844
    %v3059 = vpop.f32.mrf.mxu0
    %v3060 = vadd.f32 %v2007, %v3059
    %v3061 = vpop.f32.mrf.mxu0
    %v3062 = vadd.f32 %v2007, %v3061
    %3063 = vmatmul.bf16.gmra.mxu0 %v1848
    %v3064 = vpop.f32.mrf.mxu0
    %v3065 = vadd.f32 %v2007, %v3064
    %v3066 = vpop.f32.mrf.mxu0
    %v3067 = vadd.f32 %v2007, %v3066
    %3068 = vmatmul.bf16.gmra.mxu0 %v1852
    %v3069 = vpop.f32.mrf.mxu0
    %v3070 = vadd.f32 %v2007, %v3069
    %v3071 = vpop.f32.mrf.mxu0
    %v3072 = vadd.f32 %v2007, %v3071
    %3073 = vmatmul.bf16.gmra.mxu0 %v1856
    %v3074 = vpop.f32.mrf.mxu0
    %v3075 = vadd.f32 %v2007, %v3074
    %v3076 = vpop.f32.mrf.mxu0
    %v3077 = vadd.f32 %v2007, %v3076
    %3078 = vmatmul.bf16.gmra.mxu0 %v1860
    %v3079 = vpop.f32.mrf.mxu0
    %v3080 = vadd.f32 %v2007, %v3079
    %v3081 = vpop.f32.mrf.mxu0
    %v3082 = vadd.f32 %v2007, %v3081
    %3083 = vmatmul.bf16.gmra.mxu0 %v1864
    %v3084 = vpop.f32.mrf.mxu0
    %v3085 = vadd.f32 %v2007, %v3084
    %v3086 = vpop.f32.mrf.mxu0
    %v3087 = vadd.f32 %v2007, %v3086
    %3088 = vmatmul.bf16.gmra.mxu0 %v1868
    %v3089 = vpop.f32.mrf.mxu0
    %v3090 = vadd.f32 %v2007, %v3089
    %v3091 = vpop.f32.mrf.mxu0
    %v3092 = vadd.f32 %v2007, %v3091
    %3093 = vmatmul.bf16.gmra.mxu0 %v1872
    %v3094 = vpop.f32.mrf.mxu0
    %v3095 = vadd.f32 %v2007, %v3094
    %v3096 = vpop.f32.mrf.mxu0
    %v3097 = vadd.f32 %v2007, %v3096
    %3098 = vdwg.mxu0
    %3099 = vmatpush.bf16.msra.mxu0 %v2459
    %3100 = vmatpush.bf16.msra.mxu0 %v2455
    %3101 = vmatpush.bf16.msra.mxu0 %v2451
    %3102 = vmatpush.bf16.msra.mxu0 %v2447
    %3103 = vmatpush.bf16.msra.mxu0 %v2443
    %3104 = vmatpush.bf16.msra.mxu0 %v2439
    %3105 = vmatpush.bf16.msra.mxu0 %v2435
    %3106 = vmatpush.bf16.msra.mxu0 %v2431
    %3107 = vmatmul.bf16.gmra.mxu0 %v1813
    %v3108 = vpop.f32.mrf.mxu0
    %v3109 = vadd.f32 %v3020, %v3108
    %v3110 = vpop.f32.mrf.mxu0
    %v3111 = vadd.f32 %v3022, %v3110
    %3112 = vmatmul.bf16.gmra.mxu0 %v1817
    %v3113 = vpop.f32.mrf.mxu0
    %v3114 = vadd.f32 %v3025, %v3113
    %v3115 = vpop.f32.mrf.mxu0
    %v3116 = vadd.f32 %v3027, %v3115
    %3117 = vmatmul.bf16.gmra.mxu0 %v1821
    %v3118 = vpop.f32.mrf.mxu0
    %v3119 = vadd.f32 %v3030, %v3118
    %v3120 = vpop.f32.mrf.mxu0
    %v3121 = vadd.f32 %v3032, %v3120
    %3122 = vmatmul.bf16.gmra.mxu0 %v1825
    %v3123 = vpop.f32.mrf.mxu0
    %v3124 = vadd.f32 %v3035, %v3123
    %v3125 = vpop.f32.mrf.mxu0
    %v3126 = vadd.f32 %v3037, %v3125
    %3127 = vmatmul.bf16.gmra.mxu0 %v1829
    %v3128 = vpop.f32.mrf.mxu0
    %v3129 = vadd.f32 %v3040, %v3128
    %v3130 = vpop.f32.mrf.mxu0
    %v3131 = vadd.f32 %v3042, %v3130
    %3132 = vmatmul.bf16.gmra.mxu0 %v1833
    %v3133 = vpop.f32.mrf.mxu0
    %v3134 = vadd.f32 %v3045, %v3133
    %v3135 = vpop.f32.mrf.mxu0
    %v3136 = vadd.f32 %v3047, %v3135
    %3137 = vmatmul.bf16.gmra.mxu0 %v1837
    %v3138 = vpop.f32.mrf.mxu0
    %v3139 = vadd.f32 %v3050, %v3138
    %v3140 = vpop.f32.mrf.mxu0
    %v3141 = vadd.f32 %v3052, %v3140
    %3142 = vmatmul.bf16.gmra.mxu0 %v1841
    %v3143 = vpop.f32.mrf.mxu0
    %v3144 = vadd.f32 %v3055, %v3143
    %v3145 = vpop.f32.mrf.mxu0
    %v3146 = vadd.f32 %v3057, %v3145
    %3147 = vmatmul.bf16.gmra.mxu0 %v1845
    %v3148 = vpop.f32.mrf.mxu0
    %v3149 = vadd.f32 %v3060, %v3148
    %v3150 = vpop.f32.mrf.mxu0
    %v3151 = vadd.f32 %v3062, %v3150
    %3152 = vmatmul.bf16.gmra.mxu0 %v1849
    %v3153 = vpop.f32.mrf.mxu0
    %v3154 = vadd.f32 %v3065, %v3153
    %v3155 = vpop.f32.mrf.mxu0
    %v3156 = vadd.f32 %v3067, %v3155
    %3157 = vmatmul.bf16.gmra.mxu0 %v1853
    %v3158 = vpop.f32.mrf.mxu0
    %v3159 = vadd.f32 %v3070, %v3158
    %v3160 = vpop.f32.mrf.mxu0
    %v3161 = vadd.f32 %v3072, %v3160
    %3162 = vmatmul.bf16.gmra.mxu0 %v1857
    %v3163 = vpop.f32.mrf.mxu0
    %v3164 = vadd.f32 %v3075, %v3163
    %v3165 = vpop.f32.mrf.mxu0
    %v3166 = vadd.f32 %v3077, %v3165
    %3167 = vmatmul.bf16.gmra.mxu0 %v1861
    %v3168 = vpop.f32.mrf.mxu0
    %v3169 = vadd.f32 %v3080, %v3168
    %v3170 = vpop.f32.mrf.mxu0
    %v3171 = vadd.f32 %v3082, %v3170
    %3172 = vmatmul.bf16.gmra.mxu0 %v1865
    %v3173 = vpop.f32.mrf.mxu0
    %v3174 = vadd.f32 %v3085, %v3173
    %v3175 = vpop.f32.mrf.mxu0
    %v3176 = vadd.f32 %v3087, %v3175
    %3177 = vmatmul.bf16.gmra.mxu0 %v1869
    %v3178 = vpop.f32.mrf.mxu0
    %v3179 = vadd.f32 %v3090, %v3178
    %v3180 = vpop.f32.mrf.mxu0
    %v3181 = vadd.f32 %v3092, %v3180
    %3182 = vmatmul.bf16.gmra.mxu0 %v1873
    %v3183 = vpop.f32.mrf.mxu0
    %v3184 = vadd.f32 %v3095, %v3183
    %v3185 = vpop.f32.mrf.mxu0
    %v3186 = vadd.f32 %v3097, %v3185
    %3187 = vdwg.mxu0
    %3188 = vmatpush.bf16.msra.mxu0 %v2491
    %3189 = vmatpush.bf16.msra.mxu0 %v2487
    %3190 = vmatpush.bf16.msra.mxu0 %v2483
    %3191 = vmatpush.bf16.msra.mxu0 %v2479
    %3192 = vmatpush.bf16.msra.mxu0 %v2475
    %3193 = vmatpush.bf16.msra.mxu0 %v2471
    %3194 = vmatpush.bf16.msra.mxu0 %v2467
    %3195 = vmatpush.bf16.msra.mxu0 %v2463
    %3196 = vmatmul.bf16.gmra.mxu0 %v1814
    %v3197 = vpop.f32.mrf.mxu0
    %v3198 = vadd.f32 %v3109, %v3197
    %v3199 = vpop.f32.mrf.mxu0
    %v3200 = vadd.f32 %v3111, %v3199
    %3201 = vmatmul.bf16.gmra.mxu0 %v1818
    %v3202 = vpop.f32.mrf.mxu0
    %v3203 = vadd.f32 %v3114, %v3202
    %v3204 = vpop.f32.mrf.mxu0
    %v3205 = vadd.f32 %v3116, %v3204
    %3206 = vmatmul.bf16.gmra.mxu0 %v1822
    %v3207 = vpop.f32.mrf.mxu0
    %v3208 = vadd.f32 %v3119, %v3207
    %v3209 = vpop.f32.mrf.mxu0
    %v3210 = vadd.f32 %v3121, %v3209
    %3211 = vmatmul.bf16.gmra.mxu0 %v1826
    %v3212 = vpop.f32.mrf.mxu0
    %v3213 = vadd.f32 %v3124, %v3212
    %v3214 = vpop.f32.mrf.mxu0
    %v3215 = vadd.f32 %v3126, %v3214
    %3216 = vmatmul.bf16.gmra.mxu0 %v1830
    %v3217 = vpop.f32.mrf.mxu0
    %v3218 = vadd.f32 %v3129, %v3217
    %v3219 = vpop.f32.mrf.mxu0
    %v3220 = vadd.f32 %v3131, %v3219
    %3221 = vmatmul.bf16.gmra.mxu0 %v1834
    %v3222 = vpop.f32.mrf.mxu0
    %v3223 = vadd.f32 %v3134, %v3222
    %v3224 = vpop.f32.mrf.mxu0
    %v3225 = vadd.f32 %v3136, %v3224
    %3226 = vmatmul.bf16.gmra.mxu0 %v1838
    %v3227 = vpop.f32.mrf.mxu0
    %v3228 = vadd.f32 %v3139, %v3227
    %v3229 = vpop.f32.mrf.mxu0
    %v3230 = vadd.f32 %v3141, %v3229
    %3231 = vmatmul.bf16.gmra.mxu0 %v1842
    %v3232 = vpop.f32.mrf.mxu0
    %v3233 = vadd.f32 %v3144, %v3232
    %v3234 = vpop.f32.mrf.mxu0
    %v3235 = vadd.f32 %v3146, %v3234
    %3236 = vmatmul.bf16.gmra.mxu0 %v1846
    %v3237 = vpop.f32.mrf.mxu0
    %v3238 = vadd.f32 %v3149, %v3237
    %v3239 = vpop.f32.mrf.mxu0
    %v3240 = vadd.f32 %v3151, %v3239
    %3241 = vmatmul.bf16.gmra.mxu0 %v1850
    %v3242 = vpop.f32.mrf.mxu0
    %v3243 = vadd.f32 %v3154, %v3242
    %v3244 = vpop.f32.mrf.mxu0
    %v3245 = vadd.f32 %v3156, %v3244
    %3246 = vmatmul.bf16.gmra.mxu0 %v1854
    %v3247 = vpop.f32.mrf.mxu0
    %v3248 = vadd.f32 %v3159, %v3247
    %v3249 = vpop.f32.mrf.mxu0
    %v3250 = vadd.f32 %v3161, %v3249
    %3251 = vmatmul.bf16.gmra.mxu0 %v1858
    %v3252 = vpop.f32.mrf.mxu0
    %v3253 = vadd.f32 %v3164, %v3252
    %v3254 = vpop.f32.mrf.mxu0
    %v3255 = vadd.f32 %v3166, %v3254
    %3256 = vmatmul.bf16.gmra.mxu0 %v1862
    %v3257 = vpop.f32.mrf.mxu0
    %v3258 = vadd.f32 %v3169, %v3257
    %v3259 = vpop.f32.mrf.mxu0
    %v3260 = vadd.f32 %v3171, %v3259
    %3261 = vmatmul.bf16.gmra.mxu0 %v1866
    %v3262 = vpop.f32.mrf.mxu0
    %v3263 = vadd.f32 %v3174, %v3262
    %v3264 = vpop.f32.mrf.mxu0
    %v3265 = vadd.f32 %v3176, %v3264
    %3266 = vmatmul.bf16.gmra.mxu0 %v1870
    %v3267 = vpop.f32.mrf.mxu0
    %v3268 = vadd.f32 %v3179, %v3267
    %v3269 = vpop.f32.mrf.mxu0
    %v3270 = vadd.f32 %v3181, %v3269
    %3271 = vmatmul.bf16.gmra.mxu0 %v1874
    %v3272 = vpop.f32.mrf.mxu0
    %v3273 = vadd.f32 %v3184, %v3272
    %v3274 = vpop.f32.mrf.mxu0
    %v3275 = vadd.f32 %v3186, %v3274
    %3276 = vdwg.mxu0
    %3277 = vmatpush.bf16.msra.mxu0 %v2523
    %3278 = vmatpush.bf16.msra.mxu0 %v2519
    %3279 = vmatpush.bf16.msra.mxu0 %v2515
    %3280 = vmatpush.bf16.msra.mxu0 %v2511
    %3281 = vmatpush.bf16.msra.mxu0 %v2507
    %3282 = vmatpush.bf16.msra.mxu0 %v2503
    %3283 = vmatpush.bf16.msra.mxu0 %v2499
    %3284 = vmatpush.bf16.msra.mxu0 %v2495
    %3285 = vmatmul.bf16.gmra.mxu0 %v1815
    %v3286 = vpop.f32.mrf.mxu0
    %v3287 = vadd.f32 %v3198, %v3286
    %v3288 = vpop.f32.mrf.mxu0
    %v3289 = vadd.f32 %v3200, %v3288
    %3290 = vmatmul.bf16.gmra.mxu0 %v1819
    %v3291 = vpop.f32.mrf.mxu0
    %v3292 = vadd.f32 %v3203, %v3291
    %v3293 = vpop.f32.mrf.mxu0
    %v3294 = vadd.f32 %v3205, %v3293
    %3295 = vmatmul.bf16.gmra.mxu0 %v1823
    %v3296 = vpop.f32.mrf.mxu0
    %v3297 = vadd.f32 %v3208, %v3296
    %v3298 = vpop.f32.mrf.mxu0
    %v3299 = vadd.f32 %v3210, %v3298
    %3300 = vmatmul.bf16.gmra.mxu0 %v1827
    %v3301 = vpop.f32.mrf.mxu0
    %v3302 = vadd.f32 %v3213, %v3301
    %v3303 = vpop.f32.mrf.mxu0
    %v3304 = vadd.f32 %v3215, %v3303
    %3305 = vmatmul.bf16.gmra.mxu0 %v1831
    %v3306 = vpop.f32.mrf.mxu0
    %v3307 = vadd.f32 %v3218, %v3306
    %v3308 = vpop.f32.mrf.mxu0
    %v3309 = vadd.f32 %v3220, %v3308
    %3310 = vmatmul.bf16.gmra.mxu0 %v1835
    %v3311 = vpop.f32.mrf.mxu0
    %v3312 = vadd.f32 %v3223, %v3311
    %v3313 = vpop.f32.mrf.mxu0
    %v3314 = vadd.f32 %v3225, %v3313
    %3315 = vmatmul.bf16.gmra.mxu0 %v1839
    %v3316 = vpop.f32.mrf.mxu0
    %v3317 = vadd.f32 %v3228, %v3316
    %v3318 = vpop.f32.mrf.mxu0
    %v3319 = vadd.f32 %v3230, %v3318
    %3320 = vmatmul.bf16.gmra.mxu0 %v1843
    %v3321 = vpop.f32.mrf.mxu0
    %v3322 = vadd.f32 %v3233, %v3321
    %v3323 = vpop.f32.mrf.mxu0
    %v3324 = vadd.f32 %v3235, %v3323
    %3325 = vmatmul.bf16.gmra.mxu0 %v1847
    %v3326 = vpop.f32.mrf.mxu0
    %v3327 = vadd.f32 %v3238, %v3326
    %v3328 = vpop.f32.mrf.mxu0
    %v3329 = vadd.f32 %v3240, %v3328
    %3330 = vmatmul.bf16.gmra.mxu0 %v1851
    %v3331 = vpop.f32.mrf.mxu0
    %v3332 = vadd.f32 %v3243, %v3331
    %v3333 = vpop.f32.mrf.mxu0
    %v3334 = vadd.f32 %v3245, %v3333
    %3335 = vmatmul.bf16.gmra.mxu0 %v1855
    %v3336 = vpop.f32.mrf.mxu0
    %v3337 = vadd.f32 %v3248, %v3336
    %v3338 = vpop.f32.mrf.mxu0
    %v3339 = vadd.f32 %v3250, %v3338
    %3340 = vmatmul.bf16.gmra.mxu0 %v1859
    %v3341 = vpop.f32.mrf.mxu0
    %v3342 = vadd.f32 %v3253, %v3341
    %v3343 = vpop.f32.mrf.mxu0
    %v3344 = vadd.f32 %v3255, %v3343
    %3345 = vmatmul.bf16.gmra.mxu0 %v1863
    %v3346 = vpop.f32.mrf.mxu0
    %v3347 = vadd.f32 %v3258, %v3346
    %v3348 = vpop.f32.mrf.mxu0
    %v3349 = vadd.f32 %v3260, %v3348
    %3350 = vmatmul.bf16.gmra.mxu0 %v1867
    %v3351 = vpop.f32.mrf.mxu0
    %v3352 = vadd.f32 %v3263, %v3351
    %v3353 = vpop.f32.mrf.mxu0
    %v3354 = vadd.f32 %v3265, %v3353
    %3355 = vmatmul.bf16.gmra.mxu0 %v1871
    %v3356 = vpop.f32.mrf.mxu0
    %v3357 = vadd.f32 %v3268, %v3356
    %v3358 = vpop.f32.mrf.mxu0
    %v3359 = vadd.f32 %v3270, %v3358
    %3360 = vmatmul.bf16.gmra.mxu0 %v1875
    %v3361 = vpop.f32.mrf.mxu0
    %v3362 = vadd.f32 %v3273, %v3361
    %v3363 = vpop.f32.mrf.mxu0
    %v3364 = vadd.f32 %v3275, %v3363
    %3365 = vdwg.mxu0
    %3366 = vmatpush.bf16.msra.mxu0 %v2428
    %3367 = vmatpush.bf16.msra.mxu0 %v2424
    %3368 = vmatpush.bf16.msra.mxu0 %v2420
    %3369 = vmatpush.bf16.msra.mxu0 %v2416
    %3370 = vmatpush.bf16.msra.mxu0 %v2412
    %3371 = vmatpush.bf16.msra.mxu0 %v2408
    %3372 = vmatpush.bf16.msra.mxu0 %v2404
    %3373 = vmatpush.bf16.msra.mxu0 %v2400
    %3374 = vmatmul.bf16.gmra.mxu0 %v1812
    %v3375 = vpop.f32.mrf.mxu0
    %v3376 = vadd.f32 %v2008, %v3375
    %v3377 = vpop.f32.mrf.mxu0
    %v3378 = vadd.f32 %v2008, %v3377
    %3379 = vmatmul.bf16.gmra.mxu0 %v1816
    %v3380 = vpop.f32.mrf.mxu0
    %v3381 = vadd.f32 %v2008, %v3380
    %v3382 = vpop.f32.mrf.mxu0
    %v3383 = vadd.f32 %v2008, %v3382
    %3384 = vmatmul.bf16.gmra.mxu0 %v1820
    %v3385 = vpop.f32.mrf.mxu0
    %v3386 = vadd.f32 %v2008, %v3385
    %v3387 = vpop.f32.mrf.mxu0
    %v3388 = vadd.f32 %v2008, %v3387
    %3389 = vmatmul.bf16.gmra.mxu0 %v1824
    %v3390 = vpop.f32.mrf.mxu0
    %v3391 = vadd.f32 %v2008, %v3390
    %v3392 = vpop.f32.mrf.mxu0
    %v3393 = vadd.f32 %v2008, %v3392
    %3394 = vmatmul.bf16.gmra.mxu0 %v1828
    %v3395 = vpop.f32.mrf.mxu0
    %v3396 = vadd.f32 %v2008, %v3395
    %v3397 = vpop.f32.mrf.mxu0
    %v3398 = vadd.f32 %v2008, %v3397
    %3399 = vmatmul.bf16.gmra.mxu0 %v1832
    %v3400 = vpop.f32.mrf.mxu0
    %v3401 = vadd.f32 %v2008, %v3400
    %v3402 = vpop.f32.mrf.mxu0
    %v3403 = vadd.f32 %v2008, %v3402
    %3404 = vmatmul.bf16.gmra.mxu0 %v1836
    %v3405 = vpop.f32.mrf.mxu0
    %v3406 = vadd.f32 %v2008, %v3405
    %v3407 = vpop.f32.mrf.mxu0
    %v3408 = vadd.f32 %v2008, %v3407
    %3409 = vmatmul.bf16.gmra.mxu0 %v1840
    %v3410 = vpop.f32.mrf.mxu0
    %v3411 = vadd.f32 %v2008, %v3410
    %v3412 = vpop.f32.mrf.mxu0
    %v3413 = vadd.f32 %v2008, %v3412
    %3414 = vmatmul.bf16.gmra.mxu0 %v1844
    %v3415 = vpop.f32.mrf.mxu0
    %v3416 = vadd.f32 %v2008, %v3415
    %v3417 = vpop.f32.mrf.mxu0
    %v3418 = vadd.f32 %v2008, %v3417
    %3419 = vmatmul.bf16.gmra.mxu0 %v1848
    %v3420 = vpop.f32.mrf.mxu0
    %v3421 = vadd.f32 %v2008, %v3420
    %v3422 = vpop.f32.mrf.mxu0
    %v3423 = vadd.f32 %v2008, %v3422
    %3424 = vmatmul.bf16.gmra.mxu0 %v1852
    %v3425 = vpop.f32.mrf.mxu0
    %v3426 = vadd.f32 %v2008, %v3425
    %v3427 = vpop.f32.mrf.mxu0
    %v3428 = vadd.f32 %v2008, %v3427
    %3429 = vmatmul.bf16.gmra.mxu0 %v1856
    %v3430 = vpop.f32.mrf.mxu0
    %v3431 = vadd.f32 %v2008, %v3430
    %v3432 = vpop.f32.mrf.mxu0
    %v3433 = vadd.f32 %v2008, %v3432
    %3434 = vmatmul.bf16.gmra.mxu0 %v1860
    %v3435 = vpop.f32.mrf.mxu0
    %v3436 = vadd.f32 %v2008, %v3435
    %v3437 = vpop.f32.mrf.mxu0
    %v3438 = vadd.f32 %v2008, %v3437
    %3439 = vmatmul.bf16.gmra.mxu0 %v1864
    %v3440 = vpop.f32.mrf.mxu0
    %v3441 = vadd.f32 %v2008, %v3440
    %v3442 = vpop.f32.mrf.mxu0
    %v3443 = vadd.f32 %v2008, %v3442
    %3444 = vmatmul.bf16.gmra.mxu0 %v1868
    %v3445 = vpop.f32.mrf.mxu0
    %v3446 = vadd.f32 %v2008, %v3445
    %v3447 = vpop.f32.mrf.mxu0
    %v3448 = vadd.f32 %v2008, %v3447
    %3449 = vmatmul.bf16.gmra.mxu0 %v1872
    %v3450 = vpop.f32.mrf.mxu0
    %v3451 = vadd.f32 %v2008, %v3450
    %v3452 = vpop.f32.mrf.mxu0
    %v3453 = vadd.f32 %v2008, %v3452
    %3454 = vdwg.mxu0
    %3455 = vmatpush.bf16.msra.mxu0 %v2460
    %3456 = vmatpush.bf16.msra.mxu0 %v2456
    %3457 = vmatpush.bf16.msra.mxu0 %v2452
    %3458 = vmatpush.bf16.msra.mxu0 %v2448
    %3459 = vmatpush.bf16.msra.mxu0 %v2444
    %3460 = vmatpush.bf16.msra.mxu0 %v2440
    %3461 = vmatpush.bf16.msra.mxu0 %v2436
    %3462 = vmatpush.bf16.msra.mxu0 %v2432
    %3463 = vmatmul.bf16.gmra.mxu0 %v1813
    %v3464 = vpop.f32.mrf.mxu0
    %v3465 = vadd.f32 %v3376, %v3464
    %v3466 = vpop.f32.mrf.mxu0
    %v3467 = vadd.f32 %v3378, %v3466
    %3468 = vmatmul.bf16.gmra.mxu0 %v1817
    %v3469 = vpop.f32.mrf.mxu0
    %v3470 = vadd.f32 %v3381, %v3469
    %v3471 = vpop.f32.mrf.mxu0
    %v3472 = vadd.f32 %v3383, %v3471
    %3473 = vmatmul.bf16.gmra.mxu0 %v1821
    %v3474 = vpop.f32.mrf.mxu0
    %v3475 = vadd.f32 %v3386, %v3474
    %v3476 = vpop.f32.mrf.mxu0
    %v3477 = vadd.f32 %v3388, %v3476
    %3478 = vmatmul.bf16.gmra.mxu0 %v1825
    %v3479 = vpop.f32.mrf.mxu0
    %v3480 = vadd.f32 %v3391, %v3479
    %v3481 = vpop.f32.mrf.mxu0
    %v3482 = vadd.f32 %v3393, %v3481
    %3483 = vmatmul.bf16.gmra.mxu0 %v1829
    %v3484 = vpop.f32.mrf.mxu0
    %v3485 = vadd.f32 %v3396, %v3484
    %v3486 = vpop.f32.mrf.mxu0
    %v3487 = vadd.f32 %v3398, %v3486
    %3488 = vmatmul.bf16.gmra.mxu0 %v1833
    %v3489 = vpop.f32.mrf.mxu0
    %v3490 = vadd.f32 %v3401, %v3489
    %v3491 = vpop.f32.mrf.mxu0
    %v3492 = vadd.f32 %v3403, %v3491
    %3493 = vmatmul.bf16.gmra.mxu0 %v1837
    %v3494 = vpop.f32.mrf.mxu0
    %v3495 = vadd.f32 %v3406, %v3494
    %v3496 = vpop.f32.mrf.mxu0
    %v3497 = vadd.f32 %v3408, %v3496
    %3498 = vmatmul.bf16.gmra.mxu0 %v1841
    %v3499 = vpop.f32.mrf.mxu0
    %v3500 = vadd.f32 %v3411, %v3499
    %v3501 = vpop.f32.mrf.mxu0
    %v3502 = vadd.f32 %v3413, %v3501
    %3503 = vmatmul.bf16.gmra.mxu0 %v1845
    %v3504 = vpop.f32.mrf.mxu0
    %v3505 = vadd.f32 %v3416, %v3504
    %v3506 = vpop.f32.mrf.mxu0
    %v3507 = vadd.f32 %v3418, %v3506
    %3508 = vmatmul.bf16.gmra.mxu0 %v1849
    %v3509 = vpop.f32.mrf.mxu0
    %v3510 = vadd.f32 %v3421, %v3509
    %v3511 = vpop.f32.mrf.mxu0
    %v3512 = vadd.f32 %v3423, %v3511
    %3513 = vmatmul.bf16.gmra.mxu0 %v1853
    %v3514 = vpop.f32.mrf.mxu0
    %v3515 = vadd.f32 %v3426, %v3514
    %v3516 = vpop.f32.mrf.mxu0
    %v3517 = vadd.f32 %v3428, %v3516
    %3518 = vmatmul.bf16.gmra.mxu0 %v1857
    %v3519 = vpop.f32.mrf.mxu0
    %v3520 = vadd.f32 %v3431, %v3519
    %v3521 = vpop.f32.mrf.mxu0
    %v3522 = vadd.f32 %v3433, %v3521
    %3523 = vmatmul.bf16.gmra.mxu0 %v1861
    %v3524 = vpop.f32.mrf.mxu0
    %v3525 = vadd.f32 %v3436, %v3524
    %v3526 = vpop.f32.mrf.mxu0
    %v3527 = vadd.f32 %v3438, %v3526
    %3528 = vmatmul.bf16.gmra.mxu0 %v1865
    %v3529 = vpop.f32.mrf.mxu0
    %v3530 = vadd.f32 %v3441, %v3529
    %v3531 = vpop.f32.mrf.mxu0
    %v3532 = vadd.f32 %v3443, %v3531
    %3533 = vmatmul.bf16.gmra.mxu0 %v1869
    %v3534 = vpop.f32.mrf.mxu0
    %v3535 = vadd.f32 %v3446, %v3534
    %v3536 = vpop.f32.mrf.mxu0
    %v3537 = vadd.f32 %v3448, %v3536
    %3538 = vmatmul.bf16.gmra.mxu0 %v1873
    %v3539 = vpop.f32.mrf.mxu0
    %v3540 = vadd.f32 %v3451, %v3539
    %v3541 = vpop.f32.mrf.mxu0
    %v3542 = vadd.f32 %v3453, %v3541
    %3543 = vdwg.mxu0
    %3544 = vmatpush.bf16.msra.mxu0 %v2492
    %3545 = vmatpush.bf16.msra.mxu0 %v2488
    %3546 = vmatpush.bf16.msra.mxu0 %v2484
    %3547 = vmatpush.bf16.msra.mxu0 %v2480
    %3548 = vmatpush.bf16.msra.mxu0 %v2476
    %3549 = vmatpush.bf16.msra.mxu0 %v2472
    %3550 = vmatpush.bf16.msra.mxu0 %v2468
    %3551 = vmatpush.bf16.msra.mxu0 %v2464
    %3552 = vmatmul.bf16.gmra.mxu0 %v1814
    %v3553 = vpop.f32.mrf.mxu0
    %v3554 = vadd.f32 %v3465, %v3553
    %v3555 = vpop.f32.mrf.mxu0
    %v3556 = vadd.f32 %v3467, %v3555
    %3557 = vmatmul.bf16.gmra.mxu0 %v1818
    %v3558 = vpop.f32.mrf.mxu0
    %v3559 = vadd.f32 %v3470, %v3558
    %v3560 = vpop.f32.mrf.mxu0
    %v3561 = vadd.f32 %v3472, %v3560
    %3562 = vmatmul.bf16.gmra.mxu0 %v1822
    %v3563 = vpop.f32.mrf.mxu0
    %v3564 = vadd.f32 %v3475, %v3563
    %v3565 = vpop.f32.mrf.mxu0
    %v3566 = vadd.f32 %v3477, %v3565
    %3567 = vmatmul.bf16.gmra.mxu0 %v1826
    %v3568 = vpop.f32.mrf.mxu0
    %v3569 = vadd.f32 %v3480, %v3568
    %v3570 = vpop.f32.mrf.mxu0
    %v3571 = vadd.f32 %v3482, %v3570
    %3572 = vmatmul.bf16.gmra.mxu0 %v1830
    %v3573 = vpop.f32.mrf.mxu0
    %v3574 = vadd.f32 %v3485, %v3573
    %v3575 = vpop.f32.mrf.mxu0
    %v3576 = vadd.f32 %v3487, %v3575
    %3577 = vmatmul.bf16.gmra.mxu0 %v1834
    %v3578 = vpop.f32.mrf.mxu0
    %v3579 = vadd.f32 %v3490, %v3578
    %v3580 = vpop.f32.mrf.mxu0
    %v3581 = vadd.f32 %v3492, %v3580
    %3582 = vmatmul.bf16.gmra.mxu0 %v1838
    %v3583 = vpop.f32.mrf.mxu0
    %v3584 = vadd.f32 %v3495, %v3583
    %v3585 = vpop.f32.mrf.mxu0
    %v3586 = vadd.f32 %v3497, %v3585
    %3587 = vmatmul.bf16.gmra.mxu0 %v1842
    %v3588 = vpop.f32.mrf.mxu0
    %v3589 = vadd.f32 %v3500, %v3588
    %v3590 = vpop.f32.mrf.mxu0
    %v3591 = vadd.f32 %v3502, %v3590
    %3592 = vmatmul.bf16.gmra.mxu0 %v1846
    %v3593 = vpop.f32.mrf.mxu0
    %v3594 = vadd.f32 %v3505, %v3593
    %v3595 = vpop.f32.mrf.mxu0
    %v3596 = vadd.f32 %v3507, %v3595
    %3597 = vmatmul.bf16.gmra.mxu0 %v1850
    %v3598 = vpop.f32.mrf.mxu0
    %v3599 = vadd.f32 %v3510, %v3598
    %v3600 = vpop.f32.mrf.mxu0
    %v3601 = vadd.f32 %v3512, %v3600
    %3602 = vmatmul.bf16.gmra.mxu0 %v1854
    %v3603 = vpop.f32.mrf.mxu0
    %v3604 = vadd.f32 %v3515, %v3603
    %v3605 = vpop.f32.mrf.mxu0
    %v3606 = vadd.f32 %v3517, %v3605
    %3607 = vmatmul.bf16.gmra.mxu0 %v1858
    %v3608 = vpop.f32.mrf.mxu0
    %v3609 = vadd.f32 %v3520, %v3608
    %v3610 = vpop.f32.mrf.mxu0
    %v3611 = vadd.f32 %v3522, %v3610
    %3612 = vmatmul.bf16.gmra.mxu0 %v1862
    %v3613 = vpop.f32.mrf.mxu0
    %v3614 = vadd.f32 %v3525, %v3613
    %v3615 = vpop.f32.mrf.mxu0
    %v3616 = vadd.f32 %v3527, %v3615
    %3617 = vmatmul.bf16.gmra.mxu0 %v1866
    %v3618 = vpop.f32.mrf.mxu0
    %v3619 = vadd.f32 %v3530, %v3618
    %v3620 = vpop.f32.mrf.mxu0
    %v3621 = vadd.f32 %v3532, %v3620
    %3622 = vmatmul.bf16.gmra.mxu0 %v1870
    %v3623 = vpop.f32.mrf.mxu0
    %v3624 = vadd.f32 %v3535, %v3623
    %v3625 = vpop.f32.mrf.mxu0
    %v3626 = vadd.f32 %v3537, %v3625
    %3627 = vmatmul.bf16.gmra.mxu0 %v1874
    %v3628 = vpop.f32.mrf.mxu0
    %v3629 = vadd.f32 %v3540, %v3628
    %v3630 = vpop.f32.mrf.mxu0
    %v3631 = vadd.f32 %v3542, %v3630
    %3632 = vdwg.mxu0
    %3633 = vmatpush.bf16.msra.mxu0 %v2524
    %3634 = vmatpush.bf16.msra.mxu0 %v2520
    %3635 = vmatpush.bf16.msra.mxu0 %v2516
    %3636 = vmatpush.bf16.msra.mxu0 %v2512
    %3637 = vmatpush.bf16.msra.mxu0 %v2508
    %3638 = vmatpush.bf16.msra.mxu0 %v2504
    %3639 = vmatpush.bf16.msra.mxu0 %v2500
    %3640 = vmatpush.bf16.msra.mxu0 %v2496
    %3641 = vmatmul.bf16.gmra.mxu0 %v1815
    %v3642 = vpop.f32.mrf.mxu0
    %v3643 = vadd.f32 %v3554, %v3642
    %v3644 = vpop.f32.mrf.mxu0
    %v3645 = vadd.f32 %v3556, %v3644
    %3646 = vmatmul.bf16.gmra.mxu0 %v1819
    %v3647 = vpop.f32.mrf.mxu0
    %v3648 = vadd.f32 %v3559, %v3647
    %v3649 = vpop.f32.mrf.mxu0
    %v3650 = vadd.f32 %v3561, %v3649
    %3651 = vmatmul.bf16.gmra.mxu0 %v1823
    %v3652 = vpop.f32.mrf.mxu0
    %v3653 = vadd.f32 %v3564, %v3652
    %v3654 = vpop.f32.mrf.mxu0
    %v3655 = vadd.f32 %v3566, %v3654
    %3656 = vmatmul.bf16.gmra.mxu0 %v1827
    %v3657 = vpop.f32.mrf.mxu0
    %v3658 = vadd.f32 %v3569, %v3657
    %v3659 = vpop.f32.mrf.mxu0
    %v3660 = vadd.f32 %v3571, %v3659
    %3661 = vmatmul.bf16.gmra.mxu0 %v1831
    %v3662 = vpop.f32.mrf.mxu0
    %v3663 = vadd.f32 %v3574, %v3662
    %v3664 = vpop.f32.mrf.mxu0
    %v3665 = vadd.f32 %v3576, %v3664
    %3666 = vmatmul.bf16.gmra.mxu0 %v1835
    %v3667 = vpop.f32.mrf.mxu0
    %v3668 = vadd.f32 %v3579, %v3667
    %v3669 = vpop.f32.mrf.mxu0
    %v3670 = vadd.f32 %v3581, %v3669
    %3671 = vmatmul.bf16.gmra.mxu0 %v1839
    %v3672 = vpop.f32.mrf.mxu0
    %v3673 = vadd.f32 %v3584, %v3672
    %v3674 = vpop.f32.mrf.mxu0
    %v3675 = vadd.f32 %v3586, %v3674
    %3676 = vmatmul.bf16.gmra.mxu0 %v1843
    %v3677 = vpop.f32.mrf.mxu0
    %v3678 = vadd.f32 %v3589, %v3677
    %v3679 = vpop.f32.mrf.mxu0
    %v3680 = vadd.f32 %v3591, %v3679
    %3681 = vmatmul.bf16.gmra.mxu0 %v1847
    %v3682 = vpop.f32.mrf.mxu0
    %v3683 = vadd.f32 %v3594, %v3682
    %v3684 = vpop.f32.mrf.mxu0
    %v3685 = vadd.f32 %v3596, %v3684
    %3686 = vmatmul.bf16.gmra.mxu0 %v1851
    %v3687 = vpop.f32.mrf.mxu0
    %v3688 = vadd.f32 %v3599, %v3687
    %v3689 = vpop.f32.mrf.mxu0
    %v3690 = vadd.f32 %v3601, %v3689
    %3691 = vmatmul.bf16.gmra.mxu0 %v1855
    %v3692 = vpop.f32.mrf.mxu0
    %v3693 = vadd.f32 %v3604, %v3692
    %v3694 = vpop.f32.mrf.mxu0
    %v3695 = vadd.f32 %v3606, %v3694
    %3696 = vmatmul.bf16.gmra.mxu0 %v1859
    %v3697 = vpop.f32.mrf.mxu0
    %v3698 = vadd.f32 %v3609, %v3697
    %v3699 = vpop.f32.mrf.mxu0
    %v3700 = vadd.f32 %v3611, %v3699
    %3701 = vmatmul.bf16.gmra.mxu0 %v1863
    %v3702 = vpop.f32.mrf.mxu0
    %v3703 = vadd.f32 %v3614, %v3702
    %v3704 = vpop.f32.mrf.mxu0
    %v3705 = vadd.f32 %v3616, %v3704
    %3706 = vmatmul.bf16.gmra.mxu0 %v1867
    %v3707 = vpop.f32.mrf.mxu0
    %v3708 = vadd.f32 %v3619, %v3707
    %v3709 = vpop.f32.mrf.mxu0
    %v3710 = vadd.f32 %v3621, %v3709
    %3711 = vmatmul.bf16.gmra.mxu0 %v1871
    %v3712 = vpop.f32.mrf.mxu0
    %v3713 = vadd.f32 %v3624, %v3712
    %v3714 = vpop.f32.mrf.mxu0
    %v3715 = vadd.f32 %v3626, %v3714
    %3716 = vmatmul.bf16.gmra.mxu0 %v1875
    %v3717 = vpop.f32.mrf.mxu0
    %v3718 = vadd.f32 %v3629, %v3717
    %v3719 = vpop.f32.mrf.mxu0
    %v3720 = vadd.f32 %v3631, %v3719
    %3721 = vdwg.mxu0
    %3722 = vmatpush.bf16.msra.mxu0 %v2429
    %3723 = vmatpush.bf16.msra.mxu0 %v2425
    %3724 = vmatpush.bf16.msra.mxu0 %v2421
    %3725 = vmatpush.bf16.msra.mxu0 %v2417
    %3726 = vmatpush.bf16.msra.mxu0 %v2413
    %3727 = vmatpush.bf16.msra.mxu0 %v2409
    %3728 = vmatpush.bf16.msra.mxu0 %v2405
    %3729 = vmatpush.bf16.msra.mxu0 %v2401
    %3730 = vmatmul.bf16.gmra.mxu0 %v1812
    %v3731 = vpop.f32.mrf.mxu0
    %v3732 = vadd.f32 %v2009, %v3731
    %v3733 = vpop.f32.mrf.mxu0
    %v3734 = vadd.f32 %v2009, %v3733
    %3735 = vmatmul.bf16.gmra.mxu0 %v1816
    %v3736 = vpop.f32.mrf.mxu0
    %v3737 = vadd.f32 %v2009, %v3736
    %v3738 = vpop.f32.mrf.mxu0
    %v3739 = vadd.f32 %v2009, %v3738
    %3740 = vmatmul.bf16.gmra.mxu0 %v1820
    %v3741 = vpop.f32.mrf.mxu0
    %v3742 = vadd.f32 %v2009, %v3741
    %v3743 = vpop.f32.mrf.mxu0
    %v3744 = vadd.f32 %v2009, %v3743
    %3745 = vmatmul.bf16.gmra.mxu0 %v1824
    %v3746 = vpop.f32.mrf.mxu0
    %v3747 = vadd.f32 %v2009, %v3746
    %v3748 = vpop.f32.mrf.mxu0
    %v3749 = vadd.f32 %v2009, %v3748
    %3750 = vmatmul.bf16.gmra.mxu0 %v1828
    %v3751 = vpop.f32.mrf.mxu0
    %v3752 = vadd.f32 %v2009, %v3751
    %v3753 = vpop.f32.mrf.mxu0
    %v3754 = vadd.f32 %v2009, %v3753
    %3755 = vmatmul.bf16.gmra.mxu0 %v1832
    %v3756 = vpop.f32.mrf.mxu0
    %v3757 = vadd.f32 %v2009, %v3756
    %v3758 = vpop.f32.mrf.mxu0
    %v3759 = vadd.f32 %v2009, %v3758
    %3760 = vmatmul.bf16.gmra.mxu0 %v1836
    %v3761 = vpop.f32.mrf.mxu0
    %v3762 = vadd.f32 %v2009, %v3761
    %v3763 = vpop.f32.mrf.mxu0
    %v3764 = vadd.f32 %v2009, %v3763
    %3765 = vmatmul.bf16.gmra.mxu0 %v1840
    %v3766 = vpop.f32.mrf.mxu0
    %v3767 = vadd.f32 %v2009, %v3766
    %v3768 = vpop.f32.mrf.mxu0
    %v3769 = vadd.f32 %v2009, %v3768
    %3770 = vmatmul.bf16.gmra.mxu0 %v1844
    %v3771 = vpop.f32.mrf.mxu0
    %v3772 = vadd.f32 %v2009, %v3771
    %v3773 = vpop.f32.mrf.mxu0
    %v3774 = vadd.f32 %v2009, %v3773
    %3775 = vmatmul.bf16.gmra.mxu0 %v1848
    %v3776 = vpop.f32.mrf.mxu0
    %v3777 = vadd.f32 %v2009, %v3776
    %v3778 = vpop.f32.mrf.mxu0
    %v3779 = vadd.f32 %v2009, %v3778
    %3780 = vmatmul.bf16.gmra.mxu0 %v1852
    %v3781 = vpop.f32.mrf.mxu0
    %v3782 = vadd.f32 %v2009, %v3781
    %v3783 = vpop.f32.mrf.mxu0
    %v3784 = vadd.f32 %v2009, %v3783
    %3785 = vmatmul.bf16.gmra.mxu0 %v1856
    %v3786 = vpop.f32.mrf.mxu0
    %v3787 = vadd.f32 %v2009, %v3786
    %v3788 = vpop.f32.mrf.mxu0
    %v3789 = vadd.f32 %v2009, %v3788
    %3790 = vmatmul.bf16.gmra.mxu0 %v1860
    %v3791 = vpop.f32.mrf.mxu0
    %v3792 = vadd.f32 %v2009, %v3791
    %v3793 = vpop.f32.mrf.mxu0
    %v3794 = vadd.f32 %v2009, %v3793
    %3795 = vmatmul.bf16.gmra.mxu0 %v1864
    %v3796 = vpop.f32.mrf.mxu0
    %v3797 = vadd.f32 %v2009, %v3796
    %v3798 = vpop.f32.mrf.mxu0
    %v3799 = vadd.f32 %v2009, %v3798
    %3800 = vmatmul.bf16.gmra.mxu0 %v1868
    %v3801 = vpop.f32.mrf.mxu0
    %v3802 = vadd.f32 %v2009, %v3801
    %v3803 = vpop.f32.mrf.mxu0
    %v3804 = vadd.f32 %v2009, %v3803
    %3805 = vmatmul.bf16.gmra.mxu0 %v1872
    %v3806 = vpop.f32.mrf.mxu0
    %v3807 = vadd.f32 %v2009, %v3806
    %v3808 = vpop.f32.mrf.mxu0
    %v3809 = vadd.f32 %v2009, %v3808
    %3810 = vdwg.mxu0
    %3811 = vmatpush.bf16.msra.mxu0 %v2461
    %3812 = vmatpush.bf16.msra.mxu0 %v2457
    %3813 = vmatpush.bf16.msra.mxu0 %v2453
    %3814 = vmatpush.bf16.msra.mxu0 %v2449
    %3815 = vmatpush.bf16.msra.mxu0 %v2445
    %3816 = vmatpush.bf16.msra.mxu0 %v2441
    %3817 = vmatpush.bf16.msra.mxu0 %v2437
    %3818 = vmatpush.bf16.msra.mxu0 %v2433
    %3819 = vmatmul.bf16.gmra.mxu0 %v1813
    %v3820 = vpop.f32.mrf.mxu0
    %v3821 = vadd.f32 %v3732, %v3820
    %v3822 = vpop.f32.mrf.mxu0
    %v3823 = vadd.f32 %v3734, %v3822
    %3824 = vmatmul.bf16.gmra.mxu0 %v1817
    %v3825 = vpop.f32.mrf.mxu0
    %v3826 = vadd.f32 %v3737, %v3825
    %v3827 = vpop.f32.mrf.mxu0
    %v3828 = vadd.f32 %v3739, %v3827
    %3829 = vmatmul.bf16.gmra.mxu0 %v1821
    %v3830 = vpop.f32.mrf.mxu0
    %v3831 = vadd.f32 %v3742, %v3830
    %v3832 = vpop.f32.mrf.mxu0
    %v3833 = vadd.f32 %v3744, %v3832
    %3834 = vmatmul.bf16.gmra.mxu0 %v1825
    %v3835 = vpop.f32.mrf.mxu0
    %v3836 = vadd.f32 %v3747, %v3835
    %v3837 = vpop.f32.mrf.mxu0
    %v3838 = vadd.f32 %v3749, %v3837
    %3839 = vmatmul.bf16.gmra.mxu0 %v1829
    %v3840 = vpop.f32.mrf.mxu0
    %v3841 = vadd.f32 %v3752, %v3840
    %v3842 = vpop.f32.mrf.mxu0
    %v3843 = vadd.f32 %v3754, %v3842
    %3844 = vmatmul.bf16.gmra.mxu0 %v1833
    %v3845 = vpop.f32.mrf.mxu0
    %v3846 = vadd.f32 %v3757, %v3845
    %v3847 = vpop.f32.mrf.mxu0
    %v3848 = vadd.f32 %v3759, %v3847
    %3849 = vmatmul.bf16.gmra.mxu0 %v1837
    %v3850 = vpop.f32.mrf.mxu0
    %v3851 = vadd.f32 %v3762, %v3850
    %v3852 = vpop.f32.mrf.mxu0
    %v3853 = vadd.f32 %v3764, %v3852
    %3854 = vmatmul.bf16.gmra.mxu0 %v1841
    %v3855 = vpop.f32.mrf.mxu0
    %v3856 = vadd.f32 %v3767, %v3855
    %v3857 = vpop.f32.mrf.mxu0
    %v3858 = vadd.f32 %v3769, %v3857
    %3859 = vmatmul.bf16.gmra.mxu0 %v1845
    %v3860 = vpop.f32.mrf.mxu0
    %v3861 = vadd.f32 %v3772, %v3860
    %v3862 = vpop.f32.mrf.mxu0
    %v3863 = vadd.f32 %v3774, %v3862
    %3864 = vmatmul.bf16.gmra.mxu0 %v1849
    %v3865 = vpop.f32.mrf.mxu0
    %v3866 = vadd.f32 %v3777, %v3865
    %v3867 = vpop.f32.mrf.mxu0
    %v3868 = vadd.f32 %v3779, %v3867
    %3869 = vmatmul.bf16.gmra.mxu0 %v1853
    %v3870 = vpop.f32.mrf.mxu0
    %v3871 = vadd.f32 %v3782, %v3870
    %v3872 = vpop.f32.mrf.mxu0
    %v3873 = vadd.f32 %v3784, %v3872
    %3874 = vmatmul.bf16.gmra.mxu0 %v1857
    %v3875 = vpop.f32.mrf.mxu0
    %v3876 = vadd.f32 %v3787, %v3875
    %v3877 = vpop.f32.mrf.mxu0
    %v3878 = vadd.f32 %v3789, %v3877
    %3879 = vmatmul.bf16.gmra.mxu0 %v1861
    %v3880 = vpop.f32.mrf.mxu0
    %v3881 = vadd.f32 %v3792, %v3880
    %v3882 = vpop.f32.mrf.mxu0
    %v3883 = vadd.f32 %v3794, %v3882
    %3884 = vmatmul.bf16.gmra.mxu0 %v1865
    %v3885 = vpop.f32.mrf.mxu0
    %v3886 = vadd.f32 %v3797, %v3885
    %v3887 = vpop.f32.mrf.mxu0
    %v3888 = vadd.f32 %v3799, %v3887
    %3889 = vmatmul.bf16.gmra.mxu0 %v1869
    %v3890 = vpop.f32.mrf.mxu0
    %v3891 = vadd.f32 %v3802, %v3890
    %v3892 = vpop.f32.mrf.mxu0
    %v3893 = vadd.f32 %v3804, %v3892
    %3894 = vmatmul.bf16.gmra.mxu0 %v1873
    %v3895 = vpop.f32.mrf.mxu0
    %v3896 = vadd.f32 %v3807, %v3895
    %v3897 = vpop.f32.mrf.mxu0
    %v3898 = vadd.f32 %v3809, %v3897
    %3899 = vdwg.mxu0
    %3900 = vmatpush.bf16.msra.mxu0 %v2493
    %3901 = vmatpush.bf16.msra.mxu0 %v2489
    %3902 = vmatpush.bf16.msra.mxu0 %v2485
    %3903 = vmatpush.bf16.msra.mxu0 %v2481
    %3904 = vmatpush.bf16.msra.mxu0 %v2477
    %3905 = vmatpush.bf16.msra.mxu0 %v2473
    %3906 = vmatpush.bf16.msra.mxu0 %v2469
    %3907 = vmatpush.bf16.msra.mxu0 %v2465
    %3908 = vmatmul.bf16.gmra.mxu0 %v1814
    %v3909 = vpop.f32.mrf.mxu0
    %v3910 = vadd.f32 %v3821, %v3909
    %v3911 = vpop.f32.mrf.mxu0
    %v3912 = vadd.f32 %v3823, %v3911
    %3913 = vmatmul.bf16.gmra.mxu0 %v1818
    %v3914 = vpop.f32.mrf.mxu0
    %v3915 = vadd.f32 %v3826, %v3914
    %v3916 = vpop.f32.mrf.mxu0
    %v3917 = vadd.f32 %v3828, %v3916
    %3918 = vmatmul.bf16.gmra.mxu0 %v1822
    %v3919 = vpop.f32.mrf.mxu0
    %v3920 = vadd.f32 %v3831, %v3919
    %v3921 = vpop.f32.mrf.mxu0
    %v3922 = vadd.f32 %v3833, %v3921
    %3923 = vmatmul.bf16.gmra.mxu0 %v1826
    %v3924 = vpop.f32.mrf.mxu0
    %v3925 = vadd.f32 %v3836, %v3924
    %v3926 = vpop.f32.mrf.mxu0
    %v3927 = vadd.f32 %v3838, %v3926
    %3928 = vmatmul.bf16.gmra.mxu0 %v1830
    %v3929 = vpop.f32.mrf.mxu0
    %v3930 = vadd.f32 %v3841, %v3929
    %v3931 = vpop.f32.mrf.mxu0
    %v3932 = vadd.f32 %v3843, %v3931
    %3933 = vmatmul.bf16.gmra.mxu0 %v1834
    %v3934 = vpop.f32.mrf.mxu0
    %v3935 = vadd.f32 %v3846, %v3934
    %v3936 = vpop.f32.mrf.mxu0
    %v3937 = vadd.f32 %v3848, %v3936
    %3938 = vmatmul.bf16.gmra.mxu0 %v1838
    %v3939 = vpop.f32.mrf.mxu0
    %v3940 = vadd.f32 %v3851, %v3939
    %v3941 = vpop.f32.mrf.mxu0
    %v3942 = vadd.f32 %v3853, %v3941
    %3943 = vmatmul.bf16.gmra.mxu0 %v1842
    %v3944 = vpop.f32.mrf.mxu0
    %v3945 = vadd.f32 %v3856, %v3944
    %v3946 = vpop.f32.mrf.mxu0
    %v3947 = vadd.f32 %v3858, %v3946
    %3948 = vmatmul.bf16.gmra.mxu0 %v1846
    %v3949 = vpop.f32.mrf.mxu0
    %v3950 = vadd.f32 %v3861, %v3949
    %v3951 = vpop.f32.mrf.mxu0
    %v3952 = vadd.f32 %v3863, %v3951
    %3953 = vmatmul.bf16.gmra.mxu0 %v1850
    %v3954 = vpop.f32.mrf.mxu0
    %v3955 = vadd.f32 %v3866, %v3954
    %v3956 = vpop.f32.mrf.mxu0
    %v3957 = vadd.f32 %v3868, %v3956
    %3958 = vmatmul.bf16.gmra.mxu0 %v1854
    %v3959 = vpop.f32.mrf.mxu0
    %v3960 = vadd.f32 %v3871, %v3959
    %v3961 = vpop.f32.mrf.mxu0
    %v3962 = vadd.f32 %v3873, %v3961
    %3963 = vmatmul.bf16.gmra.mxu0 %v1858
    %v3964 = vpop.f32.mrf.mxu0
    %v3965 = vadd.f32 %v3876, %v3964
    %v3966 = vpop.f32.mrf.mxu0
    %v3967 = vadd.f32 %v3878, %v3966
    %3968 = vmatmul.bf16.gmra.mxu0 %v1862
    %v3969 = vpop.f32.mrf.mxu0
    %v3970 = vadd.f32 %v3881, %v3969
    %v3971 = vpop.f32.mrf.mxu0
    %v3972 = vadd.f32 %v3883, %v3971
    %3973 = vmatmul.bf16.gmra.mxu0 %v1866
    %v3974 = vpop.f32.mrf.mxu0
    %v3975 = vadd.f32 %v3886, %v3974
    %v3976 = vpop.f32.mrf.mxu0
    %v3977 = vadd.f32 %v3888, %v3976
    %3978 = vmatmul.bf16.gmra.mxu0 %v1870
    %v3979 = vpop.f32.mrf.mxu0
    %v3980 = vadd.f32 %v3891, %v3979
    %v3981 = vpop.f32.mrf.mxu0
    %v3982 = vadd.f32 %v3893, %v3981
    %3983 = vmatmul.bf16.gmra.mxu0 %v1874
    %v3984 = vpop.f32.mrf.mxu0
    %v3985 = vadd.f32 %v3896, %v3984
    %v3986 = vpop.f32.mrf.mxu0
    %v3987 = vadd.f32 %v3898, %v3986
    %3988 = vdwg.mxu0
    %3989 = vmatpush.bf16.msra.mxu0 %v2525
    %3990 = vmatpush.bf16.msra.mxu0 %v2521
    %3991 = vmatpush.bf16.msra.mxu0 %v2517
    %3992 = vmatpush.bf16.msra.mxu0 %v2513
    %3993 = vmatpush.bf16.msra.mxu0 %v2509
    %3994 = vmatpush.bf16.msra.mxu0 %v2505
    %3995 = vmatpush.bf16.msra.mxu0 %v2501
    %3996 = vmatpush.bf16.msra.mxu0 %v2497
    %3997 = vmatmul.bf16.gmra.mxu0 %v1815
    %v3998 = vpop.f32.mrf.mxu0
    %v3999 = vadd.f32 %v3910, %v3998
    %v4000 = vpop.f32.mrf.mxu0
    %v4001 = vadd.f32 %v3912, %v4000
    %4002 = vmatmul.bf16.gmra.mxu0 %v1819
    %v4003 = vpop.f32.mrf.mxu0
    %v4004 = vadd.f32 %v3915, %v4003
    %v4005 = vpop.f32.mrf.mxu0
    %v4006 = vadd.f32 %v3917, %v4005
    %4007 = vmatmul.bf16.gmra.mxu0 %v1823
    %v4008 = vpop.f32.mrf.mxu0
    %v4009 = vadd.f32 %v3920, %v4008
    %v4010 = vpop.f32.mrf.mxu0
    %v4011 = vadd.f32 %v3922, %v4010
    %4012 = vmatmul.bf16.gmra.mxu0 %v1827
    %v4013 = vpop.f32.mrf.mxu0
    %v4014 = vadd.f32 %v3925, %v4013
    %v4015 = vpop.f32.mrf.mxu0
    %v4016 = vadd.f32 %v3927, %v4015
    %4017 = vmatmul.bf16.gmra.mxu0 %v1831
    %v4018 = vpop.f32.mrf.mxu0
    %v4019 = vadd.f32 %v3930, %v4018
    %v4020 = vpop.f32.mrf.mxu0
    %v4021 = vadd.f32 %v3932, %v4020
    %4022 = vmatmul.bf16.gmra.mxu0 %v1835
    %v4023 = vpop.f32.mrf.mxu0
    %v4024 = vadd.f32 %v3935, %v4023
    %v4025 = vpop.f32.mrf.mxu0
    %v4026 = vadd.f32 %v3937, %v4025
    %4027 = vmatmul.bf16.gmra.mxu0 %v1839
    %v4028 = vpop.f32.mrf.mxu0
    %v4029 = vadd.f32 %v3940, %v4028
    %v4030 = vpop.f32.mrf.mxu0
    %v4031 = vadd.f32 %v3942, %v4030
    %4032 = vmatmul.bf16.gmra.mxu0 %v1843
    %v4033 = vpop.f32.mrf.mxu0
    %v4034 = vadd.f32 %v3945, %v4033
    %v4035 = vpop.f32.mrf.mxu0
    %v4036 = vadd.f32 %v3947, %v4035
    %4037 = vmatmul.bf16.gmra.mxu0 %v1847
    %v4038 = vpop.f32.mrf.mxu0
    %v4039 = vadd.f32 %v3950, %v4038
    %v4040 = vpop.f32.mrf.mxu0
    %v4041 = vadd.f32 %v3952, %v4040
    %4042 = vmatmul.bf16.gmra.mxu0 %v1851
    %v4043 = vpop.f32.mrf.mxu0
    %v4044 = vadd.f32 %v3955, %v4043
    %v4045 = vpop.f32.mrf.mxu0
    %v4046 = vadd.f32 %v3957, %v4045
    %4047 = vmatmul.bf16.gmra.mxu0 %v1855
    %v4048 = vpop.f32.mrf.mxu0
    %v4049 = vadd.f32 %v3960, %v4048
    %v4050 = vpop.f32.mrf.mxu0
    %v4051 = vadd.f32 %v3962, %v4050
    %4052 = vmatmul.bf16.gmra.mxu0 %v1859
    %v4053 = vpop.f32.mrf.mxu0
    %v4054 = vadd.f32 %v3965, %v4053
    %v4055 = vpop.f32.mrf.mxu0
    %v4056 = vadd.f32 %v3967, %v4055
    %4057 = vmatmul.bf16.gmra.mxu0 %v1863
    %v4058 = vpop.f32.mrf.mxu0
    %v4059 = vadd.f32 %v3970, %v4058
    %v4060 = vpop.f32.mrf.mxu0
    %v4061 = vadd.f32 %v3972, %v4060
    %4062 = vmatmul.bf16.gmra.mxu0 %v1867
    %v4063 = vpop.f32.mrf.mxu0
    %v4064 = vadd.f32 %v3975, %v4063
    %v4065 = vpop.f32.mrf.mxu0
    %v4066 = vadd.f32 %v3977, %v4065
    %4067 = vmatmul.bf16.gmra.mxu0 %v1871
    %v4068 = vpop.f32.mrf.mxu0
    %v4069 = vadd.f32 %v3980, %v4068
    %v4070 = vpop.f32.mrf.mxu0
    %v4071 = vadd.f32 %v3982, %v4070
    %4072 = vmatmul.bf16.gmra.mxu0 %v1875
    %v4073 = vpop.f32.mrf.mxu0
    %v4074 = vadd.f32 %v3985, %v4073
    %v4075 = vpop.f32.mrf.mxu0
    %v4076 = vadd.f32 %v3987, %v4075
    %4077 = vdwg.mxu0
    %v4078 = vadd.f32 %v2931, %v2933
    %v4079 = vadd.f32 %v4078, %v2936
    %v4080 = vadd.f32 %v4079, %v2938
    %v4081 = vadd.f32 %v4080, %v2941
    %v4082 = vadd.f32 %v4081, %v2943
    %v4083 = vadd.f32 %v4082, %v2946
    %v4084 = vadd.f32 %v4083, %v2948
    %v4085 = vadd.f32 %v4084, %v2951
    %v4086 = vadd.f32 %v4085, %v2953
    %v4087 = vadd.f32 %v4086, %v2956
    %v4088 = vadd.f32 %v4087, %v2958
    %v4089 = vadd.f32 %v4088, %v2961
    %v4090 = vadd.f32 %v4089, %v2963
    %v4091 = vadd.f32 %v4090, %v2966
    %v4092 = vadd.f32 %v4091, %v2968
    %v4093 = vadd.f32 %v4092, %v2971
    %v4094 = vadd.f32 %v4093, %v2973
    %v4095 = vadd.f32 %v4094, %v2976
    %v4096 = vadd.f32 %v4095, %v2978
    %v4097 = vadd.f32 %v4096, %v2981
    %v4098 = vadd.f32 %v4097, %v2983
    %v4099 = vadd.f32 %v4098, %v2986
    %v4100 = vadd.f32 %v4099, %v2988
    %v4101 = vadd.f32 %v4100, %v2991
    %v4102 = vadd.f32 %v4101, %v2993
    %v4103 = vadd.f32 %v4102, %v2996
    %v4104 = vadd.f32 %v4103, %v2998
    %v4105 = vadd.f32 %v4104, %v3001
    %v4106 = vadd.f32 %v4105, %v3003
    %v4107 = vadd.f32 %v4106, %v3006
    %v4108 = vadd.f32 %v4107, %v3008
    %v4109 = vrot.slane %v4108, 4
    %v4110 = vadd.f32 %v4108, %v4109
    %v4111 = vrot.slane %v4110, 2
    %v4112 = vadd.f32 %v4110, %v4111
    %v4113 = vrot.slane %v4112, 1
    %v4114 = vadd.f32 %v4112, %v4113
    %v4115 = vadd.f32 %v3287, %v3289
    %v4116 = vadd.f32 %v4115, %v3292
    %v4117 = vadd.f32 %v4116, %v3294
    %v4118 = vadd.f32 %v4117, %v3297
    %v4119 = vadd.f32 %v4118, %v3299
    %v4120 = vadd.f32 %v4119, %v3302
    %v4121 = vadd.f32 %v4120, %v3304
    %v4122 = vadd.f32 %v4121, %v3307
    %v4123 = vadd.f32 %v4122, %v3309
    %v4124 = vadd.f32 %v4123, %v3312
    %v4125 = vadd.f32 %v4124, %v3314
    %v4126 = vadd.f32 %v4125, %v3317
    %v4127 = vadd.f32 %v4126, %v3319
    %v4128 = vadd.f32 %v4127, %v3322
    %v4129 = vadd.f32 %v4128, %v3324
    %v4130 = vadd.f32 %v4129, %v3327
    %v4131 = vadd.f32 %v4130, %v3329
    %v4132 = vadd.f32 %v4131, %v3332
    %v4133 = vadd.f32 %v4132, %v3334
    %v4134 = vadd.f32 %v4133, %v3337
    %v4135 = vadd.f32 %v4134, %v3339
    %v4136 = vadd.f32 %v4135, %v3342
    %v4137 = vadd.f32 %v4136, %v3344
    %v4138 = vadd.f32 %v4137, %v3347
    %v4139 = vadd.f32 %v4138, %v3349
    %v4140 = vadd.f32 %v4139, %v3352
    %v4141 = vadd.f32 %v4140, %v3354
    %v4142 = vadd.f32 %v4141, %v3357
    %v4143 = vadd.f32 %v4142, %v3359
    %v4144 = vadd.f32 %v4143, %v3362
    %v4145 = vadd.f32 %v4144, %v3364
    %v4146 = vrot.slane %v4145, 4
    %v4147 = vadd.f32 %v4145, %v4146
    %v4148 = vrot.slane %v4147, 2
    %v4149 = vadd.f32 %v4147, %v4148
    %v4150 = vrot.slane %v4149, 1
    %v4151 = vadd.f32 %v4149, %v4150
    %v4152 = vadd.f32 %v3643, %v3645
    %v4153 = vadd.f32 %v4152, %v3648
    %v4154 = vadd.f32 %v4153, %v3650
    %v4155 = vadd.f32 %v4154, %v3653
    %v4156 = vadd.f32 %v4155, %v3655
    %v4157 = vadd.f32 %v4156, %v3658
    %v4158 = vadd.f32 %v4157, %v3660
    %v4159 = vadd.f32 %v4158, %v3663
    %v4160 = vadd.f32 %v4159, %v3665
    %v4161 = vadd.f32 %v4160, %v3668
    %v4162 = vadd.f32 %v4161, %v3670
    %v4163 = vadd.f32 %v4162, %v3673
    %v4164 = vadd.f32 %v4163, %v3675
    %v4165 = vadd.f32 %v4164, %v3678
    %v4166 = vadd.f32 %v4165, %v3680
    %v4167 = vadd.f32 %v4166, %v3683
    %v4168 = vadd.f32 %v4167, %v3685
    %v4169 = vadd.f32 %v4168, %v3688
    %v4170 = vadd.f32 %v4169, %v3690
    %v4171 = vadd.f32 %v4170, %v3693
    %v4172 = vadd.f32 %v4171, %v3695
    %v4173 = vadd.f32 %v4172, %v3698
    %v4174 = vadd.f32 %v4173, %v3700
    %v4175 = vadd.f32 %v4174, %v3703
    %v4176 = vadd.f32 %v4175, %v3705
    %v4177 = vadd.f32 %v4176, %v3708
    %v4178 = vadd.f32 %v4177, %v3710
    %v4179 = vadd.f32 %v4178, %v3713
    %v4180 = vadd.f32 %v4179, %v3715
    %v4181 = vadd.f32 %v4180, %v3718
    %v4182 = vadd.f32 %v4181, %v3720
    %v4183 = vrot.slane %v4182, 4
    %v4184 = vadd.f32 %v4182, %v4183
    %v4185 = vrot.slane %v4184, 2
    %v4186 = vadd.f32 %v4184, %v4185
    %v4187 = vrot.slane %v4186, 1
    %v4188 = vadd.f32 %v4186, %v4187
    %v4189 = vadd.f32 %v3999, %v4001
    %v4190 = vadd.f32 %v4189, %v4004
    %v4191 = vadd.f32 %v4190, %v4006
    %v4192 = vadd.f32 %v4191, %v4009
    %v4193 = vadd.f32 %v4192, %v4011
    %v4194 = vadd.f32 %v4193, %v4014
    %v4195 = vadd.f32 %v4194, %v4016
    %v4196 = vadd.f32 %v4195, %v4019
    %v4197 = vadd.f32 %v4196, %v4021
    %v4198 = vadd.f32 %v4197, %v4024
    %v4199 = vadd.f32 %v4198, %v4026
    %v4200 = vadd.f32 %v4199, %v4029
    %v4201 = vadd.f32 %v4200, %v4031
    %v4202 = vadd.f32 %v4201, %v4034
    %v4203 = vadd.f32 %v4202, %v4036
    %v4204 = vadd.f32 %v4203, %v4039
    %v4205 = vadd.f32 %v4204, %v4041
    %v4206 = vadd.f32 %v4205, %v4044
    %v4207 = vadd.f32 %v4206, %v4046
    %v4208 = vadd.f32 %v4207, %v4049
    %v4209 = vadd.f32 %v4208, %v4051
    %v4210 = vadd.f32 %v4209, %v4054
    %v4211 = vadd.f32 %v4210, %v4056
    %v4212 = vadd.f32 %v4211, %v4059
    %v4213 = vadd.f32 %v4212, %v4061
    %v4214 = vadd.f32 %v4213, %v4064
    %v4215 = vadd.f32 %v4214, %v4066
    %v4216 = vadd.f32 %v4215, %v4069
    %v4217 = vadd.f32 %v4216, %v4071
    %v4218 = vadd.f32 %v4217, %v4074
    %v4219 = vadd.f32 %v4218, %v4076
    %v4220 = vrot.slane %v4219, 4
    %v4221 = vadd.f32 %v4219, %v4220
    %v4222 = vrot.slane %v4221, 2
    %v4223 = vadd.f32 %v4221, %v4222
    %v4224 = vrot.slane %v4223, 1
    %v4225 = vadd.f32 %v4223, %v4224
    %v4226 = vmul.f32 %v4114, 0.00390625
    %v4227 = vmul.f32 %v4151, 0.00390625
    %v4228 = vmul.f32 %v4188, 0.00390625
    %v4229 = vmul.f32 %v4225, 0.00390625
    %v4230 = vsub.f32 %v2931, %v4226
    %v4231 = vsub.f32 %v3287, %v4227
    %v4232 = vsub.f32 %v3643, %v4228
    %v4233 = vsub.f32 %v3999, %v4229
    %v4234 = vsub.f32 %v2933, %v4226
    %v4235 = vsub.f32 %v3289, %v4227
    %v4236 = vsub.f32 %v3645, %v4228
    %v4237 = vsub.f32 %v4001, %v4229
    %v4238 = vsub.f32 %v2936, %v4226
    %v4239 = vsub.f32 %v3292, %v4227
    %v4240 = vsub.f32 %v3648, %v4228
    %v4241 = vsub.f32 %v4004, %v4229
    %v4242 = vsub.f32 %v2938, %v4226
    %v4243 = vsub.f32 %v3294, %v4227
    %v4244 = vsub.f32 %v3650, %v4228
    %v4245 = vsub.f32 %v4006, %v4229
    %v4246 = vsub.f32 %v2941, %v4226
    %v4247 = vsub.f32 %v3297, %v4227
    %v4248 = vsub.f32 %v3653, %v4228
    %v4249 = vsub.f32 %v4009, %v4229
    %v4250 = vsub.f32 %v2943, %v4226
    %v4251 = vsub.f32 %v3299, %v4227
    %v4252 = vsub.f32 %v3655, %v4228
    %v4253 = vsub.f32 %v4011, %v4229
    %v4254 = vsub.f32 %v2946, %v4226
    %v4255 = vsub.f32 %v3302, %v4227
    %v4256 = vsub.f32 %v3658, %v4228
    %v4257 = vsub.f32 %v4014, %v4229
    %v4258 = vsub.f32 %v2948, %v4226
    %v4259 = vsub.f32 %v3304, %v4227
    %v4260 = vsub.f32 %v3660, %v4228
    %v4261 = vsub.f32 %v4016, %v4229
    %v4262 = vsub.f32 %v2951, %v4226
    %v4263 = vsub.f32 %v3307, %v4227
    %v4264 = vsub.f32 %v3663, %v4228
    %v4265 = vsub.f32 %v4019, %v4229
    %v4266 = vsub.f32 %v2953, %v4226
    %v4267 = vsub.f32 %v3309, %v4227
    %v4268 = vsub.f32 %v3665, %v4228
    %v4269 = vsub.f32 %v4021, %v4229
    %v4270 = vsub.f32 %v2956, %v4226
    %v4271 = vsub.f32 %v3312, %v4227
    %v4272 = vsub.f32 %v3668, %v4228
    %v4273 = vsub.f32 %v4024, %v4229
    %v4274 = vsub.f32 %v2958, %v4226
    %v4275 = vsub.f32 %v3314, %v4227
    %v4276 = vsub.f32 %v3670, %v4228
    %v4277 = vsub.f32 %v4026, %v4229
    %v4278 = vsub.f32 %v2961, %v4226
    %v4279 = vsub.f32 %v3317, %v4227
    %v4280 = vsub.f32 %v3673, %v4228
    %v4281 = vsub.f32 %v4029, %v4229
    %v4282 = vsub.f32 %v2963, %v4226
    %v4283 = vsub.f32 %v3319, %v4227
    %v4284 = vsub.f32 %v3675, %v4228
    %v4285 = vsub.f32 %v4031, %v4229
    %v4286 = vsub.f32 %v2966, %v4226
    %v4287 = vsub.f32 %v3322, %v4227
    %v4288 = vsub.f32 %v3678, %v4228
    %v4289 = vsub.f32 %v4034, %v4229
    %v4290 = vsub.f32 %v2968, %v4226
    %v4291 = vsub.f32 %v3324, %v4227
    %v4292 = vsub.f32 %v3680, %v4228
    %v4293 = vsub.f32 %v4036, %v4229
    %v4294 = vsub.f32 %v2971, %v4226
    %v4295 = vsub.f32 %v3327, %v4227
    %v4296 = vsub.f32 %v3683, %v4228
    %v4297 = vsub.f32 %v4039, %v4229
    %v4298 = vsub.f32 %v2973, %v4226
    %v4299 = vsub.f32 %v3329, %v4227
    %v4300 = vsub.f32 %v3685, %v4228
    %v4301 = vsub.f32 %v4041, %v4229
    %v4302 = vsub.f32 %v2976, %v4226
    %v4303 = vsub.f32 %v3332, %v4227
    %v4304 = vsub.f32 %v3688, %v4228
    %v4305 = vsub.f32 %v4044, %v4229
    %v4306 = vsub.f32 %v2978, %v4226
    %v4307 = vsub.f32 %v3334, %v4227
    %v4308 = vsub.f32 %v3690, %v4228
    %v4309 = vsub.f32 %v4046, %v4229
    %v4310 = vsub.f32 %v2981, %v4226
    %v4311 = vsub.f32 %v3337, %v4227
    %v4312 = vsub.f32 %v3693, %v4228
    %v4313 = vsub.f32 %v4049, %v4229
    %v4314 = vsub.f32 %v2983, %v4226
    %v4315 = vsub.f32 %v3339, %v4227
    %v4316 = vsub.f32 %v3695, %v4228
    %v4317 = vsub.f32 %v4051, %v4229
    %v4318 = vsub.f32 %v2986, %v4226
    %v4319 = vsub.f32 %v3342, %v4227
    %v4320 = vsub.f32 %v3698, %v4228
    %v4321 = vsub.f32 %v4054, %v4229
    %v4322 = vsub.f32 %v2988, %v4226
    %v4323 = vsub.f32 %v3344, %v4227
    %v4324 = vsub.f32 %v3700, %v4228
    %v4325 = vsub.f32 %v4056, %v4229
    %v4326 = vsub.f32 %v2991, %v4226
    %v4327 = vsub.f32 %v3347, %v4227
    %v4328 = vsub.f32 %v3703, %v4228
    %v4329 = vsub.f32 %v4059, %v4229
    %v4330 = vsub.f32 %v2993, %v4226
    %v4331 = vsub.f32 %v3349, %v4227
    %v4332 = vsub.f32 %v3705, %v4228
    %v4333 = vsub.f32 %v4061, %v4229
    %v4334 = vsub.f32 %v2996, %v4226
    %v4335 = vsub.f32 %v3352, %v4227
    %v4336 = vsub.f32 %v3708, %v4228
    %v4337 = vsub.f32 %v4064, %v4229
    %v4338 = vsub.f32 %v2998, %v4226
    %v4339 = vsub.f32 %v3354, %v4227
    %v4340 = vsub.f32 %v3710, %v4228
    %v4341 = vsub.f32 %v4066, %v4229
    %v4342 = vsub.f32 %v3001, %v4226
    %v4343 = vsub.f32 %v3357, %v4227
    %v4344 = vsub.f32 %v3713, %v4228
    %v4345 = vsub.f32 %v4069, %v4229
    %v4346 = vsub.f32 %v3003, %v4226
    %v4347 = vsub.f32 %v3359, %v4227
    %v4348 = vsub.f32 %v3715, %v4228
    %v4349 = vsub.f32 %v4071, %v4229
    %v4350 = vsub.f32 %v3006, %v4226
    %v4351 = vsub.f32 %v3362, %v4227
    %v4352 = vsub.f32 %v3718, %v4228
    %v4353 = vsub.f32 %v4074, %v4229
    %v4354 = vsub.f32 %v3008, %v4226
    %v4355 = vsub.f32 %v3364, %v4227
    %v4356 = vsub.f32 %v3720, %v4228
    %v4357 = vsub.f32 %v4076, %v4229
    %v4358 = vmul.f32 %v4230, %v4230
    %v4359 = vmul.f32 %v4231, %v4231
    %v4360 = vmul.f32 %v4232, %v4232
    %v4361 = vmul.f32 %v4233, %v4233
    %v4362 = vmul.f32 %v4234, %v4234
    %v4363 = vmul.f32 %v4235, %v4235
    %v4364 = vmul.f32 %v4236, %v4236
    %v4365 = vmul.f32 %v4237, %v4237
    %v4366 = vmul.f32 %v4238, %v4238
    %v4367 = vmul.f32 %v4239, %v4239
    %v4368 = vmul.f32 %v4240, %v4240
    %v4369 = vmul.f32 %v4241, %v4241
    %v4370 = vmul.f32 %v4242, %v4242
    %v4371 = vmul.f32 %v4243, %v4243
    %v4372 = vmul.f32 %v4244, %v4244
    %v4373 = vmul.f32 %v4245, %v4245
    %v4374 = vmul.f32 %v4246, %v4246
    %v4375 = vmul.f32 %v4247, %v4247
    %v4376 = vmul.f32 %v4248, %v4248
    %v4377 = vmul.f32 %v4249, %v4249
    %v4378 = vmul.f32 %v4250, %v4250
    %v4379 = vmul.f32 %v4251, %v4251
    %v4380 = vmul.f32 %v4252, %v4252
    %v4381 = vmul.f32 %v4253, %v4253
    %v4382 = vmul.f32 %v4254, %v4254
    %v4383 = vmul.f32 %v4255, %v4255
    %v4384 = vmul.f32 %v4256, %v4256
    %v4385 = vmul.f32 %v4257, %v4257
    %v4386 = vmul.f32 %v4258, %v4258
    %v4387 = vmul.f32 %v4259, %v4259
    %v4388 = vmul.f32 %v4260, %v4260
    %v4389 = vmul.f32 %v4261, %v4261
    %v4390 = vmul.f32 %v4262, %v4262
    %v4391 = vmul.f32 %v4263, %v4263
    %v4392 = vmul.f32 %v4264, %v4264
    %v4393 = vmul.f32 %v4265, %v4265
    %v4394 = vmul.f32 %v4266, %v4266
    %v4395 = vmul.f32 %v4267, %v4267
    %v4396 = vmul.f32 %v4268, %v4268
    %v4397 = vmul.f32 %v4269, %v4269
    %v4398 = vmul.f32 %v4270, %v4270
    %v4399 = vmul.f32 %v4271, %v4271
    %v4400 = vmul.f32 %v4272, %v4272
    %v4401 = vmul.f32 %v4273, %v4273
    %v4402 = vmul.f32 %v4274, %v4274
    %v4403 = vmul.f32 %v4275, %v4275
    %v4404 = vmul.f32 %v4276, %v4276
    %v4405 = vmul.f32 %v4277, %v4277
    %v4406 = vmul.f32 %v4278, %v4278
    %v4407 = vmul.f32 %v4279, %v4279
    %v4408 = vmul.f32 %v4280, %v4280
    %v4409 = vmul.f32 %v4281, %v4281
    %v4410 = vmul.f32 %v4282, %v4282
    %v4411 = vmul.f32 %v4283, %v4283
    %v4412 = vmul.f32 %v4284, %v4284
    %v4413 = vmul.f32 %v4285, %v4285
    %v4414 = vmul.f32 %v4286, %v4286
    %v4415 = vmul.f32 %v4287, %v4287
    %v4416 = vmul.f32 %v4288, %v4288
    %v4417 = vmul.f32 %v4289, %v4289
    %v4418 = vmul.f32 %v4290, %v4290
    %v4419 = vmul.f32 %v4291, %v4291
    %v4420 = vmul.f32 %v4292, %v4292
    %v4421 = vmul.f32 %v4293, %v4293
    %v4422 = vmul.f32 %v4294, %v4294
    %v4423 = vmul.f32 %v4295, %v4295
    %v4424 = vmul.f32 %v4296, %v4296
    %v4425 = vmul.f32 %v4297, %v4297
    %v4426 = vmul.f32 %v4298, %v4298
    %v4427 = vmul.f32 %v4299, %v4299
    %v4428 = vmul.f32 %v4300, %v4300
    %v4429 = vmul.f32 %v4301, %v4301
    %v4430 = vmul.f32 %v4302, %v4302
    %v4431 = vmul.f32 %v4303, %v4303
    %v4432 = vmul.f32 %v4304, %v4304
    %v4433 = vmul.f32 %v4305, %v4305
    %v4434 = vmul.f32 %v4306, %v4306
    %v4435 = vmul.f32 %v4307, %v4307
    %v4436 = vmul.f32 %v4308, %v4308
    %v4437 = vmul.f32 %v4309, %v4309
    %v4438 = vmul.f32 %v4310, %v4310
    %v4439 = vmul.f32 %v4311, %v4311
    %v4440 = vmul.f32 %v4312, %v4312
    %v4441 = vmul.f32 %v4313, %v4313
    %v4442 = vmul.f32 %v4314, %v4314
    %v4443 = vmul.f32 %v4315, %v4315
    %v4444 = vmul.f32 %v4316, %v4316
    %v4445 = vmul.f32 %v4317, %v4317
    %v4446 = vmul.f32 %v4318, %v4318
    %v4447 = vmul.f32 %v4319, %v4319
    %v4448 = vmul.f32 %v4320, %v4320
    %v4449 = vmul.f32 %v4321, %v4321
    %v4450 = vmul.f32 %v4322, %v4322
    %v4451 = vmul.f32 %v4323, %v4323
    %v4452 = vmul.f32 %v4324, %v4324
    %v4453 = vmul.f32 %v4325, %v4325
    %v4454 = vmul.f32 %v4326, %v4326
    %v4455 = vmul.f32 %v4327, %v4327
    %v4456 = vmul.f32 %v4328, %v4328
    %v4457 = vmul.f32 %v4329, %v4329
    %v4458 = vmul.f32 %v4330, %v4330
    %v4459 = vmul.f32 %v4331, %v4331
    %v4460 = vmul.f32 %v4332, %v4332
    %v4461 = vmul.f32 %v4333, %v4333
    %v4462 = vmul.f32 %v4334, %v4334
    %v4463 = vmul.f32 %v4335, %v4335
    %v4464 = vmul.f32 %v4336, %v4336
    %v4465 = vmul.f32 %v4337, %v4337
    %v4466 = vmul.f32 %v4338, %v4338
    %v4467 = vmul.f32 %v4339, %v4339
    %v4468 = vmul.f32 %v4340, %v4340
    %v4469 = vmul.f32 %v4341, %v4341
    %v4470 = vmul.f32 %v4342, %v4342
    %v4471 = vmul.f32 %v4343, %v4343
    %v4472 = vmul.f32 %v4344, %v4344
    %v4473 = vmul.f32 %v4345, %v4345
    %v4474 = vmul.f32 %v4346, %v4346
    %v4475 = vmul.f32 %v4347, %v4347
    %v4476 = vmul.f32 %v4348, %v4348
    %v4477 = vmul.f32 %v4349, %v4349
    %v4478 = vmul.f32 %v4350, %v4350
    %v4479 = vmul.f32 %v4351, %v4351
    %v4480 = vmul.f32 %v4352, %v4352
    %v4481 = vmul.f32 %v4353, %v4353
    %v4482 = vmul.f32 %v4354, %v4354
    %v4483 = vmul.f32 %v4355, %v4355
    %v4484 = vmul.f32 %v4356, %v4356
    %v4485 = vmul.f32 %v4357, %v4357
    %v4486 = vadd.f32 %v4358, %v4362
    %v4487 = vadd.f32 %v4486, %v4366
    %v4488 = vadd.f32 %v4487, %v4370
    %v4489 = vadd.f32 %v4488, %v4374
    %v4490 = vadd.f32 %v4489, %v4378
    %v4491 = vadd.f32 %v4490, %v4382
    %v4492 = vadd.f32 %v4491, %v4386
    %v4493 = vadd.f32 %v4492, %v4390
    %v4494 = vadd.f32 %v4493, %v4394
    %v4495 = vadd.f32 %v4494, %v4398
    %v4496 = vadd.f32 %v4495, %v4402
    %v4497 = vadd.f32 %v4496, %v4406
    %v4498 = vadd.f32 %v4497, %v4410
    %v4499 = vadd.f32 %v4498, %v4414
    %v4500 = vadd.f32 %v4499, %v4418
    %v4501 = vadd.f32 %v4500, %v4422
    %v4502 = vadd.f32 %v4501, %v4426
    %v4503 = vadd.f32 %v4502, %v4430
    %v4504 = vadd.f32 %v4503, %v4434
    %v4505 = vadd.f32 %v4504, %v4438
    %v4506 = vadd.f32 %v4505, %v4442
    %v4507 = vadd.f32 %v4506, %v4446
    %v4508 = vadd.f32 %v4507, %v4450
    %v4509 = vadd.f32 %v4508, %v4454
    %v4510 = vadd.f32 %v4509, %v4458
    %v4511 = vadd.f32 %v4510, %v4462
    %v4512 = vadd.f32 %v4511, %v4466
    %v4513 = vadd.f32 %v4512, %v4470
    %v4514 = vadd.f32 %v4513, %v4474
    %v4515 = vadd.f32 %v4514, %v4478
    %v4516 = vadd.f32 %v4515, %v4482
    %v4517 = vrot.slane %v4516, 4
    %v4518 = vadd.f32 %v4516, %v4517
    %v4519 = vrot.slane %v4518, 2
    %v4520 = vadd.f32 %v4518, %v4519
    %v4521 = vrot.slane %v4520, 1
    %v4522 = vadd.f32 %v4520, %v4521
    %v4523 = vadd.f32 %v4359, %v4363
    %v4524 = vadd.f32 %v4523, %v4367
    %v4525 = vadd.f32 %v4524, %v4371
    %v4526 = vadd.f32 %v4525, %v4375
    %v4527 = vadd.f32 %v4526, %v4379
    %v4528 = vadd.f32 %v4527, %v4383
    %v4529 = vadd.f32 %v4528, %v4387
    %v4530 = vadd.f32 %v4529, %v4391
    %v4531 = vadd.f32 %v4530, %v4395
    %v4532 = vadd.f32 %v4531, %v4399
    %v4533 = vadd.f32 %v4532, %v4403
    %v4534 = vadd.f32 %v4533, %v4407
    %v4535 = vadd.f32 %v4534, %v4411
    %v4536 = vadd.f32 %v4535, %v4415
    %v4537 = vadd.f32 %v4536, %v4419
    %v4538 = vadd.f32 %v4537, %v4423
    %v4539 = vadd.f32 %v4538, %v4427
    %v4540 = vadd.f32 %v4539, %v4431
    %v4541 = vadd.f32 %v4540, %v4435
    %v4542 = vadd.f32 %v4541, %v4439
    %v4543 = vadd.f32 %v4542, %v4443
    %v4544 = vadd.f32 %v4543, %v4447
    %v4545 = vadd.f32 %v4544, %v4451
    %v4546 = vadd.f32 %v4545, %v4455
    %v4547 = vadd.f32 %v4546, %v4459
    %v4548 = vadd.f32 %v4547, %v4463
    %v4549 = vadd.f32 %v4548, %v4467
    %v4550 = vadd.f32 %v4549, %v4471
    %v4551 = vadd.f32 %v4550, %v4475
    %v4552 = vadd.f32 %v4551, %v4479
    %v4553 = vadd.f32 %v4552, %v4483
    %v4554 = vrot.slane %v4553, 4
    %v4555 = vadd.f32 %v4553, %v4554
    %v4556 = vrot.slane %v4555, 2
    %v4557 = vadd.f32 %v4555, %v4556
    %v4558 = vrot.slane %v4557, 1
    %v4559 = vadd.f32 %v4557, %v4558
    %v4560 = vadd.f32 %v4360, %v4364
    %v4561 = vadd.f32 %v4560, %v4368
    %v4562 = vadd.f32 %v4561, %v4372
    %v4563 = vadd.f32 %v4562, %v4376
    %v4564 = vadd.f32 %v4563, %v4380
    %v4565 = vadd.f32 %v4564, %v4384
    %v4566 = vadd.f32 %v4565, %v4388
    %v4567 = vadd.f32 %v4566, %v4392
    %v4568 = vadd.f32 %v4567, %v4396
    %v4569 = vadd.f32 %v4568, %v4400
    %v4570 = vadd.f32 %v4569, %v4404
    %v4571 = vadd.f32 %v4570, %v4408
    %v4572 = vadd.f32 %v4571, %v4412
    %v4573 = vadd.f32 %v4572, %v4416
    %v4574 = vadd.f32 %v4573, %v4420
    %v4575 = vadd.f32 %v4574, %v4424
    %v4576 = vadd.f32 %v4575, %v4428
    %v4577 = vadd.f32 %v4576, %v4432
    %v4578 = vadd.f32 %v4577, %v4436
    %v4579 = vadd.f32 %v4578, %v4440
    %v4580 = vadd.f32 %v4579, %v4444
    %v4581 = vadd.f32 %v4580, %v4448
    %v4582 = vadd.f32 %v4581, %v4452
    %v4583 = vadd.f32 %v4582, %v4456
    %v4584 = vadd.f32 %v4583, %v4460
    %v4585 = vadd.f32 %v4584, %v4464
    %v4586 = vadd.f32 %v4585, %v4468
    %v4587 = vadd.f32 %v4586, %v4472
    %v4588 = vadd.f32 %v4587, %v4476
    %v4589 = vadd.f32 %v4588, %v4480
    %v4590 = vadd.f32 %v4589, %v4484
    %v4591 = vrot.slane %v4590, 4
    %v4592 = vadd.f32 %v4590, %v4591
    %v4593 = vrot.slane %v4592, 2
    %v4594 = vadd.f32 %v4592, %v4593
    %v4595 = vrot.slane %v4594, 1
    %v4596 = vadd.f32 %v4594, %v4595
    %v4597 = vadd.f32 %v4361, %v4365
    %v4598 = vadd.f32 %v4597, %v4369
    %v4599 = vadd.f32 %v4598, %v4373
    %v4600 = vadd.f32 %v4599, %v4377
    %v4601 = vadd.f32 %v4600, %v4381
    %v4602 = vadd.f32 %v4601, %v4385
    %v4603 = vadd.f32 %v4602, %v4389
    %v4604 = vadd.f32 %v4603, %v4393
    %v4605 = vadd.f32 %v4604, %v4397
    %v4606 = vadd.f32 %v4605, %v4401
    %v4607 = vadd.f32 %v4606, %v4405
    %v4608 = vadd.f32 %v4607, %v4409
    %v4609 = vadd.f32 %v4608, %v4413
    %v4610 = vadd.f32 %v4609, %v4417
    %v4611 = vadd.f32 %v4610, %v4421
    %v4612 = vadd.f32 %v4611, %v4425
    %v4613 = vadd.f32 %v4612, %v4429
    %v4614 = vadd.f32 %v4613, %v4433
    %v4615 = vadd.f32 %v4614, %v4437
    %v4616 = vadd.f32 %v4615, %v4441
    %v4617 = vadd.f32 %v4616, %v4445
    %v4618 = vadd.f32 %v4617, %v4449
    %v4619 = vadd.f32 %v4618, %v4453
    %v4620 = vadd.f32 %v4619, %v4457
    %v4621 = vadd.f32 %v4620, %v4461
    %v4622 = vadd.f32 %v4621, %v4465
    %v4623 = vadd.f32 %v4622, %v4469
    %v4624 = vadd.f32 %v4623, %v4473
    %v4625 = vadd.f32 %v4624, %v4477
    %v4626 = vadd.f32 %v4625, %v4481
    %v4627 = vadd.f32 %v4626, %v4485
    %v4628 = vrot.slane %v4627, 4
    %v4629 = vadd.f32 %v4627, %v4628
    %v4630 = vrot.slane %v4629, 2
    %v4631 = vadd.f32 %v4629, %v4630
    %v4632 = vrot.slane %v4631, 1
    %v4633 = vadd.f32 %v4631, %v4632
    %v4634 = vmul.f32 %v4522, 0.00390625
    %v4635 = vmul.f32 %v4559, 0.00390625
    %v4636 = vmul.f32 %v4596, 0.00390625
    %v4637 = vmul.f32 %v4633, 0.00390625
    %v4638 = vld [vmem:[#allocation13] sm:$0xf]
    %v4639 = vadd.f32 %v4634, 1e-05
    %v4640 = vadd.f32 %v4635, 1e-05
    %v4641 = vadd.f32 %v4636, 1e-05
    %v4642 = vadd.f32 %v4637, 1e-05
    %v4643 = vrsqrt.pop %v4639
    %v4644 = vmul.f32 %v4643, %v4639
    %v4645 = vmul.f32 %v4644, %v4643
    %v4646 = vmul.f32 0.5, %v4645
    %v4647 = vsub.f32 1.5, %v4646
    %v4648 = vmul.f32 %v4643, %v4647
    %vm4649 = vweird.f32 %v4639
    %vm4650 = vweird.f32 %v4643
    %vm4651 = vmor %vm4649, %vm4650
    %v4652 = vsel %vm4651, %v4643, %v4648
    %v4653 = vrsqrt.pop %v4640
    %v4654 = vmul.f32 %v4653, %v4640
    %v4655 = vmul.f32 %v4654, %v4653
    %v4656 = vmul.f32 0.5, %v4655
    %v4657 = vsub.f32 1.5, %v4656
    %v4658 = vmul.f32 %v4653, %v4657
    %vm4659 = vweird.f32 %v4640
    %vm4660 = vweird.f32 %v4653
    %vm4661 = vmor %vm4659, %vm4660
    %v4662 = vsel %vm4661, %v4653, %v4658
    %v4663 = vrsqrt.pop %v4641
    %v4664 = vmul.f32 %v4663, %v4641
    %v4665 = vmul.f32 %v4664, %v4663
    %v4666 = vmul.f32 0.5, %v4665
    %v4667 = vsub.f32 1.5, %v4666
    %v4668 = vmul.f32 %v4663, %v4667
    %vm4669 = vweird.f32 %v4641
    %vm4670 = vweird.f32 %v4663
    %vm4671 = vmor %vm4669, %vm4670
    %v4672 = vsel %vm4671, %v4663, %v4668
    %v4673 = vrsqrt.pop %v4642
    %v4674 = vmul.f32 %v4673, %v4642
    %v4675 = vmul.f32 %v4674, %v4673
    %v4676 = vmul.f32 0.5, %v4675
    %v4677 = vsub.f32 1.5, %v4676
    %v4678 = vmul.f32 %v4673, %v4677
    %vm4679 = vweird.f32 %v4642
    %vm4680 = vweird.f32 %v4673
    %vm4681 = vmor %vm4679, %vm4680
    %v4682 = vsel %vm4681, %v4673, %v4678
    %v4687 = vrot.slane %v4662, 7
    %v4688 = vrot.slane %v4672, 6
    %v4689 = vrot.slane %v4682, 5
    %v4690 = vsel %vm1401, %v4652, %v4687
    %v4691 = vsel %vm1403, %v4688, %v4689
    %v4692 = vsel %vm1405, %v4690, %v4691
    %v4694 = vmul.f32 %v4638, %v4692
    %v4696 = vperm.slane %v4694, 0
    %v4697 = vperm.slane %v4694, 1
    %v4698 = vperm.slane %v4694, 2
    %v4699 = vperm.slane %v4694, 3
    %v4704 = vmul.f32 %v4230, %v4696
    %v4705 = vmul.f32 %v4231, %v4697
    %v4706 = vmul.f32 %v4232, %v4698
    %v4707 = vmul.f32 %v4233, %v4699
    %v4708 = vmul.f32 %v4234, %v4696
    %v4709 = vmul.f32 %v4235, %v4697
    %v4710 = vmul.f32 %v4236, %v4698
    %v4711 = vmul.f32 %v4237, %v4699
    %v4712 = vmul.f32 %v4238, %v4696
    %v4713 = vmul.f32 %v4239, %v4697
    %v4714 = vmul.f32 %v4240, %v4698
    %v4715 = vmul.f32 %v4241, %v4699
    %v4716 = vmul.f32 %v4242, %v4696
    %v4717 = vmul.f32 %v4243, %v4697
    %v4718 = vmul.f32 %v4244, %v4698
    %v4719 = vmul.f32 %v4245, %v4699
    %v4720 = vmul.f32 %v4246, %v4696
    %v4721 = vmul.f32 %v4247, %v4697
    %v4722 = vmul.f32 %v4248, %v4698
    %v4723 = vmul.f32 %v4249, %v4699
    %v4724 = vmul.f32 %v4250, %v4696
    %v4725 = vmul.f32 %v4251, %v4697
    %v4726 = vmul.f32 %v4252, %v4698
    %v4727 = vmul.f32 %v4253, %v4699
    %v4728 = vmul.f32 %v4254, %v4696
    %v4729 = vmul.f32 %v4255, %v4697
    %v4730 = vmul.f32 %v4256, %v4698
    %v4731 = vmul.f32 %v4257, %v4699
    %v4732 = vmul.f32 %v4258, %v4696
    %v4733 = vmul.f32 %v4259, %v4697
    %v4734 = vmul.f32 %v4260, %v4698
    %v4735 = vmul.f32 %v4261, %v4699
    %v4736 = vmul.f32 %v4262, %v4696
    %v4737 = vmul.f32 %v4263, %v4697
    %v4738 = vmul.f32 %v4264, %v4698
    %v4739 = vmul.f32 %v4265, %v4699
    %v4740 = vmul.f32 %v4266, %v4696
    %v4741 = vmul.f32 %v4267, %v4697
    %v4742 = vmul.f32 %v4268, %v4698
    %v4743 = vmul.f32 %v4269, %v4699
    %v4744 = vmul.f32 %v4270, %v4696
    %v4745 = vmul.f32 %v4271, %v4697
    %v4746 = vmul.f32 %v4272, %v4698
    %v4747 = vmul.f32 %v4273, %v4699
    %v4748 = vmul.f32 %v4274, %v4696
    %v4749 = vmul.f32 %v4275, %v4697
    %v4750 = vmul.f32 %v4276, %v4698
    %v4751 = vmul.f32 %v4277, %v4699
    %v4752 = vmul.f32 %v4278, %v4696
    %v4753 = vmul.f32 %v4279, %v4697
    %v4754 = vmul.f32 %v4280, %v4698
    %v4755 = vmul.f32 %v4281, %v4699
    %v4756 = vmul.f32 %v4282, %v4696
    %v4757 = vmul.f32 %v4283, %v4697
    %v4758 = vmul.f32 %v4284, %v4698
    %v4759 = vmul.f32 %v4285, %v4699
    %v4760 = vmul.f32 %v4286, %v4696
    %v4761 = vmul.f32 %v4287, %v4697
    %v4762 = vmul.f32 %v4288, %v4698
    %v4763 = vmul.f32 %v4289, %v4699
    %v4764 = vmul.f32 %v4290, %v4696
    %v4765 = vmul.f32 %v4291, %v4697
    %v4766 = vmul.f32 %v4292, %v4698
    %v4767 = vmul.f32 %v4293, %v4699
    %v4768 = vmul.f32 %v4294, %v4696
    %v4769 = vmul.f32 %v4295, %v4697
    %v4770 = vmul.f32 %v4296, %v4698
    %v4771 = vmul.f32 %v4297, %v4699
    %v4772 = vmul.f32 %v4298, %v4696
    %v4773 = vmul.f32 %v4299, %v4697
    %v4774 = vmul.f32 %v4300, %v4698
    %v4775 = vmul.f32 %v4301, %v4699
    %v4776 = vmul.f32 %v4302, %v4696
    %v4777 = vmul.f32 %v4303, %v4697
    %v4778 = vmul.f32 %v4304, %v4698
    %v4779 = vmul.f32 %v4305, %v4699
    %v4780 = vmul.f32 %v4306, %v4696
    %v4781 = vmul.f32 %v4307, %v4697
    %v4782 = vmul.f32 %v4308, %v4698
    %v4783 = vmul.f32 %v4309, %v4699
    %v4784 = vmul.f32 %v4310, %v4696
    %v4785 = vmul.f32 %v4311, %v4697
    %v4786 = vmul.f32 %v4312, %v4698
    %v4787 = vmul.f32 %v4313, %v4699
    %v4788 = vmul.f32 %v4314, %v4696
    %v4789 = vmul.f32 %v4315, %v4697
    %v4790 = vmul.f32 %v4316, %v4698
    %v4791 = vmul.f32 %v4317, %v4699
    %v4792 = vmul.f32 %v4318, %v4696
    %v4793 = vmul.f32 %v4319, %v4697
    %v4794 = vmul.f32 %v4320, %v4698
    %v4795 = vmul.f32 %v4321, %v4699
    %v4796 = vmul.f32 %v4322, %v4696
    %v4797 = vmul.f32 %v4323, %v4697
    %v4798 = vmul.f32 %v4324, %v4698
    %v4799 = vmul.f32 %v4325, %v4699
    %v4800 = vmul.f32 %v4326, %v4696
    %v4801 = vmul.f32 %v4327, %v4697
    %v4802 = vmul.f32 %v4328, %v4698
    %v4803 = vmul.f32 %v4329, %v4699
    %v4804 = vmul.f32 %v4330, %v4696
    %v4805 = vmul.f32 %v4331, %v4697
    %v4806 = vmul.f32 %v4332, %v4698
    %v4807 = vmul.f32 %v4333, %v4699
    %v4808 = vmul.f32 %v4334, %v4696
    %v4809 = vmul.f32 %v4335, %v4697
    %v4810 = vmul.f32 %v4336, %v4698
    %v4811 = vmul.f32 %v4337, %v4699
    %v4812 = vmul.f32 %v4338, %v4696
    %v4813 = vmul.f32 %v4339, %v4697
    %v4814 = vmul.f32 %v4340, %v4698
    %v4815 = vmul.f32 %v4341, %v4699
    %v4816 = vmul.f32 %v4342, %v4696
    %v4817 = vmul.f32 %v4343, %v4697
    %v4818 = vmul.f32 %v4344, %v4698
    %v4819 = vmul.f32 %v4345, %v4699
    %v4820 = vmul.f32 %v4346, %v4696
    %v4821 = vmul.f32 %v4347, %v4697
    %v4822 = vmul.f32 %v4348, %v4698
    %v4823 = vmul.f32 %v4349, %v4699
    %v4824 = vmul.f32 %v4350, %v4696
    %v4825 = vmul.f32 %v4351, %v4697
    %v4826 = vmul.f32 %v4352, %v4698
    %v4827 = vmul.f32 %v4353, %v4699
    %v4828 = vmul.f32 %v4354, %v4696
    %v4829 = vmul.f32 %v4355, %v4697
    %v4830 = vmul.f32 %v4356, %v4698
    %v4831 = vmul.f32 %v4357, %v4699
    %v4832 = vld [vmem:[#allocation14] sm:$0xf]
    %v4834 = vperm.slane %v4832, 0
    %v4835 = vperm.slane %v4832, 1
    %v4836 = vperm.slane %v4832, 2
    %v4837 = vperm.slane %v4832, 3
    %v4842 = vadd.f32 %v4704, %v4834
    %v4843 = vadd.f32 %v4705, %v4835
    %v4844 = vadd.f32 %v4706, %v4836
    %v4845 = vadd.f32 %v4707, %v4837
    %v4846 = vadd.f32 %v4708, %v4834
    %v4847 = vadd.f32 %v4709, %v4835
    %v4848 = vadd.f32 %v4710, %v4836
    %v4849 = vadd.f32 %v4711, %v4837
    %v4850 = vadd.f32 %v4712, %v4834
    %v4851 = vadd.f32 %v4713, %v4835
    %v4852 = vadd.f32 %v4714, %v4836
    %v4853 = vadd.f32 %v4715, %v4837
    %v4854 = vadd.f32 %v4716, %v4834
    %v4855 = vadd.f32 %v4717, %v4835
    %v4856 = vadd.f32 %v4718, %v4836
    %v4857 = vadd.f32 %v4719, %v4837
    %v4858 = vadd.f32 %v4720, %v4834
    %v4859 = vadd.f32 %v4721, %v4835
    %v4860 = vadd.f32 %v4722, %v4836
    %v4861 = vadd.f32 %v4723, %v4837
    %v4862 = vadd.f32 %v4724, %v4834
    %v4863 = vadd.f32 %v4725, %v4835
    %v4864 = vadd.f32 %v4726, %v4836
    %v4865 = vadd.f32 %v4727, %v4837
    %v4866 = vadd.f32 %v4728, %v4834
    %v4867 = vadd.f32 %v4729, %v4835
    %v4868 = vadd.f32 %v4730, %v4836
    %v4869 = vadd.f32 %v4731, %v4837
    %v4870 = vadd.f32 %v4732, %v4834
    %v4871 = vadd.f32 %v4733, %v4835
    %v4872 = vadd.f32 %v4734, %v4836
    %v4873 = vadd.f32 %v4735, %v4837
    %v4874 = vadd.f32 %v4736, %v4834
    %v4875 = vadd.f32 %v4737, %v4835
    %v4876 = vadd.f32 %v4738, %v4836
    %v4877 = vadd.f32 %v4739, %v4837
    %v4878 = vadd.f32 %v4740, %v4834
    %v4879 = vadd.f32 %v4741, %v4835
    %v4880 = vadd.f32 %v4742, %v4836
    %v4881 = vadd.f32 %v4743, %v4837
    %v4882 = vadd.f32 %v4744, %v4834
    %v4883 = vadd.f32 %v4745, %v4835
    %v4884 = vadd.f32 %v4746, %v4836
    %v4885 = vadd.f32 %v4747, %v4837
    %v4886 = vadd.f32 %v4748, %v4834
    %v4887 = vadd.f32 %v4749, %v4835
    %v4888 = vadd.f32 %v4750, %v4836
    %v4889 = vadd.f32 %v4751, %v4837
    %v4890 = vadd.f32 %v4752, %v4834
    %v4891 = vadd.f32 %v4753, %v4835
    %v4892 = vadd.f32 %v4754, %v4836
    %v4893 = vadd.f32 %v4755, %v4837
    %v4894 = vadd.f32 %v4756, %v4834
    %v4895 = vadd.f32 %v4757, %v4835
    %v4896 = vadd.f32 %v4758, %v4836
    %v4897 = vadd.f32 %v4759, %v4837
    %v4898 = vadd.f32 %v4760, %v4834
    %v4899 = vadd.f32 %v4761, %v4835
    %v4900 = vadd.f32 %v4762, %v4836
    %v4901 = vadd.f32 %v4763, %v4837
    %v4902 = vadd.f32 %v4764, %v4834
    %v4903 = vadd.f32 %v4765, %v4835
    %v4904 = vadd.f32 %v4766, %v4836
    %v4905 = vadd.f32 %v4767, %v4837
    %v4906 = vadd.f32 %v4768, %v4834
    %v4907 = vadd.f32 %v4769, %v4835
    %v4908 = vadd.f32 %v4770, %v4836
    %v4909 = vadd.f32 %v4771, %v4837
    %v4910 = vadd.f32 %v4772, %v4834
    %v4911 = vadd.f32 %v4773, %v4835
    %v4912 = vadd.f32 %v4774, %v4836
    %v4913 = vadd.f32 %v4775, %v4837
    %v4914 = vadd.f32 %v4776, %v4834
    %v4915 = vadd.f32 %v4777, %v4835
    %v4916 = vadd.f32 %v4778, %v4836
    %v4917 = vadd.f32 %v4779, %v4837
    %v4918 = vadd.f32 %v4780, %v4834
    %v4919 = vadd.f32 %v4781, %v4835
    %v4920 = vadd.f32 %v4782, %v4836
    %v4921 = vadd.f32 %v4783, %v4837
    %v4922 = vadd.f32 %v4784, %v4834
    %v4923 = vadd.f32 %v4785, %v4835
    %v4924 = vadd.f32 %v4786, %v4836
    %v4925 = vadd.f32 %v4787, %v4837
    %v4926 = vadd.f32 %v4788, %v4834
    %v4927 = vadd.f32 %v4789, %v4835
    %v4928 = vadd.f32 %v4790, %v4836
    %v4929 = vadd.f32 %v4791, %v4837
    %v4930 = vadd.f32 %v4792, %v4834
    %v4931 = vadd.f32 %v4793, %v4835
    %v4932 = vadd.f32 %v4794, %v4836
    %v4933 = vadd.f32 %v4795, %v4837
    %v4934 = vadd.f32 %v4796, %v4834
    %v4935 = vadd.f32 %v4797, %v4835
    %v4936 = vadd.f32 %v4798, %v4836
    %v4937 = vadd.f32 %v4799, %v4837
    %v4938 = vadd.f32 %v4800, %v4834
    %v4939 = vadd.f32 %v4801, %v4835
    %v4940 = vadd.f32 %v4802, %v4836
    %v4941 = vadd.f32 %v4803, %v4837
    %v4942 = vadd.f32 %v4804, %v4834
    %v4943 = vadd.f32 %v4805, %v4835
    %v4944 = vadd.f32 %v4806, %v4836
    %v4945 = vadd.f32 %v4807, %v4837
    %v4946 = vadd.f32 %v4808, %v4834
    %v4947 = vadd.f32 %v4809, %v4835
    %v4948 = vadd.f32 %v4810, %v4836
    %v4949 = vadd.f32 %v4811, %v4837
    %v4950 = vadd.f32 %v4812, %v4834
    %v4951 = vadd.f32 %v4813, %v4835
    %v4952 = vadd.f32 %v4814, %v4836
    %v4953 = vadd.f32 %v4815, %v4837
    %v4954 = vadd.f32 %v4816, %v4834
    %v4955 = vadd.f32 %v4817, %v4835
    %v4956 = vadd.f32 %v4818, %v4836
    %v4957 = vadd.f32 %v4819, %v4837
    %v4958 = vadd.f32 %v4820, %v4834
    %v4959 = vadd.f32 %v4821, %v4835
    %v4960 = vadd.f32 %v4822, %v4836
    %v4961 = vadd.f32 %v4823, %v4837
    %v4962 = vadd.f32 %v4824, %v4834
    %v4963 = vadd.f32 %v4825, %v4835
    %v4964 = vadd.f32 %v4826, %v4836
    %v4965 = vadd.f32 %v4827, %v4837
    %v4966 = vadd.f32 %v4828, %v4834
    %v4967 = vadd.f32 %v4829, %v4835
    %v4968 = vadd.f32 %v4830, %v4836
    %v4969 = vadd.f32 %v4831, %v4837
    %v4970 = vmax.f32 %v4842, 0.0
    %v4971 = vmax.f32 %v4843, 0.0
    %v4972 = vmax.f32 %v4844, 0.0
    %v4973 = vmax.f32 %v4845, 0.0
    %v4974 = vmax.f32 %v4846, 0.0
    %v4975 = vmax.f32 %v4847, 0.0
    %v4976 = vmax.f32 %v4848, 0.0
    %v4977 = vmax.f32 %v4849, 0.0
    %v4978 = vmax.f32 %v4850, 0.0
    %v4979 = vmax.f32 %v4851, 0.0
    %v4980 = vmax.f32 %v4852, 0.0
    %v4981 = vmax.f32 %v4853, 0.0
    %v4982 = vmax.f32 %v4854, 0.0
    %v4983 = vmax.f32 %v4855, 0.0
    %v4984 = vmax.f32 %v4856, 0.0
    %v4985 = vmax.f32 %v4857, 0.0
    %v4986 = vmax.f32 %v4858, 0.0
    %v4987 = vmax.f32 %v4859, 0.0
    %v4988 = vmax.f32 %v4860, 0.0
    %v4989 = vmax.f32 %v4861, 0.0
    %v4990 = vmax.f32 %v4862, 0.0
    %v4991 = vmax.f32 %v4863, 0.0
    %v4992 = vmax.f32 %v4864, 0.0
    %v4993 = vmax.f32 %v4865, 0.0
    %v4994 = vmax.f32 %v4866, 0.0
    %v4995 = vmax.f32 %v4867, 0.0
    %v4996 = vmax.f32 %v4868, 0.0
    %v4997 = vmax.f32 %v4869, 0.0
    %v4998 = vmax.f32 %v4870, 0.0
    %v4999 = vmax.f32 %v4871, 0.0
    %v5000 = vmax.f32 %v4872, 0.0
    %v5001 = vmax.f32 %v4873, 0.0
    %v5002 = vmax.f32 %v4874, 0.0
    %v5003 = vmax.f32 %v4875, 0.0
    %v5004 = vmax.f32 %v4876, 0.0
    %v5005 = vmax.f32 %v4877, 0.0
    %v5006 = vmax.f32 %v4878, 0.0
    %v5007 = vmax.f32 %v4879, 0.0
    %v5008 = vmax.f32 %v4880, 0.0
    %v5009 = vmax.f32 %v4881, 0.0
    %v5010 = vmax.f32 %v4882, 0.0
    %v5011 = vmax.f32 %v4883, 0.0
    %v5012 = vmax.f32 %v4884, 0.0
    %v5013 = vmax.f32 %v4885, 0.0
    %v5014 = vmax.f32 %v4886, 0.0
    %v5015 = vmax.f32 %v4887, 0.0
    %v5016 = vmax.f32 %v4888, 0.0
    %v5017 = vmax.f32 %v4889, 0.0
    %v5018 = vmax.f32 %v4890, 0.0
    %v5019 = vmax.f32 %v4891, 0.0
    %v5020 = vmax.f32 %v4892, 0.0
    %v5021 = vmax.f32 %v4893, 0.0
    %v5022 = vmax.f32 %v4894, 0.0
    %v5023 = vmax.f32 %v4895, 0.0
    %v5024 = vmax.f32 %v4896, 0.0
    %v5025 = vmax.f32 %v4897, 0.0
    %v5026 = vmax.f32 %v4898, 0.0
    %v5027 = vmax.f32 %v4899, 0.0
    %v5028 = vmax.f32 %v4900, 0.0
    %v5029 = vmax.f32 %v4901, 0.0
    %v5030 = vmax.f32 %v4902, 0.0
    %v5031 = vmax.f32 %v4903, 0.0
    %v5032 = vmax.f32 %v4904, 0.0
    %v5033 = vmax.f32 %v4905, 0.0
    %v5034 = vmax.f32 %v4906, 0.0
    %v5035 = vmax.f32 %v4907, 0.0
    %v5036 = vmax.f32 %v4908, 0.0
    %v5037 = vmax.f32 %v4909, 0.0
    %v5038 = vmax.f32 %v4910, 0.0
    %v5039 = vmax.f32 %v4911, 0.0
    %v5040 = vmax.f32 %v4912, 0.0
    %v5041 = vmax.f32 %v4913, 0.0
    %v5042 = vmax.f32 %v4914, 0.0
    %v5043 = vmax.f32 %v4915, 0.0
    %v5044 = vmax.f32 %v4916, 0.0
    %v5045 = vmax.f32 %v4917, 0.0
    %v5046 = vmax.f32 %v4918, 0.0
    %v5047 = vmax.f32 %v4919, 0.0
    %v5048 = vmax.f32 %v4920, 0.0
    %v5049 = vmax.f32 %v4921, 0.0
    %v5050 = vmax.f32 %v4922, 0.0
    %v5051 = vmax.f32 %v4923, 0.0
    %v5052 = vmax.f32 %v4924, 0.0
    %v5053 = vmax.f32 %v4925, 0.0
    %v5054 = vmax.f32 %v4926, 0.0
    %v5055 = vmax.f32 %v4927, 0.0
    %v5056 = vmax.f32 %v4928, 0.0
    %v5057 = vmax.f32 %v4929, 0.0
    %v5058 = vmax.f32 %v4930, 0.0
    %v5059 = vmax.f32 %v4931, 0.0
    %v5060 = vmax.f32 %v4932, 0.0
    %v5061 = vmax.f32 %v4933, 0.0
    %v5062 = vmax.f32 %v4934, 0.0
    %v5063 = vmax.f32 %v4935, 0.0
    %v5064 = vmax.f32 %v4936, 0.0
    %v5065 = vmax.f32 %v4937, 0.0
    %v5066 = vmax.f32 %v4938, 0.0
    %v5067 = vmax.f32 %v4939, 0.0
    %v5068 = vmax.f32 %v4940, 0.0
    %v5069 = vmax.f32 %v4941, 0.0
    %v5070 = vmax.f32 %v4942, 0.0
    %v5071 = vmax.f32 %v4943, 0.0
    %v5072 = vmax.f32 %v4944, 0.0
    %v5073 = vmax.f32 %v4945, 0.0
    %v5074 = vmax.f32 %v4946, 0.0
    %v5075 = vmax.f32 %v4947, 0.0
    %v5076 = vmax.f32 %v4948, 0.0
    %v5077 = vmax.f32 %v4949, 0.0
    %v5078 = vmax.f32 %v4950, 0.0
    %v5079 = vmax.f32 %v4951, 0.0
    %v5080 = vmax.f32 %v4952, 0.0
    %v5081 = vmax.f32 %v4953, 0.0
    %v5082 = vmax.f32 %v4954, 0.0
    %v5083 = vmax.f32 %v4955, 0.0
    %v5084 = vmax.f32 %v4956, 0.0
    %v5085 = vmax.f32 %v4957, 0.0
    %v5086 = vmax.f32 %v4958, 0.0
    %v5087 = vmax.f32 %v4959, 0.0
    %v5088 = vmax.f32 %v4960, 0.0
    %v5089 = vmax.f32 %v4961, 0.0
    %v5090 = vmax.f32 %v4962, 0.0
    %v5091 = vmax.f32 %v4963, 0.0
    %v5092 = vmax.f32 %v4964, 0.0
    %v5093 = vmax.f32 %v4965, 0.0
    %v5094 = vmax.f32 %v4966, 0.0
    %v5095 = vmax.f32 %v4967, 0.0
    %v5096 = vmax.f32 %v4968, 0.0
    %v5097 = vmax.f32 %v4969, 0.0
    %v5098 = vpack.c.bf16 %v4974, %v4970
    %v5099 = vpack.c.bf16 %v4975, %v4971
    %v5100 = vpack.c.bf16 %v4976, %v4972
    %v5101 = vpack.c.bf16 %v4977, %v4973
    %v5102 = vpack.c.bf16 %v4982, %v4978
    %v5103 = vpack.c.bf16 %v4983, %v4979
    %v5104 = vpack.c.bf16 %v4984, %v4980
    %v5105 = vpack.c.bf16 %v4985, %v4981
    %v5106 = vpack.c.bf16 %v4990, %v4986
    %v5107 = vpack.c.bf16 %v4991, %v4987
    %v5108 = vpack.c.bf16 %v4992, %v4988
    %v5109 = vpack.c.bf16 %v4993, %v4989
    %v5110 = vpack.c.bf16 %v4998, %v4994
    %v5111 = vpack.c.bf16 %v4999, %v4995
    %v5112 = vpack.c.bf16 %v5000, %v4996
    %v5113 = vpack.c.bf16 %v5001, %v4997
    %v5114 = vpack.c.bf16 %v5006, %v5002
    %v5115 = vpack.c.bf16 %v5007, %v5003
    %v5116 = vpack.c.bf16 %v5008, %v5004
    %v5117 = vpack.c.bf16 %v5009, %v5005
    %v5118 = vpack.c.bf16 %v5014, %v5010
    %v5119 = vpack.c.bf16 %v5015, %v5011
    %v5120 = vpack.c.bf16 %v5016, %v5012
    %v5121 = vpack.c.bf16 %v5017, %v5013
    %v5122 = vpack.c.bf16 %v5022, %v5018
    %v5123 = vpack.c.bf16 %v5023, %v5019
    %v5124 = vpack.c.bf16 %v5024, %v5020
    %v5125 = vpack.c.bf16 %v5025, %v5021
    %v5126 = vpack.c.bf16 %v5030, %v5026
    %v5127 = vpack.c.bf16 %v5031, %v5027
    %v5128 = vpack.c.bf16 %v5032, %v5028
    %v5129 = vpack.c.bf16 %v5033, %v5029
    %v5130 = vpack.c.bf16 %v5038, %v5034
    %v5131 = vpack.c.bf16 %v5039, %v5035
    %v5132 = vpack.c.bf16 %v5040, %v5036
    %v5133 = vpack.c.bf16 %v5041, %v5037
    %v5134 = vpack.c.bf16 %v5046, %v5042
    %v5135 = vpack.c.bf16 %v5047, %v5043
    %v5136 = vpack.c.bf16 %v5048, %v5044
    %v5137 = vpack.c.bf16 %v5049, %v5045
    %v5138 = vpack.c.bf16 %v5054, %v5050
    %v5139 = vpack.c.bf16 %v5055, %v5051
    %v5140 = vpack.c.bf16 %v5056, %v5052
    %v5141 = vpack.c.bf16 %v5057, %v5053
    %v5142 = vpack.c.bf16 %v5062, %v5058
    %v5143 = vpack.c.bf16 %v5063, %v5059
    %v5144 = vpack.c.bf16 %v5064, %v5060
    %v5145 = vpack.c.bf16 %v5065, %v5061
    %v5146 = vpack.c.bf16 %v5070, %v5066
    %v5147 = vpack.c.bf16 %v5071, %v5067
    %v5148 = vpack.c.bf16 %v5072, %v5068
    %v5149 = vpack.c.bf16 %v5073, %v5069
    %v5150 = vpack.c.bf16 %v5078, %v5074
    %v5151 = vpack.c.bf16 %v5079, %v5075
    %v5152 = vpack.c.bf16 %v5080, %v5076
    %v5153 = vpack.c.bf16 %v5081, %v5077
    %v5154 = vpack.c.bf16 %v5086, %v5082
    %v5155 = vpack.c.bf16 %v5087, %v5083
    %v5156 = vpack.c.bf16 %v5088, %v5084
    %v5157 = vpack.c.bf16 %v5089, %v5085
    %v5158 = vpack.c.bf16 %v5094, %v5090
    %v5159 = vpack.c.bf16 %v5095, %v5091
    %v5160 = vpack.c.bf16 %v5096, %v5092
    %v5161 = vpack.c.bf16 %v5097, %v5093
    %v5162 = vld [vmem:[#allocation16] sm:$0xff]
    %v5163 = vld [vmem:[#allocation16 + $0x8] sm:$0xff]
    %v5164 = vld [vmem:[#allocation16 + $0x10] sm:$0xff]
    %v5165 = vld [vmem:[#allocation16 + $0x18] sm:$0xff]
    %v5166 = vld [vmem:[#allocation16 + $0x20] sm:$0xff]
    %v5167 = vld [vmem:[#allocation16 + $0x28] sm:$0xff]
    %v5168 = vld [vmem:[#allocation16 + $0x30] sm:$0xff]
    %v5169 = vld [vmem:[#allocation16 + $0x38] sm:$0xff]
    %v5170 = vld [vmem:[#allocation16 + $0x40] sm:$0xff]
    %v5171 = vld [vmem:[#allocation16 + $0x48] sm:$0xff]
    %v5172 = vld [vmem:[#allocation16 + $0x50] sm:$0xff]
    %v5173 = vld [vmem:[#allocation16 + $0x58] sm:$0xff]
    %v5174 = vld [vmem:[#allocation16 + $0x60] sm:$0xff]
    %v5175 = vld [vmem:[#allocation16 + $0x68] sm:$0xff]
    %v5176 = vld [vmem:[#allocation16 + $0x70] sm:$0xff]
    %v5177 = vld [vmem:[#allocation16 + $0x78] sm:$0xff]
    %v5178 = vld [vmem:[#allocation16 + $0x80] sm:$0xff]
    %v5179 = vld [vmem:[#allocation16 + $0x88] sm:$0xff]
    %v5180 = vld [vmem:[#allocation16 + $0x90] sm:$0xff]
    %v5181 = vld [vmem:[#allocation16 + $0x98] sm:$0xff]
    %v5182 = vld [vmem:[#allocation16 + $0xa0] sm:$0xff]
    %v5183 = vld [vmem:[#allocation16 + $0xa8] sm:$0xff]
    %v5184 = vld [vmem:[#allocation16 + $0xb0] sm:$0xff]
    %v5185 = vld [vmem:[#allocation16 + $0xb8] sm:$0xff]
    %v5186 = vld [vmem:[#allocation16 + $0xc0] sm:$0xff]
    %v5187 = vld [vmem:[#allocation16 + $0xc8] sm:$0xff]
    %v5188 = vld [vmem:[#allocation16 + $0xd0] sm:$0xff]
    %v5189 = vld [vmem:[#allocation16 + $0xd8] sm:$0xff]
    %v5190 = vld [vmem:[#allocation16 + $0xe0] sm:$0xff]
    %v5191 = vld [vmem:[#allocation16 + $0xe8] sm:$0xff]
    %v5192 = vld [vmem:[#allocation16 + $0xf0] sm:$0xff]
    %v5193 = vld [vmem:[#allocation16 + $0xf8] sm:$0xff]
    %v5194 = vld [vmem:[#allocation16 + $0x100] sm:$0xff]
    %v5195 = vld [vmem:[#allocation16 + $0x108] sm:$0xff]
    %v5196 = vld [vmem:[#allocation16 + $0x110] sm:$0xff]
    %v5197 = vld [vmem:[#allocation16 + $0x118] sm:$0xff]
    %v5198 = vld [vmem:[#allocation16 + $0x120] sm:$0xff]
    %v5199 = vld [vmem:[#allocation16 + $0x128] sm:$0xff]
    %v5200 = vld [vmem:[#allocation16 + $0x130] sm:$0xff]
    %v5201 = vld [vmem:[#allocation16 + $0x138] sm:$0xff]
    %v5202 = vld [vmem:[#allocation16 + $0x140] sm:$0xff]
    %v5203 = vld [vmem:[#allocation16 + $0x148] sm:$0xff]
    %v5204 = vld [vmem:[#allocation16 + $0x150] sm:$0xff]
    %v5205 = vld [vmem:[#allocation16 + $0x158] sm:$0xff]
    %v5206 = vld [vmem:[#allocation16 + $0x160] sm:$0xff]
    %v5207 = vld [vmem:[#allocation16 + $0x168] sm:$0xff]
    %v5208 = vld [vmem:[#allocation16 + $0x170] sm:$0xff]
    %v5209 = vld [vmem:[#allocation16 + $0x178] sm:$0xff]
    %v5210 = vld [vmem:[#allocation16 + $0x180] sm:$0xff]
    %v5211 = vld [vmem:[#allocation16 + $0x188] sm:$0xff]
    %v5212 = vld [vmem:[#allocation16 + $0x190] sm:$0xff]
    %v5213 = vld [vmem:[#allocation16 + $0x198] sm:$0xff]
    %v5214 = vld [vmem:[#allocation16 + $0x1a0] sm:$0xff]
    %v5215 = vld [vmem:[#allocation16 + $0x1a8] sm:$0xff]
    %v5216 = vld [vmem:[#allocation16 + $0x1b0] sm:$0xff]
    %v5217 = vld [vmem:[#allocation16 + $0x1b8] sm:$0xff]
    %v5218 = vld [vmem:[#allocation16 + $0x1c0] sm:$0xff]
    %v5219 = vld [vmem:[#allocation16 + $0x1c8] sm:$0xff]
    %v5220 = vld [vmem:[#allocation16 + $0x1d0] sm:$0xff]
    %v5221 = vld [vmem:[#allocation16 + $0x1d8] sm:$0xff]
    %v5222 = vld [vmem:[#allocation16 + $0x1e0] sm:$0xff]
    %v5223 = vld [vmem:[#allocation16 + $0x1e8] sm:$0xff]
    %v5224 = vld [vmem:[#allocation16 + $0x1f0] sm:$0xff]
    %v5225 = vld [vmem:[#allocation16 + $0x1f8] sm:$0xff]
    %v5226 = vld [vmem:[#allocation16 + $0x200] sm:$0xff]
    %v5227 = vld [vmem:[#allocation16 + $0x208] sm:$0xff]
    %v5228 = vld [vmem:[#allocation16 + $0x210] sm:$0xff]
    %v5229 = vld [vmem:[#allocation16 + $0x218] sm:$0xff]
    %v5230 = vld [vmem:[#allocation16 + $0x220] sm:$0xff]
    %v5231 = vld [vmem:[#allocation16 + $0x228] sm:$0xff]
    %v5232 = vld [vmem:[#allocation16 + $0x230] sm:$0xff]
    %v5233 = vld [vmem:[#allocation16 + $0x238] sm:$0xff]
    %v5234 = vld [vmem:[#allocation16 + $0x240] sm:$0xff]
    %v5235 = vld [vmem:[#allocation16 + $0x248] sm:$0xff]
    %v5236 = vld [vmem:[#allocation16 + $0x250] sm:$0xff]
    %v5237 = vld [vmem:[#allocation16 + $0x258] sm:$0xff]
    %v5238 = vld [vmem:[#allocation16 + $0x260] sm:$0xff]
    %v5239 = vld [vmem:[#allocation16 + $0x268] sm:$0xff]
    %v5240 = vld [vmem:[#allocation16 + $0x270] sm:$0xff]
    %v5241 = vld [vmem:[#allocation16 + $0x278] sm:$0xff]
    %v5242 = vld [vmem:[#allocation16 + $0x280] sm:$0xff]
    %v5243 = vld [vmem:[#allocation16 + $0x288] sm:$0xff]
    %v5244 = vld [vmem:[#allocation16 + $0x290] sm:$0xff]
    %v5245 = vld [vmem:[#allocation16 + $0x298] sm:$0xff]
    %v5246 = vld [vmem:[#allocation16 + $0x2a0] sm:$0xff]
    %v5247 = vld [vmem:[#allocation16 + $0x2a8] sm:$0xff]
    %v5248 = vld [vmem:[#allocation16 + $0x2b0] sm:$0xff]
    %v5249 = vld [vmem:[#allocation16 + $0x2b8] sm:$0xff]
    %v5250 = vld [vmem:[#allocation16 + $0x2c0] sm:$0xff]
    %v5251 = vld [vmem:[#allocation16 + $0x2c8] sm:$0xff]
    %v5252 = vld [vmem:[#allocation16 + $0x2d0] sm:$0xff]
    %v5253 = vld [vmem:[#allocation16 + $0x2d8] sm:$0xff]
    %v5254 = vld [vmem:[#allocation16 + $0x2e0] sm:$0xff]
    %v5255 = vld [vmem:[#allocation16 + $0x2e8] sm:$0xff]
    %v5256 = vld [vmem:[#allocation16 + $0x2f0] sm:$0xff]
    %v5257 = vld [vmem:[#allocation16 + $0x2f8] sm:$0xff]
    %v5258 = vld [vmem:[#allocation16 + $0x300] sm:$0xff]
    %v5259 = vld [vmem:[#allocation16 + $0x308] sm:$0xff]
    %v5260 = vld [vmem:[#allocation16 + $0x310] sm:$0xff]
    %v5261 = vld [vmem:[#allocation16 + $0x318] sm:$0xff]
    %v5262 = vld [vmem:[#allocation16 + $0x320] sm:$0xff]
    %v5263 = vld [vmem:[#allocation16 + $0x328] sm:$0xff]
    %v5264 = vld [vmem:[#allocation16 + $0x330] sm:$0xff]
    %v5265 = vld [vmem:[#allocation16 + $0x338] sm:$0xff]
    %v5266 = vld [vmem:[#allocation16 + $0x340] sm:$0xff]
    %v5267 = vld [vmem:[#allocation16 + $0x348] sm:$0xff]
    %v5268 = vld [vmem:[#allocation16 + $0x350] sm:$0xff]
    %v5269 = vld [vmem:[#allocation16 + $0x358] sm:$0xff]
    %v5270 = vld [vmem:[#allocation16 + $0x360] sm:$0xff]
    %v5271 = vld [vmem:[#allocation16 + $0x368] sm:$0xff]
    %v5272 = vld [vmem:[#allocation16 + $0x370] sm:$0xff]
    %v5273 = vld [vmem:[#allocation16 + $0x378] sm:$0xff]
    %v5274 = vld [vmem:[#allocation16 + $0x380] sm:$0xff]
    %v5275 = vld [vmem:[#allocation16 + $0x388] sm:$0xff]
    %v5276 = vld [vmem:[#allocation16 + $0x390] sm:$0xff]
    %v5277 = vld [vmem:[#allocation16 + $0x398] sm:$0xff]
    %v5278 = vld [vmem:[#allocation16 + $0x3a0] sm:$0xff]
    %v5279 = vld [vmem:[#allocation16 + $0x3a8] sm:$0xff]
    %v5280 = vld [vmem:[#allocation16 + $0x3b0] sm:$0xff]
    %v5281 = vld [vmem:[#allocation16 + $0x3b8] sm:$0xff]
    %v5282 = vld [vmem:[#allocation16 + $0x3c0] sm:$0xff]
    %v5283 = vld [vmem:[#allocation16 + $0x3c8] sm:$0xff]
    %v5284 = vld [vmem:[#allocation16 + $0x3d0] sm:$0xff]
    %v5285 = vld [vmem:[#allocation16 + $0x3d8] sm:$0xff]
    %v5286 = vld [vmem:[#allocation16 + $0x3e0] sm:$0xff]
    %v5287 = vld [vmem:[#allocation16 + $0x3e8] sm:$0xff]
    %v5288 = vld [vmem:[#allocation16 + $0x3f0] sm:$0xff]
    %v5289 = vld [vmem:[#allocation16 + $0x3f8] sm:$0xff]
    %v5290 = vld [vmem:[#allocation17] sm:$0xf]
    %v5292 = vperm.slane %v5290, 0
    %v5293 = vperm.slane %v5290, 1
    %v5294 = vperm.slane %v5290, 2
    %v5295 = vperm.slane %v5290, 3
    %v5428 = vunpack.c.l.b16 %v5162
    %v5429 = vunpack.c.h.b16 %v5162
    %v5430 = vunpack.c.l.b16 %v5163
    %v5431 = vunpack.c.h.b16 %v5163
    %v5432 = vunpack.c.l.b16 %v5164
    %v5433 = vunpack.c.h.b16 %v5164
    %v5434 = vunpack.c.l.b16 %v5165
    %v5435 = vunpack.c.h.b16 %v5165
    %v5436 = vunpack.c.l.b16 %v5166
    %v5437 = vunpack.c.h.b16 %v5166
    %v5438 = vunpack.c.l.b16 %v5167
    %v5439 = vunpack.c.h.b16 %v5167
    %v5440 = vunpack.c.l.b16 %v5168
    %v5441 = vunpack.c.h.b16 %v5168
    %v5442 = vunpack.c.l.b16 %v5169
    %v5443 = vunpack.c.h.b16 %v5169
    %v5444 = vunpack.c.l.b16 %v5170
    %v5445 = vunpack.c.h.b16 %v5170
    %v5446 = vunpack.c.l.b16 %v5171
    %v5447 = vunpack.c.h.b16 %v5171
    %v5448 = vunpack.c.l.b16 %v5172
    %v5449 = vunpack.c.h.b16 %v5172
    %v5450 = vunpack.c.l.b16 %v5173
    %v5451 = vunpack.c.h.b16 %v5173
    %v5452 = vunpack.c.l.b16 %v5174
    %v5453 = vunpack.c.h.b16 %v5174
    %v5454 = vunpack.c.l.b16 %v5175
    %v5455 = vunpack.c.h.b16 %v5175
    %v5456 = vunpack.c.l.b16 %v5176
    %v5457 = vunpack.c.h.b16 %v5176
    %v5458 = vunpack.c.l.b16 %v5177
    %v5459 = vunpack.c.h.b16 %v5177
    %v5460 = vunpack.c.l.b16 %v5178
    %v5461 = vunpack.c.h.b16 %v5178
    %v5462 = vunpack.c.l.b16 %v5179
    %v5463 = vunpack.c.h.b16 %v5179
    %v5464 = vunpack.c.l.b16 %v5180
    %v5465 = vunpack.c.h.b16 %v5180
    %v5466 = vunpack.c.l.b16 %v5181
    %v5467 = vunpack.c.h.b16 %v5181
    %v5468 = vunpack.c.l.b16 %v5182
    %v5469 = vunpack.c.h.b16 %v5182
    %v5470 = vunpack.c.l.b16 %v5183
    %v5471 = vunpack.c.h.b16 %v5183
    %v5472 = vunpack.c.l.b16 %v5184
    %v5473 = vunpack.c.h.b16 %v5184
    %v5474 = vunpack.c.l.b16 %v5185
    %v5475 = vunpack.c.h.b16 %v5185
    %v5476 = vunpack.c.l.b16 %v5186
    %v5477 = vunpack.c.h.b16 %v5186
    %v5478 = vunpack.c.l.b16 %v5187
    %v5479 = vunpack.c.h.b16 %v5187
    %v5480 = vunpack.c.l.b16 %v5188
    %v5481 = vunpack.c.h.b16 %v5188
    %v5482 = vunpack.c.l.b16 %v5189
    %v5483 = vunpack.c.h.b16 %v5189
    %v5484 = vunpack.c.l.b16 %v5190
    %v5485 = vunpack.c.h.b16 %v5190
    %v5486 = vunpack.c.l.b16 %v5191
    %v5487 = vunpack.c.h.b16 %v5191
    %v5488 = vunpack.c.l.b16 %v5192
    %v5489 = vunpack.c.h.b16 %v5192
    %v5490 = vunpack.c.l.b16 %v5193
    %v5491 = vunpack.c.h.b16 %v5193
    %v5492 = vunpack.c.l.b16 %v5194
    %v5493 = vunpack.c.h.b16 %v5194
    %v5494 = vunpack.c.l.b16 %v5195
    %v5495 = vunpack.c.h.b16 %v5195
    %v5496 = vunpack.c.l.b16 %v5196
    %v5497 = vunpack.c.h.b16 %v5196
    %v5498 = vunpack.c.l.b16 %v5197
    %v5499 = vunpack.c.h.b16 %v5197
    %v5500 = vunpack.c.l.b16 %v5198
    %v5501 = vunpack.c.h.b16 %v5198
    %v5502 = vunpack.c.l.b16 %v5199
    %v5503 = vunpack.c.h.b16 %v5199
    %v5504 = vunpack.c.l.b16 %v5200
    %v5505 = vunpack.c.h.b16 %v5200
    %v5506 = vunpack.c.l.b16 %v5201
    %v5507 = vunpack.c.h.b16 %v5201
    %v5508 = vunpack.c.l.b16 %v5202
    %v5509 = vunpack.c.h.b16 %v5202
    %v5510 = vunpack.c.l.b16 %v5203
    %v5511 = vunpack.c.h.b16 %v5203
    %v5512 = vunpack.c.l.b16 %v5204
    %v5513 = vunpack.c.h.b16 %v5204
    %v5514 = vunpack.c.l.b16 %v5205
    %v5515 = vunpack.c.h.b16 %v5205
    %v5516 = vunpack.c.l.b16 %v5206
    %v5517 = vunpack.c.h.b16 %v5206
    %v5518 = vunpack.c.l.b16 %v5207
    %v5519 = vunpack.c.h.b16 %v5207
    %v5520 = vunpack.c.l.b16 %v5208
    %v5521 = vunpack.c.h.b16 %v5208
    %v5522 = vunpack.c.l.b16 %v5209
    %v5523 = vunpack.c.h.b16 %v5209
    %v5524 = vunpack.c.l.b16 %v5210
    %v5525 = vunpack.c.h.b16 %v5210
    %v5526 = vunpack.c.l.b16 %v5211
    %v5527 = vunpack.c.h.b16 %v5211
    %v5528 = vunpack.c.l.b16 %v5212
    %v5529 = vunpack.c.h.b16 %v5212
    %v5530 = vunpack.c.l.b16 %v5213
    %v5531 = vunpack.c.h.b16 %v5213
    %v5532 = vunpack.c.l.b16 %v5214
    %v5533 = vunpack.c.h.b16 %v5214
    %v5534 = vunpack.c.l.b16 %v5215
    %v5535 = vunpack.c.h.b16 %v5215
    %v5536 = vunpack.c.l.b16 %v5216
    %v5537 = vunpack.c.h.b16 %v5216
    %v5538 = vunpack.c.l.b16 %v5217
    %v5539 = vunpack.c.h.b16 %v5217
    %v5540 = vunpack.c.l.b16 %v5218
    %v5541 = vunpack.c.h.b16 %v5218
    %v5542 = vunpack.c.l.b16 %v5219
    %v5543 = vunpack.c.h.b16 %v5219
    %v5544 = vunpack.c.l.b16 %v5220
    %v5545 = vunpack.c.h.b16 %v5220
    %v5546 = vunpack.c.l.b16 %v5221
    %v5547 = vunpack.c.h.b16 %v5221
    %v5548 = vunpack.c.l.b16 %v5222
    %v5549 = vunpack.c.h.b16 %v5222
    %v5550 = vunpack.c.l.b16 %v5223
    %v5551 = vunpack.c.h.b16 %v5223
    %v5552 = vunpack.c.l.b16 %v5224
    %v5553 = vunpack.c.h.b16 %v5224
    %v5554 = vunpack.c.l.b16 %v5225
    %v5555 = vunpack.c.h.b16 %v5225
    %v5556 = vunpack.c.l.b16 %v5226
    %v5557 = vunpack.c.h.b16 %v5226
    %v5558 = vunpack.c.l.b16 %v5227
    %v5559 = vunpack.c.h.b16 %v5227
    %v5560 = vunpack.c.l.b16 %v5228
    %v5561 = vunpack.c.h.b16 %v5228
    %v5562 = vunpack.c.l.b16 %v5229
    %v5563 = vunpack.c.h.b16 %v5229
    %v5564 = vunpack.c.l.b16 %v5230
    %v5565 = vunpack.c.h.b16 %v5230
    %v5566 = vunpack.c.l.b16 %v5231
    %v5567 = vunpack.c.h.b16 %v5231
    %v5568 = vunpack.c.l.b16 %v5232
    %v5569 = vunpack.c.h.b16 %v5232
    %v5570 = vunpack.c.l.b16 %v5233
    %v5571 = vunpack.c.h.b16 %v5233
    %v5572 = vunpack.c.l.b16 %v5234
    %v5573 = vunpack.c.h.b16 %v5234
    %v5574 = vunpack.c.l.b16 %v5235
    %v5575 = vunpack.c.h.b16 %v5235
    %v5576 = vunpack.c.l.b16 %v5236
    %v5577 = vunpack.c.h.b16 %v5236
    %v5578 = vunpack.c.l.b16 %v5237
    %v5579 = vunpack.c.h.b16 %v5237
    %v5580 = vunpack.c.l.b16 %v5238
    %v5581 = vunpack.c.h.b16 %v5238
    %v5582 = vunpack.c.l.b16 %v5239
    %v5583 = vunpack.c.h.b16 %v5239
    %v5584 = vunpack.c.l.b16 %v5240
    %v5585 = vunpack.c.h.b16 %v5240
    %v5586 = vunpack.c.l.b16 %v5241
    %v5587 = vunpack.c.h.b16 %v5241
    %v5588 = vunpack.c.l.b16 %v5242
    %v5589 = vunpack.c.h.b16 %v5242
    %v5590 = vunpack.c.l.b16 %v5243
    %v5591 = vunpack.c.h.b16 %v5243
    %v5592 = vunpack.c.l.b16 %v5244
    %v5593 = vunpack.c.h.b16 %v5244
    %v5594 = vunpack.c.l.b16 %v5245
    %v5595 = vunpack.c.h.b16 %v5245
    %v5596 = vunpack.c.l.b16 %v5246
    %v5597 = vunpack.c.h.b16 %v5246
    %v5598 = vunpack.c.l.b16 %v5247
    %v5599 = vunpack.c.h.b16 %v5247
    %v5600 = vunpack.c.l.b16 %v5248
    %v5601 = vunpack.c.h.b16 %v5248
    %v5602 = vunpack.c.l.b16 %v5249
    %v5603 = vunpack.c.h.b16 %v5249
    %v5604 = vunpack.c.l.b16 %v5250
    %v5605 = vunpack.c.h.b16 %v5250
    %v5606 = vunpack.c.l.b16 %v5251
    %v5607 = vunpack.c.h.b16 %v5251
    %v5608 = vunpack.c.l.b16 %v5252
    %v5609 = vunpack.c.h.b16 %v5252
    %v5610 = vunpack.c.l.b16 %v5253
    %v5611 = vunpack.c.h.b16 %v5253
    %v5612 = vunpack.c.l.b16 %v5254
    %v5613 = vunpack.c.h.b16 %v5254
    %v5614 = vunpack.c.l.b16 %v5255
    %v5615 = vunpack.c.h.b16 %v5255
    %v5616 = vunpack.c.l.b16 %v5256
    %v5617 = vunpack.c.h.b16 %v5256
    %v5618 = vunpack.c.l.b16 %v5257
    %v5619 = vunpack.c.h.b16 %v5257
    %v5620 = vunpack.c.l.b16 %v5258
    %v5621 = vunpack.c.h.b16 %v5258
    %v5622 = vunpack.c.l.b16 %v5259
    %v5623 = vunpack.c.h.b16 %v5259
    %v5624 = vunpack.c.l.b16 %v5260
    %v5625 = vunpack.c.h.b16 %v5260
    %v5626 = vunpack.c.l.b16 %v5261
    %v5627 = vunpack.c.h.b16 %v5261
    %v5628 = vunpack.c.l.b16 %v5262
    %v5629 = vunpack.c.h.b16 %v5262
    %v5630 = vunpack.c.l.b16 %v5263
    %v5631 = vunpack.c.h.b16 %v5263
    %v5632 = vunpack.c.l.b16 %v5264
    %v5633 = vunpack.c.h.b16 %v5264
    %v5634 = vunpack.c.l.b16 %v5265
    %v5635 = vunpack.c.h.b16 %v5265
    %v5636 = vunpack.c.l.b16 %v5266
    %v5637 = vunpack.c.h.b16 %v5266
    %v5638 = vunpack.c.l.b16 %v5267
    %v5639 = vunpack.c.h.b16 %v5267
    %v5640 = vunpack.c.l.b16 %v5268
    %v5641 = vunpack.c.h.b16 %v5268
    %v5642 = vunpack.c.l.b16 %v5269
    %v5643 = vunpack.c.h.b16 %v5269
    %v5644 = vunpack.c.l.b16 %v5270
    %v5645 = vunpack.c.h.b16 %v5270
    %v5646 = vunpack.c.l.b16 %v5271
    %v5647 = vunpack.c.h.b16 %v5271
    %v5648 = vunpack.c.l.b16 %v5272
    %v5649 = vunpack.c.h.b16 %v5272
    %v5650 = vunpack.c.l.b16 %v5273
    %v5651 = vunpack.c.h.b16 %v5273
    %v5652 = vunpack.c.l.b16 %v5274
    %v5653 = vunpack.c.h.b16 %v5274
    %v5654 = vunpack.c.l.b16 %v5275
    %v5655 = vunpack.c.h.b16 %v5275
    %v5656 = vunpack.c.l.b16 %v5276
    %v5657 = vunpack.c.h.b16 %v5276
    %v5658 = vunpack.c.l.b16 %v5277
    %v5659 = vunpack.c.h.b16 %v5277
    %v5660 = vunpack.c.l.b16 %v5278
    %v5661 = vunpack.c.h.b16 %v5278
    %v5662 = vunpack.c.l.b16 %v5279
    %v5663 = vunpack.c.h.b16 %v5279
    %v5664 = vunpack.c.l.b16 %v5280
    %v5665 = vunpack.c.h.b16 %v5280
    %v5666 = vunpack.c.l.b16 %v5281
    %v5667 = vunpack.c.h.b16 %v5281
    %v5668 = vunpack.c.l.b16 %v5282
    %v5669 = vunpack.c.h.b16 %v5282
    %v5670 = vunpack.c.l.b16 %v5283
    %v5671 = vunpack.c.h.b16 %v5283
    %v5672 = vunpack.c.l.b16 %v5284
    %v5673 = vunpack.c.h.b16 %v5284
    %v5674 = vunpack.c.l.b16 %v5285
    %v5675 = vunpack.c.h.b16 %v5285
    %v5676 = vunpack.c.l.b16 %v5286
    %v5677 = vunpack.c.h.b16 %v5286
    %v5678 = vunpack.c.l.b16 %v5287
    %v5679 = vunpack.c.h.b16 %v5287
    %v5680 = vunpack.c.l.b16 %v5288
    %v5681 = vunpack.c.h.b16 %v5288
    %v5682 = vunpack.c.l.b16 %v5289
    %v5683 = vunpack.c.h.b16 %v5289
    %v5684 = vpack.c.b16 %v5432, %v5428
    %v5685 = vpack.c.b16 %v5433, %v5429
    %v5686 = vpack.c.b16 %v5434, %v5430
    %v5687 = vpack.c.b16 %v5435, %v5431
    %v5688 = vpack.c.b16 %v5440, %v5436
    %v5689 = vpack.c.b16 %v5441, %v5437
    %v5690 = vpack.c.b16 %v5442, %v5438
    %v5691 = vpack.c.b16 %v5443, %v5439
    %v5692 = vpack.c.b16 %v5448, %v5444
    %v5693 = vpack.c.b16 %v5449, %v5445
    %v5694 = vpack.c.b16 %v5450, %v5446
    %v5695 = vpack.c.b16 %v5451, %v5447
    %v5696 = vpack.c.b16 %v5456, %v5452
    %v5697 = vpack.c.b16 %v5457, %v5453
    %v5698 = vpack.c.b16 %v5458, %v5454
    %v5699 = vpack.c.b16 %v5459, %v5455
    %v5700 = vpack.c.b16 %v5464, %v5460
    %v5701 = vpack.c.b16 %v5465, %v5461
    %v5702 = vpack.c.b16 %v5466, %v5462
    %v5703 = vpack.c.b16 %v5467, %v5463
    %v5704 = vpack.c.b16 %v5472, %v5468
    %v5705 = vpack.c.b16 %v5473, %v5469
    %v5706 = vpack.c.b16 %v5474, %v5470
    %v5707 = vpack.c.b16 %v5475, %v5471
    %v5708 = vpack.c.b16 %v5480, %v5476
    %v5709 = vpack.c.b16 %v5481, %v5477
    %v5710 = vpack.c.b16 %v5482, %v5478
    %v5711 = vpack.c.b16 %v5483, %v5479
    %v5712 = vpack.c.b16 %v5488, %v5484
    %v5713 = vpack.c.b16 %v5489, %v5485
    %v5714 = vpack.c.b16 %v5490, %v5486
    %v5715 = vpack.c.b16 %v5491, %v5487
    %v5716 = vpack.c.b16 %v5496, %v5492
    %v5717 = vpack.c.b16 %v5497, %v5493
    %v5718 = vpack.c.b16 %v5498, %v5494
    %v5719 = vpack.c.b16 %v5499, %v5495
    %v5720 = vpack.c.b16 %v5504, %v5500
    %v5721 = vpack.c.b16 %v5505, %v5501
    %v5722 = vpack.c.b16 %v5506, %v5502
    %v5723 = vpack.c.b16 %v5507, %v5503
    %v5724 = vpack.c.b16 %v5512, %v5508
    %v5725 = vpack.c.b16 %v5513, %v5509
    %v5726 = vpack.c.b16 %v5514, %v5510
    %v5727 = vpack.c.b16 %v5515, %v5511
    %v5728 = vpack.c.b16 %v5520, %v5516
    %v5729 = vpack.c.b16 %v5521, %v5517
    %v5730 = vpack.c.b16 %v5522, %v5518
    %v5731 = vpack.c.b16 %v5523, %v5519
    %v5732 = vpack.c.b16 %v5528, %v5524
    %v5733 = vpack.c.b16 %v5529, %v5525
    %v5734 = vpack.c.b16 %v5530, %v5526
    %v5735 = vpack.c.b16 %v5531, %v5527
    %v5736 = vpack.c.b16 %v5536, %v5532
    %v5737 = vpack.c.b16 %v5537, %v5533
    %v5738 = vpack.c.b16 %v5538, %v5534
    %v5739 = vpack.c.b16 %v5539, %v5535
    %v5740 = vpack.c.b16 %v5544, %v5540
    %v5741 = vpack.c.b16 %v5545, %v5541
    %v5742 = vpack.c.b16 %v5546, %v5542
    %v5743 = vpack.c.b16 %v5547, %v5543
    %v5744 = vpack.c.b16 %v5552, %v5548
    %v5745 = vpack.c.b16 %v5553, %v5549
    %v5746 = vpack.c.b16 %v5554, %v5550
    %v5747 = vpack.c.b16 %v5555, %v5551
    %v5748 = vpack.c.b16 %v5560, %v5556
    %v5749 = vpack.c.b16 %v5561, %v5557
    %v5750 = vpack.c.b16 %v5562, %v5558
    %v5751 = vpack.c.b16 %v5563, %v5559
    %v5752 = vpack.c.b16 %v5568, %v5564
    %v5753 = vpack.c.b16 %v5569, %v5565
    %v5754 = vpack.c.b16 %v5570, %v5566
    %v5755 = vpack.c.b16 %v5571, %v5567
    %v5756 = vpack.c.b16 %v5576, %v5572
    %v5757 = vpack.c.b16 %v5577, %v5573
    %v5758 = vpack.c.b16 %v5578, %v5574
    %v5759 = vpack.c.b16 %v5579, %v5575
    %v5760 = vpack.c.b16 %v5584, %v5580
    %v5761 = vpack.c.b16 %v5585, %v5581
    %v5762 = vpack.c.b16 %v5586, %v5582
    %v5763 = vpack.c.b16 %v5587, %v5583
    %v5764 = vpack.c.b16 %v5592, %v5588
    %v5765 = vpack.c.b16 %v5593, %v5589
    %v5766 = vpack.c.b16 %v5594, %v5590
    %v5767 = vpack.c.b16 %v5595, %v5591
    %v5768 = vpack.c.b16 %v5600, %v5596
    %v5769 = vpack.c.b16 %v5601, %v5597
    %v5770 = vpack.c.b16 %v5602, %v5598
    %v5771 = vpack.c.b16 %v5603, %v5599
    %v5772 = vpack.c.b16 %v5608, %v5604
    %v5773 = vpack.c.b16 %v5609, %v5605
    %v5774 = vpack.c.b16 %v5610, %v5606
    %v5775 = vpack.c.b16 %v5611, %v5607
    %v5776 = vpack.c.b16 %v5616, %v5612
    %v5777 = vpack.c.b16 %v5617, %v5613
    %v5778 = vpack.c.b16 %v5618, %v5614
    %v5779 = vpack.c.b16 %v5619, %v5615
    %v5780 = vpack.c.b16 %v5624, %v5620
    %v5781 = vpack.c.b16 %v5625, %v5621
    %v5782 = vpack.c.b16 %v5626, %v5622
    %v5783 = vpack.c.b16 %v5627, %v5623
    %v5784 = vpack.c.b16 %v5632, %v5628
    %v5785 = vpack.c.b16 %v5633, %v5629
    %v5786 = vpack.c.b16 %v5634, %v5630
    %v5787 = vpack.c.b16 %v5635, %v5631
    %v5788 = vpack.c.b16 %v5640, %v5636
    %v5789 = vpack.c.b16 %v5641, %v5637
    %v5790 = vpack.c.b16 %v5642, %v5638
    %v5791 = vpack.c.b16 %v5643, %v5639
    %v5792 = vpack.c.b16 %v5648, %v5644
    %v5793 = vpack.c.b16 %v5649, %v5645
    %v5794 = vpack.c.b16 %v5650, %v5646
    %v5795 = vpack.c.b16 %v5651, %v5647
    %v5796 = vpack.c.b16 %v5656, %v5652
    %v5797 = vpack.c.b16 %v5657, %v5653
    %v5798 = vpack.c.b16 %v5658, %v5654
    %v5799 = vpack.c.b16 %v5659, %v5655
    %v5800 = vpack.c.b16 %v5664, %v5660
    %v5801 = vpack.c.b16 %v5665, %v5661
    %v5802 = vpack.c.b16 %v5666, %v5662
    %v5803 = vpack.c.b16 %v5667, %v5663
    %v5804 = vpack.c.b16 %v5672, %v5668
    %v5805 = vpack.c.b16 %v5673, %v5669
    %v5806 = vpack.c.b16 %v5674, %v5670
    %v5807 = vpack.c.b16 %v5675, %v5671
    %v5808 = vpack.c.b16 %v5680, %v5676
    %v5809 = vpack.c.b16 %v5681, %v5677
    %v5810 = vpack.c.b16 %v5682, %v5678
    %v5811 = vpack.c.b16 %v5683, %v5679
    %5940 = vmatpush.bf16.msra.mxu0 %v5712
    %5941 = vmatpush.bf16.msra.mxu0 %v5708
    %5942 = vmatpush.bf16.msra.mxu0 %v5704
    %5943 = vmatpush.bf16.msra.mxu0 %v5700
    %5944 = vmatpush.bf16.msra.mxu0 %v5696
    %5945 = vmatpush.bf16.msra.mxu0 %v5692
    %5946 = vmatpush.bf16.msra.mxu0 %v5688
    %5947 = vmatpush.bf16.msra.mxu0 %v5684
    %5948 = vmatmul.bf16.gmra.mxu0 %v5098
    %v5949 = vpop.f32.mrf.mxu0
    %v5950 = vadd.f32 %v5292, %v5949
    %v5951 = vpop.f32.mrf.mxu0
    %v5952 = vadd.f32 %v5292, %v5951
    %5953 = vmatmul.bf16.gmra.mxu0 %v5102
    %v5954 = vpop.f32.mrf.mxu0
    %v5955 = vadd.f32 %v5292, %v5954
    %v5956 = vpop.f32.mrf.mxu0
    %v5957 = vadd.f32 %v5292, %v5956
    %5958 = vmatmul.bf16.gmra.mxu0 %v5106
    %v5959 = vpop.f32.mrf.mxu0
    %v5960 = vadd.f32 %v5292, %v5959
    %v5961 = vpop.f32.mrf.mxu0
    %v5962 = vadd.f32 %v5292, %v5961
    %5963 = vmatmul.bf16.gmra.mxu0 %v5110
    %v5964 = vpop.f32.mrf.mxu0
    %v5965 = vadd.f32 %v5292, %v5964
    %v5966 = vpop.f32.mrf.mxu0
    %v5967 = vadd.f32 %v5292, %v5966
    %5968 = vmatmul.bf16.gmra.mxu0 %v5114
    %v5969 = vpop.f32.mrf.mxu0
    %v5970 = vadd.f32 %v5292, %v5969
    %v5971 = vpop.f32.mrf.mxu0
    %v5972 = vadd.f32 %v5292, %v5971
    %5973 = vmatmul.bf16.gmra.mxu0 %v5118
    %v5974 = vpop.f32.mrf.mxu0
    %v5975 = vadd.f32 %v5292, %v5974
    %v5976 = vpop.f32.mrf.mxu0
    %v5977 = vadd.f32 %v5292, %v5976
    %5978 = vmatmul.bf16.gmra.mxu0 %v5122
    %v5979 = vpop.f32.mrf.mxu0
    %v5980 = vadd.f32 %v5292, %v5979
    %v5981 = vpop.f32.mrf.mxu0
    %v5982 = vadd.f32 %v5292, %v5981
    %5983 = vmatmul.bf16.gmra.mxu0 %v5126
    %v5984 = vpop.f32.mrf.mxu0
    %v5985 = vadd.f32 %v5292, %v5984
    %v5986 = vpop.f32.mrf.mxu0
    %v5987 = vadd.f32 %v5292, %v5986
    %5988 = vmatmul.bf16.gmra.mxu0 %v5130
    %v5989 = vpop.f32.mrf.mxu0
    %v5990 = vadd.f32 %v5292, %v5989
    %v5991 = vpop.f32.mrf.mxu0
    %v5992 = vadd.f32 %v5292, %v5991
    %5993 = vmatmul.bf16.gmra.mxu0 %v5134
    %v5994 = vpop.f32.mrf.mxu0
    %v5995 = vadd.f32 %v5292, %v5994
    %v5996 = vpop.f32.mrf.mxu0
    %v5997 = vadd.f32 %v5292, %v5996
    %5998 = vmatmul.bf16.gmra.mxu0 %v5138
    %v5999 = vpop.f32.mrf.mxu0
    %v6000 = vadd.f32 %v5292, %v5999
    %v6001 = vpop.f32.mrf.mxu0
    %v6002 = vadd.f32 %v5292, %v6001
    %6003 = vmatmul.bf16.gmra.mxu0 %v5142
    %v6004 = vpop.f32.mrf.mxu0
    %v6005 = vadd.f32 %v5292, %v6004
    %v6006 = vpop.f32.mrf.mxu0
    %v6007 = vadd.f32 %v5292, %v6006
    %6008 = vmatmul.bf16.gmra.mxu0 %v5146
    %v6009 = vpop.f32.mrf.mxu0
    %v6010 = vadd.f32 %v5292, %v6009
    %v6011 = vpop.f32.mrf.mxu0
    %v6012 = vadd.f32 %v5292, %v6011
    %6013 = vmatmul.bf16.gmra.mxu0 %v5150
    %v6014 = vpop.f32.mrf.mxu0
    %v6015 = vadd.f32 %v5292, %v6014
    %v6016 = vpop.f32.mrf.mxu0
    %v6017 = vadd.f32 %v5292, %v6016
    %6018 = vmatmul.bf16.gmra.mxu0 %v5154
    %v6019 = vpop.f32.mrf.mxu0
    %v6020 = vadd.f32 %v5292, %v6019
    %v6021 = vpop.f32.mrf.mxu0
    %v6022 = vadd.f32 %v5292, %v6021
    %6023 = vmatmul.bf16.gmra.mxu0 %v5158
    %v6024 = vpop.f32.mrf.mxu0
    %v6025 = vadd.f32 %v5292, %v6024
    %v6026 = vpop.f32.mrf.mxu0
    %v6027 = vadd.f32 %v5292, %v6026
    %6028 = vdwg.mxu0
    %6029 = vmatpush.bf16.msra.mxu0 %v5744
    %6030 = vmatpush.bf16.msra.mxu0 %v5740
    %6031 = vmatpush.bf16.msra.mxu0 %v5736
    %6032 = vmatpush.bf16.msra.mxu0 %v5732
    %6033 = vmatpush.bf16.msra.mxu0 %v5728
    %6034 = vmatpush.bf16.msra.mxu0 %v5724
    %6035 = vmatpush.bf16.msra.mxu0 %v5720
    %6036 = vmatpush.bf16.msra.mxu0 %v5716
    %6037 = vmatmul.bf16.gmra.mxu0 %v5099
    %v6038 = vpop.f32.mrf.mxu0
    %v6039 = vadd.f32 %v5950, %v6038
    %v6040 = vpop.f32.mrf.mxu0
    %v6041 = vadd.f32 %v5952, %v6040
    %6042 = vmatmul.bf16.gmra.mxu0 %v5103
    %v6043 = vpop.f32.mrf.mxu0
    %v6044 = vadd.f32 %v5955, %v6043
    %v6045 = vpop.f32.mrf.mxu0
    %v6046 = vadd.f32 %v5957, %v6045
    %6047 = vmatmul.bf16.gmra.mxu0 %v5107
    %v6048 = vpop.f32.mrf.mxu0
    %v6049 = vadd.f32 %v5960, %v6048
    %v6050 = vpop.f32.mrf.mxu0
    %v6051 = vadd.f32 %v5962, %v6050
    %6052 = vmatmul.bf16.gmra.mxu0 %v5111
    %v6053 = vpop.f32.mrf.mxu0
    %v6054 = vadd.f32 %v5965, %v6053
    %v6055 = vpop.f32.mrf.mxu0
    %v6056 = vadd.f32 %v5967, %v6055
    %6057 = vmatmul.bf16.gmra.mxu0 %v5115
    %v6058 = vpop.f32.mrf.mxu0
    %v6059 = vadd.f32 %v5970, %v6058
    %v6060 = vpop.f32.mrf.mxu0
    %v6061 = vadd.f32 %v5972, %v6060
    %6062 = vmatmul.bf16.gmra.mxu0 %v5119
    %v6063 = vpop.f32.mrf.mxu0
    %v6064 = vadd.f32 %v5975, %v6063
    %v6065 = vpop.f32.mrf.mxu0
    %v6066 = vadd.f32 %v5977, %v6065
    %6067 = vmatmul.bf16.gmra.mxu0 %v5123
    %v6068 = vpop.f32.mrf.mxu0
    %v6069 = vadd.f32 %v5980, %v6068
    %v6070 = vpop.f32.mrf.mxu0
    %v6071 = vadd.f32 %v5982, %v6070
    %6072 = vmatmul.bf16.gmra.mxu0 %v5127
    %v6073 = vpop.f32.mrf.mxu0
    %v6074 = vadd.f32 %v5985, %v6073
    %v6075 = vpop.f32.mrf.mxu0
    %v6076 = vadd.f32 %v5987, %v6075
    %6077 = vmatmul.bf16.gmra.mxu0 %v5131
    %v6078 = vpop.f32.mrf.mxu0
    %v6079 = vadd.f32 %v5990, %v6078
    %v6080 = vpop.f32.mrf.mxu0
    %v6081 = vadd.f32 %v5992, %v6080
    %6082 = vmatmul.bf16.gmra.mxu0 %v5135
    %v6083 = vpop.f32.mrf.mxu0
    %v6084 = vadd.f32 %v5995, %v6083
    %v6085 = vpop.f32.mrf.mxu0
    %v6086 = vadd.f32 %v5997, %v6085
    %6087 = vmatmul.bf16.gmra.mxu0 %v5139
    %v6088 = vpop.f32.mrf.mxu0
    %v6089 = vadd.f32 %v6000, %v6088
    %v6090 = vpop.f32.mrf.mxu0
    %v6091 = vadd.f32 %v6002, %v6090
    %6092 = vmatmul.bf16.gmra.mxu0 %v5143
    %v6093 = vpop.f32.mrf.mxu0
    %v6094 = vadd.f32 %v6005, %v6093
    %v6095 = vpop.f32.mrf.mxu0
    %v6096 = vadd.f32 %v6007, %v6095
    %6097 = vmatmul.bf16.gmra.mxu0 %v5147
    %v6098 = vpop.f32.mrf.mxu0
    %v6099 = vadd.f32 %v6010, %v6098
    %v6100 = vpop.f32.mrf.mxu0
    %v6101 = vadd.f32 %v6012, %v6100
    %6102 = vmatmul.bf16.gmra.mxu0 %v5151
    %v6103 = vpop.f32.mrf.mxu0
    %v6104 = vadd.f32 %v6015, %v6103
    %v6105 = vpop.f32.mrf.mxu0
    %v6106 = vadd.f32 %v6017, %v6105
    %6107 = vmatmul.bf16.gmra.mxu0 %v5155
    %v6108 = vpop.f32.mrf.mxu0
    %v6109 = vadd.f32 %v6020, %v6108
    %v6110 = vpop.f32.mrf.mxu0
    %v6111 = vadd.f32 %v6022, %v6110
    %6112 = vmatmul.bf16.gmra.mxu0 %v5159
    %v6113 = vpop.f32.mrf.mxu0
    %v6114 = vadd.f32 %v6025, %v6113
    %v6115 = vpop.f32.mrf.mxu0
    %v6116 = vadd.f32 %v6027, %v6115
    %6117 = vdwg.mxu0
    %6118 = vmatpush.bf16.msra.mxu0 %v5776
    %6119 = vmatpush.bf16.msra.mxu0 %v5772
    %6120 = vmatpush.bf16.msra.mxu0 %v5768
    %6121 = vmatpush.bf16.msra.mxu0 %v5764
    %6122 = vmatpush.bf16.msra.mxu0 %v5760
    %6123 = vmatpush.bf16.msra.mxu0 %v5756
    %6124 = vmatpush.bf16.msra.mxu0 %v5752
    %6125 = vmatpush.bf16.msra.mxu0 %v5748
    %6126 = vmatmul.bf16.gmra.mxu0 %v5100
    %v6127 = vpop.f32.mrf.mxu0
    %v6128 = vadd.f32 %v6039, %v6127
    %v6129 = vpop.f32.mrf.mxu0
    %v6130 = vadd.f32 %v6041, %v6129
    %6131 = vmatmul.bf16.gmra.mxu0 %v5104
    %v6132 = vpop.f32.mrf.mxu0
    %v6133 = vadd.f32 %v6044, %v6132
    %v6134 = vpop.f32.mrf.mxu0
    %v6135 = vadd.f32 %v6046, %v6134
    %6136 = vmatmul.bf16.gmra.mxu0 %v5108
    %v6137 = vpop.f32.mrf.mxu0
    %v6138 = vadd.f32 %v6049, %v6137
    %v6139 = vpop.f32.mrf.mxu0
    %v6140 = vadd.f32 %v6051, %v6139
    %6141 = vmatmul.bf16.gmra.mxu0 %v5112
    %v6142 = vpop.f32.mrf.mxu0
    %v6143 = vadd.f32 %v6054, %v6142
    %v6144 = vpop.f32.mrf.mxu0
    %v6145 = vadd.f32 %v6056, %v6144
    %6146 = vmatmul.bf16.gmra.mxu0 %v5116
    %v6147 = vpop.f32.mrf.mxu0
    %v6148 = vadd.f32 %v6059, %v6147
    %v6149 = vpop.f32.mrf.mxu0
    %v6150 = vadd.f32 %v6061, %v6149
    %6151 = vmatmul.bf16.gmra.mxu0 %v5120
    %v6152 = vpop.f32.mrf.mxu0
    %v6153 = vadd.f32 %v6064, %v6152
    %v6154 = vpop.f32.mrf.mxu0
    %v6155 = vadd.f32 %v6066, %v6154
    %6156 = vmatmul.bf16.gmra.mxu0 %v5124
    %v6157 = vpop.f32.mrf.mxu0
    %v6158 = vadd.f32 %v6069, %v6157
    %v6159 = vpop.f32.mrf.mxu0
    %v6160 = vadd.f32 %v6071, %v6159
    %6161 = vmatmul.bf16.gmra.mxu0 %v5128
    %v6162 = vpop.f32.mrf.mxu0
    %v6163 = vadd.f32 %v6074, %v6162
    %v6164 = vpop.f32.mrf.mxu0
    %v6165 = vadd.f32 %v6076, %v6164
    %6166 = vmatmul.bf16.gmra.mxu0 %v5132
    %v6167 = vpop.f32.mrf.mxu0
    %v6168 = vadd.f32 %v6079, %v6167
    %v6169 = vpop.f32.mrf.mxu0
    %v6170 = vadd.f32 %v6081, %v6169
    %6171 = vmatmul.bf16.gmra.mxu0 %v5136
    %v6172 = vpop.f32.mrf.mxu0
    %v6173 = vadd.f32 %v6084, %v6172
    %v6174 = vpop.f32.mrf.mxu0
    %v6175 = vadd.f32 %v6086, %v6174
    %6176 = vmatmul.bf16.gmra.mxu0 %v5140
    %v6177 = vpop.f32.mrf.mxu0
    %v6178 = vadd.f32 %v6089, %v6177
    %v6179 = vpop.f32.mrf.mxu0
    %v6180 = vadd.f32 %v6091, %v6179
    %6181 = vmatmul.bf16.gmra.mxu0 %v5144
    %v6182 = vpop.f32.mrf.mxu0
    %v6183 = vadd.f32 %v6094, %v6182
    %v6184 = vpop.f32.mrf.mxu0
    %v6185 = vadd.f32 %v6096, %v6184
    %6186 = vmatmul.bf16.gmra.mxu0 %v5148
    %v6187 = vpop.f32.mrf.mxu0
    %v6188 = vadd.f32 %v6099, %v6187
    %v6189 = vpop.f32.mrf.mxu0
    %v6190 = vadd.f32 %v6101, %v6189
    %6191 = vmatmul.bf16.gmra.mxu0 %v5152
    %v6192 = vpop.f32.mrf.mxu0
    %v6193 = vadd.f32 %v6104, %v6192
    %v6194 = vpop.f32.mrf.mxu0
    %v6195 = vadd.f32 %v6106, %v6194
    %6196 = vmatmul.bf16.gmra.mxu0 %v5156
    %v6197 = vpop.f32.mrf.mxu0
    %v6198 = vadd.f32 %v6109, %v6197
    %v6199 = vpop.f32.mrf.mxu0
    %v6200 = vadd.f32 %v6111, %v6199
    %6201 = vmatmul.bf16.gmra.mxu0 %v5160
    %v6202 = vpop.f32.mrf.mxu0
    %v6203 = vadd.f32 %v6114, %v6202
    %v6204 = vpop.f32.mrf.mxu0
    %v6205 = vadd.f32 %v6116, %v6204
    %6206 = vdwg.mxu0
    %6207 = vmatpush.bf16.msra.mxu0 %v5808
    %6208 = vmatpush.bf16.msra.mxu0 %v5804
    %6209 = vmatpush.bf16.msra.mxu0 %v5800
    %6210 = vmatpush.bf16.msra.mxu0 %v5796
    %6211 = vmatpush.bf16.msra.mxu0 %v5792
    %6212 = vmatpush.bf16.msra.mxu0 %v5788
    %6213 = vmatpush.bf16.msra.mxu0 %v5784
    %6214 = vmatpush.bf16.msra.mxu0 %v5780
    %6215 = vmatmul.bf16.gmra.mxu0 %v5101
    %v6216 = vpop.f32.mrf.mxu0
    %v6217 = vadd.f32 %v6128, %v6216
    %v6218 = vpop.f32.mrf.mxu0
    %v6219 = vadd.f32 %v6130, %v6218
    %6220 = vmatmul.bf16.gmra.mxu0 %v5105
    %v6221 = vpop.f32.mrf.mxu0
    %v6222 = vadd.f32 %v6133, %v6221
    %v6223 = vpop.f32.mrf.mxu0
    %v6224 = vadd.f32 %v6135, %v6223
    %6225 = vmatmul.bf16.gmra.mxu0 %v5109
    %v6226 = vpop.f32.mrf.mxu0
    %v6227 = vadd.f32 %v6138, %v6226
    %v6228 = vpop.f32.mrf.mxu0
    %v6229 = vadd.f32 %v6140, %v6228
    %6230 = vmatmul.bf16.gmra.mxu0 %v5113
    %v6231 = vpop.f32.mrf.mxu0
    %v6232 = vadd.f32 %v6143, %v6231
    %v6233 = vpop.f32.mrf.mxu0
    %v6234 = vadd.f32 %v6145, %v6233
    %6235 = vmatmul.bf16.gmra.mxu0 %v5117
    %v6236 = vpop.f32.mrf.mxu0
    %v6237 = vadd.f32 %v6148, %v6236
    %v6238 = vpop.f32.mrf.mxu0
    %v6239 = vadd.f32 %v6150, %v6238
    %6240 = vmatmul.bf16.gmra.mxu0 %v5121
    %v6241 = vpop.f32.mrf.mxu0
    %v6242 = vadd.f32 %v6153, %v6241
    %v6243 = vpop.f32.mrf.mxu0
    %v6244 = vadd.f32 %v6155, %v6243
    %6245 = vmatmul.bf16.gmra.mxu0 %v5125
    %v6246 = vpop.f32.mrf.mxu0
    %v6247 = vadd.f32 %v6158, %v6246
    %v6248 = vpop.f32.mrf.mxu0
    %v6249 = vadd.f32 %v6160, %v6248
    %6250 = vmatmul.bf16.gmra.mxu0 %v5129
    %v6251 = vpop.f32.mrf.mxu0
    %v6252 = vadd.f32 %v6163, %v6251
    %v6253 = vpop.f32.mrf.mxu0
    %v6254 = vadd.f32 %v6165, %v6253
    %6255 = vmatmul.bf16.gmra.mxu0 %v5133
    %v6256 = vpop.f32.mrf.mxu0
    %v6257 = vadd.f32 %v6168, %v6256
    %v6258 = vpop.f32.mrf.mxu0
    %v6259 = vadd.f32 %v6170, %v6258
    %6260 = vmatmul.bf16.gmra.mxu0 %v5137
    %v6261 = vpop.f32.mrf.mxu0
    %v6262 = vadd.f32 %v6173, %v6261
    %v6263 = vpop.f32.mrf.mxu0
    %v6264 = vadd.f32 %v6175, %v6263
    %6265 = vmatmul.bf16.gmra.mxu0 %v5141
    %v6266 = vpop.f32.mrf.mxu0
    %v6267 = vadd.f32 %v6178, %v6266
    %v6268 = vpop.f32.mrf.mxu0
    %v6269 = vadd.f32 %v6180, %v6268
    %6270 = vmatmul.bf16.gmra.mxu0 %v5145
    %v6271 = vpop.f32.mrf.mxu0
    %v6272 = vadd.f32 %v6183, %v6271
    %v6273 = vpop.f32.mrf.mxu0
    %v6274 = vadd.f32 %v6185, %v6273
    %6275 = vmatmul.bf16.gmra.mxu0 %v5149
    %v6276 = vpop.f32.mrf.mxu0
    %v6277 = vadd.f32 %v6188, %v6276
    %v6278 = vpop.f32.mrf.mxu0
    %v6279 = vadd.f32 %v6190, %v6278
    %6280 = vmatmul.bf16.gmra.mxu0 %v5153
    %v6281 = vpop.f32.mrf.mxu0
    %v6282 = vadd.f32 %v6193, %v6281
    %v6283 = vpop.f32.mrf.mxu0
    %v6284 = vadd.f32 %v6195, %v6283
    %6285 = vmatmul.bf16.gmra.mxu0 %v5157
    %v6286 = vpop.f32.mrf.mxu0
    %v6287 = vadd.f32 %v6198, %v6286
    %v6288 = vpop.f32.mrf.mxu0
    %v6289 = vadd.f32 %v6200, %v6288
    %6290 = vmatmul.bf16.gmra.mxu0 %v5161
    %v6291 = vpop.f32.mrf.mxu0
    %v6292 = vadd.f32 %v6203, %v6291
    %v6293 = vpop.f32.mrf.mxu0
    %v6294 = vadd.f32 %v6205, %v6293
    %6295 = vdwg.mxu0
    %6296 = vmatpush.bf16.msra.mxu0 %v5713
    %6297 = vmatpush.bf16.msra.mxu0 %v5709
    %6298 = vmatpush.bf16.msra.mxu0 %v5705
    %6299 = vmatpush.bf16.msra.mxu0 %v5701
    %6300 = vmatpush.bf16.msra.mxu0 %v5697
    %6301 = vmatpush.bf16.msra.mxu0 %v5693
    %6302 = vmatpush.bf16.msra.mxu0 %v5689
    %6303 = vmatpush.bf16.msra.mxu0 %v5685
    %6304 = vmatmul.bf16.gmra.mxu0 %v5098
    %v6305 = vpop.f32.mrf.mxu0
    %v6306 = vadd.f32 %v5293, %v6305
    %v6307 = vpop.f32.mrf.mxu0
    %v6308 = vadd.f32 %v5293, %v6307
    %6309 = vmatmul.bf16.gmra.mxu0 %v5102
    %v6310 = vpop.f32.mrf.mxu0
    %v6311 = vadd.f32 %v5293, %v6310
    %v6312 = vpop.f32.mrf.mxu0
    %v6313 = vadd.f32 %v5293, %v6312
    %6314 = vmatmul.bf16.gmra.mxu0 %v5106
    %v6315 = vpop.f32.mrf.mxu0
    %v6316 = vadd.f32 %v5293, %v6315
    %v6317 = vpop.f32.mrf.mxu0
    %v6318 = vadd.f32 %v5293, %v6317
    %6319 = vmatmul.bf16.gmra.mxu0 %v5110
    %v6320 = vpop.f32.mrf.mxu0
    %v6321 = vadd.f32 %v5293, %v6320
    %v6322 = vpop.f32.mrf.mxu0
    %v6323 = vadd.f32 %v5293, %v6322
    %6324 = vmatmul.bf16.gmra.mxu0 %v5114
    %v6325 = vpop.f32.mrf.mxu0
    %v6326 = vadd.f32 %v5293, %v6325
    %v6327 = vpop.f32.mrf.mxu0
    %v6328 = vadd.f32 %v5293, %v6327
    %6329 = vmatmul.bf16.gmra.mxu0 %v5118
    %v6330 = vpop.f32.mrf.mxu0
    %v6331 = vadd.f32 %v5293, %v6330
    %v6332 = vpop.f32.mrf.mxu0
    %v6333 = vadd.f32 %v5293, %v6332
    %6334 = vmatmul.bf16.gmra.mxu0 %v5122
    %v6335 = vpop.f32.mrf.mxu0
    %v6336 = vadd.f32 %v5293, %v6335
    %v6337 = vpop.f32.mrf.mxu0
    %v6338 = vadd.f32 %v5293, %v6337
    %6339 = vmatmul.bf16.gmra.mxu0 %v5126
    %v6340 = vpop.f32.mrf.mxu0
    %v6341 = vadd.f32 %v5293, %v6340
    %v6342 = vpop.f32.mrf.mxu0
    %v6343 = vadd.f32 %v5293, %v6342
    %6344 = vmatmul.bf16.gmra.mxu0 %v5130
    %v6345 = vpop.f32.mrf.mxu0
    %v6346 = vadd.f32 %v5293, %v6345
    %v6347 = vpop.f32.mrf.mxu0
    %v6348 = vadd.f32 %v5293, %v6347
    %6349 = vmatmul.bf16.gmra.mxu0 %v5134
    %v6350 = vpop.f32.mrf.mxu0
    %v6351 = vadd.f32 %v5293, %v6350
    %v6352 = vpop.f32.mrf.mxu0
    %v6353 = vadd.f32 %v5293, %v6352
    %6354 = vmatmul.bf16.gmra.mxu0 %v5138
    %v6355 = vpop.f32.mrf.mxu0
    %v6356 = vadd.f32 %v5293, %v6355
    %v6357 = vpop.f32.mrf.mxu0
    %v6358 = vadd.f32 %v5293, %v6357
    %6359 = vmatmul.bf16.gmra.mxu0 %v5142
    %v6360 = vpop.f32.mrf.mxu0
    %v6361 = vadd.f32 %v5293, %v6360
    %v6362 = vpop.f32.mrf.mxu0
    %v6363 = vadd.f32 %v5293, %v6362
    %6364 = vmatmul.bf16.gmra.mxu0 %v5146
    %v6365 = vpop.f32.mrf.mxu0
    %v6366 = vadd.f32 %v5293, %v6365
    %v6367 = vpop.f32.mrf.mxu0
    %v6368 = vadd.f32 %v5293, %v6367
    %6369 = vmatmul.bf16.gmra.mxu0 %v5150
    %v6370 = vpop.f32.mrf.mxu0
    %v6371 = vadd.f32 %v5293, %v6370
    %v6372 = vpop.f32.mrf.mxu0
    %v6373 = vadd.f32 %v5293, %v6372
    %6374 = vmatmul.bf16.gmra.mxu0 %v5154
    %v6375 = vpop.f32.mrf.mxu0
    %v6376 = vadd.f32 %v5293, %v6375
    %v6377 = vpop.f32.mrf.mxu0
    %v6378 = vadd.f32 %v5293, %v6377
    %6379 = vmatmul.bf16.gmra.mxu0 %v5158
    %v6380 = vpop.f32.mrf.mxu0
    %v6381 = vadd.f32 %v5293, %v6380
    %v6382 = vpop.f32.mrf.mxu0
    %v6383 = vadd.f32 %v5293, %v6382
    %6384 = vdwg.mxu0
    %6385 = vmatpush.bf16.msra.mxu0 %v5745
    %6386 = vmatpush.bf16.msra.mxu0 %v5741
    %6387 = vmatpush.bf16.msra.mxu0 %v5737
    %6388 = vmatpush.bf16.msra.mxu0 %v5733
    %6389 = vmatpush.bf16.msra.mxu0 %v5729
    %6390 = vmatpush.bf16.msra.mxu0 %v5725
    %6391 = vmatpush.bf16.msra.mxu0 %v5721
    %6392 = vmatpush.bf16.msra.mxu0 %v5717
    %6393 = vmatmul.bf16.gmra.mxu0 %v5099
    %v6394 = vpop.f32.mrf.mxu0
    %v6395 = vadd.f32 %v6306, %v6394
    %v6396 = vpop.f32.mrf.mxu0
    %v6397 = vadd.f32 %v6308, %v6396
    %6398 = vmatmul.bf16.gmra.mxu0 %v5103
    %v6399 = vpop.f32.mrf.mxu0
    %v6400 = vadd.f32 %v6311, %v6399
    %v6401 = vpop.f32.mrf.mxu0
    %v6402 = vadd.f32 %v6313, %v6401
    %6403 = vmatmul.bf16.gmra.mxu0 %v5107
    %v6404 = vpop.f32.mrf.mxu0
    %v6405 = vadd.f32 %v6316, %v6404
    %v6406 = vpop.f32.mrf.mxu0
    %v6407 = vadd.f32 %v6318, %v6406
    %6408 = vmatmul.bf16.gmra.mxu0 %v5111
    %v6409 = vpop.f32.mrf.mxu0
    %v6410 = vadd.f32 %v6321, %v6409
    %v6411 = vpop.f32.mrf.mxu0
    %v6412 = vadd.f32 %v6323, %v6411
    %6413 = vmatmul.bf16.gmra.mxu0 %v5115
    %v6414 = vpop.f32.mrf.mxu0
    %v6415 = vadd.f32 %v6326, %v6414
    %v6416 = vpop.f32.mrf.mxu0
    %v6417 = vadd.f32 %v6328, %v6416
    %6418 = vmatmul.bf16.gmra.mxu0 %v5119
    %v6419 = vpop.f32.mrf.mxu0
    %v6420 = vadd.f32 %v6331, %v6419
    %v6421 = vpop.f32.mrf.mxu0
    %v6422 = vadd.f32 %v6333, %v6421
    %6423 = vmatmul.bf16.gmra.mxu0 %v5123
    %v6424 = vpop.f32.mrf.mxu0
    %v6425 = vadd.f32 %v6336, %v6424
    %v6426 = vpop.f32.mrf.mxu0
    %v6427 = vadd.f32 %v6338, %v6426
    %6428 = vmatmul.bf16.gmra.mxu0 %v5127
    %v6429 = vpop.f32.mrf.mxu0
    %v6430 = vadd.f32 %v6341, %v6429
    %v6431 = vpop.f32.mrf.mxu0
    %v6432 = vadd.f32 %v6343, %v6431
    %6433 = vmatmul.bf16.gmra.mxu0 %v5131
    %v6434 = vpop.f32.mrf.mxu0
    %v6435 = vadd.f32 %v6346, %v6434
    %v6436 = vpop.f32.mrf.mxu0
    %v6437 = vadd.f32 %v6348, %v6436
    %6438 = vmatmul.bf16.gmra.mxu0 %v5135
    %v6439 = vpop.f32.mrf.mxu0
    %v6440 = vadd.f32 %v6351, %v6439
    %v6441 = vpop.f32.mrf.mxu0
    %v6442 = vadd.f32 %v6353, %v6441
    %6443 = vmatmul.bf16.gmra.mxu0 %v5139
    %v6444 = vpop.f32.mrf.mxu0
    %v6445 = vadd.f32 %v6356, %v6444
    %v6446 = vpop.f32.mrf.mxu0
    %v6447 = vadd.f32 %v6358, %v6446
    %6448 = vmatmul.bf16.gmra.mxu0 %v5143
    %v6449 = vpop.f32.mrf.mxu0
    %v6450 = vadd.f32 %v6361, %v6449
    %v6451 = vpop.f32.mrf.mxu0
    %v6452 = vadd.f32 %v6363, %v6451
    %6453 = vmatmul.bf16.gmra.mxu0 %v5147
    %v6454 = vpop.f32.mrf.mxu0
    %v6455 = vadd.f32 %v6366, %v6454
    %v6456 = vpop.f32.mrf.mxu0
    %v6457 = vadd.f32 %v6368, %v6456
    %6458 = vmatmul.bf16.gmra.mxu0 %v5151
    %v6459 = vpop.f32.mrf.mxu0
    %v6460 = vadd.f32 %v6371, %v6459
    %v6461 = vpop.f32.mrf.mxu0
    %v6462 = vadd.f32 %v6373, %v6461
    %6463 = vmatmul.bf16.gmra.mxu0 %v5155
    %v6464 = vpop.f32.mrf.mxu0
    %v6465 = vadd.f32 %v6376, %v6464
    %v6466 = vpop.f32.mrf.mxu0
    %v6467 = vadd.f32 %v6378, %v6466
    %6468 = vmatmul.bf16.gmra.mxu0 %v5159
    %v6469 = vpop.f32.mrf.mxu0
    %v6470 = vadd.f32 %v6381, %v6469
    %v6471 = vpop.f32.mrf.mxu0
    %v6472 = vadd.f32 %v6383, %v6471
    %6473 = vdwg.mxu0
    %6474 = vmatpush.bf16.msra.mxu0 %v5777
    %6475 = vmatpush.bf16.msra.mxu0 %v5773
    %6476 = vmatpush.bf16.msra.mxu0 %v5769
    %6477 = vmatpush.bf16.msra.mxu0 %v5765
    %6478 = vmatpush.bf16.msra.mxu0 %v5761
    %6479 = vmatpush.bf16.msra.mxu0 %v5757
    %6480 = vmatpush.bf16.msra.mxu0 %v5753
    %6481 = vmatpush.bf16.msra.mxu0 %v5749
    %6482 = vmatmul.bf16.gmra.mxu0 %v5100
    %v6483 = vpop.f32.mrf.mxu0
    %v6484 = vadd.f32 %v6395, %v6483
    %v6485 = vpop.f32.mrf.mxu0
    %v6486 = vadd.f32 %v6397, %v6485
    %6487 = vmatmul.bf16.gmra.mxu0 %v5104
    %v6488 = vpop.f32.mrf.mxu0
    %v6489 = vadd.f32 %v6400, %v6488
    %v6490 = vpop.f32.mrf.mxu0
    %v6491 = vadd.f32 %v6402, %v6490
    %6492 = vmatmul.bf16.gmra.mxu0 %v5108
    %v6493 = vpop.f32.mrf.mxu0
    %v6494 = vadd.f32 %v6405, %v6493
    %v6495 = vpop.f32.mrf.mxu0
    %v6496 = vadd.f32 %v6407, %v6495
    %6497 = vmatmul.bf16.gmra.mxu0 %v5112
    %v6498 = vpop.f32.mrf.mxu0
    %v6499 = vadd.f32 %v6410, %v6498
    %v6500 = vpop.f32.mrf.mxu0
    %v6501 = vadd.f32 %v6412, %v6500
    %6502 = vmatmul.bf16.gmra.mxu0 %v5116
    %v6503 = vpop.f32.mrf.mxu0
    %v6504 = vadd.f32 %v6415, %v6503
    %v6505 = vpop.f32.mrf.mxu0
    %v6506 = vadd.f32 %v6417, %v6505
    %6507 = vmatmul.bf16.gmra.mxu0 %v5120
    %v6508 = vpop.f32.mrf.mxu0
    %v6509 = vadd.f32 %v6420, %v6508
    %v6510 = vpop.f32.mrf.mxu0
    %v6511 = vadd.f32 %v6422, %v6510
    %6512 = vmatmul.bf16.gmra.mxu0 %v5124
    %v6513 = vpop.f32.mrf.mxu0
    %v6514 = vadd.f32 %v6425, %v6513
    %v6515 = vpop.f32.mrf.mxu0
    %v6516 = vadd.f32 %v6427, %v6515
    %6517 = vmatmul.bf16.gmra.mxu0 %v5128
    %v6518 = vpop.f32.mrf.mxu0
    %v6519 = vadd.f32 %v6430, %v6518
    %v6520 = vpop.f32.mrf.mxu0
    %v6521 = vadd.f32 %v6432, %v6520
    %6522 = vmatmul.bf16.gmra.mxu0 %v5132
    %v6523 = vpop.f32.mrf.mxu0
    %v6524 = vadd.f32 %v6435, %v6523
    %v6525 = vpop.f32.mrf.mxu0
    %v6526 = vadd.f32 %v6437, %v6525
    %6527 = vmatmul.bf16.gmra.mxu0 %v5136
    %v6528 = vpop.f32.mrf.mxu0
    %v6529 = vadd.f32 %v6440, %v6528
    %v6530 = vpop.f32.mrf.mxu0
    %v6531 = vadd.f32 %v6442, %v6530
    %6532 = vmatmul.bf16.gmra.mxu0 %v5140
    %v6533 = vpop.f32.mrf.mxu0
    %v6534 = vadd.f32 %v6445, %v6533
    %v6535 = vpop.f32.mrf.mxu0
    %v6536 = vadd.f32 %v6447, %v6535
    %6537 = vmatmul.bf16.gmra.mxu0 %v5144
    %v6538 = vpop.f32.mrf.mxu0
    %v6539 = vadd.f32 %v6450, %v6538
    %v6540 = vpop.f32.mrf.mxu0
    %v6541 = vadd.f32 %v6452, %v6540
    %6542 = vmatmul.bf16.gmra.mxu0 %v5148
    %v6543 = vpop.f32.mrf.mxu0
    %v6544 = vadd.f32 %v6455, %v6543
    %v6545 = vpop.f32.mrf.mxu0
    %v6546 = vadd.f32 %v6457, %v6545
    %6547 = vmatmul.bf16.gmra.mxu0 %v5152
    %v6548 = vpop.f32.mrf.mxu0
    %v6549 = vadd.f32 %v6460, %v6548
    %v6550 = vpop.f32.mrf.mxu0
    %v6551 = vadd.f32 %v6462, %v6550
    %6552 = vmatmul.bf16.gmra.mxu0 %v5156
    %v6553 = vpop.f32.mrf.mxu0
    %v6554 = vadd.f32 %v6465, %v6553
    %v6555 = vpop.f32.mrf.mxu0
    %v6556 = vadd.f32 %v6467, %v6555
    %6557 = vmatmul.bf16.gmra.mxu0 %v5160
    %v6558 = vpop.f32.mrf.mxu0
    %v6559 = vadd.f32 %v6470, %v6558
    %v6560 = vpop.f32.mrf.mxu0
    %v6561 = vadd.f32 %v6472, %v6560
    %6562 = vdwg.mxu0
    %6563 = vmatpush.bf16.msra.mxu0 %v5809
    %6564 = vmatpush.bf16.msra.mxu0 %v5805
    %6565 = vmatpush.bf16.msra.mxu0 %v5801
    %6566 = vmatpush.bf16.msra.mxu0 %v5797
    %6567 = vmatpush.bf16.msra.mxu0 %v5793
    %6568 = vmatpush.bf16.msra.mxu0 %v5789
    %6569 = vmatpush.bf16.msra.mxu0 %v5785
    %6570 = vmatpush.bf16.msra.mxu0 %v5781
    %6571 = vmatmul.bf16.gmra.mxu0 %v5101
    %v6572 = vpop.f32.mrf.mxu0
    %v6573 = vadd.f32 %v6484, %v6572
    %v6574 = vpop.f32.mrf.mxu0
    %v6575 = vadd.f32 %v6486, %v6574
    %6576 = vmatmul.bf16.gmra.mxu0 %v5105
    %v6577 = vpop.f32.mrf.mxu0
    %v6578 = vadd.f32 %v6489, %v6577
    %v6579 = vpop.f32.mrf.mxu0
    %v6580 = vadd.f32 %v6491, %v6579
    %6581 = vmatmul.bf16.gmra.mxu0 %v5109
    %v6582 = vpop.f32.mrf.mxu0
    %v6583 = vadd.f32 %v6494, %v6582
    %v6584 = vpop.f32.mrf.mxu0
    %v6585 = vadd.f32 %v6496, %v6584
    %6586 = vmatmul.bf16.gmra.mxu0 %v5113
    %v6587 = vpop.f32.mrf.mxu0
    %v6588 = vadd.f32 %v6499, %v6587
    %v6589 = vpop.f32.mrf.mxu0
    %v6590 = vadd.f32 %v6501, %v6589
    %6591 = vmatmul.bf16.gmra.mxu0 %v5117
    %v6592 = vpop.f32.mrf.mxu0
    %v6593 = vadd.f32 %v6504, %v6592
    %v6594 = vpop.f32.mrf.mxu0
    %v6595 = vadd.f32 %v6506, %v6594
    %6596 = vmatmul.bf16.gmra.mxu0 %v5121
    %v6597 = vpop.f32.mrf.mxu0
    %v6598 = vadd.f32 %v6509, %v6597
    %v6599 = vpop.f32.mrf.mxu0
    %v6600 = vadd.f32 %v6511, %v6599
    %6601 = vmatmul.bf16.gmra.mxu0 %v5125
    %v6602 = vpop.f32.mrf.mxu0
    %v6603 = vadd.f32 %v6514, %v6602
    %v6604 = vpop.f32.mrf.mxu0
    %v6605 = vadd.f32 %v6516, %v6604
    %6606 = vmatmul.bf16.gmra.mxu0 %v5129
    %v6607 = vpop.f32.mrf.mxu0
    %v6608 = vadd.f32 %v6519, %v6607
    %v6609 = vpop.f32.mrf.mxu0
    %v6610 = vadd.f32 %v6521, %v6609
    %6611 = vmatmul.bf16.gmra.mxu0 %v5133
    %v6612 = vpop.f32.mrf.mxu0
    %v6613 = vadd.f32 %v6524, %v6612
    %v6614 = vpop.f32.mrf.mxu0
    %v6615 = vadd.f32 %v6526, %v6614
    %6616 = vmatmul.bf16.gmra.mxu0 %v5137
    %v6617 = vpop.f32.mrf.mxu0
    %v6618 = vadd.f32 %v6529, %v6617
    %v6619 = vpop.f32.mrf.mxu0
    %v6620 = vadd.f32 %v6531, %v6619
    %6621 = vmatmul.bf16.gmra.mxu0 %v5141
    %v6622 = vpop.f32.mrf.mxu0
    %v6623 = vadd.f32 %v6534, %v6622
    %v6624 = vpop.f32.mrf.mxu0
    %v6625 = vadd.f32 %v6536, %v6624
    %6626 = vmatmul.bf16.gmra.mxu0 %v5145
    %v6627 = vpop.f32.mrf.mxu0
    %v6628 = vadd.f32 %v6539, %v6627
    %v6629 = vpop.f32.mrf.mxu0
    %v6630 = vadd.f32 %v6541, %v6629
    %6631 = vmatmul.bf16.gmra.mxu0 %v5149
    %v6632 = vpop.f32.mrf.mxu0
    %v6633 = vadd.f32 %v6544, %v6632
    %v6634 = vpop.f32.mrf.mxu0
    %v6635 = vadd.f32 %v6546, %v6634
    %6636 = vmatmul.bf16.gmra.mxu0 %v5153
    %v6637 = vpop.f32.mrf.mxu0
    %v6638 = vadd.f32 %v6549, %v6637
    %v6639 = vpop.f32.mrf.mxu0
    %v6640 = vadd.f32 %v6551, %v6639
    %6641 = vmatmul.bf16.gmra.mxu0 %v5157
    %v6642 = vpop.f32.mrf.mxu0
    %v6643 = vadd.f32 %v6554, %v6642
    %v6644 = vpop.f32.mrf.mxu0
    %v6645 = vadd.f32 %v6556, %v6644
    %6646 = vmatmul.bf16.gmra.mxu0 %v5161
    %v6647 = vpop.f32.mrf.mxu0
    %v6648 = vadd.f32 %v6559, %v6647
    %v6649 = vpop.f32.mrf.mxu0
    %v6650 = vadd.f32 %v6561, %v6649
    %6651 = vdwg.mxu0
    %6652 = vmatpush.bf16.msra.mxu0 %v5714
    %6653 = vmatpush.bf16.msra.mxu0 %v5710
    %6654 = vmatpush.bf16.msra.mxu0 %v5706
    %6655 = vmatpush.bf16.msra.mxu0 %v5702
    %6656 = vmatpush.bf16.msra.mxu0 %v5698
    %6657 = vmatpush.bf16.msra.mxu0 %v5694
    %6658 = vmatpush.bf16.msra.mxu0 %v5690
    %6659 = vmatpush.bf16.msra.mxu0 %v5686
    %6660 = vmatmul.bf16.gmra.mxu0 %v5098
    %v6661 = vpop.f32.mrf.mxu0
    %v6662 = vadd.f32 %v5294, %v6661
    %v6663 = vpop.f32.mrf.mxu0
    %v6664 = vadd.f32 %v5294, %v6663
    %6665 = vmatmul.bf16.gmra.mxu0 %v5102
    %v6666 = vpop.f32.mrf.mxu0
    %v6667 = vadd.f32 %v5294, %v6666
    %v6668 = vpop.f32.mrf.mxu0
    %v6669 = vadd.f32 %v5294, %v6668
    %6670 = vmatmul.bf16.gmra.mxu0 %v5106
    %v6671 = vpop.f32.mrf.mxu0
    %v6672 = vadd.f32 %v5294, %v6671
    %v6673 = vpop.f32.mrf.mxu0
    %v6674 = vadd.f32 %v5294, %v6673
    %6675 = vmatmul.bf16.gmra.mxu0 %v5110
    %v6676 = vpop.f32.mrf.mxu0
    %v6677 = vadd.f32 %v5294, %v6676
    %v6678 = vpop.f32.mrf.mxu0
    %v6679 = vadd.f32 %v5294, %v6678
    %6680 = vmatmul.bf16.gmra.mxu0 %v5114
    %v6681 = vpop.f32.mrf.mxu0
    %v6682 = vadd.f32 %v5294, %v6681
    %v6683 = vpop.f32.mrf.mxu0
    %v6684 = vadd.f32 %v5294, %v6683
    %6685 = vmatmul.bf16.gmra.mxu0 %v5118
    %v6686 = vpop.f32.mrf.mxu0
    %v6687 = vadd.f32 %v5294, %v6686
    %v6688 = vpop.f32.mrf.mxu0
    %v6689 = vadd.f32 %v5294, %v6688
    %6690 = vmatmul.bf16.gmra.mxu0 %v5122
    %v6691 = vpop.f32.mrf.mxu0
    %v6692 = vadd.f32 %v5294, %v6691
    %v6693 = vpop.f32.mrf.mxu0
    %v6694 = vadd.f32 %v5294, %v6693
    %6695 = vmatmul.bf16.gmra.mxu0 %v5126
    %v6696 = vpop.f32.mrf.mxu0
    %v6697 = vadd.f32 %v5294, %v6696
    %v6698 = vpop.f32.mrf.mxu0
    %v6699 = vadd.f32 %v5294, %v6698
    %6700 = vmatmul.bf16.gmra.mxu0 %v5130
    %v6701 = vpop.f32.mrf.mxu0
    %v6702 = vadd.f32 %v5294, %v6701
    %v6703 = vpop.f32.mrf.mxu0
    %v6704 = vadd.f32 %v5294, %v6703
    %6705 = vmatmul.bf16.gmra.mxu0 %v5134
    %v6706 = vpop.f32.mrf.mxu0
    %v6707 = vadd.f32 %v5294, %v6706
    %v6708 = vpop.f32.mrf.mxu0
    %v6709 = vadd.f32 %v5294, %v6708
    %6710 = vmatmul.bf16.gmra.mxu0 %v5138
    %v6711 = vpop.f32.mrf.mxu0
    %v6712 = vadd.f32 %v5294, %v6711
    %v6713 = vpop.f32.mrf.mxu0
    %v6714 = vadd.f32 %v5294, %v6713
    %6715 = vmatmul.bf16.gmra.mxu0 %v5142
    %v6716 = vpop.f32.mrf.mxu0
    %v6717 = vadd.f32 %v5294, %v6716
    %v6718 = vpop.f32.mrf.mxu0
    %v6719 = vadd.f32 %v5294, %v6718
    %6720 = vmatmul.bf16.gmra.mxu0 %v5146
    %v6721 = vpop.f32.mrf.mxu0
    %v6722 = vadd.f32 %v5294, %v6721
    %v6723 = vpop.f32.mrf.mxu0
    %v6724 = vadd.f32 %v5294, %v6723
    %6725 = vmatmul.bf16.gmra.mxu0 %v5150
    %v6726 = vpop.f32.mrf.mxu0
    %v6727 = vadd.f32 %v5294, %v6726
    %v6728 = vpop.f32.mrf.mxu0
    %v6729 = vadd.f32 %v5294, %v6728
    %6730 = vmatmul.bf16.gmra.mxu0 %v5154
    %v6731 = vpop.f32.mrf.mxu0
    %v6732 = vadd.f32 %v5294, %v6731
    %v6733 = vpop.f32.mrf.mxu0
    %v6734 = vadd.f32 %v5294, %v6733
    %6735 = vmatmul.bf16.gmra.mxu0 %v5158
    %v6736 = vpop.f32.mrf.mxu0
    %v6737 = vadd.f32 %v5294, %v6736
    %v6738 = vpop.f32.mrf.mxu0
    %v6739 = vadd.f32 %v5294, %v6738
    %6740 = vdwg.mxu0
    %6741 = vmatpush.bf16.msra.mxu0 %v5746
    %6742 = vmatpush.bf16.msra.mxu0 %v5742
    %6743 = vmatpush.bf16.msra.mxu0 %v5738
    %6744 = vmatpush.bf16.msra.mxu0 %v5734
    %6745 = vmatpush.bf16.msra.mxu0 %v5730
    %6746 = vmatpush.bf16.msra.mxu0 %v5726
    %6747 = vmatpush.bf16.msra.mxu0 %v5722
    %6748 = vmatpush.bf16.msra.mxu0 %v5718
    %6749 = vmatmul.bf16.gmra.mxu0 %v5099
    %v6750 = vpop.f32.mrf.mxu0
    %v6751 = vadd.f32 %v6662, %v6750
    %v6752 = vpop.f32.mrf.mxu0
    %v6753 = vadd.f32 %v6664, %v6752
    %6754 = vmatmul.bf16.gmra.mxu0 %v5103
    %v6755 = vpop.f32.mrf.mxu0
    %v6756 = vadd.f32 %v6667, %v6755
    %v6757 = vpop.f32.mrf.mxu0
    %v6758 = vadd.f32 %v6669, %v6757
    %6759 = vmatmul.bf16.gmra.mxu0 %v5107
    %v6760 = vpop.f32.mrf.mxu0
    %v6761 = vadd.f32 %v6672, %v6760
    %v6762 = vpop.f32.mrf.mxu0
    %v6763 = vadd.f32 %v6674, %v6762
    %6764 = vmatmul.bf16.gmra.mxu0 %v5111
    %v6765 = vpop.f32.mrf.mxu0
    %v6766 = vadd.f32 %v6677, %v6765
    %v6767 = vpop.f32.mrf.mxu0
    %v6768 = vadd.f32 %v6679, %v6767
    %6769 = vmatmul.bf16.gmra.mxu0 %v5115
    %v6770 = vpop.f32.mrf.mxu0
    %v6771 = vadd.f32 %v6682, %v6770
    %v6772 = vpop.f32.mrf.mxu0
    %v6773 = vadd.f32 %v6684, %v6772
    %6774 = vmatmul.bf16.gmra.mxu0 %v5119
    %v6775 = vpop.f32.mrf.mxu0
    %v6776 = vadd.f32 %v6687, %v6775
    %v6777 = vpop.f32.mrf.mxu0
    %v6778 = vadd.f32 %v6689, %v6777
    %6779 = vmatmul.bf16.gmra.mxu0 %v5123
    %v6780 = vpop.f32.mrf.mxu0
    %v6781 = vadd.f32 %v6692, %v6780
    %v6782 = vpop.f32.mrf.mxu0
    %v6783 = vadd.f32 %v6694, %v6782
    %6784 = vmatmul.bf16.gmra.mxu0 %v5127
    %v6785 = vpop.f32.mrf.mxu0
    %v6786 = vadd.f32 %v6697, %v6785
    %v6787 = vpop.f32.mrf.mxu0
    %v6788 = vadd.f32 %v6699, %v6787
    %6789 = vmatmul.bf16.gmra.mxu0 %v5131
    %v6790 = vpop.f32.mrf.mxu0
    %v6791 = vadd.f32 %v6702, %v6790
    %v6792 = vpop.f32.mrf.mxu0
    %v6793 = vadd.f32 %v6704, %v6792
    %6794 = vmatmul.bf16.gmra.mxu0 %v5135
    %v6795 = vpop.f32.mrf.mxu0
    %v6796 = vadd.f32 %v6707, %v6795
    %v6797 = vpop.f32.mrf.mxu0
    %v6798 = vadd.f32 %v6709, %v6797
    %6799 = vmatmul.bf16.gmra.mxu0 %v5139
    %v6800 = vpop.f32.mrf.mxu0
    %v6801 = vadd.f32 %v6712, %v6800
    %v6802 = vpop.f32.mrf.mxu0
    %v6803 = vadd.f32 %v6714, %v6802
    %6804 = vmatmul.bf16.gmra.mxu0 %v5143
    %v6805 = vpop.f32.mrf.mxu0
    %v6806 = vadd.f32 %v6717, %v6805
    %v6807 = vpop.f32.mrf.mxu0
    %v6808 = vadd.f32 %v6719, %v6807
    %6809 = vmatmul.bf16.gmra.mxu0 %v5147
    %v6810 = vpop.f32.mrf.mxu0
    %v6811 = vadd.f32 %v6722, %v6810
    %v6812 = vpop.f32.mrf.mxu0
    %v6813 = vadd.f32 %v6724, %v6812
    %6814 = vmatmul.bf16.gmra.mxu0 %v5151
    %v6815 = vpop.f32.mrf.mxu0
    %v6816 = vadd.f32 %v6727, %v6815
    %v6817 = vpop.f32.mrf.mxu0
    %v6818 = vadd.f32 %v6729, %v6817
    %6819 = vmatmul.bf16.gmra.mxu0 %v5155
    %v6820 = vpop.f32.mrf.mxu0
    %v6821 = vadd.f32 %v6732, %v6820
    %v6822 = vpop.f32.mrf.mxu0
    %v6823 = vadd.f32 %v6734, %v6822
    %6824 = vmatmul.bf16.gmra.mxu0 %v5159
    %v6825 = vpop.f32.mrf.mxu0
    %v6826 = vadd.f32 %v6737, %v6825
    %v6827 = vpop.f32.mrf.mxu0
    %v6828 = vadd.f32 %v6739, %v6827
    %6829 = vdwg.mxu0
    %6830 = vmatpush.bf16.msra.mxu0 %v5778
    %6831 = vmatpush.bf16.msra.mxu0 %v5774
    %6832 = vmatpush.bf16.msra.mxu0 %v5770
    %6833 = vmatpush.bf16.msra.mxu0 %v5766
    %6834 = vmatpush.bf16.msra.mxu0 %v5762
    %6835 = vmatpush.bf16.msra.mxu0 %v5758
    %6836 = vmatpush.bf16.msra.mxu0 %v5754
    %6837 = vmatpush.bf16.msra.mxu0 %v5750
    %6838 = vmatmul.bf16.gmra.mxu0 %v5100
    %v6839 = vpop.f32.mrf.mxu0
    %v6840 = vadd.f32 %v6751, %v6839
    %v6841 = vpop.f32.mrf.mxu0
    %v6842 = vadd.f32 %v6753, %v6841
    %6843 = vmatmul.bf16.gmra.mxu0 %v5104
    %v6844 = vpop.f32.mrf.mxu0
    %v6845 = vadd.f32 %v6756, %v6844
    %v6846 = vpop.f32.mrf.mxu0
    %v6847 = vadd.f32 %v6758, %v6846
    %6848 = vmatmul.bf16.gmra.mxu0 %v5108
    %v6849 = vpop.f32.mrf.mxu0
    %v6850 = vadd.f32 %v6761, %v6849
    %v6851 = vpop.f32.mrf.mxu0
    %v6852 = vadd.f32 %v6763, %v6851
    %6853 = vmatmul.bf16.gmra.mxu0 %v5112
    %v6854 = vpop.f32.mrf.mxu0
    %v6855 = vadd.f32 %v6766, %v6854
    %v6856 = vpop.f32.mrf.mxu0
    %v6857 = vadd.f32 %v6768, %v6856
    %6858 = vmatmul.bf16.gmra.mxu0 %v5116
    %v6859 = vpop.f32.mrf.mxu0
    %v6860 = vadd.f32 %v6771, %v6859
    %v6861 = vpop.f32.mrf.mxu0
    %v6862 = vadd.f32 %v6773, %v6861
    %6863 = vmatmul.bf16.gmra.mxu0 %v5120
    %v6864 = vpop.f32.mrf.mxu0
    %v6865 = vadd.f32 %v6776, %v6864
    %v6866 = vpop.f32.mrf.mxu0
    %v6867 = vadd.f32 %v6778, %v6866
    %6868 = vmatmul.bf16.gmra.mxu0 %v5124
    %v6869 = vpop.f32.mrf.mxu0
    %v6870 = vadd.f32 %v6781, %v6869
    %v6871 = vpop.f32.mrf.mxu0
    %v6872 = vadd.f32 %v6783, %v6871
    %6873 = vmatmul.bf16.gmra.mxu0 %v5128
    %v6874 = vpop.f32.mrf.mxu0
    %v6875 = vadd.f32 %v6786, %v6874
    %v6876 = vpop.f32.mrf.mxu0
    %v6877 = vadd.f32 %v6788, %v6876
    %6878 = vmatmul.bf16.gmra.mxu0 %v5132
    %v6879 = vpop.f32.mrf.mxu0
    %v6880 = vadd.f32 %v6791, %v6879
    %v6881 = vpop.f32.mrf.mxu0
    %v6882 = vadd.f32 %v6793, %v6881
    %6883 = vmatmul.bf16.gmra.mxu0 %v5136
    %v6884 = vpop.f32.mrf.mxu0
    %v6885 = vadd.f32 %v6796, %v6884
    %v6886 = vpop.f32.mrf.mxu0
    %v6887 = vadd.f32 %v6798, %v6886
    %6888 = vmatmul.bf16.gmra.mxu0 %v5140
    %v6889 = vpop.f32.mrf.mxu0
    %v6890 = vadd.f32 %v6801, %v6889
    %v6891 = vpop.f32.mrf.mxu0
    %v6892 = vadd.f32 %v6803, %v6891
    %6893 = vmatmul.bf16.gmra.mxu0 %v5144
    %v6894 = vpop.f32.mrf.mxu0
    %v6895 = vadd.f32 %v6806, %v6894
    %v6896 = vpop.f32.mrf.mxu0
    %v6897 = vadd.f32 %v6808, %v6896
    %6898 = vmatmul.bf16.gmra.mxu0 %v5148
    %v6899 = vpop.f32.mrf.mxu0
    %v6900 = vadd.f32 %v6811, %v6899
    %v6901 = vpop.f32.mrf.mxu0
    %v6902 = vadd.f32 %v6813, %v6901
    %6903 = vmatmul.bf16.gmra.mxu0 %v5152
    %v6904 = vpop.f32.mrf.mxu0
    %v6905 = vadd.f32 %v6816, %v6904
    %v6906 = vpop.f32.mrf.mxu0
    %v6907 = vadd.f32 %v6818, %v6906
    %6908 = vmatmul.bf16.gmra.mxu0 %v5156
    %v6909 = vpop.f32.mrf.mxu0
    %v6910 = vadd.f32 %v6821, %v6909
    %v6911 = vpop.f32.mrf.mxu0
    %v6912 = vadd.f32 %v6823, %v6911
    %6913 = vmatmul.bf16.gmra.mxu0 %v5160
    %v6914 = vpop.f32.mrf.mxu0
    %v6915 = vadd.f32 %v6826, %v6914
    %v6916 = vpop.f32.mrf.mxu0
    %v6917 = vadd.f32 %v6828, %v6916
    %6918 = vdwg.mxu0
    %6919 = vmatpush.bf16.msra.mxu0 %v5810
    %6920 = vmatpush.bf16.msra.mxu0 %v5806
    %6921 = vmatpush.bf16.msra.mxu0 %v5802
    %6922 = vmatpush.bf16.msra.mxu0 %v5798
    %6923 = vmatpush.bf16.msra.mxu0 %v5794
    %6924 = vmatpush.bf16.msra.mxu0 %v5790
    %6925 = vmatpush.bf16.msra.mxu0 %v5786
    %6926 = vmatpush.bf16.msra.mxu0 %v5782
    %6927 = vmatmul.bf16.gmra.mxu0 %v5101
    %v6928 = vpop.f32.mrf.mxu0
    %v6929 = vadd.f32 %v6840, %v6928
    %v6930 = vpop.f32.mrf.mxu0
    %v6931 = vadd.f32 %v6842, %v6930
    %6932 = vmatmul.bf16.gmra.mxu0 %v5105
    %v6933 = vpop.f32.mrf.mxu0
    %v6934 = vadd.f32 %v6845, %v6933
    %v6935 = vpop.f32.mrf.mxu0
    %v6936 = vadd.f32 %v6847, %v6935
    %6937 = vmatmul.bf16.gmra.mxu0 %v5109
    %v6938 = vpop.f32.mrf.mxu0
    %v6939 = vadd.f32 %v6850, %v6938
    %v6940 = vpop.f32.mrf.mxu0
    %v6941 = vadd.f32 %v6852, %v6940
    %6942 = vmatmul.bf16.gmra.mxu0 %v5113
    %v6943 = vpop.f32.mrf.mxu0
    %v6944 = vadd.f32 %v6855, %v6943
    %v6945 = vpop.f32.mrf.mxu0
    %v6946 = vadd.f32 %v6857, %v6945
    %6947 = vmatmul.bf16.gmra.mxu0 %v5117
    %v6948 = vpop.f32.mrf.mxu0
    %v6949 = vadd.f32 %v6860, %v6948
    %v6950 = vpop.f32.mrf.mxu0
    %v6951 = vadd.f32 %v6862, %v6950
    %6952 = vmatmul.bf16.gmra.mxu0 %v5121
    %v6953 = vpop.f32.mrf.mxu0
    %v6954 = vadd.f32 %v6865, %v6953
    %v6955 = vpop.f32.mrf.mxu0
    %v6956 = vadd.f32 %v6867, %v6955
    %6957 = vmatmul.bf16.gmra.mxu0 %v5125
    %v6958 = vpop.f32.mrf.mxu0
    %v6959 = vadd.f32 %v6870, %v6958
    %v6960 = vpop.f32.mrf.mxu0
    %v6961 = vadd.f32 %v6872, %v6960
    %6962 = vmatmul.bf16.gmra.mxu0 %v5129
    %v6963 = vpop.f32.mrf.mxu0
    %v6964 = vadd.f32 %v6875, %v6963
    %v6965 = vpop.f32.mrf.mxu0
    %v6966 = vadd.f32 %v6877, %v6965
    %6967 = vmatmul.bf16.gmra.mxu0 %v5133
    %v6968 = vpop.f32.mrf.mxu0
    %v6969 = vadd.f32 %v6880, %v6968
    %v6970 = vpop.f32.mrf.mxu0
    %v6971 = vadd.f32 %v6882, %v6970
    %6972 = vmatmul.bf16.gmra.mxu0 %v5137
    %v6973 = vpop.f32.mrf.mxu0
    %v6974 = vadd.f32 %v6885, %v6973
    %v6975 = vpop.f32.mrf.mxu0
    %v6976 = vadd.f32 %v6887, %v6975
    %6977 = vmatmul.bf16.gmra.mxu0 %v5141
    %v6978 = vpop.f32.mrf.mxu0
    %v6979 = vadd.f32 %v6890, %v6978
    %v6980 = vpop.f32.mrf.mxu0
    %v6981 = vadd.f32 %v6892, %v6980
    %6982 = vmatmul.bf16.gmra.mxu0 %v5145
    %v6983 = vpop.f32.mrf.mxu0
    %v6984 = vadd.f32 %v6895, %v6983
    %v6985 = vpop.f32.mrf.mxu0
    %v6986 = vadd.f32 %v6897, %v6985
    %6987 = vmatmul.bf16.gmra.mxu0 %v5149
    %v6988 = vpop.f32.mrf.mxu0
    %v6989 = vadd.f32 %v6900, %v6988
    %v6990 = vpop.f32.mrf.mxu0
    %v6991 = vadd.f32 %v6902, %v6990
    %6992 = vmatmul.bf16.gmra.mxu0 %v5153
    %v6993 = vpop.f32.mrf.mxu0
    %v6994 = vadd.f32 %v6905, %v6993
    %v6995 = vpop.f32.mrf.mxu0
    %v6996 = vadd.f32 %v6907, %v6995
    %6997 = vmatmul.bf16.gmra.mxu0 %v5157
    %v6998 = vpop.f32.mrf.mxu0
    %v6999 = vadd.f32 %v6910, %v6998
    %v7000 = vpop.f32.mrf.mxu0
    %v7001 = vadd.f32 %v6912, %v7000
    %7002 = vmatmul.bf16.gmra.mxu0 %v5161
    %v7003 = vpop.f32.mrf.mxu0
    %v7004 = vadd.f32 %v6915, %v7003
    %v7005 = vpop.f32.mrf.mxu0
    %v7006 = vadd.f32 %v6917, %v7005
    %7007 = vdwg.mxu0
    %7008 = vmatpush.bf16.msra.mxu0 %v5715
    %7009 = vmatpush.bf16.msra.mxu0 %v5711
    %7010 = vmatpush.bf16.msra.mxu0 %v5707
    %7011 = vmatpush.bf16.msra.mxu0 %v5703
    %7012 = vmatpush.bf16.msra.mxu0 %v5699
    %7013 = vmatpush.bf16.msra.mxu0 %v5695
    %7014 = vmatpush.bf16.msra.mxu0 %v5691
    %7015 = vmatpush.bf16.msra.mxu0 %v5687
    %7016 = vmatmul.bf16.gmra.mxu0 %v5098
    %v7017 = vpop.f32.mrf.mxu0
    %v7018 = vadd.f32 %v5295, %v7017
    %v7019 = vpop.f32.mrf.mxu0
    %v7020 = vadd.f32 %v5295, %v7019
    %7021 = vmatmul.bf16.gmra.mxu0 %v5102
    %v7022 = vpop.f32.mrf.mxu0
    %v7023 = vadd.f32 %v5295, %v7022
    %v7024 = vpop.f32.mrf.mxu0
    %v7025 = vadd.f32 %v5295, %v7024
    %7026 = vmatmul.bf16.gmra.mxu0 %v5106
    %v7027 = vpop.f32.mrf.mxu0
    %v7028 = vadd.f32 %v5295, %v7027
    %v7029 = vpop.f32.mrf.mxu0
    %v7030 = vadd.f32 %v5295, %v7029
    %7031 = vmatmul.bf16.gmra.mxu0 %v5110
    %v7032 = vpop.f32.mrf.mxu0
    %v7033 = vadd.f32 %v5295, %v7032
    %v7034 = vpop.f32.mrf.mxu0
    %v7035 = vadd.f32 %v5295, %v7034
    %7036 = vmatmul.bf16.gmra.mxu0 %v5114
    %v7037 = vpop.f32.mrf.mxu0
    %v7038 = vadd.f32 %v5295, %v7037
    %v7039 = vpop.f32.mrf.mxu0
    %v7040 = vadd.f32 %v5295, %v7039
    %7041 = vmatmul.bf16.gmra.mxu0 %v5118
    %v7042 = vpop.f32.mrf.mxu0
    %v7043 = vadd.f32 %v5295, %v7042
    %v7044 = vpop.f32.mrf.mxu0
    %v7045 = vadd.f32 %v5295, %v7044
    %7046 = vmatmul.bf16.gmra.mxu0 %v5122
    %v7047 = vpop.f32.mrf.mxu0
    %v7048 = vadd.f32 %v5295, %v7047
    %v7049 = vpop.f32.mrf.mxu0
    %v7050 = vadd.f32 %v5295, %v7049
    %7051 = vmatmul.bf16.gmra.mxu0 %v5126
    %v7052 = vpop.f32.mrf.mxu0
    %v7053 = vadd.f32 %v5295, %v7052
    %v7054 = vpop.f32.mrf.mxu0
    %v7055 = vadd.f32 %v5295, %v7054
    %7056 = vmatmul.bf16.gmra.mxu0 %v5130
    %v7057 = vpop.f32.mrf.mxu0
    %v7058 = vadd.f32 %v5295, %v7057
    %v7059 = vpop.f32.mrf.mxu0
    %v7060 = vadd.f32 %v5295, %v7059
    %7061 = vmatmul.bf16.gmra.mxu0 %v5134
    %v7062 = vpop.f32.mrf.mxu0
    %v7063 = vadd.f32 %v5295, %v7062
    %v7064 = vpop.f32.mrf.mxu0
    %v7065 = vadd.f32 %v5295, %v7064
    %7066 = vmatmul.bf16.gmra.mxu0 %v5138
    %v7067 = vpop.f32.mrf.mxu0
    %v7068 = vadd.f32 %v5295, %v7067
    %v7069 = vpop.f32.mrf.mxu0
    %v7070 = vadd.f32 %v5295, %v7069
    %7071 = vmatmul.bf16.gmra.mxu0 %v5142
    %v7072 = vpop.f32.mrf.mxu0
    %v7073 = vadd.f32 %v5295, %v7072
    %v7074 = vpop.f32.mrf.mxu0
    %v7075 = vadd.f32 %v5295, %v7074
    %7076 = vmatmul.bf16.gmra.mxu0 %v5146
    %v7077 = vpop.f32.mrf.mxu0
    %v7078 = vadd.f32 %v5295, %v7077
    %v7079 = vpop.f32.mrf.mxu0
    %v7080 = vadd.f32 %v5295, %v7079
    %7081 = vmatmul.bf16.gmra.mxu0 %v5150
    %v7082 = vpop.f32.mrf.mxu0
    %v7083 = vadd.f32 %v5295, %v7082
    %v7084 = vpop.f32.mrf.mxu0
    %v7085 = vadd.f32 %v5295, %v7084
    %7086 = vmatmul.bf16.gmra.mxu0 %v5154
    %v7087 = vpop.f32.mrf.mxu0
    %v7088 = vadd.f32 %v5295, %v7087
    %v7089 = vpop.f32.mrf.mxu0
    %v7090 = vadd.f32 %v5295, %v7089
    %7091 = vmatmul.bf16.gmra.mxu0 %v5158
    %v7092 = vpop.f32.mrf.mxu0
    %v7093 = vadd.f32 %v5295, %v7092
    %v7094 = vpop.f32.mrf.mxu0
    %v7095 = vadd.f32 %v5295, %v7094
    %7096 = vdwg.mxu0
    %7097 = vmatpush.bf16.msra.mxu0 %v5747
    %7098 = vmatpush.bf16.msra.mxu0 %v5743
    %7099 = vmatpush.bf16.msra.mxu0 %v5739
    %7100 = vmatpush.bf16.msra.mxu0 %v5735
    %7101 = vmatpush.bf16.msra.mxu0 %v5731
    %7102 = vmatpush.bf16.msra.mxu0 %v5727
    %7103 = vmatpush.bf16.msra.mxu0 %v5723
    %7104 = vmatpush.bf16.msra.mxu0 %v5719
    %7105 = vmatmul.bf16.gmra.mxu0 %v5099
    %v7106 = vpop.f32.mrf.mxu0
    %v7107 = vadd.f32 %v7018, %v7106
    %v7108 = vpop.f32.mrf.mxu0
    %v7109 = vadd.f32 %v7020, %v7108
    %7110 = vmatmul.bf16.gmra.mxu0 %v5103
    %v7111 = vpop.f32.mrf.mxu0
    %v7112 = vadd.f32 %v7023, %v7111
    %v7113 = vpop.f32.mrf.mxu0
    %v7114 = vadd.f32 %v7025, %v7113
    %7115 = vmatmul.bf16.gmra.mxu0 %v5107
    %v7116 = vpop.f32.mrf.mxu0
    %v7117 = vadd.f32 %v7028, %v7116
    %v7118 = vpop.f32.mrf.mxu0
    %v7119 = vadd.f32 %v7030, %v7118
    %7120 = vmatmul.bf16.gmra.mxu0 %v5111
    %v7121 = vpop.f32.mrf.mxu0
    %v7122 = vadd.f32 %v7033, %v7121
    %v7123 = vpop.f32.mrf.mxu0
    %v7124 = vadd.f32 %v7035, %v7123
    %7125 = vmatmul.bf16.gmra.mxu0 %v5115
    %v7126 = vpop.f32.mrf.mxu0
    %v7127 = vadd.f32 %v7038, %v7126
    %v7128 = vpop.f32.mrf.mxu0
    %v7129 = vadd.f32 %v7040, %v7128
    %7130 = vmatmul.bf16.gmra.mxu0 %v5119
    %v7131 = vpop.f32.mrf.mxu0
    %v7132 = vadd.f32 %v7043, %v7131
    %v7133 = vpop.f32.mrf.mxu0
    %v7134 = vadd.f32 %v7045, %v7133
    %7135 = vmatmul.bf16.gmra.mxu0 %v5123
    %v7136 = vpop.f32.mrf.mxu0
    %v7137 = vadd.f32 %v7048, %v7136
    %v7138 = vpop.f32.mrf.mxu0
    %v7139 = vadd.f32 %v7050, %v7138
    %7140 = vmatmul.bf16.gmra.mxu0 %v5127
    %v7141 = vpop.f32.mrf.mxu0
    %v7142 = vadd.f32 %v7053, %v7141
    %v7143 = vpop.f32.mrf.mxu0
    %v7144 = vadd.f32 %v7055, %v7143
    %7145 = vmatmul.bf16.gmra.mxu0 %v5131
    %v7146 = vpop.f32.mrf.mxu0
    %v7147 = vadd.f32 %v7058, %v7146
    %v7148 = vpop.f32.mrf.mxu0
    %v7149 = vadd.f32 %v7060, %v7148
    %7150 = vmatmul.bf16.gmra.mxu0 %v5135
    %v7151 = vpop.f32.mrf.mxu0
    %v7152 = vadd.f32 %v7063, %v7151
    %v7153 = vpop.f32.mrf.mxu0
    %v7154 = vadd.f32 %v7065, %v7153
    %7155 = vmatmul.bf16.gmra.mxu0 %v5139
    %v7156 = vpop.f32.mrf.mxu0
    %v7157 = vadd.f32 %v7068, %v7156
    %v7158 = vpop.f32.mrf.mxu0
    %v7159 = vadd.f32 %v7070, %v7158
    %7160 = vmatmul.bf16.gmra.mxu0 %v5143
    %v7161 = vpop.f32.mrf.mxu0
    %v7162 = vadd.f32 %v7073, %v7161
    %v7163 = vpop.f32.mrf.mxu0
    %v7164 = vadd.f32 %v7075, %v7163
    %7165 = vmatmul.bf16.gmra.mxu0 %v5147
    %v7166 = vpop.f32.mrf.mxu0
    %v7167 = vadd.f32 %v7078, %v7166
    %v7168 = vpop.f32.mrf.mxu0
    %v7169 = vadd.f32 %v7080, %v7168
    %7170 = vmatmul.bf16.gmra.mxu0 %v5151
    %v7171 = vpop.f32.mrf.mxu0
    %v7172 = vadd.f32 %v7083, %v7171
    %v7173 = vpop.f32.mrf.mxu0
    %v7174 = vadd.f32 %v7085, %v7173
    %7175 = vmatmul.bf16.gmra.mxu0 %v5155
    %v7176 = vpop.f32.mrf.mxu0
    %v7177 = vadd.f32 %v7088, %v7176
    %v7178 = vpop.f32.mrf.mxu0
    %v7179 = vadd.f32 %v7090, %v7178
    %7180 = vmatmul.bf16.gmra.mxu0 %v5159
    %v7181 = vpop.f32.mrf.mxu0
    %v7182 = vadd.f32 %v7093, %v7181
    %v7183 = vpop.f32.mrf.mxu0
    %v7184 = vadd.f32 %v7095, %v7183
    %7185 = vdwg.mxu0
    %7186 = vmatpush.bf16.msra.mxu0 %v5779
    %7187 = vmatpush.bf16.msra.mxu0 %v5775
    %7188 = vmatpush.bf16.msra.mxu0 %v5771
    %7189 = vmatpush.bf16.msra.mxu0 %v5767
    %7190 = vmatpush.bf16.msra.mxu0 %v5763
    %7191 = vmatpush.bf16.msra.mxu0 %v5759
    %7192 = vmatpush.bf16.msra.mxu0 %v5755
    %7193 = vmatpush.bf16.msra.mxu0 %v5751
    %7194 = vmatmul.bf16.gmra.mxu0 %v5100
    %v7195 = vpop.f32.mrf.mxu0
    %v7196 = vadd.f32 %v7107, %v7195
    %v7197 = vpop.f32.mrf.mxu0
    %v7198 = vadd.f32 %v7109, %v7197
    %7199 = vmatmul.bf16.gmra.mxu0 %v5104
    %v7200 = vpop.f32.mrf.mxu0
    %v7201 = vadd.f32 %v7112, %v7200
    %v7202 = vpop.f32.mrf.mxu0
    %v7203 = vadd.f32 %v7114, %v7202
    %7204 = vmatmul.bf16.gmra.mxu0 %v5108
    %v7205 = vpop.f32.mrf.mxu0
    %v7206 = vadd.f32 %v7117, %v7205
    %v7207 = vpop.f32.mrf.mxu0
    %v7208 = vadd.f32 %v7119, %v7207
    %7209 = vmatmul.bf16.gmra.mxu0 %v5112
    %v7210 = vpop.f32.mrf.mxu0
    %v7211 = vadd.f32 %v7122, %v7210
    %v7212 = vpop.f32.mrf.mxu0
    %v7213 = vadd.f32 %v7124, %v7212
    %7214 = vmatmul.bf16.gmra.mxu0 %v5116
    %v7215 = vpop.f32.mrf.mxu0
    %v7216 = vadd.f32 %v7127, %v7215
    %v7217 = vpop.f32.mrf.mxu0
    %v7218 = vadd.f32 %v7129, %v7217
    %7219 = vmatmul.bf16.gmra.mxu0 %v5120
    %v7220 = vpop.f32.mrf.mxu0
    %v7221 = vadd.f32 %v7132, %v7220
    %v7222 = vpop.f32.mrf.mxu0
    %v7223 = vadd.f32 %v7134, %v7222
    %7224 = vmatmul.bf16.gmra.mxu0 %v5124
    %v7225 = vpop.f32.mrf.mxu0
    %v7226 = vadd.f32 %v7137, %v7225
    %v7227 = vpop.f32.mrf.mxu0
    %v7228 = vadd.f32 %v7139, %v7227
    %7229 = vmatmul.bf16.gmra.mxu0 %v5128
    %v7230 = vpop.f32.mrf.mxu0
    %v7231 = vadd.f32 %v7142, %v7230
    %v7232 = vpop.f32.mrf.mxu0
    %v7233 = vadd.f32 %v7144, %v7232
    %7234 = vmatmul.bf16.gmra.mxu0 %v5132
    %v7235 = vpop.f32.mrf.mxu0
    %v7236 = vadd.f32 %v7147, %v7235
    %v7237 = vpop.f32.mrf.mxu0
    %v7238 = vadd.f32 %v7149, %v7237
    %7239 = vmatmul.bf16.gmra.mxu0 %v5136
    %v7240 = vpop.f32.mrf.mxu0
    %v7241 = vadd.f32 %v7152, %v7240
    %v7242 = vpop.f32.mrf.mxu0
    %v7243 = vadd.f32 %v7154, %v7242
    %7244 = vmatmul.bf16.gmra.mxu0 %v5140
    %v7245 = vpop.f32.mrf.mxu0
    %v7246 = vadd.f32 %v7157, %v7245
    %v7247 = vpop.f32.mrf.mxu0
    %v7248 = vadd.f32 %v7159, %v7247
    %7249 = vmatmul.bf16.gmra.mxu0 %v5144
    %v7250 = vpop.f32.mrf.mxu0
    %v7251 = vadd.f32 %v7162, %v7250
    %v7252 = vpop.f32.mrf.mxu0
    %v7253 = vadd.f32 %v7164, %v7252
    %7254 = vmatmul.bf16.gmra.mxu0 %v5148
    %v7255 = vpop.f32.mrf.mxu0
    %v7256 = vadd.f32 %v7167, %v7255
    %v7257 = vpop.f32.mrf.mxu0
    %v7258 = vadd.f32 %v7169, %v7257
    %7259 = vmatmul.bf16.gmra.mxu0 %v5152
    %v7260 = vpop.f32.mrf.mxu0
    %v7261 = vadd.f32 %v7172, %v7260
    %v7262 = vpop.f32.mrf.mxu0
    %v7263 = vadd.f32 %v7174, %v7262
    %7264 = vmatmul.bf16.gmra.mxu0 %v5156
    %v7265 = vpop.f32.mrf.mxu0
    %v7266 = vadd.f32 %v7177, %v7265
    %v7267 = vpop.f32.mrf.mxu0
    %v7268 = vadd.f32 %v7179, %v7267
    %7269 = vmatmul.bf16.gmra.mxu0 %v5160
    %v7270 = vpop.f32.mrf.mxu0
    %v7271 = vadd.f32 %v7182, %v7270
    %v7272 = vpop.f32.mrf.mxu0
    %v7273 = vadd.f32 %v7184, %v7272
    %7274 = vdwg.mxu0
    %7275 = vmatpush.bf16.msra.mxu0 %v5811
    %7276 = vmatpush.bf16.msra.mxu0 %v5807
    %7277 = vmatpush.bf16.msra.mxu0 %v5803
    %7278 = vmatpush.bf16.msra.mxu0 %v5799
    %7279 = vmatpush.bf16.msra.mxu0 %v5795
    %7280 = vmatpush.bf16.msra.mxu0 %v5791
    %7281 = vmatpush.bf16.msra.mxu0 %v5787
    %7282 = vmatpush.bf16.msra.mxu0 %v5783
    %7283 = vmatmul.bf16.gmra.mxu0 %v5101
    %v7284 = vpop.f32.mrf.mxu0
    %v7285 = vadd.f32 %v7196, %v7284
    %v7286 = vpop.f32.mrf.mxu0
    %v7287 = vadd.f32 %v7198, %v7286
    %7288 = vmatmul.bf16.gmra.mxu0 %v5105
    %v7289 = vpop.f32.mrf.mxu0
    %v7290 = vadd.f32 %v7201, %v7289
    %v7291 = vpop.f32.mrf.mxu0
    %v7292 = vadd.f32 %v7203, %v7291
    %7293 = vmatmul.bf16.gmra.mxu0 %v5109
    %v7294 = vpop.f32.mrf.mxu0
    %v7295 = vadd.f32 %v7206, %v7294
    %v7296 = vpop.f32.mrf.mxu0
    %v7297 = vadd.f32 %v7208, %v7296
    %7298 = vmatmul.bf16.gmra.mxu0 %v5113
    %v7299 = vpop.f32.mrf.mxu0
    %v7300 = vadd.f32 %v7211, %v7299
    %v7301 = vpop.f32.mrf.mxu0
    %v7302 = vadd.f32 %v7213, %v7301
    %7303 = vmatmul.bf16.gmra.mxu0 %v5117
    %v7304 = vpop.f32.mrf.mxu0
    %v7305 = vadd.f32 %v7216, %v7304
    %v7306 = vpop.f32.mrf.mxu0
    %v7307 = vadd.f32 %v7218, %v7306
    %7308 = vmatmul.bf16.gmra.mxu0 %v5121
    %v7309 = vpop.f32.mrf.mxu0
    %v7310 = vadd.f32 %v7221, %v7309
    %v7311 = vpop.f32.mrf.mxu0
    %v7312 = vadd.f32 %v7223, %v7311
    %7313 = vmatmul.bf16.gmra.mxu0 %v5125
    %v7314 = vpop.f32.mrf.mxu0
    %v7315 = vadd.f32 %v7226, %v7314
    %v7316 = vpop.f32.mrf.mxu0
    %v7317 = vadd.f32 %v7228, %v7316
    %7318 = vmatmul.bf16.gmra.mxu0 %v5129
    %v7319 = vpop.f32.mrf.mxu0
    %v7320 = vadd.f32 %v7231, %v7319
    %v7321 = vpop.f32.mrf.mxu0
    %v7322 = vadd.f32 %v7233, %v7321
    %7323 = vmatmul.bf16.gmra.mxu0 %v5133
    %v7324 = vpop.f32.mrf.mxu0
    %v7325 = vadd.f32 %v7236, %v7324
    %v7326 = vpop.f32.mrf.mxu0
    %v7327 = vadd.f32 %v7238, %v7326
    %7328 = vmatmul.bf16.gmra.mxu0 %v5137
    %v7329 = vpop.f32.mrf.mxu0
    %v7330 = vadd.f32 %v7241, %v7329
    %v7331 = vpop.f32.mrf.mxu0
    %v7332 = vadd.f32 %v7243, %v7331
    %7333 = vmatmul.bf16.gmra.mxu0 %v5141
    %v7334 = vpop.f32.mrf.mxu0
    %v7335 = vadd.f32 %v7246, %v7334
    %v7336 = vpop.f32.mrf.mxu0
    %v7337 = vadd.f32 %v7248, %v7336
    %7338 = vmatmul.bf16.gmra.mxu0 %v5145
    %v7339 = vpop.f32.mrf.mxu0
    %v7340 = vadd.f32 %v7251, %v7339
    %v7341 = vpop.f32.mrf.mxu0
    %v7342 = vadd.f32 %v7253, %v7341
    %7343 = vmatmul.bf16.gmra.mxu0 %v5149
    %v7344 = vpop.f32.mrf.mxu0
    %v7345 = vadd.f32 %v7256, %v7344
    %v7346 = vpop.f32.mrf.mxu0
    %v7347 = vadd.f32 %v7258, %v7346
    %7348 = vmatmul.bf16.gmra.mxu0 %v5153
    %v7349 = vpop.f32.mrf.mxu0
    %v7350 = vadd.f32 %v7261, %v7349
    %v7351 = vpop.f32.mrf.mxu0
    %v7352 = vadd.f32 %v7263, %v7351
    %7353 = vmatmul.bf16.gmra.mxu0 %v5157
    %v7354 = vpop.f32.mrf.mxu0
    %v7355 = vadd.f32 %v7266, %v7354
    %v7356 = vpop.f32.mrf.mxu0
    %v7357 = vadd.f32 %v7268, %v7356
    %7358 = vmatmul.bf16.gmra.mxu0 %v5161
    %v7359 = vpop.f32.mrf.mxu0
    %v7360 = vadd.f32 %v7271, %v7359
    %v7361 = vpop.f32.mrf.mxu0
    %v7362 = vadd.f32 %v7273, %v7361
    %7363 = vdwg.mxu0
    %7364 = vst [vmem:[#allocation19] sm:$0xff] %v6217
    %7365 = vst [vmem:[#allocation19 + $0x8] sm:$0xff] %v6573
    %7366 = vst [vmem:[#allocation19 + $0x10] sm:$0xff] %v6929
    %7367 = vst [vmem:[#allocation19 + $0x18] sm:$0xff] %v7285
    %7368 = vst [vmem:[#allocation19 + $0x20] sm:$0xff] %v6219
    %7369 = vst [vmem:[#allocation19 + $0x28] sm:$0xff] %v6575
    %7370 = vst [vmem:[#allocation19 + $0x30] sm:$0xff] %v6931
    %7371 = vst [vmem:[#allocation19 + $0x38] sm:$0xff] %v7287
    %7372 = vst [vmem:[#allocation19 + $0x40] sm:$0xff] %v6222
    %7373 = vst [vmem:[#allocation19 + $0x48] sm:$0xff] %v6578
    %7374 = vst [vmem:[#allocation19 + $0x50] sm:$0xff] %v6934
    %7375 = vst [vmem:[#allocation19 + $0x58] sm:$0xff] %v7290
    %7376 = vst [vmem:[#allocation19 + $0x60] sm:$0xff] %v6224
    %7377 = vst [vmem:[#allocation19 + $0x68] sm:$0xff] %v6580
    %7378 = vst [vmem:[#allocation19 + $0x70] sm:$0xff] %v6936
    %7379 = vst [vmem:[#allocation19 + $0x78] sm:$0xff] %v7292
    %7380 = vst [vmem:[#allocation19 + $0x80] sm:$0xff] %v6227
    %7381 = vst [vmem:[#allocation19 + $0x88] sm:$0xff] %v6583
    %7382 = vst [vmem:[#allocation19 + $0x90] sm:$0xff] %v6939
    %7383 = vst [vmem:[#allocation19 + $0x98] sm:$0xff] %v7295
    %7384 = vst [vmem:[#allocation19 + $0xa0] sm:$0xff] %v6229
    %7385 = vst [vmem:[#allocation19 + $0xa8] sm:$0xff] %v6585
    %7386 = vst [vmem:[#allocation19 + $0xb0] sm:$0xff] %v6941
    %7387 = vst [vmem:[#allocation19 + $0xb8] sm:$0xff] %v7297
    %7388 = vst [vmem:[#allocation19 + $0xc0] sm:$0xff] %v6232
    %7389 = vst [vmem:[#allocation19 + $0xc8] sm:$0xff] %v6588
    %7390 = vst [vmem:[#allocation19 + $0xd0] sm:$0xff] %v6944
    %7391 = vst [vmem:[#allocation19 + $0xd8] sm:$0xff] %v7300
    %7392 = vst [vmem:[#allocation19 + $0xe0] sm:$0xff] %v6234
    %7393 = vst [vmem:[#allocation19 + $0xe8] sm:$0xff] %v6590
    %7394 = vst [vmem:[#allocation19 + $0xf0] sm:$0xff] %v6946
    %7395 = vst [vmem:[#allocation19 + $0xf8] sm:$0xff] %v7302
    %7396 = vst [vmem:[#allocation19 + $0x100] sm:$0xff] %v6237
    %7397 = vst [vmem:[#allocation19 + $0x108] sm:$0xff] %v6593
    %7398 = vst [vmem:[#allocation19 + $0x110] sm:$0xff] %v6949
    %7399 = vst [vmem:[#allocation19 + $0x118] sm:$0xff] %v7305
    %7400 = vst [vmem:[#allocation19 + $0x120] sm:$0xff] %v6239
    %7401 = vst [vmem:[#allocation19 + $0x128] sm:$0xff] %v6595
    %7402 = vst [vmem:[#allocation19 + $0x130] sm:$0xff] %v6951
    %7403 = vst [vmem:[#allocation19 + $0x138] sm:$0xff] %v7307
    %7404 = vst [vmem:[#allocation19 + $0x140] sm:$0xff] %v6242
    %7405 = vst [vmem:[#allocation19 + $0x148] sm:$0xff] %v6598
    %7406 = vst [vmem:[#allocation19 + $0x150] sm:$0xff] %v6954
    %7407 = vst [vmem:[#allocation19 + $0x158] sm:$0xff] %v7310
    %7408 = vst [vmem:[#allocation19 + $0x160] sm:$0xff] %v6244
    %7409 = vst [vmem:[#allocation19 + $0x168] sm:$0xff] %v6600
    %7410 = vst [vmem:[#allocation19 + $0x170] sm:$0xff] %v6956
    %7411 = vst [vmem:[#allocation19 + $0x178] sm:$0xff] %v7312
    %7412 = vst [vmem:[#allocation19 + $0x180] sm:$0xff] %v6247
    %7413 = vst [vmem:[#allocation19 + $0x188] sm:$0xff] %v6603
    %7414 = vst [vmem:[#allocation19 + $0x190] sm:$0xff] %v6959
    %7415 = vst [vmem:[#allocation19 + $0x198] sm:$0xff] %v7315
    %7416 = vst [vmem:[#allocation19 + $0x1a0] sm:$0xff] %v6249
    %7417 = vst [vmem:[#allocation19 + $0x1a8] sm:$0xff] %v6605
    %7418 = vst [vmem:[#allocation19 + $0x1b0] sm:$0xff] %v6961
    %7419 = vst [vmem:[#allocation19 + $0x1b8] sm:$0xff] %v7317
    %7420 = vst [vmem:[#allocation19 + $0x1c0] sm:$0xff] %v6252
    %7421 = vst [vmem:[#allocation19 + $0x1c8] sm:$0xff] %v6608
    %7422 = vst [vmem:[#allocation19 + $0x1d0] sm:$0xff] %v6964
    %7423 = vst [vmem:[#allocation19 + $0x1d8] sm:$0xff] %v7320
    %7424 = vst [vmem:[#allocation19 + $0x1e0] sm:$0xff] %v6254
    %7425 = vst [vmem:[#allocation19 + $0x1e8] sm:$0xff] %v6610
    %7426 = vst [vmem:[#allocation19 + $0x1f0] sm:$0xff] %v6966
    %7427 = vst [vmem:[#allocation19 + $0x1f8] sm:$0xff] %v7322
    %7428 = vst [vmem:[#allocation19 + $0x200] sm:$0xff] %v6257
    %7429 = vst [vmem:[#allocation19 + $0x208] sm:$0xff] %v6613
    %7430 = vst [vmem:[#allocation19 + $0x210] sm:$0xff] %v6969
    %7431 = vst [vmem:[#allocation19 + $0x218] sm:$0xff] %v7325
    %7432 = vst [vmem:[#allocation19 + $0x220] sm:$0xff] %v6259
    %7433 = vst [vmem:[#allocation19 + $0x228] sm:$0xff] %v6615
    %7434 = vst [vmem:[#allocation19 + $0x230] sm:$0xff] %v6971
    %7435 = vst [vmem:[#allocation19 + $0x238] sm:$0xff] %v7327
    %7436 = vst [vmem:[#allocation19 + $0x240] sm:$0xff] %v6262
    %7437 = vst [vmem:[#allocation19 + $0x248] sm:$0xff] %v6618
    %7438 = vst [vmem:[#allocation19 + $0x250] sm:$0xff] %v6974
    %7439 = vst [vmem:[#allocation19 + $0x258] sm:$0xff] %v7330
    %7440 = vst [vmem:[#allocation19 + $0x260] sm:$0xff] %v6264
    %7441 = vst [vmem:[#allocation19 + $0x268] sm:$0xff] %v6620
    %7442 = vst [vmem:[#allocation19 + $0x270] sm:$0xff] %v6976
    %7443 = vst [vmem:[#allocation19 + $0x278] sm:$0xff] %v7332
    %7444 = vst [vmem:[#allocation19 + $0x280] sm:$0xff] %v6267
    %7445 = vst [vmem:[#allocation19 + $0x288] sm:$0xff] %v6623
    %7446 = vst [vmem:[#allocation19 + $0x290] sm:$0xff] %v6979
    %7447 = vst [vmem:[#allocation19 + $0x298] sm:$0xff] %v7335
    %7448 = vst [vmem:[#allocation19 + $0x2a0] sm:$0xff] %v6269
    %7449 = vst [vmem:[#allocation19 + $0x2a8] sm:$0xff] %v6625
    %7450 = vst [vmem:[#allocation19 + $0x2b0] sm:$0xff] %v6981
    %7451 = vst [vmem:[#allocation19 + $0x2b8] sm:$0xff] %v7337
    %7452 = vst [vmem:[#allocation19 + $0x2c0] sm:$0xff] %v6272
    %7453 = vst [vmem:[#allocation19 + $0x2c8] sm:$0xff] %v6628
    %7454 = vst [vmem:[#allocation19 + $0x2d0] sm:$0xff] %v6984
    %7455 = vst [vmem:[#allocation19 + $0x2d8] sm:$0xff] %v7340
    %7456 = vst [vmem:[#allocation19 + $0x2e0] sm:$0xff] %v6274
    %7457 = vst [vmem:[#allocation19 + $0x2e8] sm:$0xff] %v6630
    %7458 = vst [vmem:[#allocation19 + $0x2f0] sm:$0xff] %v6986
    %7459 = vst [vmem:[#allocation19 + $0x2f8] sm:$0xff] %v7342
    %7460 = vst [vmem:[#allocation19 + $0x300] sm:$0xff] %v6277
    %7461 = vst [vmem:[#allocation19 + $0x308] sm:$0xff] %v6633
    %7462 = vst [vmem:[#allocation19 + $0x310] sm:$0xff] %v6989
    %7463 = vst [vmem:[#allocation19 + $0x318] sm:$0xff] %v7345
    %7464 = vst [vmem:[#allocation19 + $0x320] sm:$0xff] %v6279
    %7465 = vst [vmem:[#allocation19 + $0x328] sm:$0xff] %v6635
    %7466 = vst [vmem:[#allocation19 + $0x330] sm:$0xff] %v6991
    %7467 = vst [vmem:[#allocation19 + $0x338] sm:$0xff] %v7347
    %7468 = vst [vmem:[#allocation19 + $0x340] sm:$0xff] %v6282
    %7469 = vst [vmem:[#allocation19 + $0x348] sm:$0xff] %v6638
    %7470 = vst [vmem:[#allocation19 + $0x350] sm:$0xff] %v6994
    %7471 = vst [vmem:[#allocation19 + $0x358] sm:$0xff] %v7350
    %7472 = vst [vmem:[#allocation19 + $0x360] sm:$0xff] %v6284
    %7473 = vst [vmem:[#allocation19 + $0x368] sm:$0xff] %v6640
    %7474 = vst [vmem:[#allocation19 + $0x370] sm:$0xff] %v6996
    %7475 = vst [vmem:[#allocation19 + $0x378] sm:$0xff] %v7352
    %7476 = vst [vmem:[#allocation19 + $0x380] sm:$0xff] %v6287
    %7477 = vst [vmem:[#allocation19 + $0x388] sm:$0xff] %v6643
    %7478 = vst [vmem:[#allocation19 + $0x390] sm:$0xff] %v6999
    %7479 = vst [vmem:[#allocation19 + $0x398] sm:$0xff] %v7355
    %7480 = vst [vmem:[#allocation19 + $0x3a0] sm:$0xff] %v6289
    %7481 = vst [vmem:[#allocation19 + $0x3a8] sm:$0xff] %v6645
    %7482 = vst [vmem:[#allocation19 + $0x3b0] sm:$0xff] %v7001
    %7483 = vst [vmem:[#allocation19 + $0x3b8] sm:$0xff] %v7357
    %7484 = vst [vmem:[#allocation19 + $0x3c0] sm:$0xff] %v6292
    %7485 = vst [vmem:[#allocation19 + $0x3c8] sm:$0xff] %v6648
    %7486 = vst [vmem:[#allocation19 + $0x3d0] sm:$0xff] %v7004
    %7487 = vst [vmem:[#allocation19 + $0x3d8] sm:$0xff] %v7360
    %7488 = vst [vmem:[#allocation19 + $0x3e0] sm:$0xff] %v6294
    %7489 = vst [vmem:[#allocation19 + $0x3e8] sm:$0xff] %v6650
    %7490 = vst [vmem:[#allocation19 + $0x3f0] sm:$0xff] %v7006
    %7491 = vst [vmem:[#allocation19 + $0x3f8] sm:$0xff] %v7362
    // Predicated region
    $region86: #{projector_forward.1} parent=1 // pred_check
      _
    $region87: #{projector_forward.1} parent=1 // pred_check_branch
      %7493 = sbr.rel (0) target = $region89
    $region88: #{projector_forward.1} parent=1 // pred_region
      %7495 = vsyncadd [#allocation4], 0
      %s7496 = sshll.u32 [#allocation19], 4
      %s7497 = int_to_ptr.vmem [resolvable:$true] %s7496
      %s7498 = sshll.u32 %s11, 4
      %s7499 = int_to_ptr.hbm [resolvable:$true] %s7498
      %7504 = dma.vmem_to_hbm [thread:$0]  %s7497, 16384, %s7499, [#allocation4], 512, 512, 32
    $region89: #{projector_forward.1} parent=1 // pred_fallthru
      _
    // Predicated region
    $region90: #{projector_forward.1} parent=1 // pred_check
      _
    $region91: #{projector_forward.1} parent=1 // pred_check_branch
      %7506 = sbr.rel (0) target = $region93
    $region92: #{projector_forward.1} parent=1 // pred_region
      %7508 = dma.done [#allocation4], 16384
    $region93: #{projector_forward.1} parent=1 // pred_fallthru
      _
    %7509 = vsyncpa [#allocation3], 1
    %7510 = vsyncpa [#allocation6], 1
    %7511 = vsyncpa [#allocation9], 1
    %7512 = vsyncpa [#allocation12], 1
    %7513 = vsyncpa [#allocation15], 1
    %7514 = vsyncpa [#allocation18], 1
    %7515 = vsyncpa [#allocation4], 1

</llo_original>
